<compile_context>
chip_gen: v7x
topology: tpu7x:2x2x1
jax: 0.10.0
libtpu: 0.0.40
codegen_flags: <defaults>
</compile_context>

<pallas_src>
import functools

import jax
import jax.numpy as jnp
import numpy as np
from jax.experimental import pallas as pl
from jax.experimental.pallas import tpu as pltpu

LANES = 128


def _round_up(x, m):
    return (x + m - 1) // m * m


def _pad_axis(a, target, axis):
    if a.shape[axis] == target:
        return a
    widths = [(0, 0)] * a.ndim
    widths[axis] = (0, target - a.shape[axis])
    return jnp.pad(a, widths)


# ----------------------- host-side constant matrices -----------------------

def _pool_pad_matrix(H, W, r, pad, dtype):
    """(Hp*Wp, H*W): flattened x -> flattened zero-padded AvgPool_{r,r}(x)."""
    Hi, Wi = H // r, W // r
    Hp, Wp = Hi + 2 * pad, Wi + 2 * pad
    m = np.zeros((Hp * Wp, H * W), np.float32)
    inv = 1.0 / float(r * r)
    for i in range(Hi):
        for j in range(Wi):
            row = (i + pad) * Wp + (j + pad)
            for a in range(r):
                for b in range(r):
                    m[row, (i * r + a) * W + (j * r + b)] = inv
    return jnp.asarray(m, dtype)


def _nearest_upsample_matrix(Hin, Win, Hout, Wout, dtype):
    """(Hout*Wout, Hin*Win) 0/1 matrix == F.interpolate(mode='nearest', size=(Hout, Wout))."""
    m = np.zeros((Hout * Wout, Hin * Win), np.float32)
    for h in range(Hout):
        sh = (h * Hin) // Hout
        for w in range(Wout):
            sw = (w * Win) // Wout
            m[h * Wout + w, sh * Win + sw] = 1.0
    return jnp.asarray(m, dtype)


# ------------------------------ in-kernel helpers ------------------------------

def _zero_pad_border(ref, pad, h, w):
    """Zero everything in `ref` outside the interior window [pad:pad+h, pad:pad+w, :].

    The interior is fully overwritten every grid step, so only the border needs a
    (small) memset; doing it every step keeps the kernel correct when the batch
    grid axis is split across TensorCores.
    """
    Hq, Wq, C = ref.shape
    if pad > 0:
        ref[0:pad, :, :] = jnp.zeros((pad, Wq, C), ref.dtype)
    if Hq > pad + h:
        ref[pad + h:Hq, :, :] = jnp.zeros((Hq - pad - h, Wq, C), ref.dtype)
    if pad > 0:
        ref[pad:pad + h, 0:pad, :] = jnp.zeros((h, pad, C), ref.dtype)
    if Wq > pad + w:
        ref[pad:pad + h, pad + w:Wq, :] = jnp.zeros((h, Wq - pad - w, C), ref.dtype)


def _conv3x3_bn(src, w_ref, scale, bias, Ho, Wo, stride, dilation, mxu_dtype):
    """3x3 conv as nine lane-aligned (Npix, Cin) @ (Cin, Cout) MXU matmuls + folded BN.

    src:   (Hp, Wp, Cin) zero-padded input (VMEM ref or value).
    w_ref: (9, Cin, Cout) tap-major weights (ref, already in mxu_dtype).
    Returns (Ho*Wo, Cout) float32.
    """
    cin = w_ref.shape[1]
    cout = w_ref.shape[2]
    acc = jnp.zeros((Ho * Wo, cout), jnp.float32)
    for kh in range(3):
        for kw in range(3):
            h0 = kh * dilation
            w0 = kw * dilation
            if stride == 1:
                tap = src[h0:h0 + Ho, w0:w0 + Wo, :]
            else:
                # TODO(synk): deinterleave `src` into stride-phase planes once instead of
                # a per-tap slab reshape (the reshape splits the sublane axis).
                slab = src[h0:h0 + Ho * stride, w0:w0 + Wo * stride, :]
                tap = slab.reshape(Ho, stride, Wo, stride, cin)[:, 0, :, 0, :]
            acc = acc + jnp.dot(tap.reshape(Ho * Wo, cin).astype(mxu_dtype),
                                w_ref[kh * 3 + kw],
                                preferred_element_type=jnp.float32)
    return acc * scale + bias


# ---------------------------------- kernel ----------------------------------

def _scconv_kernel(x_ref, ppad_ref, up_ref, w2_ref, w3_ref, w4_ref, aff_ref,
                   o_ref, xpad_ref, gpad_ref, *,
                   H, W, Hp2, Wp2, Ho2, Wo2, Ho4, Wo4,
                   padding, dilation, stride, mxu_dtype):
    Cp = x_ref.shape[-1]
    aff = aff_ref[...].astype(jnp.float32)                           # (6, Cp)
    s2, b2 = aff[0:1, :], aff[1:2, :]
    s3, b3 = aff[2:3, :], aff[3:4, :]
    s4, b4 = aff[4:5, :], aff[5:6, :]

    x = x_ref[...].astype(jnp.float32)                               # (H, W, Cp)
    x_flat = x.reshape(H * W, Cp)                                    # free: W % 8 == 0

    # ---- k2 = BN(Conv3x3(AvgPool_r(x))): pool + zero-pad fused into one MXU matmul.
    pooled_pad = jnp.dot(ppad_ref[...], x_flat.astype(mxu_dtype),
                         preferred_element_type=jnp.float32)         # (Hp2*Wp2, Cp)
    pooled_pad = pooled_pad.reshape(Hp2, Wp2, Cp)
    k2 = _conv3x3_bn(pooled_pad, w2_ref, s2, b2, Ho2, Wo2, 1, dilation, mxu_dtype)
    # k2: (Ho2*Wo2, Cp) f32, kept flat (never leaves VMEM).

    # ---- k3 = BN(Conv3x3(x)): zero-pad in VMEM scratch (border only), nine matmuls.
    _zero_pad_border(xpad_ref, padding, H, W)
    xpad_ref[padding:padding + H, padding:padding + W, :] = x.astype(xpad_ref.dtype)
    k3 = _conv3x3_bn(xpad_ref, w3_ref, s3, b3, H, W, 1, dilation, mxu_dtype)

    # ---- gate = sigmoid(x + nearest_up(k2)); gated = k3 * gate (lane-dense 2-D, f32).
    up = jnp.dot(up_ref[...], k2.astype(mxu_dtype),
                 preferred_element_type=jnp.float32)                 # (H*W, Cp)
    gated = k3 * jax.nn.sigmoid(x_flat + up)

    # ---- out = BN(Conv3x3_stride(gated)): gated never touches HBM.
    _zero_pad_border(gpad_ref, padding, H, W)
    gpad_ref[padding:padding + H, padding:padding + W, :] = (
        gated.reshape(H, W, Cp).astype(gpad_ref.dtype))
    out = _conv3x3_bn(gpad_ref, w4_ref, s4, b4, Ho4, Wo4, stride, dilation, mxu_dtype)
    o_ref[...] = out.reshape(Ho4, Wo4, Cp).astype(o_ref.dtype)


# -------------------------------- SCConv forward --------------------------------

def scconv_forward(x_nchw, params, *, stride, padding, dilation, groups, pooling_r,
                   mxu_dtype=jnp.float32):
    assert groups == 1  # TODO(synk): grouped convolution not implemented.
    N, C, H, W = x_nchw.shape
    inplanes, planes = params["w3"].shape[-2], params["w3"].shape[-1]
    assert inplanes == C and planes == C, "SCConv gate requires planes == inplanes"
    # The gate multiplies Conv3x3(x) with a (H, W) map -> needs 'same' 3x3 conv.
    assert padding == dilation, "3x3 'same' conv required by the gate (as in the module)"
    assert W % 8 == 0  # keeps the (H, W, C)<->(H*W, C) reshapes free of relayouts.

    r = pooling_r
    Hi, Wi = H // r, W // r                                # AvgPool output (floor, as in torch)
    Hp2, Wp2 = Hi + 2 * padding, Wi + 2 * padding          # padded pooled image
    Ho2, Wo2 = Hi + 2 * padding - 2 * dilation, Wi + 2 * padding - 2 * dilation
    Ho4 = (H + 2 * padding - 2 * dilation - 1) // stride + 1
    Wo4 = (W + 2 * padding - 2 * dilation - 1) // stride + 1

    Cp = _round_up(C, LANES)                               # lane-dense channel count

    x = jnp.transpose(x_nchw, (0, 2, 3, 1))                # NCHW -> NHWC
    x = _pad_axis(x, Cp, axis=3)

    def prep_w(w):                                         # (3,3,Cin,Cout) -> (9,Cp,Cp), host-side
        w = _pad_axis(_pad_axis(w, Cp, 2), Cp, 3)
        return w.reshape(9, Cp, Cp).astype(mxu_dtype)

    w2, w3, w4 = prep_w(params["w2"]), prep_w(params["w3"]), prep_w(params["w4"])
    aff = jnp.stack([
        _pad_axis(params["s2"].astype(jnp.float32), Cp, 0),
        _pad_axis(params["b2"].astype(jnp.float32), Cp, 0),
        _pad_axis(params["s3"].astype(jnp.float32), Cp, 0),
        _pad_axis(params["b3"].astype(jnp.float32), Cp, 0),
        _pad_axis(params["s4"].astype(jnp.float32), Cp, 0),
        _pad_axis(params["b4"].astype(jnp.float32), Cp, 0),
    ])                                                     # (6, Cp)

    ppad = _pool_pad_matrix(H, W, r, padding, mxu_dtype)           # (Hp2*Wp2, H*W)
    upm = _nearest_upsample_matrix(Ho2, Wo2, H, W, mxu_dtype)      # (H*W, Ho2*Wo2)

    # Scratch sized so the stride>1 slab loads stay in bounds (extra rows/cols are zeroed).
    Hq = max(H + 2 * padding, 2 * dilation + Ho4 * stride)
    Wq = max(W + 2 * padding, 2 * dilation + Wo4 * stride)

    kernel = functools.partial(
        _scconv_kernel, H=H, W=W, Hp2=Hp2, Wp2=Wp2, Ho2=Ho2, Wo2=Wo2,
        Ho4=Ho4, Wo4=Wo4, padding=padding, dilation=dilation, stride=stride,
        mxu_dtype=mxu_dtype)

    out = pl.pallas_call(
        kernel,
        out_shape=jax.ShapeDtypeStruct((N, Ho4, Wo4, Cp), x_nchw.dtype),
        grid=(N,),
        in_specs=[
            pl.BlockSpec((None, H, W, Cp), lambda n: (n, 0, 0, 0)),      # x (batch squeezed)
            pl.BlockSpec((Hp2 * Wp2, H * W), lambda n: (0, 0)),          # pool+pad matrix
            pl.BlockSpec((H * W, Ho2 * Wo2), lambda n: (0, 0)),          # nearest-upsample matrix
            pl.BlockSpec((9, Cp, Cp), lambda n: (0, 0, 0)),              # w2 (tap-major)
            pl.BlockSpec((9, Cp, Cp), lambda n: (0, 0, 0)),              # w3
            pl.BlockSpec((9, Cp, Cp), lambda n: (0, 0, 0)),              # w4
            pl.BlockSpec((6, Cp), lambda n: (0, 0)),                     # folded BN affines
        ],
        out_specs=pl.BlockSpec((None, Ho4, Wo4, Cp), lambda n: (n, 0, 0, 0)),
        scratch_shapes=[
            pltpu.VMEM((H + 2 * padding, W + 2 * padding, Cp), jnp.float32),  # padded x
            pltpu.VMEM((Hq, Wq, Cp), jnp.float32),                            # padded gated
        ],
        compiler_params=pltpu.CompilerParams(dimension_semantics=("parallel",)),
    )(x, ppad, upm, w2, w3, w4, aff)

    out = out[..., :C]                                     # drop lane padding
    return jnp.transpose(out, (0, 3, 1, 2))                # NHWC -> NCHW


# ------------------------------ params / reference ------------------------------

def init_params(key, inplanes, planes):
    k2, k3, k4 = jax.random.split(key, 3)
    eps = 1e-5
    gamma = jnp.linspace(0.8, 1.2, planes, dtype=jnp.float32)
    beta = jnp.linspace(-0.1, 0.1, planes, dtype=jnp.float32)
    running_mean = jnp.linspace(-0.05, 0.05, planes, dtype=jnp.float32)
    running_var = jnp.linspace(0.9, 1.1, planes, dtype=jnp.float32)
    # Eval-mode BatchNorm folded into per-channel affine.
    scale = gamma / jnp.sqrt(running_var + eps)
    bias = beta - running_mean * scale

    def conv_w(k):  # HWIO layout
        return 0.1 * jax.random.normal(k, (3, 3, inplanes, planes), jnp.float32)

    return {
        "w2": conv_w(k2), "s2": scale, "b2": bias,
        "w3": conv_w(k3), "s3": scale, "b3": bias,
        "w4": conv_w(k4), "s4": scale, "b4": bias,
    }


def scconv_reference(x_nchw, params, *, stride, padding, dilation, pooling_r):
    x = jnp.transpose(x_nchw, (0, 2, 3, 1))
    N, H, W, C = x.shape
    r = pooling_r

    def conv_bn(inp, w, scale, bias, s):
        out = jax.lax.conv_general_dilated(
            inp, w, window_strides=(s, s),
            padding=[(padding, padding), (padding, padding)],
            rhs_dilation=(dilation, dilation),
            dimension_numbers=("NHWC", "HWIO", "NHWC"))
        return out * scale.reshape(1, 1, 1, -1) + bias.reshape(1, 1, 1, -1)

    pooled = x.reshape(N, H // r, r, W // r, r, C).mean(axis=(2, 4))
    k2o = conv_bn(pooled, params["w2"], params["s2"], params["b2"], 1)
    fh, fw = H // k2o.shape[1], W // k2o.shape[2]
    k2up = jnp.repeat(jnp.repeat(k2o, fh, axis=1), fw, axis=2)  # nearest (integer factor)
    gate = jax.nn.sigmoid(x + k2up)
    k3o = conv_bn(x, params["w3"], params["s3"], params["b3"], 1)
    out = conv_bn(k3o * gate, params["w4"], params["s4"], params["b4"], stride)
    return jnp.transpose(out, (0, 3, 1, 2))


# ------------------------------------- main ------------------------------------

if __name__ == "__main__":
    key = jax.random.PRNGKey(0)
    kx, kp = jax.random.split(key)

    N, C, H, W = 2, 4, 16, 16
    stride, padding, dilation, groups, pooling_r = 1, 1, 1, 1, 4

    x = jax.random.normal(kx, (N, C, H, W), jnp.float32)
    params = init_params(kp, C, C)

    ref = scconv_reference(x, params, stride=stride, padding=padding,
                           dilation=dilation, pooling_r=pooling_r)

    # Default f32 MXU path: tight agreement with the lax reference.
    out = scconv_forward(x, params, stride=stride, padding=padding, dilation=dilation,
                         groups=groups, pooling_r=pooling_r, mxu_dtype=jnp.float32)
    out = jax.block_until_ready(out)
    assert out.shape == (N, C, H, W)
    err_f32 = float(jnp.max(jnp.abs(out - ref)))
    assert err_f32 < 1e-4, f"f32 path mismatch vs reference: max abs err = {err_f32}"

    # Optional bf16 MXU path (f32 accumulation / element-wise math): looser tolerance.
    out_bf16 = scconv_forward(x, params, stride=stride, padding=padding, dilation=dilation,
                              groups=groups, pooling_r=pooling_r, mxu_dtype=jnp.bfloat16)
    out_bf16 = jax.block_until_ready(out_bf16)
    err_bf16 = float(jnp.max(jnp.abs(out_bf16 - ref)))
    assert err_bf16 < 1e-1, f"bf16 path mismatch vs reference: max abs err = {err_bf16}"

    print("KERNEL_OK")
</pallas_src>

<mosaic_0001>
module attributes {stable_mosaic.version = 11 : i64} {
  func.func @_scconv_kernel(%arg0: i32, %arg1: memref<1x16x16x128xf32, #tpu.memory_space<vmem>>, %arg2: memref<36x256xf32, #tpu.memory_space<vmem>>, %arg3: memref<256x16xf32, #tpu.memory_space<vmem>>, %arg4: memref<9x128x128xf32, #tpu.memory_space<vmem>>, %arg5: memref<9x128x128xf32, #tpu.memory_space<vmem>>, %arg6: memref<9x128x128xf32, #tpu.memory_space<vmem>>, %arg7: memref<6x128xf32, #tpu.memory_space<vmem>>, %arg8: memref<1x16x16x128xf32, #tpu.memory_space<vmem>>, %arg9: memref<18x18x128xf32, #tpu.memory_space<vmem>>, %arg10: memref<18x18x128xf32, #tpu.memory_space<vmem>>) attributes {dimension_semantics = [#tpu.dimension_semantics<parallel>], iteration_bounds = array<i64: 2>, scalar_prefetch = 0 : i64, scratch_operands = 2 : i64, tpu.core_type = #tpu.core_type<tc>, window_params = [{transform_indices = @transform_0, window_bounds = array<i64: 1, 16, 16, 128>}, {pipeline_mode = #tpu.pipeline_mode<synchronous>, transform_indices = @transform_1, window_bounds = array<i64: 36, 256>}, {pipeline_mode = #tpu.pipeline_mode<synchronous>, transform_indices = @transform_2, window_bounds = array<i64: 256, 16>}, {pipeline_mode = #tpu.pipeline_mode<synchronous>, transform_indices = @transform_3, window_bounds = array<i64: 9, 128, 128>}, {pipeline_mode = #tpu.pipeline_mode<synchronous>, transform_indices = @transform_4, window_bounds = array<i64: 9, 128, 128>}, {pipeline_mode = #tpu.pipeline_mode<synchronous>, transform_indices = @transform_5, window_bounds = array<i64: 9, 128, 128>}, {pipeline_mode = #tpu.pipeline_mode<synchronous>, transform_indices = @transform_6, window_bounds = array<i64: 6, 128>}, {transform_indices = @transform_7, window_bounds = array<i64: 1, 16, 16, 128>}]} {
    %c0 = arith.constant 0 : index
    %c0_0 = arith.constant 0 : index
    %0 = vector.load %arg7[%c0, %c0_0] : memref<6x128xf32, #tpu.memory_space<vmem>>, vector<6x128xf32>
    %1 = vector.extract_strided_slice %0 {offsets = [0, 0], sizes = [1, 128], strides = [1, 1]} : vector<6x128xf32> to vector<1x128xf32>
    %2 = vector.extract_strided_slice %0 {offsets = [1, 0], sizes = [1, 128], strides = [1, 1]} : vector<6x128xf32> to vector<1x128xf32>
    %3 = vector.extract_strided_slice %0 {offsets = [2, 0], sizes = [1, 128], strides = [1, 1]} : vector<6x128xf32> to vector<1x128xf32>
    %4 = vector.extract_strided_slice %0 {offsets = [3, 0], sizes = [1, 128], strides = [1, 1]} : vector<6x128xf32> to vector<1x128xf32>
    %5 = vector.extract_strided_slice %0 {offsets = [4, 0], sizes = [1, 128], strides = [1, 1]} : vector<6x128xf32> to vector<1x128xf32>
    %6 = vector.extract_strided_slice %0 {offsets = [5, 0], sizes = [1, 128], strides = [1, 1]} : vector<6x128xf32> to vector<1x128xf32>
    %c0_1 = arith.constant 0 : index
    %c0_2 = arith.constant 0 : index
    %c0_3 = arith.constant 0 : index
    %c0_4 = arith.constant 0 : index
    %7 = vector.load %arg1[%c0_1, %c0_2, %c0_3, %c0_4] : memref<1x16x16x128xf32, #tpu.memory_space<vmem>>, vector<1x16x16x128xf32>
    %8 = vector.shape_cast %7 : vector<1x16x16x128xf32> to vector<16x16x128xf32>
    %9 = vector.shape_cast %8 : vector<16x16x128xf32> to vector<256x128xf32>
    %c0_5 = arith.constant 0 : index
    %c0_6 = arith.constant 0 : index
    %10 = vector.load %arg2[%c0_5, %c0_6] : memref<36x256xf32, #tpu.memory_space<vmem>>, vector<36x256xf32>
    %cst = arith.constant dense<0.000000e+00> : vector<36x128xf32>
    %11 = tpu.matmul %10, %9, %cst {dimension_numbers = #tpu.dot_dimension_numbers<[1], [0], [0], [1], [0, 0, 1, 1], [], []>} : vector<36x256xf32>, vector<256x128xf32>, vector<36x128xf32> -> vector<36x128xf32>
    %12 = vector.shape_cast %11 : vector<36x128xf32> to vector<6x6x128xf32>
    %cst_7 = arith.constant 0.000000e+00 : f32
    %13 = vector.broadcast %cst_7 : f32 to vector<16x128xf32>
    %14 = vector.extract_strided_slice %12 {offsets = [0, 0, 0], sizes = [4, 4, 128], strides = [1, 1, 1]} : vector<6x6x128xf32> to vector<4x4x128xf32>
    %15 = vector.shape_cast %14 : vector<4x4x128xf32> to vector<16x128xf32>
    %c0_8 = arith.constant 0 : index
    %c0_9 = arith.constant 0 : index
    %c0_10 = arith.constant 0 : index
    %16 = vector.load %arg4[%c0_8, %c0_9, %c0_10] : memref<9x128x128xf32, #tpu.memory_space<vmem>>, vector<1x128x128xf32>
    %17 = vector.shape_cast %16 : vector<1x128x128xf32> to vector<128x128xf32>
    %cst_11 = arith.constant dense<0.000000e+00> : vector<16x128xf32>
    %18 = tpu.matmul %15, %17, %cst_11 {dimension_numbers = #tpu.dot_dimension_numbers<[1], [0], [0], [1], [0, 0, 1, 1], [], []>} : vector<16x128xf32>, vector<128x128xf32>, vector<16x128xf32> -> vector<16x128xf32>
    %19 = arith.addf %13, %18 : vector<16x128xf32>
    %20 = vector.extract_strided_slice %12 {offsets = [0, 1, 0], sizes = [4, 4, 128], strides = [1, 1, 1]} : vector<6x6x128xf32> to vector<4x4x128xf32>
    %21 = vector.shape_cast %20 : vector<4x4x128xf32> to vector<16x128xf32>
    %c1 = arith.constant 1 : index
    %c0_12 = arith.constant 0 : index
    %c0_13 = arith.constant 0 : index
    %22 = vector.load %arg4[%c1, %c0_12, %c0_13] : memref<9x128x128xf32, #tpu.memory_space<vmem>>, vector<1x128x128xf32>
    %23 = vector.shape_cast %22 : vector<1x128x128xf32> to vector<128x128xf32>
    %cst_14 = arith.constant dense<0.000000e+00> : vector<16x128xf32>
    %24 = tpu.matmul %21, %23, %cst_14 {dimension_numbers = #tpu.dot_dimension_numbers<[1], [0], [0], [1], [0, 0, 1, 1], [], []>} : vector<16x128xf32>, vector<128x128xf32>, vector<16x128xf32> -> vector<16x128xf32>
    %25 = arith.addf %19, %24 : vector<16x128xf32>
    %26 = vector.extract_strided_slice %12 {offsets = [0, 2, 0], sizes = [4, 4, 128], strides = [1, 1, 1]} : vector<6x6x128xf32> to vector<4x4x128xf32>
    %27 = vector.shape_cast %26 : vector<4x4x128xf32> to vector<16x128xf32>
    %c2 = arith.constant 2 : index
    %c0_15 = arith.constant 0 : index
    %c0_16 = arith.constant 0 : index
    %28 = vector.load %arg4[%c2, %c0_15, %c0_16] : memref<9x128x128xf32, #tpu.memory_space<vmem>>, vector<1x128x128xf32>
    %29 = vector.shape_cast %28 : vector<1x128x128xf32> to vector<128x128xf32>
    %cst_17 = arith.constant dense<0.000000e+00> : vector<16x128xf32>
    %30 = tpu.matmul %27, %29, %cst_17 {dimension_numbers = #tpu.dot_dimension_numbers<[1], [0], [0], [1], [0, 0, 1, 1], [], []>} : vector<16x128xf32>, vector<128x128xf32>, vector<16x128xf32> -> vector<16x128xf32>
    %31 = arith.addf %25, %30 : vector<16x128xf32>
    %32 = vector.extract_strided_slice %12 {offsets = [1, 0, 0], sizes = [4, 4, 128], strides = [1, 1, 1]} : vector<6x6x128xf32> to vector<4x4x128xf32>
    %33 = vector.shape_cast %32 : vector<4x4x128xf32> to vector<16x128xf32>
    %c3 = arith.constant 3 : index
    %c0_18 = arith.constant 0 : index
    %c0_19 = arith.constant 0 : index
    %34 = vector.load %arg4[%c3, %c0_18, %c0_19] : memref<9x128x128xf32, #tpu.memory_space<vmem>>, vector<1x128x128xf32>
    %35 = vector.shape_cast %34 : vector<1x128x128xf32> to vector<128x128xf32>
    %cst_20 = arith.constant dense<0.000000e+00> : vector<16x128xf32>
    %36 = tpu.matmul %33, %35, %cst_20 {dimension_numbers = #tpu.dot_dimension_numbers<[1], [0], [0], [1], [0, 0, 1, 1], [], []>} : vector<16x128xf32>, vector<128x128xf32>, vector<16x128xf32> -> vector<16x128xf32>
    %37 = arith.addf %31, %36 : vector<16x128xf32>
    %38 = vector.extract_strided_slice %12 {offsets = [1, 1, 0], sizes = [4, 4, 128], strides = [1, 1, 1]} : vector<6x6x128xf32> to vector<4x4x128xf32>
    %39 = vector.shape_cast %38 : vector<4x4x128xf32> to vector<16x128xf32>
    %c4 = arith.constant 4 : index
    %c0_21 = arith.constant 0 : index
    %c0_22 = arith.constant 0 : index
    %40 = vector.load %arg4[%c4, %c0_21, %c0_22] : memref<9x128x128xf32, #tpu.memory_space<vmem>>, vector<1x128x128xf32>
    %41 = vector.shape_cast %40 : vector<1x128x128xf32> to vector<128x128xf32>
    %cst_23 = arith.constant dense<0.000000e+00> : vector<16x128xf32>
    %42 = tpu.matmul %39, %41, %cst_23 {dimension_numbers = #tpu.dot_dimension_numbers<[1], [0], [0], [1], [0, 0, 1, 1], [], []>} : vector<16x128xf32>, vector<128x128xf32>, vector<16x128xf32> -> vector<16x128xf32>
    %43 = arith.addf %37, %42 : vector<16x128xf32>
    %44 = vector.extract_strided_slice %12 {offsets = [1, 2, 0], sizes = [4, 4, 128], strides = [1, 1, 1]} : vector<6x6x128xf32> to vector<4x4x128xf32>
    %45 = vector.shape_cast %44 : vector<4x4x128xf32> to vector<16x128xf32>
    %c5 = arith.constant 5 : index
    %c0_24 = arith.constant 0 : index
    %c0_25 = arith.constant 0 : index
    %46 = vector.load %arg4[%c5, %c0_24, %c0_25] : memref<9x128x128xf32, #tpu.memory_space<vmem>>, vector<1x128x128xf32>
    %47 = vector.shape_cast %46 : vector<1x128x128xf32> to vector<128x128xf32>
    %cst_26 = arith.constant dense<0.000000e+00> : vector<16x128xf32>
    %48 = tpu.matmul %45, %47, %cst_26 {dimension_numbers = #tpu.dot_dimension_numbers<[1], [0], [0], [1], [0, 0, 1, 1], [], []>} : vector<16x128xf32>, vector<128x128xf32>, vector<16x128xf32> -> vector<16x128xf32>
    %49 = arith.addf %43, %48 : vector<16x128xf32>
    %50 = vector.extract_strided_slice %12 {offsets = [2, 0, 0], sizes = [4, 4, 128], strides = [1, 1, 1]} : vector<6x6x128xf32> to vector<4x4x128xf32>
    %51 = vector.shape_cast %50 : vector<4x4x128xf32> to vector<16x128xf32>
    %c6 = arith.constant 6 : index
    %c0_27 = arith.constant 0 : index
    %c0_28 = arith.constant 0 : index
    %52 = vector.load %arg4[%c6, %c0_27, %c0_28] : memref<9x128x128xf32, #tpu.memory_space<vmem>>, vector<1x128x128xf32>
    %53 = vector.shape_cast %52 : vector<1x128x128xf32> to vector<128x128xf32>
    %cst_29 = arith.constant dense<0.000000e+00> : vector<16x128xf32>
    %54 = tpu.matmul %51, %53, %cst_29 {dimension_numbers = #tpu.dot_dimension_numbers<[1], [0], [0], [1], [0, 0, 1, 1], [], []>} : vector<16x128xf32>, vector<128x128xf32>, vector<16x128xf32> -> vector<16x128xf32>
    %55 = arith.addf %49, %54 : vector<16x128xf32>
    %56 = vector.extract_strided_slice %12 {offsets = [2, 1, 0], sizes = [4, 4, 128], strides = [1, 1, 1]} : vector<6x6x128xf32> to vector<4x4x128xf32>
    %57 = vector.shape_cast %56 : vector<4x4x128xf32> to vector<16x128xf32>
    %c7 = arith.constant 7 : index
    %c0_30 = arith.constant 0 : index
    %c0_31 = arith.constant 0 : index
    %58 = vector.load %arg4[%c7, %c0_30, %c0_31] : memref<9x128x128xf32, #tpu.memory_space<vmem>>, vector<1x128x128xf32>
    %59 = vector.shape_cast %58 : vector<1x128x128xf32> to vector<128x128xf32>
    %cst_32 = arith.constant dense<0.000000e+00> : vector<16x128xf32>
    %60 = tpu.matmul %57, %59, %cst_32 {dimension_numbers = #tpu.dot_dimension_numbers<[1], [0], [0], [1], [0, 0, 1, 1], [], []>} : vector<16x128xf32>, vector<128x128xf32>, vector<16x128xf32> -> vector<16x128xf32>
    %61 = arith.addf %55, %60 : vector<16x128xf32>
    %62 = vector.extract_strided_slice %12 {offsets = [2, 2, 0], sizes = [4, 4, 128], strides = [1, 1, 1]} : vector<6x6x128xf32> to vector<4x4x128xf32>
    %63 = vector.shape_cast %62 : vector<4x4x128xf32> to vector<16x128xf32>
    %c8 = arith.constant 8 : index
    %c0_33 = arith.constant 0 : index
    %c0_34 = arith.constant 0 : index
    %64 = vector.load %arg4[%c8, %c0_33, %c0_34] : memref<9x128x128xf32, #tpu.memory_space<vmem>>, vector<1x128x128xf32>
    %65 = vector.shape_cast %64 : vector<1x128x128xf32> to vector<128x128xf32>
    %cst_35 = arith.constant dense<0.000000e+00> : vector<16x128xf32>
    %66 = tpu.matmul %63, %65, %cst_35 {dimension_numbers = #tpu.dot_dimension_numbers<[1], [0], [0], [1], [0, 0, 1, 1], [], []>} : vector<16x128xf32>, vector<128x128xf32>, vector<16x128xf32> -> vector<16x128xf32>
    %67 = arith.addf %61, %66 : vector<16x128xf32>
    %68 = vector.broadcast %1 : vector<1x128xf32> to vector<16x128xf32>
    %69 = arith.mulf %67, %68 : vector<16x128xf32>
    %70 = vector.broadcast %2 : vector<1x128xf32> to vector<16x128xf32>
    %71 = arith.addf %69, %70 : vector<16x128xf32>
    %cst_36 = arith.constant 0.000000e+00 : f32
    %72 = vector.broadcast %cst_36 : f32 to vector<1x18x128xf32>
    %c0_37 = arith.constant 0 : index
    %c0_38 = arith.constant 0 : index
    %c0_39 = arith.constant 0 : index
    %73 = vector.load %arg9[%c0_37, %c0_38, %c0_39] : memref<18x18x128xf32, #tpu.memory_space<vmem>>, vector<1x18x128xf32>
    tpu.vector_store %arg9[%c0_37, %c0_38, %c0_39], %72 {strides = array<i32>} : memref<18x18x128xf32, #tpu.memory_space<vmem>>, vector<1x18x128xf32>,
    %cst_40 = arith.constant 0.000000e+00 : f32
    %74 = vector.broadcast %cst_40 : f32 to vector<1x18x128xf32>
    %c17 = arith.constant 17 : index
    %c0_41 = arith.constant 0 : index
    %c0_42 = arith.constant 0 : index
    %75 = vector.load %arg9[%c17, %c0_41, %c0_42] : memref<18x18x128xf32, #tpu.memory_space<vmem>>, vector<1x18x128xf32>
    tpu.vector_store %arg9[%c17, %c0_41, %c0_42], %74 {strides = array<i32>} : memref<18x18x128xf32, #tpu.memory_space<vmem>>, vector<1x18x128xf32>,
    %cst_43 = arith.constant 0.000000e+00 : f32
    %76 = vector.broadcast %cst_43 : f32 to vector<16x1x128xf32>
    %c1_44 = arith.constant 1 : index
    %c0_45 = arith.constant 0 : index
    %c0_46 = arith.constant 0 : index
    %77 = vector.load %arg9[%c1_44, %c0_45, %c0_46] : memref<18x18x128xf32, #tpu.memory_space<vmem>>, vector<16x1x128xf32>
    tpu.vector_store %arg9[%c1_44, %c0_45, %c0_46], %76 {strides = array<i32>} : memref<18x18x128xf32, #tpu.memory_space<vmem>>, vector<16x1x128xf32>,
    %cst_47 = arith.constant 0.000000e+00 : f32
    %78 = vector.broadcast %cst_47 : f32 to vector<16x1x128xf32>
    %c1_48 = arith.constant 1 : index
    %c17_49 = arith.constant 17 : index
    %c0_50 = arith.constant 0 : index
    %79 = vector.load %arg9[%c1_48, %c17_49, %c0_50] : memref<18x18x128xf32, #tpu.memory_space<vmem>>, vector<16x1x128xf32>
    tpu.vector_store %arg9[%c1_48, %c17_49, %c0_50], %78 {strides = array<i32>} : memref<18x18x128xf32, #tpu.memory_space<vmem>>, vector<16x1x128xf32>,
    %c1_51 = arith.constant 1 : index
    %c1_52 = arith.constant 1 : index
    %c0_53 = arith.constant 0 : index
    %80 = vector.load %arg9[%c1_51, %c1_52, %c0_53] : memref<18x18x128xf32, #tpu.memory_space<vmem>>, vector<16x16x128xf32>
    tpu.vector_store %arg9[%c1_51, %c1_52, %c0_53], %8 {strides = array<i32>} : memref<18x18x128xf32, #tpu.memory_space<vmem>>, vector<16x16x128xf32>,
    %cst_54 = arith.constant 0.000000e+00 : f32
    %81 = vector.broadcast %cst_54 : f32 to vector<256x128xf32>
    %c0_55 = arith.constant 0 : index
    %c0_56 = arith.constant 0 : index
    %c0_57 = arith.constant 0 : index
    %82 = vector.load %arg9[%c0_55, %c0_56, %c0_57] : memref<18x18x128xf32, #tpu.memory_space<vmem>>, vector<16x16x128xf32>
    %83 = vector.shape_cast %82 : vector<16x16x128xf32> to vector<256x128xf32>
    %c0_58 = arith.constant 0 : index
    %c0_59 = arith.constant 0 : index
    %c0_60 = arith.constant 0 : index
    %84 = vector.load %arg5[%c0_58, %c0_59, %c0_60] : memref<9x128x128xf32, #tpu.memory_space<vmem>>, vector<1x128x128xf32>
    %85 = vector.shape_cast %84 : vector<1x128x128xf32> to vector<128x128xf32>
    %cst_61 = arith.constant dense<0.000000e+00> : vector<256x128xf32>
    %86 = tpu.matmul %83, %85, %cst_61 {dimension_numbers = #tpu.dot_dimension_numbers<[1], [0], [0], [1], [0, 0, 1, 1], [], []>} : vector<256x128xf32>, vector<128x128xf32>, vector<256x128xf32> -> vector<256x128xf32>
    %87 = arith.addf %81, %86 : vector<256x128xf32>
    %c0_62 = arith.constant 0 : index
    %c1_63 = arith.constant 1 : index
    %c0_64 = arith.constant 0 : index
    %88 = vector.load %arg9[%c0_62, %c1_63, %c0_64] : memref<18x18x128xf32, #tpu.memory_space<vmem>>, vector<16x16x128xf32>
    %89 = vector.shape_cast %88 : vector<16x16x128xf32> to vector<256x128xf32>
    %c1_65 = arith.constant 1 : index
    %c0_66 = arith.constant 0 : index
    %c0_67 = arith.constant 0 : index
    %90 = vector.load %arg5[%c1_65, %c0_66, %c0_67] : memref<9x128x128xf32, #tpu.memory_space<vmem>>, vector<1x128x128xf32>
    %91 = vector.shape_cast %90 : vector<1x128x128xf32> to vector<128x128xf32>
    %cst_68 = arith.constant dense<0.000000e+00> : vector<256x128xf32>
    %92 = tpu.matmul %89, %91, %cst_68 {dimension_numbers = #tpu.dot_dimension_numbers<[1], [0], [0], [1], [0, 0, 1, 1], [], []>} : vector<256x128xf32>, vector<128x128xf32>, vector<256x128xf32> -> vector<256x128xf32>
    %93 = arith.addf %87, %92 : vector<256x128xf32>
    %c0_69 = arith.constant 0 : index
    %c2_70 = arith.constant 2 : index
    %c0_71 = arith.constant 0 : index
    %94 = vector.load %arg9[%c0_69, %c2_70, %c0_71] : memref<18x18x128xf32, #tpu.memory_space<vmem>>, vector<16x16x128xf32>
    %95 = vector.shape_cast %94 : vector<16x16x128xf32> to vector<256x128xf32>
    %c2_72 = arith.constant 2 : index
    %c0_73 = arith.constant 0 : index
    %c0_74 = arith.constant 0 : index
    %96 = vector.load %arg5[%c2_72, %c0_73, %c0_74] : memref<9x128x128xf32, #tpu.memory_space<vmem>>, vector<1x128x128xf32>
    %97 = vector.shape_cast %96 : vector<1x128x128xf32> to vector<128x128xf32>
    %cst_75 = arith.constant dense<0.000000e+00> : vector<256x128xf32>
    %98 = tpu.matmul %95, %97, %cst_75 {dimension_numbers = #tpu.dot_dimension_numbers<[1], [0], [0], [1], [0, 0, 1, 1], [], []>} : vector<256x128xf32>, vector<128x128xf32>, vector<256x128xf32> -> vector<256x128xf32>
    %99 = arith.addf %93, %98 : vector<256x128xf32>
    %c1_76 = arith.constant 1 : index
    %c0_77 = arith.constant 0 : index
    %c0_78 = arith.constant 0 : index
    %100 = vector.load %arg9[%c1_76, %c0_77, %c0_78] : memref<18x18x128xf32, #tpu.memory_space<vmem>>, vector<16x16x128xf32>
    %101 = vector.shape_cast %100 : vector<16x16x128xf32> to vector<256x128xf32>
    %c3_79 = arith.constant 3 : index
    %c0_80 = arith.constant 0 : index
    %c0_81 = arith.constant 0 : index
    %102 = vector.load %arg5[%c3_79, %c0_80, %c0_81] : memref<9x128x128xf32, #tpu.memory_space<vmem>>, vector<1x128x128xf32>
    %103 = vector.shape_cast %102 : vector<1x128x128xf32> to vector<128x128xf32>
    %cst_82 = arith.constant dense<0.000000e+00> : vector<256x128xf32>
    %104 = tpu.matmul %101, %103, %cst_82 {dimension_numbers = #tpu.dot_dimension_numbers<[1], [0], [0], [1], [0, 0, 1, 1], [], []>} : vector<256x128xf32>, vector<128x128xf32>, vector<256x128xf32> -> vector<256x128xf32>
    %105 = arith.addf %99, %104 : vector<256x128xf32>
    %c1_83 = arith.constant 1 : index
    %c1_84 = arith.constant 1 : index
    %c0_85 = arith.constant 0 : index
    %106 = vector.load %arg9[%c1_83, %c1_84, %c0_85] : memref<18x18x128xf32, #tpu.memory_space<vmem>>, vector<16x16x128xf32>
    %107 = vector.shape_cast %106 : vector<16x16x128xf32> to vector<256x128xf32>
    %c4_86 = arith.constant 4 : index
    %c0_87 = arith.constant 0 : index
    %c0_88 = arith.constant 0 : index
    %108 = vector.load %arg5[%c4_86, %c0_87, %c0_88] : memref<9x128x128xf32, #tpu.memory_space<vmem>>, vector<1x128x128xf32>
    %109 = vector.shape_cast %108 : vector<1x128x128xf32> to vector<128x128xf32>
    %cst_89 = arith.constant dense<0.000000e+00> : vector<256x128xf32>
    %110 = tpu.matmul %107, %109, %cst_89 {dimension_numbers = #tpu.dot_dimension_numbers<[1], [0], [0], [1], [0, 0, 1, 1], [], []>} : vector<256x128xf32>, vector<128x128xf32>, vector<256x128xf32> -> vector<256x128xf32>
    %111 = arith.addf %105, %110 : vector<256x128xf32>
    %c1_90 = arith.constant 1 : index
    %c2_91 = arith.constant 2 : index
    %c0_92 = arith.constant 0 : index
    %112 = vector.load %arg9[%c1_90, %c2_91, %c0_92] : memref<18x18x128xf32, #tpu.memory_space<vmem>>, vector<16x16x128xf32>
    %113 = vector.shape_cast %112 : vector<16x16x128xf32> to vector<256x128xf32>
    %c5_93 = arith.constant 5 : index
    %c0_94 = arith.constant 0 : index
    %c0_95 = arith.constant 0 : index
    %114 = vector.load %arg5[%c5_93, %c0_94, %c0_95] : memref<9x128x128xf32, #tpu.memory_space<vmem>>, vector<1x128x128xf32>
    %115 = vector.shape_cast %114 : vector<1x128x128xf32> to vector<128x128xf32>
    %cst_96 = arith.constant dense<0.000000e+00> : vector<256x128xf32>
    %116 = tpu.matmul %113, %115, %cst_96 {dimension_numbers = #tpu.dot_dimension_numbers<[1], [0], [0], [1], [0, 0, 1, 1], [], []>} : vector<256x128xf32>, vector<128x128xf32>, vector<256x128xf32> -> vector<256x128xf32>
    %117 = arith.addf %111, %116 : vector<256x128xf32>
    %c2_97 = arith.constant 2 : index
    %c0_98 = arith.constant 0 : index
    %c0_99 = arith.constant 0 : index
    %118 = vector.load %arg9[%c2_97, %c0_98, %c0_99] : memref<18x18x128xf32, #tpu.memory_space<vmem>>, vector<16x16x128xf32>
    %119 = vector.shape_cast %118 : vector<16x16x128xf32> to vector<256x128xf32>
    %c6_100 = arith.constant 6 : index
    %c0_101 = arith.constant 0 : index
    %c0_102 = arith.constant 0 : index
    %120 = vector.load %arg5[%c6_100, %c0_101, %c0_102] : memref<9x128x128xf32, #tpu.memory_space<vmem>>, vector<1x128x128xf32>
    %121 = vector.shape_cast %120 : vector<1x128x128xf32> to vector<128x128xf32>
    %cst_103 = arith.constant dense<0.000000e+00> : vector<256x128xf32>
    %122 = tpu.matmul %119, %121, %cst_103 {dimension_numbers = #tpu.dot_dimension_numbers<[1], [0], [0], [1], [0, 0, 1, 1], [], []>} : vector<256x128xf32>, vector<128x128xf32>, vector<256x128xf32> -> vector<256x128xf32>
    %123 = arith.addf %117, %122 : vector<256x128xf32>
    %c2_104 = arith.constant 2 : index
    %c1_105 = arith.constant 1 : index
    %c0_106 = arith.constant 0 : index
    %124 = vector.load %arg9[%c2_104, %c1_105, %c0_106] : memref<18x18x128xf32, #tpu.memory_space<vmem>>, vector<16x16x128xf32>
    %125 = vector.shape_cast %124 : vector<16x16x128xf32> to vector<256x128xf32>
    %c7_107 = arith.constant 7 : index
    %c0_108 = arith.constant 0 : index
    %c0_109 = arith.constant 0 : index
    %126 = vector.load %arg5[%c7_107, %c0_108, %c0_109] : memref<9x128x128xf32, #tpu.memory_space<vmem>>, vector<1x128x128xf32>
    %127 = vector.shape_cast %126 : vector<1x128x128xf32> to vector<128x128xf32>
    %cst_110 = arith.constant dense<0.000000e+00> : vector<256x128xf32>
    %128 = tpu.matmul %125, %127, %cst_110 {dimension_numbers = #tpu.dot_dimension_numbers<[1], [0], [0], [1], [0, 0, 1, 1], [], []>} : vector<256x128xf32>, vector<128x128xf32>, vector<256x128xf32> -> vector<256x128xf32>
    %129 = arith.addf %123, %128 : vector<256x128xf32>
    %c2_111 = arith.constant 2 : index
    %c2_112 = arith.constant 2 : index
    %c0_113 = arith.constant 0 : index
    %130 = vector.load %arg9[%c2_111, %c2_112, %c0_113] : memref<18x18x128xf32, #tpu.memory_space<vmem>>, vector<16x16x128xf32>
    %131 = vector.shape_cast %130 : vector<16x16x128xf32> to vector<256x128xf32>
    %c8_114 = arith.constant 8 : index
    %c0_115 = arith.constant 0 : index
    %c0_116 = arith.constant 0 : index
    %132 = vector.load %arg5[%c8_114, %c0_115, %c0_116] : memref<9x128x128xf32, #tpu.memory_space<vmem>>, vector<1x128x128xf32>
    %133 = vector.shape_cast %132 : vector<1x128x128xf32> to vector<128x128xf32>
    %cst_117 = arith.constant dense<0.000000e+00> : vector<256x128xf32>
    %134 = tpu.matmul %131, %133, %cst_117 {dimension_numbers = #tpu.dot_dimension_numbers<[1], [0], [0], [1], [0, 0, 1, 1], [], []>} : vector<256x128xf32>, vector<128x128xf32>, vector<256x128xf32> -> vector<256x128xf32>
    %135 = arith.addf %129, %134 : vector<256x128xf32>
    %136 = vector.broadcast %3 : vector<1x128xf32> to vector<256x128xf32>
    %137 = arith.mulf %135, %136 : vector<256x128xf32>
    %138 = vector.broadcast %4 : vector<1x128xf32> to vector<256x128xf32>
    %139 = arith.addf %137, %138 : vector<256x128xf32>
    %c0_118 = arith.constant 0 : index
    %c0_119 = arith.constant 0 : index
    %140 = vector.load %arg3[%c0_118, %c0_119] : memref<256x16xf32, #tpu.memory_space<vmem>>, vector<256x16xf32>
    %cst_120 = arith.constant dense<0.000000e+00> : vector<256x128xf32>
    %141 = tpu.matmul %140, %71, %cst_120 {dimension_numbers = #tpu.dot_dimension_numbers<[1], [0], [0], [1], [0, 0, 1, 1], [], []>} : vector<256x16xf32>, vector<16x128xf32>, vector<256x128xf32> -> vector<256x128xf32>
    %142 = arith.addf %9, %141 : vector<256x128xf32>
    %143 = arith.negf %142 : vector<256x128xf32>
    %144 = math.exp %143 : vector<256x128xf32>
    %cst_121 = arith.constant 1.000000e+00 : f32
    %145 = vector.broadcast %cst_121 : f32 to vector<256x128xf32>
    %146 = arith.addf %145, %144 : vector<256x128xf32>
    %147 = arith.divf %145, %146 : vector<256x128xf32>
    %148 = arith.mulf %139, %147 : vector<256x128xf32>
    %cst_122 = arith.constant 0.000000e+00 : f32
    %149 = vector.broadcast %cst_122 : f32 to vector<1x18x128xf32>
    %c0_123 = arith.constant 0 : index
    %c0_124 = arith.constant 0 : index
    %c0_125 = arith.constant 0 : index
    %150 = vector.load %arg10[%c0_123, %c0_124, %c0_125] : memref<18x18x128xf32, #tpu.memory_space<vmem>>, vector<1x18x128xf32>
    tpu.vector_store %arg10[%c0_123, %c0_124, %c0_125], %149 {strides = array<i32>} : memref<18x18x128xf32, #tpu.memory_space<vmem>>, vector<1x18x128xf32>,
    %cst_126 = arith.constant 0.000000e+00 : f32
    %151 = vector.broadcast %cst_126 : f32 to vector<1x18x128xf32>
    %c17_127 = arith.constant 17 : index
    %c0_128 = arith.constant 0 : index
    %c0_129 = arith.constant 0 : index
    %152 = vector.load %arg10[%c17_127, %c0_128, %c0_129] : memref<18x18x128xf32, #tpu.memory_space<vmem>>, vector<1x18x128xf32>
    tpu.vector_store %arg10[%c17_127, %c0_128, %c0_129], %151 {strides = array<i32>} : memref<18x18x128xf32, #tpu.memory_space<vmem>>, vector<1x18x128xf32>,
    %cst_130 = arith.constant 0.000000e+00 : f32
    %153 = vector.broadcast %cst_130 : f32 to vector<16x1x128xf32>
    %c1_131 = arith.constant 1 : index
    %c0_132 = arith.constant 0 : index
    %c0_133 = arith.constant 0 : index
    %154 = vector.load %arg10[%c1_131, %c0_132, %c0_133] : memref<18x18x128xf32, #tpu.memory_space<vmem>>, vector<16x1x128xf32>
    tpu.vector_store %arg10[%c1_131, %c0_132, %c0_133], %153 {strides = array<i32>} : memref<18x18x128xf32, #tpu.memory_space<vmem>>, vector<16x1x128xf32>,
    %cst_134 = arith.constant 0.000000e+00 : f32
    %155 = vector.broadcast %cst_134 : f32 to vector<16x1x128xf32>
    %c1_135 = arith.constant 1 : index
    %c17_136 = arith.constant 17 : index
    %c0_137 = arith.constant 0 : index
    %156 = vector.load %arg10[%c1_135, %c17_136, %c0_137] : memref<18x18x128xf32, #tpu.memory_space<vmem>>, vector<16x1x128xf32>
    tpu.vector_store %arg10[%c1_135, %c17_136, %c0_137], %155 {strides = array<i32>} : memref<18x18x128xf32, #tpu.memory_space<vmem>>, vector<16x1x128xf32>,
    %157 = vector.shape_cast %148 : vector<256x128xf32> to vector<16x16x128xf32>
    %c1_138 = arith.constant 1 : index
    %c1_139 = arith.constant 1 : index
    %c0_140 = arith.constant 0 : index
    %158 = vector.load %arg10[%c1_138, %c1_139, %c0_140] : memref<18x18x128xf32, #tpu.memory_space<vmem>>, vector<16x16x128xf32>
    tpu.vector_store %arg10[%c1_138, %c1_139, %c0_140], %157 {strides = array<i32>} : memref<18x18x128xf32, #tpu.memory_space<vmem>>, vector<16x16x128xf32>,
    %cst_141 = arith.constant 0.000000e+00 : f32
    %159 = vector.broadcast %cst_141 : f32 to vector<256x128xf32>
    %c0_142 = arith.constant 0 : index
    %c0_143 = arith.constant 0 : index
    %c0_144 = arith.constant 0 : index
    %160 = vector.load %arg10[%c0_142, %c0_143, %c0_144] : memref<18x18x128xf32, #tpu.memory_space<vmem>>, vector<16x16x128xf32>
    %161 = vector.shape_cast %160 : vector<16x16x128xf32> to vector<256x128xf32>
    %c0_145 = arith.constant 0 : index
    %c0_146 = arith.constant 0 : index
    %c0_147 = arith.constant 0 : index
    %162 = vector.load %arg6[%c0_145, %c0_146, %c0_147] : memref<9x128x128xf32, #tpu.memory_space<vmem>>, vector<1x128x128xf32>
    %163 = vector.shape_cast %162 : vector<1x128x128xf32> to vector<128x128xf32>
    %cst_148 = arith.constant dense<0.000000e+00> : vector<256x128xf32>
    %164 = tpu.matmul %161, %163, %cst_148 {dimension_numbers = #tpu.dot_dimension_numbers<[1], [0], [0], [1], [0, 0, 1, 1], [], []>} : vector<256x128xf32>, vector<128x128xf32>, vector<256x128xf32> -> vector<256x128xf32>
    %165 = arith.addf %159, %164 : vector<256x128xf32>
    %c0_149 = arith.constant 0 : index
    %c1_150 = arith.constant 1 : index
    %c0_151 = arith.constant 0 : index
    %166 = vector.load %arg10[%c0_149, %c1_150, %c0_151] : memref<18x18x128xf32, #tpu.memory_space<vmem>>, vector<16x16x128xf32>
    %167 = vector.shape_cast %166 : vector<16x16x128xf32> to vector<256x128xf32>
    %c1_152 = arith.constant 1 : index
    %c0_153 = arith.constant 0 : index
    %c0_154 = arith.constant 0 : index
    %168 = vector.load %arg6[%c1_152, %c0_153, %c0_154] : memref<9x128x128xf32, #tpu.memory_space<vmem>>, vector<1x128x128xf32>
    %169 = vector.shape_cast %168 : vector<1x128x128xf32> to vector<128x128xf32>
    %cst_155 = arith.constant dense<0.000000e+00> : vector<256x128xf32>
    %170 = tpu.matmul %167, %169, %cst_155 {dimension_numbers = #tpu.dot_dimension_numbers<[1], [0], [0], [1], [0, 0, 1, 1], [], []>} : vector<256x128xf32>, vector<128x128xf32>, vector<256x128xf32> -> vector<256x128xf32>
    %171 = arith.addf %165, %170 : vector<256x128xf32>
    %c0_156 = arith.constant 0 : index
    %c2_157 = arith.constant 2 : index
    %c0_158 = arith.constant 0 : index
    %172 = vector.load %arg10[%c0_156, %c2_157, %c0_158] : memref<18x18x128xf32, #tpu.memory_space<vmem>>, vector<16x16x128xf32>
    %173 = vector.shape_cast %172 : vector<16x16x128xf32> to vector<256x128xf32>
    %c2_159 = arith.constant 2 : index
    %c0_160 = arith.constant 0 : index
    %c0_161 = arith.constant 0 : index
    %174 = vector.load %arg6[%c2_159, %c0_160, %c0_161] : memref<9x128x128xf32, #tpu.memory_space<vmem>>, vector<1x128x128xf32>
    %175 = vector.shape_cast %174 : vector<1x128x128xf32> to vector<128x128xf32>
    %cst_162 = arith.constant dense<0.000000e+00> : vector<256x128xf32>
    %176 = tpu.matmul %173, %175, %cst_162 {dimension_numbers = #tpu.dot_dimension_numbers<[1], [0], [0], [1], [0, 0, 1, 1], [], []>} : vector<256x128xf32>, vector<128x128xf32>, vector<256x128xf32> -> vector<256x128xf32>
    %177 = arith.addf %171, %176 : vector<256x128xf32>
    %c1_163 = arith.constant 1 : index
    %c0_164 = arith.constant 0 : index
    %c0_165 = arith.constant 0 : index
    %178 = vector.load %arg10[%c1_163, %c0_164, %c0_165] : memref<18x18x128xf32, #tpu.memory_space<vmem>>, vector<16x16x128xf32>
    %179 = vector.shape_cast %178 : vector<16x16x128xf32> to vector<256x128xf32>
    %c3_166 = arith.constant 3 : index
    %c0_167 = arith.constant 0 : index
    %c0_168 = arith.constant 0 : index
    %180 = vector.load %arg6[%c3_166, %c0_167, %c0_168] : memref<9x128x128xf32, #tpu.memory_space<vmem>>, vector<1x128x128xf32>
    %181 = vector.shape_cast %180 : vector<1x128x128xf32> to vector<128x128xf32>
    %cst_169 = arith.constant dense<0.000000e+00> : vector<256x128xf32>
    %182 = tpu.matmul %179, %181, %cst_169 {dimension_numbers = #tpu.dot_dimension_numbers<[1], [0], [0], [1], [0, 0, 1, 1], [], []>} : vector<256x128xf32>, vector<128x128xf32>, vector<256x128xf32> -> vector<256x128xf32>
    %183 = arith.addf %177, %182 : vector<256x128xf32>
    %c1_170 = arith.constant 1 : index
    %c1_171 = arith.constant 1 : index
    %c0_172 = arith.constant 0 : index
    %184 = vector.load %arg10[%c1_170, %c1_171, %c0_172] : memref<18x18x128xf32, #tpu.memory_space<vmem>>, vector<16x16x128xf32>
    %185 = vector.shape_cast %184 : vector<16x16x128xf32> to vector<256x128xf32>
    %c4_173 = arith.constant 4 : index
    %c0_174 = arith.constant 0 : index
    %c0_175 = arith.constant 0 : index
    %186 = vector.load %arg6[%c4_173, %c0_174, %c0_175] : memref<9x128x128xf32, #tpu.memory_space<vmem>>, vector<1x128x128xf32>
    %187 = vector.shape_cast %186 : vector<1x128x128xf32> to vector<128x128xf32>
    %cst_176 = arith.constant dense<0.000000e+00> : vector<256x128xf32>
    %188 = tpu.matmul %185, %187, %cst_176 {dimension_numbers = #tpu.dot_dimension_numbers<[1], [0], [0], [1], [0, 0, 1, 1], [], []>} : vector<256x128xf32>, vector<128x128xf32>, vector<256x128xf32> -> vector<256x128xf32>
    %189 = arith.addf %183, %188 : vector<256x128xf32>
    %c1_177 = arith.constant 1 : index
    %c2_178 = arith.constant 2 : index
    %c0_179 = arith.constant 0 : index
    %190 = vector.load %arg10[%c1_177, %c2_178, %c0_179] : memref<18x18x128xf32, #tpu.memory_space<vmem>>, vector<16x16x128xf32>
    %191 = vector.shape_cast %190 : vector<16x16x128xf32> to vector<256x128xf32>
    %c5_180 = arith.constant 5 : index
    %c0_181 = arith.constant 0 : index
    %c0_182 = arith.constant 0 : index
    %192 = vector.load %arg6[%c5_180, %c0_181, %c0_182] : memref<9x128x128xf32, #tpu.memory_space<vmem>>, vector<1x128x128xf32>
    %193 = vector.shape_cast %192 : vector<1x128x128xf32> to vector<128x128xf32>
    %cst_183 = arith.constant dense<0.000000e+00> : vector<256x128xf32>
    %194 = tpu.matmul %191, %193, %cst_183 {dimension_numbers = #tpu.dot_dimension_numbers<[1], [0], [0], [1], [0, 0, 1, 1], [], []>} : vector<256x128xf32>, vector<128x128xf32>, vector<256x128xf32> -> vector<256x128xf32>
    %195 = arith.addf %189, %194 : vector<256x128xf32>
    %c2_184 = arith.constant 2 : index
    %c0_185 = arith.constant 0 : index
    %c0_186 = arith.constant 0 : index
    %196 = vector.load %arg10[%c2_184, %c0_185, %c0_186] : memref<18x18x128xf32, #tpu.memory_space<vmem>>, vector<16x16x128xf32>
    %197 = vector.shape_cast %196 : vector<16x16x128xf32> to vector<256x128xf32>
    %c6_187 = arith.constant 6 : index
    %c0_188 = arith.constant 0 : index
    %c0_189 = arith.constant 0 : index
    %198 = vector.load %arg6[%c6_187, %c0_188, %c0_189] : memref<9x128x128xf32, #tpu.memory_space<vmem>>, vector<1x128x128xf32>
    %199 = vector.shape_cast %198 : vector<1x128x128xf32> to vector<128x128xf32>
    %cst_190 = arith.constant dense<0.000000e+00> : vector<256x128xf32>
    %200 = tpu.matmul %197, %199, %cst_190 {dimension_numbers = #tpu.dot_dimension_numbers<[1], [0], [0], [1], [0, 0, 1, 1], [], []>} : vector<256x128xf32>, vector<128x128xf32>, vector<256x128xf32> -> vector<256x128xf32>
    %201 = arith.addf %195, %200 : vector<256x128xf32>
    %c2_191 = arith.constant 2 : index
    %c1_192 = arith.constant 1 : index
    %c0_193 = arith.constant 0 : index
    %202 = vector.load %arg10[%c2_191, %c1_192, %c0_193] : memref<18x18x128xf32, #tpu.memory_space<vmem>>, vector<16x16x128xf32>
    %203 = vector.shape_cast %202 : vector<16x16x128xf32> to vector<256x128xf32>
    %c7_194 = arith.constant 7 : index
    %c0_195 = arith.constant 0 : index
    %c0_196 = arith.constant 0 : index
    %204 = vector.load %arg6[%c7_194, %c0_195, %c0_196] : memref<9x128x128xf32, #tpu.memory_space<vmem>>, vector<1x128x128xf32>
    %205 = vector.shape_cast %204 : vector<1x128x128xf32> to vector<128x128xf32>
    %cst_197 = arith.constant dense<0.000000e+00> : vector<256x128xf32>
    %206 = tpu.matmul %203, %205, %cst_197 {dimension_numbers = #tpu.dot_dimension_numbers<[1], [0], [0], [1], [0, 0, 1, 1], [], []>} : vector<256x128xf32>, vector<128x128xf32>, vector<256x128xf32> -> vector<256x128xf32>
    %207 = arith.addf %201, %206 : vector<256x128xf32>
    %c2_198 = arith.constant 2 : index
    %c2_199 = arith.constant 2 : index
    %c0_200 = arith.constant 0 : index
    %208 = vector.load %arg10[%c2_198, %c2_199, %c0_200] : memref<18x18x128xf32, #tpu.memory_space<vmem>>, vector<16x16x128xf32>
    %209 = vector.shape_cast %208 : vector<16x16x128xf32> to vector<256x128xf32>
    %c8_201 = arith.constant 8 : index
    %c0_202 = arith.constant 0 : index
    %c0_203 = arith.constant 0 : index
    %210 = vector.load %arg6[%c8_201, %c0_202, %c0_203] : memref<9x128x128xf32, #tpu.memory_space<vmem>>, vector<1x128x128xf32>
    %211 = vector.shape_cast %210 : vector<1x128x128xf32> to vector<128x128xf32>
    %cst_204 = arith.constant dense<0.000000e+00> : vector<256x128xf32>
    %212 = tpu.matmul %209, %211, %cst_204 {dimension_numbers = #tpu.dot_dimension_numbers<[1], [0], [0], [1], [0, 0, 1, 1], [], []>} : vector<256x128xf32>, vector<128x128xf32>, vector<256x128xf32> -> vector<256x128xf32>
    %213 = arith.addf %207, %212 : vector<256x128xf32>
    %214 = vector.broadcast %5 : vector<1x128xf32> to vector<256x128xf32>
    %215 = arith.mulf %213, %214 : vector<256x128xf32>
    %216 = vector.broadcast %6 : vector<1x128xf32> to vector<256x128xf32>
    %217 = arith.addf %215, %216 : vector<256x128xf32>
    %218 = vector.shape_cast %217 : vector<256x128xf32> to vector<16x16x128xf32>
    %c0_205 = arith.constant 0 : index
    %c0_206 = arith.constant 0 : index
    %c0_207 = arith.constant 0 : index
    %c0_208 = arith.constant 0 : index
    %219 = vector.load %arg8[%c0_205, %c0_206, %c0_207, %c0_208] : memref<1x16x16x128xf32, #tpu.memory_space<vmem>>, vector<1x16x16x128xf32>
    %220 = vector.shape_cast %219 : vector<1x16x16x128xf32> to vector<16x16x128xf32>
    %221 = vector.shape_cast %218 : vector<16x16x128xf32> to vector<1x16x16x128xf32>
    tpu.vector_store %arg8[%c0_205, %c0_206, %c0_207, %c0_208], %221 {strides = array<i32>} : memref<1x16x16x128xf32, #tpu.memory_space<vmem>>, vector<1x16x16x128xf32>,
    return
  }
  func.func @transform_0(%arg0: i32) -> (i32, i32, i32, i32) {
    %c0_i32 = arith.constant 0 : i32
    %c0_i32_0 = arith.constant 0 : i32
    %c0_i32_1 = arith.constant 0 : i32
    %c0_i32_2 = arith.constant 0 : i32
    return %arg0, %c0_i32, %c0_i32_0, %c0_i32_1 : i32, i32, i32, i32
  }
  func.func @transform_1(%arg0: i32) -> (i32, i32) {
    %c0_i32 = arith.constant 0 : i32
    %c0_i32_0 = arith.constant 0 : i32
    %c0_i32_1 = arith.constant 0 : i32
    return %c0_i32, %c0_i32_0 : i32, i32
  }
  func.func @transform_2(%arg0: i32) -> (i32, i32) {
    %c0_i32 = arith.constant 0 : i32
    %c0_i32_0 = arith.constant 0 : i32
    %c0_i32_1 = arith.constant 0 : i32
    return %c0_i32, %c0_i32_0 : i32, i32
  }
  func.func @transform_3(%arg0: i32) -> (i32, i32, i32) {
    %c0_i32 = arith.constant 0 : i32
    %c0_i32_0 = arith.constant 0 : i32
    %c0_i32_1 = arith.constant 0 : i32
    %c0_i32_2 = arith.constant 0 : i32
    return %c0_i32, %c0_i32_0, %c0_i32_1 : i32, i32, i32
  }
  func.func @transform_4(%arg0: i32) -> (i32, i32, i32) {
    %c0_i32 = arith.constant 0 : i32
    %c0_i32_0 = arith.constant 0 : i32
    %c0_i32_1 = arith.constant 0 : i32
    %c0_i32_2 = arith.constant 0 : i32
    return %c0_i32, %c0_i32_0, %c0_i32_1 : i32, i32, i32
  }
  func.func @transform_5(%arg0: i32) -> (i32, i32, i32) {
    %c0_i32 = arith.constant 0 : i32
    %c0_i32_0 = arith.constant 0 : i32
    %c0_i32_1 = arith.constant 0 : i32
    %c0_i32_2 = arith.constant 0 : i32
    return %c0_i32, %c0_i32_0, %c0_i32_1 : i32, i32, i32
  }
  func.func @transform_6(%arg0: i32) -> (i32, i32) {
    %c0_i32 = arith.constant 0 : i32
    %c0_i32_0 = arith.constant 0 : i32
    %c0_i32_1 = arith.constant 0 : i32
    return %c0_i32, %c0_i32_0 : i32, i32
  }
  func.func @transform_7(%arg0: i32) -> (i32, i32, i32, i32) {
    %c0_i32 = arith.constant 0 : i32
    %c0_i32_0 = arith.constant 0 : i32
    %c0_i32_1 = arith.constant 0 : i32
    %c0_i32_2 = arith.constant 0 : i32
    return %arg0, %c0_i32, %c0_i32_0, %c0_i32_1 : i32, i32, i32, i32
  }
}

</mosaic_0001>

<llo_original>
// kernel: tpu_custom_call.1
$region0: #{tpu_custom_call.1}
  #allocation0 [shape = 'u32[]', space=smem, size = 0x4, offset = 0x4, fixed_abs, tag = 'smem constant byte address 0x4 - core index']
  #allocation1 [shape = 'u32[144,128]{1,0:T(1,128)}', space=vmem, size = 0x12000, scoped, tag = 'internal scratch']
  #allocation2 [shape = 'f32[18,18,128]{2,1,0:T(8,128)}', space=vmem, size = 0x36000, scoped, tag = 'scratch operand']
  #allocation3 [shape = 'f32[18,18,128]{2,1,0:T(8,128)}', space=vmem, size = 0x36000, scoped, tag = 'scratch operand']
  %s0 = inlined_call_operand.hbm [shape: f32[2,16,16,128], index: 0, kind: input, shape index: {}]
  %s1 = inlined_call_operand.vmem [shape: f32[36,256], index: 1, kind: input, shape index: {}]
  %s2 = inlined_call_operand.vmem [shape: f32[256,16], index: 2, kind: input, shape index: {}]
  %s3 = inlined_call_operand.hbm [shape: f32[9,128,128], index: 3, kind: input, shape index: {}]
  %s4 = inlined_call_operand.hbm [shape: f32[9,128,128], index: 4, kind: input, shape index: {}]
  %s5 = inlined_call_operand.hbm [shape: f32[9,128,128], index: 5, kind: input, shape index: {}]
  %s6 = inlined_call_operand.vmem [shape: f32[6,128], index: 6, kind: input, shape index: {}]
  %s7 = inlined_call_operand.hbm [shape: f32[2,16,16,128], index: 7, kind: output, shape index: {}]
  %s8 = sld [smem:[#allocation0]]
  $region77: #{tpu_custom_call.1} parent=0
    _
  %s10 = ssub.s32 1, %s8
  %s11 = scalar_select 0, %s10, %s8
  $region1: #{tpu_custom_call.1} parent=0
    #allocation4 [shape = 'u8[262144]{0}', space=vmem, size = 0x40000, scoped, tag = 'input window, operand 0']
    #allocation5 [shape = 's32[2]{0}', space=sflag, size = 0x8, scoped, tag = 'scoped memory for tpu_custom_call.1']
    #allocation6 [shape = 's32[2]{0}', space=sflag, size = 0x8, scoped, tag = 'scoped memory for tpu_custom_call.1']
    #allocation7 [shape = 'u8[589824]{0}', space=vmem, size = 0x90000, scoped, tag = 'input window, operand 3, single buffered']
    #allocation8 [shape = 's32[1]{0}', space=sflag, size = 0x4, scoped, tag = 'scoped memory for tpu_custom_call.1']
    #allocation9 [shape = 'u8[589824]{0}', space=vmem, size = 0x90000, scoped, tag = 'input window, operand 4, single buffered']
    #allocation10 [shape = 'u8[589824]{0}', space=vmem, size = 0x90000, scoped, tag = 'input window, operand 5, single buffered']
    #allocation11 [shape = 's32[1]{0}', space=sflag, size = 0x4, scoped, tag = 'scoped memory for tpu_custom_call.1']
    #allocation12 [shape = 'u8[262144]{0}', space=vmem, size = 0x40000, scoped, tag = 'output window, operand 0']
    %12 = vsyncpa [#allocation5], 0
    %s13 = scalar_lea.sflag [#allocation5], 1
    %14 = vsyncpa %s13, 0
    %15 = vsyncpa [#allocation8], 0
    %16 = vsyncpa [#allocation11], 0
    %17 = vsyncpa [#allocation6], 0
    %s18 = scalar_lea.sflag [#allocation6], 1
    %19 = vsyncpa %s18, 0
    loop: start=0, step=1, limit=4
    $region2: #{tpu_custom_call.1} parent=1 // loop_pre_header
      _
    $region3: #{tpu_custom_call.1} parent=1 // loop_header
      %s21 = sphi 0, %s25
      %p22 = scmp.ge.s32.totalorder %s21, 4
      %s31 = sphi 0, %s33
      %s34 = sphi 0, %s31
      %s35 = sphi 0, %s34
      %s51 = sphi 0, %s35
      %s55 = sphi 0, %s55
      %s57 = sphi 0, %s55
      %s58 = sphi 0, %s57
      %s72 = sphi 0, %s58
      %s76 = sphi 0, %s76
      %s78 = sphi 0, %s76
      %s79 = sphi 0, %s78
      %s93 = sphi 0, %s79
      %s97 = sphi 0, %s97
      %s99 = sphi 0, %s97
      %s100 = sphi 0, %s99
      %s114 = sphi 0, %s100
      %s118 = sphi 0, %s118
      %s120 = sphi 0, %s118
      %s121 = sphi 0, %s120
      %s135 = sphi 0, %s121
      %s139 = sphi 0, %s139
      %s141 = sphi 0, %s139
      %s142 = sphi 0, %s141
      %s156 = sphi 0, %s142
      %s160 = sphi 0, %s160
      %s162 = sphi 0, %s160
      %s163 = sphi 0, %s162
      %s177 = sphi 0, %s163
      %s183 = sphi 0, %s185
      %s186 = sphi 0, %s183
      %s187 = sphi 0, %s186
      %s203 = sphi 0, %s187
    $region4: #{tpu_custom_call.1} parent=1 // loop_header_branch
      %24 = sbr.rel (%p22) target = $region8
    $region5: #{tpu_custom_call.1} parent=1 // loop_body
      %s26 = ssub.s32 %s21, 1
      %s27 = ssub.s32 %s21, 2
      %s28 = sadd.s32 %s21, 1
      %s29 = ssub.s32 %s21, %s28
      %p30 = scmp.eq.s32.totalorder %s29, 0
      %s32 = sadd.s32 %s31, 1
      %s33 = scalar_select %p30, %s31, %s32
      %p36 = pneg %p30
      %p37 = scmp.eq.s32.totalorder %s21, 1
      %p38 = por %p36, %p37
      %p39 = scmp.ne.s32.totalorder %s31, %s34
      %p40 = scmp.eq.s32.totalorder %s21, 0
      %p41 = por %p39, %p40
      %p42 = scmp.ne.s32.totalorder %s31, %s34
      %p43 = scmp.eq.s32.totalorder %s26, 1
      %p44 = por %p42, %p43
      %p45 = scmp.ne.s32.totalorder %s34, %s35
      %p46 = scmp.eq.s32.totalorder %s26, 0
      %p47 = por %p45, %p46
      %p48 = scmp.ne.s32.totalorder %s34, %s35
      %p49 = scmp.eq.s32.totalorder %s27, 1
      %p50 = por %p48, %p49
      %p52 = scmp.ne.s32.totalorder %s35, %s51
      %p53 = scmp.eq.s32.totalorder %s27, 0
      %p54 = por %p52, %p53
      %s56 = sadd.s32 %s55, 1
      %p59 = scmp.eq.s32.totalorder %s21, 1
      %p60 = scmp.ne.s32.totalorder %s55, %s57
      %p61 = scmp.eq.s32.totalorder %s21, 0
      %p62 = por %p60, %p61
      %p63 = scmp.ne.s32.totalorder %s55, %s57
      %p64 = scmp.eq.s32.totalorder %s26, 1
      %p65 = por %p63, %p64
      %p66 = scmp.ne.s32.totalorder %s57, %s58
      %p67 = scmp.eq.s32.totalorder %s26, 0
      %p68 = por %p66, %p67
      %p69 = scmp.ne.s32.totalorder %s57, %s58
      %p70 = scmp.eq.s32.totalorder %s27, 1
      %p71 = por %p69, %p70
      %p73 = scmp.ne.s32.totalorder %s58, %s72
      %p74 = scmp.eq.s32.totalorder %s27, 0
      %p75 = por %p73, %p74
      %s77 = sadd.s32 %s76, 1
      %p80 = scmp.eq.s32.totalorder %s21, 1
      %p81 = scmp.ne.s32.totalorder %s76, %s78
      %p82 = scmp.eq.s32.totalorder %s21, 0
      %p83 = por %p81, %p82
      %p84 = scmp.ne.s32.totalorder %s76, %s78
      %p85 = scmp.eq.s32.totalorder %s26, 1
      %p86 = por %p84, %p85
      %p87 = scmp.ne.s32.totalorder %s78, %s79
      %p88 = scmp.eq.s32.totalorder %s26, 0
      %p89 = por %p87, %p88
      %p90 = scmp.ne.s32.totalorder %s78, %s79
      %p91 = scmp.eq.s32.totalorder %s27, 1
      %p92 = por %p90, %p91
      %p94 = scmp.ne.s32.totalorder %s79, %s93
      %p95 = scmp.eq.s32.totalorder %s27, 0
      %p96 = por %p94, %p95
      %s98 = sadd.s32 %s97, 1
      %p101 = scmp.eq.s32.totalorder %s21, 1
      %p102 = scmp.ne.s32.totalorder %s97, %s99
      %p103 = scmp.eq.s32.totalorder %s21, 0
      %p104 = por %p102, %p103
      %p105 = scmp.ne.s32.totalorder %s97, %s99
      %p106 = scmp.eq.s32.totalorder %s26, 1
      %p107 = por %p105, %p106
      %p108 = scmp.ne.s32.totalorder %s99, %s100
      %p109 = scmp.eq.s32.totalorder %s26, 0
      %p110 = por %p108, %p109
      %p111 = scmp.ne.s32.totalorder %s99, %s100
      %p112 = scmp.eq.s32.totalorder %s27, 1
      %p113 = por %p111, %p112
      %p115 = scmp.ne.s32.totalorder %s100, %s114
      %p116 = scmp.eq.s32.totalorder %s27, 0
      %p117 = por %p115, %p116
      %s119 = sadd.s32 %s118, 1
      %p122 = scmp.eq.s32.totalorder %s21, 1
      %p123 = scmp.ne.s32.totalorder %s118, %s120
      %p124 = scmp.eq.s32.totalorder %s21, 0
      %p125 = por %p123, %p124
      %p126 = scmp.ne.s32.totalorder %s118, %s120
      %p127 = scmp.eq.s32.totalorder %s26, 1
      %p128 = por %p126, %p127
      %p129 = scmp.ne.s32.totalorder %s120, %s121
      %p130 = scmp.eq.s32.totalorder %s26, 0
      %p131 = por %p129, %p130
      %p132 = scmp.ne.s32.totalorder %s120, %s121
      %p133 = scmp.eq.s32.totalorder %s27, 1
      %p134 = por %p132, %p133
      %p136 = scmp.ne.s32.totalorder %s121, %s135
      %p137 = scmp.eq.s32.totalorder %s27, 0
      %p138 = por %p136, %p137
      %s140 = sadd.s32 %s139, 1
      %p143 = scmp.eq.s32.totalorder %s21, 1
      %p144 = scmp.ne.s32.totalorder %s139, %s141
      %p145 = scmp.eq.s32.totalorder %s21, 0
      %p146 = por %p144, %p145
      %p147 = scmp.ne.s32.totalorder %s139, %s141
      %p148 = scmp.eq.s32.totalorder %s26, 1
      %p149 = por %p147, %p148
      %p150 = scmp.ne.s32.totalorder %s141, %s142
      %p151 = scmp.eq.s32.totalorder %s26, 0
      %p152 = por %p150, %p151
      %p153 = scmp.ne.s32.totalorder %s141, %s142
      %p154 = scmp.eq.s32.totalorder %s27, 1
      %p155 = por %p153, %p154
      %p157 = scmp.ne.s32.totalorder %s142, %s156
      %p158 = scmp.eq.s32.totalorder %s27, 0
      %p159 = por %p157, %p158
      %s161 = sadd.s32 %s160, 1
      %p164 = scmp.eq.s32.totalorder %s21, 1
      %p165 = scmp.ne.s32.totalorder %s160, %s162
      %p166 = scmp.eq.s32.totalorder %s21, 0
      %p167 = por %p165, %p166
      %p168 = scmp.ne.s32.totalorder %s160, %s162
      %p169 = scmp.eq.s32.totalorder %s26, 1
      %p170 = por %p168, %p169
      %p171 = scmp.ne.s32.totalorder %s162, %s163
      %p172 = scmp.eq.s32.totalorder %s26, 0
      %p173 = por %p171, %p172
      %p174 = scmp.ne.s32.totalorder %s162, %s163
      %p175 = scmp.eq.s32.totalorder %s27, 1
      %p176 = por %p174, %p175
      %p178 = scmp.ne.s32.totalorder %s163, %s177
      %p179 = scmp.eq.s32.totalorder %s27, 0
      %p180 = por %p178, %p179
      %s181 = ssub.s32 %s21, %s28
      %p182 = scmp.eq.s32.totalorder %s181, 0
      %s184 = sadd.s32 %s183, 1
      %s185 = scalar_select %p182, %s183, %s184
      %p188 = pneg %p182
      %p189 = scmp.eq.s32.totalorder %s21, 1
      %p190 = por %p188, %p189
      %p191 = scmp.ne.s32.totalorder %s183, %s186
      %p192 = scmp.eq.s32.totalorder %s21, 0
      %p193 = por %p191, %p192
      %p194 = scmp.ne.s32.totalorder %s183, %s186
      %p195 = scmp.eq.s32.totalorder %s26, 1
      %p196 = por %p194, %p195
      %p197 = scmp.ne.s32.totalorder %s186, %s187
      %p198 = scmp.eq.s32.totalorder %s26, 0
      %p199 = por %p197, %p198
      %p200 = scmp.ne.s32.totalorder %s186, %s187
      %p201 = scmp.eq.s32.totalorder %s27, 1
      %p202 = por %p200, %p201
      %p204 = scmp.ne.s32.totalorder %s187, %s203
      %p205 = scmp.eq.s32.totalorder %s27, 0
      %p206 = por %p204, %p205
      %p207 = scmp.le.s32.totalorder 1, %s21
      %p208 = scmp.lt.s32.totalorder %s21, 3
      %p209 = pnand %p207, %p208
      %p210 = pneg %p209
      // Predicated region
      $region9: #{tpu_custom_call.1} parent=5 // pred_check
        _
      $region10: #{tpu_custom_call.1} parent=5 // pred_check_branch
        %212 = sbr.rel (%p209) target = $region12
      $region11: #{tpu_custom_call.1} parent=5 // pred_region
        %s213 = ssub.s32 %s21, 1
        // Predicated region
        $region13: #{tpu_custom_call.1} parent=11 // pred_check
          %p214 = pneg %p68
        $region14: #{tpu_custom_call.1} parent=11 // pred_check_branch
          %216 = sbr.rel (%p214) target = $region16
        $region15: #{tpu_custom_call.1} parent=11 // pred_region
          _
        $region16: #{tpu_custom_call.1} parent=11 // pred_fallthru
          _
        // Predicated region
        $region17: #{tpu_custom_call.1} parent=11 // pred_check
          %p217 = pneg %p89
        $region18: #{tpu_custom_call.1} parent=11 // pred_check_branch
          %219 = sbr.rel (%p217) target = $region20
        $region19: #{tpu_custom_call.1} parent=11 // pred_region
          _
        $region20: #{tpu_custom_call.1} parent=11 // pred_fallthru
          _
        // Predicated region
        $region21: #{tpu_custom_call.1} parent=11 // pred_check
          %p220 = pneg %p110
        $region22: #{tpu_custom_call.1} parent=11 // pred_check_branch
          %222 = sbr.rel (%p220) target = $region24
        $region23: #{tpu_custom_call.1} parent=11 // pred_region
          %s224 = ssub.s32 18432, 18432
          %225 = vsyncadd [#allocation8], %s224
          %s226 = sshll.u32 [#allocation7], 4
          %s227 = int_to_ptr.vmem [resolvable:$true] %s226
          %232 = dma.hbm_to_vmem [thread:$0]  %s3, 18432, %s227, [#allocation8], 128, 128, 8
        $region24: #{tpu_custom_call.1} parent=11 // pred_fallthru
          _
        // Predicated region
        $region25: #{tpu_custom_call.1} parent=11 // pred_check
          %p233 = pneg %p131
        $region26: #{tpu_custom_call.1} parent=11 // pred_check_branch
          %235 = sbr.rel (%p233) target = $region28
        $region27: #{tpu_custom_call.1} parent=11 // pred_region
          %s237 = ssub.s32 18432, 18432
          %238 = vsyncadd [#allocation8], %s237
          %s239 = sshll.u32 [#allocation9], 4
          %s240 = int_to_ptr.vmem [resolvable:$true] %s239
          %245 = dma.hbm_to_vmem [thread:$0]  %s4, 18432, %s240, [#allocation8], 128, 128, 8
        $region28: #{tpu_custom_call.1} parent=11 // pred_fallthru
          _
        // Predicated region
        $region29: #{tpu_custom_call.1} parent=11 // pred_check
          %p246 = pneg %p152
        $region30: #{tpu_custom_call.1} parent=11 // pred_check_branch
          %248 = sbr.rel (%p246) target = $region32
        $region31: #{tpu_custom_call.1} parent=11 // pred_region
          %s250 = ssub.s32 18432, 18432
          %251 = vsyncadd [#allocation11], %s250
          %s252 = sshll.u32 [#allocation10], 4
          %s253 = int_to_ptr.vmem [resolvable:$true] %s252
          %258 = dma.hbm_to_vmem [thread:$0]  %s5, 18432, %s253, [#allocation11], 128, 128, 8
        $region32: #{tpu_custom_call.1} parent=11 // pred_fallthru
          _
        // Predicated region
        $region33: #{tpu_custom_call.1} parent=11 // pred_check
          %p259 = pneg %p173
        $region34: #{tpu_custom_call.1} parent=11 // pred_check_branch
          %261 = sbr.rel (%p259) target = $region36
        $region35: #{tpu_custom_call.1} parent=11 // pred_region
          _
        $region36: #{tpu_custom_call.1} parent=11 // pred_fallthru
          _
      $region12: #{tpu_custom_call.1} parent=5 // pred_fallthru
        _
      %p262 = scmp.lt.s32.totalorder %s21, 2
      // Predicated region
      $region37: #{tpu_custom_call.1} parent=5 // pred_check
        %p263 = pneg %p262
      $region38: #{tpu_custom_call.1} parent=5 // pred_check_branch
        %265 = sbr.rel (%p263) target = $region40
      $region39: #{tpu_custom_call.1} parent=5 // pred_region
        // Predicated region
        $region41: #{tpu_custom_call.1} parent=39 // pred_check
          %p266 = pneg %p41
        $region42: #{tpu_custom_call.1} parent=39 // pred_check_branch
          %268 = sbr.rel (%p266) target = $region44
        $region43: #{tpu_custom_call.1} parent=39 // pred_region
          %s269 = sand.u32 %s31, 1
          %s270 = scalar_lea.sflag [#allocation5], %s269
          %s271 = sand.u32 %s31, 1
          %s272 = smul.addr %s271, 256
          %s273 = scalar_lea.vmem [#allocation4], %s272
          %s275 = ssub.s32 4096, 4096
          %276 = vsyncadd %s270, %s275
          %s277 = smul.addr %s21, 32
          %s278 = smul.addr %s277, 128
          %s279 = scalar_lea.hbm %s0, %s278
          %s280 = sshll.u32 %s273, 4
          %s281 = int_to_ptr.vmem [resolvable:$true] %s280
          %286 = dma.hbm_to_vmem [thread:$0]  %s279, 4096, %s281, %s270, 128, 128, 8
        $region44: #{tpu_custom_call.1} parent=39 // pred_fallthru
          _
      $region40: #{tpu_custom_call.1} parent=5 // pred_fallthru
        _
      %p287 = scmp.le.s32.totalorder 1, %s21
      %p288 = scmp.lt.s32.totalorder %s21, 3
      %p289 = pnand %p287, %p288
      %p290 = pneg %p289
      // Predicated region
      $region45: #{tpu_custom_call.1} parent=5 // pred_check
        _
      $region46: #{tpu_custom_call.1} parent=5 // pred_check_branch
        %292 = sbr.rel (%p289) target = $region48
      $region47: #{tpu_custom_call.1} parent=5 // pred_region
        %s293 = ssub.s32 %s21, 1
        %s294 = sand.u32 %s34, 1
        %s295 = scalar_lea.sflag [#allocation5], %s294
        %s296 = sand.u32 %s34, 1
        %s297 = smul.addr %s296, 256
        %s298 = scalar_lea.vmem [#allocation4], %s297
        // Predicated region
        $region49: #{tpu_custom_call.1} parent=47 // pred_check
          %p299 = pneg %p47
        $region50: #{tpu_custom_call.1} parent=47 // pred_check_branch
          %301 = sbr.rel (%p299) target = $region52
        $region51: #{tpu_custom_call.1} parent=47 // pred_region
          %302 = dma.done %s295, 4096
        $region52: #{tpu_custom_call.1} parent=47 // pred_fallthru
          _
        // Predicated region
        $region53: #{tpu_custom_call.1} parent=47 // pred_check
          %p303 = pneg %p110
        $region54: #{tpu_custom_call.1} parent=47 // pred_check_branch
          %305 = sbr.rel (%p303) target = $region56
        $region55: #{tpu_custom_call.1} parent=47 // pred_region
          %306 = dma.done [#allocation8], 18432
        $region56: #{tpu_custom_call.1} parent=47 // pred_fallthru
          _
        // Predicated region
        $region57: #{tpu_custom_call.1} parent=47 // pred_check
          %p307 = pneg %p131
        $region58: #{tpu_custom_call.1} parent=47 // pred_check_branch
          %309 = sbr.rel (%p307) target = $region60
        $region59: #{tpu_custom_call.1} parent=47 // pred_region
          %310 = dma.done [#allocation8], 18432
        $region60: #{tpu_custom_call.1} parent=47 // pred_fallthru
          _
        // Predicated region
        $region61: #{tpu_custom_call.1} parent=47 // pred_check
          %p311 = pneg %p152
        $region62: #{tpu_custom_call.1} parent=47 // pred_check_branch
          %313 = sbr.rel (%p311) target = $region64
        $region63: #{tpu_custom_call.1} parent=47 // pred_region
          %314 = dma.done [#allocation11], 18432
        $region64: #{tpu_custom_call.1} parent=47 // pred_fallthru
          _
        %s315 = sand.u32 %s34, 1
        %s316 = scalar_lea.sflag [#allocation5], %s315
        %s317 = sand.u32 %s34, 1
        %s318 = smul.addr %s317, 256
        %s319 = scalar_lea.vmem [#allocation4], %s318
        %p320 = pneg %p47
        %p321 = pneg %p44
        %p322 = pneg %p68
        %p323 = pneg %p65
        %p324 = pneg %p89
        %p325 = pneg %p86
        %p326 = pneg %p110
        %p327 = pneg %p107
        %p328 = pneg %p131
        %p329 = pneg %p128
        %p330 = pneg %p152
        %p331 = pneg %p149
        %p332 = pneg %p173
        %p333 = pneg %p170
        %p334 = pneg %p199
        %p335 = pneg %p196
        %s336 = sand.u32 %s186, 1
        %s337 = scalar_lea.sflag [#allocation6], %s336
        %s338 = sand.u32 %s186, 1
        %s339 = smul.addr %s338, 256
        %s340 = scalar_lea.vmem [#allocation12], %s339
        %v341 = vld [vmem:[%s6] sm:$0x3f]
        %v342 = vld [vmem:[%s298] sm:$0xff]
        %v343 = vld [vmem:[%s298 + $0x8] sm:$0xff]
        %v344 = vld [vmem:[%s298 + $0x10] sm:$0xff]
        %v345 = vld [vmem:[%s298 + $0x18] sm:$0xff]
        %v346 = vld [vmem:[%s298 + $0x20] sm:$0xff]
        %v347 = vld [vmem:[%s298 + $0x28] sm:$0xff]
        %v348 = vld [vmem:[%s298 + $0x30] sm:$0xff]
        %v349 = vld [vmem:[%s298 + $0x38] sm:$0xff]
        %v350 = vld [vmem:[%s298 + $0x40] sm:$0xff]
        %v351 = vld [vmem:[%s298 + $0x48] sm:$0xff]
        %v352 = vld [vmem:[%s298 + $0x50] sm:$0xff]
        %v353 = vld [vmem:[%s298 + $0x58] sm:$0xff]
        %v354 = vld [vmem:[%s298 + $0x60] sm:$0xff]
        %v355 = vld [vmem:[%s298 + $0x68] sm:$0xff]
        %v356 = vld [vmem:[%s298 + $0x70] sm:$0xff]
        %v357 = vld [vmem:[%s298 + $0x78] sm:$0xff]
        %v358 = vld [vmem:[%s298 + $0x80] sm:$0xff]
        %v359 = vld [vmem:[%s298 + $0x88] sm:$0xff]
        %v360 = vld [vmem:[%s298 + $0x90] sm:$0xff]
        %v361 = vld [vmem:[%s298 + $0x98] sm:$0xff]
        %v362 = vld [vmem:[%s298 + $0xa0] sm:$0xff]
        %v363 = vld [vmem:[%s298 + $0xa8] sm:$0xff]
        %v364 = vld [vmem:[%s298 + $0xb0] sm:$0xff]
        %v365 = vld [vmem:[%s298 + $0xb8] sm:$0xff]
        %v366 = vld [vmem:[%s298 + $0xc0] sm:$0xff]
        %v367 = vld [vmem:[%s298 + $0xc8] sm:$0xff]
        %v368 = vld [vmem:[%s298 + $0xd0] sm:$0xff]
        %v369 = vld [vmem:[%s298 + $0xd8] sm:$0xff]
        %v370 = vld [vmem:[%s298 + $0xe0] sm:$0xff]
        %v371 = vld [vmem:[%s298 + $0xe8] sm:$0xff]
        %v372 = vld [vmem:[%s298 + $0xf0] sm:$0xff]
        %v373 = vld [vmem:[%s298 + $0xf8] sm:$0xff]
        %v374 = vld [vmem:[%s1] sm:$0xff]
        %v375 = vld [vmem:[%s1 + $0x8] sm:$0xff]
        %v376 = vld [vmem:[%s1 + $0x10] sm:$0xff]
        %v377 = vld [vmem:[%s1 + $0x18] sm:$0xff]
        %v378 = vld [vmem:[%s1 + $0x20] sm:$0xff]
        %v379 = vld [vmem:[%s1 + $0x28] sm:$0xff]
        %v380 = vld [vmem:[%s1 + $0x30] sm:$0xff]
        %v381 = vld [vmem:[%s1 + $0x38] sm:$0xff]
        %v382 = vld [vmem:[%s1 + $0x40] sm:$0xf]
        %v383 = vld [vmem:[%s1 + $0x48] sm:$0xf]
        %384 = vmatprep.subr.mxu0 0.0
        %385 = vmatpush1.msra.mxu0 %v342
        %386 = vmatprep.subr.mxu0 0.0
        %387 = vmatpush1.msra.mxu0 %v343
        %388 = vmatprep.subr.mxu0 0.0
        %389 = vmatpush1.msra.mxu0 %v344
        %390 = vmatprep.subr.mxu0 0.0
        %391 = vmatpush1.msra.mxu0 %v345
        %392 = vmatprep.subr.mxu0 0.0
        %393 = vmatpush1.msra.mxu0 %v346
        %394 = vmatprep.subr.mxu0 0.0
        %395 = vmatpush1.msra.mxu0 %v347
        %396 = vmatprep.subr.mxu0 0.0
        %397 = vmatpush1.msra.mxu0 %v348
        %398 = vmatprep.subr.mxu0 0.0
        %399 = vmatpush1.msra.mxu0 %v349
        %400 = vmatprep.subr.mxu0 0.0
        %401 = vmatpush1.msra.mxu0 %v350
        %402 = vmatprep.subr.mxu0 0.0
        %403 = vmatpush1.msra.mxu0 %v351
        %404 = vmatprep.subr.mxu0 0.0
        %405 = vmatpush1.msra.mxu0 %v352
        %406 = vmatprep.subr.mxu0 0.0
        %407 = vmatpush1.msra.mxu0 %v353
        %408 = vmatprep.subr.mxu0 0.0
        %409 = vmatpush1.msra.mxu0 %v354
        %410 = vmatprep.subr.mxu0 0.0
        %411 = vmatpush1.msra.mxu0 %v355
        %412 = vmatprep.subr.mxu0 0.0
        %413 = vmatpush1.msra.mxu0 %v356
        %414 = vmatprep.subr.mxu0 0.0
        %415 = vmatpush1.msra.mxu0 %v357
        %416 = vmatprep.subr.mxu0 0.0
        %417 = vmatpush1.msra.mxu0 %v358
        %418 = vmatprep.subr.mxu0 0.0
        %419 = vmatpush1.msra.mxu0 %v359
        %420 = vmatprep.subr.mxu0 0.0
        %421 = vmatpush1.msra.mxu0 %v360
        %422 = vmatprep.subr.mxu0 0.0
        %423 = vmatpush1.msra.mxu0 %v361
        %424 = vmatprep.subr.mxu0 0.0
        %425 = vmatpush1.msra.mxu0 %v362
        %426 = vmatprep.subr.mxu0 0.0
        %427 = vmatpush1.msra.mxu0 %v363
        %428 = vmatprep.subr.mxu0 0.0
        %429 = vmatpush1.msra.mxu0 %v364
        %430 = vmatprep.subr.mxu0 0.0
        %431 = vmatpush1.msra.mxu0 %v365
        %432 = vmatprep.subr.mxu0 0.0
        %433 = vmatpush1.msra.mxu0 %v366
        %434 = vmatprep.subr.mxu0 0.0
        %435 = vmatpush1.msra.mxu0 %v367
        %436 = vmatprep.subr.mxu0 0.0
        %437 = vmatpush1.msra.mxu0 %v368
        %438 = vmatprep.subr.mxu0 0.0
        %439 = vmatpush1.msra.mxu0 %v369
        %440 = vmatprep.subr.mxu0 0.0
        %441 = vmatpush1.msra.mxu0 %v370
        %442 = vmatprep.subr.mxu0 0.0
        %443 = vmatpush1.msra.mxu0 %v371
        %444 = vmatprep.subr.mxu0 0.0
        %445 = vmatpush1.msra.mxu0 %v372
        %446 = vmatprep.subr.mxu0 0.0
        %447 = vmatpush1.msra.mxu0 %v373
        %448 = vmatprep.mubr.f32.mxu0 %v375
        %449 = vmatmul.mubr.f32.gmra.mrb[0].mxu0 %v374
        %v450 = vpop.f32.mrb[0].mxu0
        %v451 = vadd.f32 0.0, %v450
        %v452 = vpop.f32.mrb[0].mxu0
        %453 = vmatprep.mubr.f32.mxu0 %v377
        %454 = vmatmul.mubr.f32.gmra.mrb[0].mxu0 %v376
        %v455 = vpop.f32.mrb[0].mxu0
        %v456 = vadd.f32 0.0, %v455
        %v457 = vpop.f32.mrb[0].mxu0
        %458 = vmatprep.mubr.f32.mxu0 %v379
        %459 = vmatmul.mubr.f32.gmra.mrb[0].mxu0 %v378
        %v460 = vpop.f32.mrb[0].mxu0
        %v461 = vadd.f32 0.0, %v460
        %v462 = vpop.f32.mrb[0].mxu0
        %463 = vmatprep.mubr.f32.mxu0 %v381
        %464 = vmatmul.mubr.f32.gmra.mrb[0].mxu0 %v380
        %v465 = vpop.f32.mrb[0].mxu0
        %v466 = vadd.f32 0.0, %v465
        %v467 = vpop.f32.mrb[0].mxu0
        %468 = vmatprep.mubr.f32.mxu0 %v383
        %469 = vmatmul.mubr.f32.gmra.mrb[0].mxu0 %v382
        %v470 = vpop.f32.mrb[0].mxu0
        %v471 = vadd.f32 0.0, %v470
        %v472 = vpop.f32.mrb[0].mxu0
        %473 = vdwg.mxu0
        %v479 = vcombine.high %v451, %v451
        %v481 = vunpack.c.l.s4 1983009808
        %v482 = vunpack.c.0.s8 %v481
        %v483 = vlaneseq
        %v484 = vshrl.u32 %v483, 7
        %v485 = vsub.s32 %v482, %v484
        %v486 = vrot.slane %v451, %v485
        %v488 = vunpack.c.l.s4 1983009808
        %v489 = vunpack.c.0.s8 %v488
        %v490 = vlaneseq
        %v491 = vshrl.u32 %v490, 7
        %v492 = vsub.s32 %v489, %v491
        %v493 = vrot.slane %v479, %v492
        %v494 = vcombine.high %v486, %v486
        %v495 = vcombine.high %v493, %v493
        %v496 = vcombine.high %v456, %v456
        %v498 = vunpack.c.l.s4 1983009808
        %v499 = vunpack.c.0.s8 %v498
        %v500 = vlaneseq
        %v501 = vshrl.u32 %v500, 7
        %v502 = vsub.s32 %v499, %v501
        %v503 = vrot.slane %v456, %v502
        %v505 = vunpack.c.l.s4 1983009808
        %v506 = vunpack.c.0.s8 %v505
        %v507 = vlaneseq
        %v508 = vshrl.u32 %v507, 7
        %v509 = vsub.s32 %v506, %v508
        %v510 = vrot.slane %v496, %v509
        %v511 = vcombine.high %v503, %v503
        %v512 = vcombine.high %v510, %v510
        %v513 = vcombine.high %v461, %v461
        %v515 = vunpack.c.l.s4 1983009808
        %v516 = vunpack.c.0.s8 %v515
        %v517 = vlaneseq
        %v518 = vshrl.u32 %v517, 7
        %v519 = vsub.s32 %v516, %v518
        %v520 = vrot.slane %v461, %v519
        %v522 = vunpack.c.l.s4 1983009808
        %v523 = vunpack.c.0.s8 %v522
        %v524 = vlaneseq
        %v525 = vshrl.u32 %v524, 7
        %v526 = vsub.s32 %v523, %v525
        %v527 = vrot.slane %v513, %v526
        %v528 = vcombine.high %v520, %v520
        %v529 = vcombine.high %v527, %v527
        %v530 = vcombine.high %v466, %v466
        %v532 = vunpack.c.l.s4 1983009808
        %v533 = vunpack.c.0.s8 %v532
        %v534 = vlaneseq
        %v535 = vshrl.u32 %v534, 7
        %v536 = vsub.s32 %v533, %v535
        %v537 = vrot.slane %v466, %v536
        %v539 = vunpack.c.l.s4 1983009808
        %v540 = vunpack.c.0.s8 %v539
        %v541 = vlaneseq
        %v542 = vshrl.u32 %v541, 7
        %v543 = vsub.s32 %v540, %v542
        %v544 = vrot.slane %v530, %v543
        %v545 = vcombine.high %v537, %v537
        %v546 = vcombine.high %v544, %v544
        %v548 = vunpack.c.l.s4 1983009808
        %v549 = vunpack.c.0.s8 %v548
        %v550 = vlaneseq
        %v551 = vshrl.u32 %v550, 7
        %v552 = vsub.s32 %v549, %v551
        %v553 = vrot.slane %v471, %v552
        %v554 = vcombine.high %v553, %v553
        %v555 = vld [vmem:[#allocation7] sm:$0xff]
        %v556 = vld [vmem:[#allocation7 + $0x8] sm:$0xff]
        %v557 = vld [vmem:[#allocation7 + $0x10] sm:$0xff]
        %v558 = vld [vmem:[#allocation7 + $0x18] sm:$0xff]
        %v559 = vld [vmem:[#allocation7 + $0x20] sm:$0xff]
        %v560 = vld [vmem:[#allocation7 + $0x28] sm:$0xff]
        %v561 = vld [vmem:[#allocation7 + $0x30] sm:$0xff]
        %v562 = vld [vmem:[#allocation7 + $0x38] sm:$0xff]
        %v563 = vld [vmem:[#allocation7 + $0x40] sm:$0xff]
        %v564 = vld [vmem:[#allocation7 + $0x48] sm:$0xff]
        %v565 = vld [vmem:[#allocation7 + $0x50] sm:$0xff]
        %v566 = vld [vmem:[#allocation7 + $0x58] sm:$0xff]
        %v567 = vld [vmem:[#allocation7 + $0x60] sm:$0xff]
        %v568 = vld [vmem:[#allocation7 + $0x68] sm:$0xff]
        %v569 = vld [vmem:[#allocation7 + $0x70] sm:$0xff]
        %v570 = vld [vmem:[#allocation7 + $0x78] sm:$0xff]
        %vm571 = vcmask 1040384
        %vm572 = vcmask 1042434
        %vm573 = vmor %vm571, %vm572
        %vm574 = vcmask 1044484
        %vm575 = vmor %vm573, %vm574
        %vm576 = vcmask 1046534
        %vm577 = vmor %vm575, %vm576
        %v578 = vrot.slane %v486, 7
        %v579 = vrot.slane %v578, 2
        %v580 = vrot.slane %v494, 7
        %v581 = vsel %vm577, %v579, %v580
        %v582 = vrot.slane %v580, 2
        %v583 = vrot.slane %v493, 7
        %v584 = vsel %vm577, %v582, %v583
        %v585 = vrot.slane %v495, 7
        %v586 = vrot.slane %v585, 2
        %v587 = vrot.slane %v503, 7
        %v588 = vsel %vm577, %v586, %v587
        %v589 = vrot.slane %v587, 2
        %v590 = vrot.slane %v511, 7
        %v591 = vsel %vm577, %v589, %v590
        %v592 = vrot.slane %v510, 7
        %v593 = vrot.slane %v592, 2
        %v594 = vrot.slane %v512, 7
        %v595 = vsel %vm577, %v593, %v594
        %v596 = vrot.slane %v594, 2
        %v597 = vrot.slane %v520, 7
        %v598 = vsel %vm577, %v596, %v597
        %v599 = vrot.slane %v528, 7
        %v600 = vrot.slane %v599, 2
        %v601 = vrot.slane %v527, 7
        %v602 = vsel %vm577, %v600, %v601
        %v603 = vrot.slane %v601, 2
        %v604 = vrot.slane %v529, 7
        %v605 = vsel %vm577, %v603, %v604
        %s606 = scalar_lea.vmem [#allocation7], 128
        %v607 = vld [vmem:[%s606] sm:$0xff]
        %v608 = vld [vmem:[%s606 + $0x8] sm:$0xff]
        %v609 = vld [vmem:[%s606 + $0x10] sm:$0xff]
        %v610 = vld [vmem:[%s606 + $0x18] sm:$0xff]
        %v611 = vld [vmem:[%s606 + $0x20] sm:$0xff]
        %v612 = vld [vmem:[%s606 + $0x28] sm:$0xff]
        %v613 = vld [vmem:[%s606 + $0x30] sm:$0xff]
        %v614 = vld [vmem:[%s606 + $0x38] sm:$0xff]
        %v615 = vld [vmem:[%s606 + $0x40] sm:$0xff]
        %v616 = vld [vmem:[%s606 + $0x48] sm:$0xff]
        %v617 = vld [vmem:[%s606 + $0x50] sm:$0xff]
        %v618 = vld [vmem:[%s606 + $0x58] sm:$0xff]
        %v619 = vld [vmem:[%s606 + $0x60] sm:$0xff]
        %v620 = vld [vmem:[%s606 + $0x68] sm:$0xff]
        %v621 = vld [vmem:[%s606 + $0x70] sm:$0xff]
        %v622 = vld [vmem:[%s606 + $0x78] sm:$0xff]
        %v623 = vcombine.low %v581, %v584
        %v624 = vcombine.low %v588, %v591
        %v626 = vunpack.c.l.s4 1983009808
        %v627 = vunpack.c.0.s8 %v626
        %v628 = vlaneseq
        %v629 = vshrl.u32 %v628, 7
        %v630 = vsub.s32 %v627, %v629
        %v631 = vrot.slane %v623, %v630
        %v633 = vunpack.c.l.s4 1983009808
        %v634 = vunpack.c.0.s8 %v633
        %v635 = vlaneseq
        %v636 = vshrl.u32 %v635, 7
        %v637 = vsub.s32 %v634, %v636
        %v638 = vrot.slane %v624, %v637
        %v639 = vcombine.low %v631, %v638
        %v640 = vcombine.low %v595, %v598
        %v641 = vcombine.low %v602, %v605
        %v643 = vunpack.c.l.s4 1983009808
        %v644 = vunpack.c.0.s8 %v643
        %v645 = vlaneseq
        %v646 = vshrl.u32 %v645, 7
        %v647 = vsub.s32 %v644, %v646
        %v648 = vrot.slane %v640, %v647
        %v650 = vunpack.c.l.s4 1983009808
        %v651 = vunpack.c.0.s8 %v650
        %v652 = vlaneseq
        %v653 = vshrl.u32 %v652, 7
        %v654 = vsub.s32 %v651, %v653
        %v655 = vrot.slane %v641, %v654
        %v656 = vcombine.low %v648, %v655
        %659 = vmatprep.subr.mxu0 0.0
        %660 = vmatpush1.msra.mxu0 %v607
        %661 = vmatprep.subr.mxu0 0.0
        %662 = vmatpush1.msra.mxu0 %v608
        %663 = vmatprep.subr.mxu0 0.0
        %664 = vmatpush1.msra.mxu0 %v609
        %665 = vmatprep.subr.mxu0 0.0
        %666 = vmatpush1.msra.mxu0 %v610
        %667 = vmatprep.subr.mxu0 0.0
        %668 = vmatpush1.msra.mxu0 %v611
        %669 = vmatprep.subr.mxu0 0.0
        %670 = vmatpush1.msra.mxu0 %v612
        %671 = vmatprep.subr.mxu0 0.0
        %672 = vmatpush1.msra.mxu0 %v613
        %673 = vmatprep.subr.mxu0 0.0
        %674 = vmatpush1.msra.mxu0 %v614
        %675 = vmatprep.subr.mxu0 0.0
        %676 = vmatpush1.msra.mxu0 %v615
        %677 = vmatprep.subr.mxu0 0.0
        %678 = vmatpush1.msra.mxu0 %v616
        %679 = vmatprep.subr.mxu0 0.0
        %680 = vmatpush1.msra.mxu0 %v617
        %681 = vmatprep.subr.mxu0 0.0
        %682 = vmatpush1.msra.mxu0 %v618
        %683 = vmatprep.subr.mxu0 0.0
        %684 = vmatpush1.msra.mxu0 %v619
        %685 = vmatprep.subr.mxu0 0.0
        %686 = vmatpush1.msra.mxu0 %v620
        %687 = vmatprep.subr.mxu0 0.0
        %688 = vmatpush1.msra.mxu0 %v621
        %689 = vmatprep.subr.mxu0 0.0
        %690 = vmatpush1.msra.mxu0 %v622
        %691 = vmatprep.subr.mxu0 0.0
        %692 = vmatpush1.msra.mxu0 0.0
        %693 = vmatprep.subr.mxu0 0.0
        %694 = vmatpush1.msra.mxu0 0.0
        %695 = vmatprep.subr.mxu0 0.0
        %696 = vmatpush1.msra.mxu0 0.0
        %697 = vmatprep.subr.mxu0 0.0
        %698 = vmatpush1.msra.mxu0 0.0
        %699 = vmatprep.subr.mxu0 0.0
        %700 = vmatpush1.msra.mxu0 0.0
        %701 = vmatprep.subr.mxu0 0.0
        %702 = vmatpush1.msra.mxu0 0.0
        %703 = vmatprep.subr.mxu0 0.0
        %704 = vmatpush1.msra.mxu0 0.0
        %705 = vmatprep.subr.mxu0 0.0
        %706 = vmatpush1.msra.mxu0 0.0
        %707 = vmatprep.subr.mxu0 0.0
        %708 = vmatpush1.msra.mxu0 0.0
        %709 = vmatprep.subr.mxu0 0.0
        %710 = vmatpush1.msra.mxu0 0.0
        %711 = vmatprep.subr.mxu0 0.0
        %712 = vmatpush1.msra.mxu0 0.0
        %713 = vmatprep.subr.mxu0 0.0
        %714 = vmatpush1.msra.mxu0 0.0
        %715 = vmatprep.subr.mxu0 0.0
        %716 = vmatpush1.msra.mxu0 0.0
        %717 = vmatprep.subr.mxu0 0.0
        %718 = vmatpush1.msra.mxu0 0.0
        %719 = vmatprep.subr.mxu0 0.0
        %720 = vmatpush1.msra.mxu0 0.0
        %721 = vmatprep.subr.mxu0 0.0
        %722 = vmatpush1.msra.mxu0 0.0
        %723 = vmatprep.mubr.f32.mxu0 0.0
        %724 = vmatmul.mubr.f32.gmra.mrb[0].mxu0 %v639
        %v725 = vpop.f32.mrb[0].mxu0
        %v726 = vadd.f32 0.0, %v725
        %v727 = vpop.f32.mrb[0].mxu0
        %728 = vmatprep.mubr.f32.mxu0 0.0
        %729 = vmatmul.mubr.f32.gmra.mrb[0].mxu0 %v656
        %v730 = vpop.f32.mrb[0].mxu0
        %v731 = vadd.f32 0.0, %v730
        %v732 = vpop.f32.mrb[0].mxu0
        %733 = vdwg.mxu0
        %v734 = vcombine.low %v486, %v494
        %v735 = vcombine.low %v495, %v503
        %v737 = vunpack.c.l.s4 1983009808
        %v738 = vunpack.c.0.s8 %v737
        %v739 = vlaneseq
        %v740 = vshrl.u32 %v739, 7
        %v741 = vsub.s32 %v738, %v740
        %v742 = vrot.slane %v734, %v741
        %v744 = vunpack.c.l.s4 1983009808
        %v745 = vunpack.c.0.s8 %v744
        %v746 = vlaneseq
        %v747 = vshrl.u32 %v746, 7
        %v748 = vsub.s32 %v745, %v747
        %v749 = vrot.slane %v735, %v748
        %v750 = vcombine.low %v742, %v749
        %v751 = vcombine.low %v510, %v512
        %v752 = vcombine.low %v528, %v527
        %v754 = vunpack.c.l.s4 1983009808
        %v755 = vunpack.c.0.s8 %v754
        %v756 = vlaneseq
        %v757 = vshrl.u32 %v756, 7
        %v758 = vsub.s32 %v755, %v757
        %v759 = vrot.slane %v751, %v758
        %v761 = vunpack.c.l.s4 1983009808
        %v762 = vunpack.c.0.s8 %v761
        %v763 = vlaneseq
        %v764 = vshrl.u32 %v763, 7
        %v765 = vsub.s32 %v762, %v764
        %v766 = vrot.slane %v752, %v765
        %v767 = vcombine.low %v759, %v766
        %770 = vmatprep.subr.mxu0 0.0
        %771 = vmatpush1.msra.mxu0 %v555
        %772 = vmatprep.subr.mxu0 0.0
        %773 = vmatpush1.msra.mxu0 %v556
        %774 = vmatprep.subr.mxu0 0.0
        %775 = vmatpush1.msra.mxu0 %v557
        %776 = vmatprep.subr.mxu0 0.0
        %777 = vmatpush1.msra.mxu0 %v558
        %778 = vmatprep.subr.mxu0 0.0
        %779 = vmatpush1.msra.mxu0 %v559
        %780 = vmatprep.subr.mxu0 0.0
        %781 = vmatpush1.msra.mxu0 %v560
        %782 = vmatprep.subr.mxu0 0.0
        %783 = vmatpush1.msra.mxu0 %v561
        %784 = vmatprep.subr.mxu0 0.0
        %785 = vmatpush1.msra.mxu0 %v562
        %786 = vmatprep.subr.mxu0 0.0
        %787 = vmatpush1.msra.mxu0 %v563
        %788 = vmatprep.subr.mxu0 0.0
        %789 = vmatpush1.msra.mxu0 %v564
        %790 = vmatprep.subr.mxu0 0.0
        %791 = vmatpush1.msra.mxu0 %v565
        %792 = vmatprep.subr.mxu0 0.0
        %793 = vmatpush1.msra.mxu0 %v566
        %794 = vmatprep.subr.mxu0 0.0
        %795 = vmatpush1.msra.mxu0 %v567
        %796 = vmatprep.subr.mxu0 0.0
        %797 = vmatpush1.msra.mxu0 %v568
        %798 = vmatprep.subr.mxu0 0.0
        %799 = vmatpush1.msra.mxu0 %v569
        %800 = vmatprep.subr.mxu0 0.0
        %801 = vmatpush1.msra.mxu0 %v570
        %802 = vmatprep.subr.mxu0 0.0
        %803 = vmatpush1.msra.mxu0 0.0
        %804 = vmatprep.subr.mxu0 0.0
        %805 = vmatpush1.msra.mxu0 0.0
        %806 = vmatprep.subr.mxu0 0.0
        %807 = vmatpush1.msra.mxu0 0.0
        %808 = vmatprep.subr.mxu0 0.0
        %809 = vmatpush1.msra.mxu0 0.0
        %810 = vmatprep.subr.mxu0 0.0
        %811 = vmatpush1.msra.mxu0 0.0
        %812 = vmatprep.subr.mxu0 0.0
        %813 = vmatpush1.msra.mxu0 0.0
        %814 = vmatprep.subr.mxu0 0.0
        %815 = vmatpush1.msra.mxu0 0.0
        %816 = vmatprep.subr.mxu0 0.0
        %817 = vmatpush1.msra.mxu0 0.0
        %818 = vmatprep.subr.mxu0 0.0
        %819 = vmatpush1.msra.mxu0 0.0
        %820 = vmatprep.subr.mxu0 0.0
        %821 = vmatpush1.msra.mxu0 0.0
        %822 = vmatprep.subr.mxu0 0.0
        %823 = vmatpush1.msra.mxu0 0.0
        %824 = vmatprep.subr.mxu0 0.0
        %825 = vmatpush1.msra.mxu0 0.0
        %826 = vmatprep.subr.mxu0 0.0
        %827 = vmatpush1.msra.mxu0 0.0
        %828 = vmatprep.subr.mxu0 0.0
        %829 = vmatpush1.msra.mxu0 0.0
        %830 = vmatprep.subr.mxu0 0.0
        %831 = vmatpush1.msra.mxu0 0.0
        %832 = vmatprep.subr.mxu0 0.0
        %833 = vmatpush1.msra.mxu0 0.0
        %834 = vmatprep.mubr.f32.mxu0 0.0
        %835 = vmatmul.mubr.f32.gmra.mrb[0].mxu0 %v750
        %v836 = vpop.f32.mrb[0].mxu0
        %v837 = vadd.f32 %v726, %v836
        %v838 = vpop.f32.mrb[0].mxu0
        %839 = vmatprep.mubr.f32.mxu0 0.0
        %840 = vmatmul.mubr.f32.gmra.mrb[0].mxu0 %v767
        %v841 = vpop.f32.mrb[0].mxu0
        %v842 = vadd.f32 %v731, %v841
        %v843 = vpop.f32.mrb[0].mxu0
        %844 = vdwg.mxu0
        %s845 = scalar_lea.vmem [#allocation7], 256
        %v846 = vld [vmem:[%s845] sm:$0xff]
        %v847 = vld [vmem:[%s845 + $0x8] sm:$0xff]
        %v848 = vld [vmem:[%s845 + $0x10] sm:$0xff]
        %v849 = vld [vmem:[%s845 + $0x18] sm:$0xff]
        %v850 = vld [vmem:[%s845 + $0x20] sm:$0xff]
        %v851 = vld [vmem:[%s845 + $0x28] sm:$0xff]
        %v852 = vld [vmem:[%s845 + $0x30] sm:$0xff]
        %v853 = vld [vmem:[%s845 + $0x38] sm:$0xff]
        %v854 = vld [vmem:[%s845 + $0x40] sm:$0xff]
        %v855 = vld [vmem:[%s845 + $0x48] sm:$0xff]
        %v856 = vld [vmem:[%s845 + $0x50] sm:$0xff]
        %v857 = vld [vmem:[%s845 + $0x58] sm:$0xff]
        %v858 = vld [vmem:[%s845 + $0x60] sm:$0xff]
        %v859 = vld [vmem:[%s845 + $0x68] sm:$0xff]
        %v860 = vld [vmem:[%s845 + $0x70] sm:$0xff]
        %v861 = vld [vmem:[%s845 + $0x78] sm:$0xff]
        %v862 = vcombine.low %v494, %v493
        %v863 = vcombine.low %v503, %v511
        %v865 = vunpack.c.l.s4 1983009808
        %v866 = vunpack.c.0.s8 %v865
        %v867 = vlaneseq
        %v868 = vshrl.u32 %v867, 7
        %v869 = vsub.s32 %v866, %v868
        %v870 = vrot.slane %v862, %v869
        %v872 = vunpack.c.l.s4 1983009808
        %v873 = vunpack.c.0.s8 %v872
        %v874 = vlaneseq
        %v875 = vshrl.u32 %v874, 7
        %v876 = vsub.s32 %v873, %v875
        %v877 = vrot.slane %v863, %v876
        %v878 = vcombine.low %v870, %v877
        %v879 = vcombine.low %v512, %v520
        %v880 = vcombine.low %v527, %v529
        %v882 = vunpack.c.l.s4 1983009808
        %v883 = vunpack.c.0.s8 %v882
        %v884 = vlaneseq
        %v885 = vshrl.u32 %v884, 7
        %v886 = vsub.s32 %v883, %v885
        %v887 = vrot.slane %v879, %v886
        %v889 = vunpack.c.l.s4 1983009808
        %v890 = vunpack.c.0.s8 %v889
        %v891 = vlaneseq
        %v892 = vshrl.u32 %v891, 7
        %v893 = vsub.s32 %v890, %v892
        %v894 = vrot.slane %v880, %v893
        %v895 = vcombine.low %v887, %v894
        %898 = vmatprep.subr.mxu0 0.0
        %899 = vmatpush1.msra.mxu0 %v846
        %900 = vmatprep.subr.mxu0 0.0
        %901 = vmatpush1.msra.mxu0 %v847
        %902 = vmatprep.subr.mxu0 0.0
        %903 = vmatpush1.msra.mxu0 %v848
        %904 = vmatprep.subr.mxu0 0.0
        %905 = vmatpush1.msra.mxu0 %v849
        %906 = vmatprep.subr.mxu0 0.0
        %907 = vmatpush1.msra.mxu0 %v850
        %908 = vmatprep.subr.mxu0 0.0
        %909 = vmatpush1.msra.mxu0 %v851
        %910 = vmatprep.subr.mxu0 0.0
        %911 = vmatpush1.msra.mxu0 %v852
        %912 = vmatprep.subr.mxu0 0.0
        %913 = vmatpush1.msra.mxu0 %v853
        %914 = vmatprep.subr.mxu0 0.0
        %915 = vmatpush1.msra.mxu0 %v854
        %916 = vmatprep.subr.mxu0 0.0
        %917 = vmatpush1.msra.mxu0 %v855
        %918 = vmatprep.subr.mxu0 0.0
        %919 = vmatpush1.msra.mxu0 %v856
        %920 = vmatprep.subr.mxu0 0.0
        %921 = vmatpush1.msra.mxu0 %v857
        %922 = vmatprep.subr.mxu0 0.0
        %923 = vmatpush1.msra.mxu0 %v858
        %924 = vmatprep.subr.mxu0 0.0
        %925 = vmatpush1.msra.mxu0 %v859
        %926 = vmatprep.subr.mxu0 0.0
        %927 = vmatpush1.msra.mxu0 %v860
        %928 = vmatprep.subr.mxu0 0.0
        %929 = vmatpush1.msra.mxu0 %v861
        %930 = vmatprep.subr.mxu0 0.0
        %931 = vmatpush1.msra.mxu0 0.0
        %932 = vmatprep.subr.mxu0 0.0
        %933 = vmatpush1.msra.mxu0 0.0
        %934 = vmatprep.subr.mxu0 0.0
        %935 = vmatpush1.msra.mxu0 0.0
        %936 = vmatprep.subr.mxu0 0.0
        %937 = vmatpush1.msra.mxu0 0.0
        %938 = vmatprep.subr.mxu0 0.0
        %939 = vmatpush1.msra.mxu0 0.0
        %940 = vmatprep.subr.mxu0 0.0
        %941 = vmatpush1.msra.mxu0 0.0
        %942 = vmatprep.subr.mxu0 0.0
        %943 = vmatpush1.msra.mxu0 0.0
        %944 = vmatprep.subr.mxu0 0.0
        %945 = vmatpush1.msra.mxu0 0.0
        %946 = vmatprep.subr.mxu0 0.0
        %947 = vmatpush1.msra.mxu0 0.0
        %948 = vmatprep.subr.mxu0 0.0
        %949 = vmatpush1.msra.mxu0 0.0
        %950 = vmatprep.subr.mxu0 0.0
        %951 = vmatpush1.msra.mxu0 0.0
        %952 = vmatprep.subr.mxu0 0.0
        %953 = vmatpush1.msra.mxu0 0.0
        %954 = vmatprep.subr.mxu0 0.0
        %955 = vmatpush1.msra.mxu0 0.0
        %956 = vmatprep.subr.mxu0 0.0
        %957 = vmatpush1.msra.mxu0 0.0
        %958 = vmatprep.subr.mxu0 0.0
        %959 = vmatpush1.msra.mxu0 0.0
        %960 = vmatprep.subr.mxu0 0.0
        %961 = vmatpush1.msra.mxu0 0.0
        %962 = vmatprep.mubr.f32.mxu0 0.0
        %963 = vmatmul.mubr.f32.gmra.mrb[0].mxu0 %v878
        %v964 = vpop.f32.mrb[0].mxu0
        %v965 = vadd.f32 0.0, %v964
        %v966 = vpop.f32.mrb[0].mxu0
        %967 = vmatprep.mubr.f32.mxu0 0.0
        %968 = vmatmul.mubr.f32.gmra.mrb[0].mxu0 %v895
        %v969 = vpop.f32.mrb[0].mxu0
        %v970 = vadd.f32 0.0, %v969
        %v971 = vpop.f32.mrb[0].mxu0
        %972 = vdwg.mxu0
        %v973 = vadd.f32 %v837, %v965
        %v974 = vadd.f32 %v842, %v970
        %s975 = scalar_lea.vmem [#allocation7], 384
        %v976 = vld [vmem:[%s975] sm:$0xff]
        %v977 = vld [vmem:[%s975 + $0x8] sm:$0xff]
        %v978 = vld [vmem:[%s975 + $0x10] sm:$0xff]
        %v979 = vld [vmem:[%s975 + $0x18] sm:$0xff]
        %v980 = vld [vmem:[%s975 + $0x20] sm:$0xff]
        %v981 = vld [vmem:[%s975 + $0x28] sm:$0xff]
        %v982 = vld [vmem:[%s975 + $0x30] sm:$0xff]
        %v983 = vld [vmem:[%s975 + $0x38] sm:$0xff]
        %v984 = vld [vmem:[%s975 + $0x40] sm:$0xff]
        %v985 = vld [vmem:[%s975 + $0x48] sm:$0xff]
        %v986 = vld [vmem:[%s975 + $0x50] sm:$0xff]
        %v987 = vld [vmem:[%s975 + $0x58] sm:$0xff]
        %v988 = vld [vmem:[%s975 + $0x60] sm:$0xff]
        %v989 = vld [vmem:[%s975 + $0x68] sm:$0xff]
        %v990 = vld [vmem:[%s975 + $0x70] sm:$0xff]
        %v991 = vld [vmem:[%s975 + $0x78] sm:$0xff]
        %v992 = vcombine.low %v749, %v759
        %v993 = vcombine.low %v537, %v545
        %v995 = vunpack.c.l.s4 1983009808
        %v996 = vunpack.c.0.s8 %v995
        %v997 = vlaneseq
        %v998 = vshrl.u32 %v997, 7
        %v999 = vsub.s32 %v996, %v998
        %v1000 = vrot.slane %v993, %v999
        %v1001 = vcombine.low %v766, %v1000
        %1004 = vmatprep.subr.mxu0 0.0
        %1005 = vmatpush1.msra.mxu0 %v976
        %1006 = vmatprep.subr.mxu0 0.0
        %1007 = vmatpush1.msra.mxu0 %v977
        %1008 = vmatprep.subr.mxu0 0.0
        %1009 = vmatpush1.msra.mxu0 %v978
        %1010 = vmatprep.subr.mxu0 0.0
        %1011 = vmatpush1.msra.mxu0 %v979
        %1012 = vmatprep.subr.mxu0 0.0
        %1013 = vmatpush1.msra.mxu0 %v980
        %1014 = vmatprep.subr.mxu0 0.0
        %1015 = vmatpush1.msra.mxu0 %v981
        %1016 = vmatprep.subr.mxu0 0.0
        %1017 = vmatpush1.msra.mxu0 %v982
        %1018 = vmatprep.subr.mxu0 0.0
        %1019 = vmatpush1.msra.mxu0 %v983
        %1020 = vmatprep.subr.mxu0 0.0
        %1021 = vmatpush1.msra.mxu0 %v984
        %1022 = vmatprep.subr.mxu0 0.0
        %1023 = vmatpush1.msra.mxu0 %v985
        %1024 = vmatprep.subr.mxu0 0.0
        %1025 = vmatpush1.msra.mxu0 %v986
        %1026 = vmatprep.subr.mxu0 0.0
        %1027 = vmatpush1.msra.mxu0 %v987
        %1028 = vmatprep.subr.mxu0 0.0
        %1029 = vmatpush1.msra.mxu0 %v988
        %1030 = vmatprep.subr.mxu0 0.0
        %1031 = vmatpush1.msra.mxu0 %v989
        %1032 = vmatprep.subr.mxu0 0.0
        %1033 = vmatpush1.msra.mxu0 %v990
        %1034 = vmatprep.subr.mxu0 0.0
        %1035 = vmatpush1.msra.mxu0 %v991
        %1036 = vmatprep.subr.mxu0 0.0
        %1037 = vmatpush1.msra.mxu0 0.0
        %1038 = vmatprep.subr.mxu0 0.0
        %1039 = vmatpush1.msra.mxu0 0.0
        %1040 = vmatprep.subr.mxu0 0.0
        %1041 = vmatpush1.msra.mxu0 0.0
        %1042 = vmatprep.subr.mxu0 0.0
        %1043 = vmatpush1.msra.mxu0 0.0
        %1044 = vmatprep.subr.mxu0 0.0
        %1045 = vmatpush1.msra.mxu0 0.0
        %1046 = vmatprep.subr.mxu0 0.0
        %1047 = vmatpush1.msra.mxu0 0.0
        %1048 = vmatprep.subr.mxu0 0.0
        %1049 = vmatpush1.msra.mxu0 0.0
        %1050 = vmatprep.subr.mxu0 0.0
        %1051 = vmatpush1.msra.mxu0 0.0
        %1052 = vmatprep.subr.mxu0 0.0
        %1053 = vmatpush1.msra.mxu0 0.0
        %1054 = vmatprep.subr.mxu0 0.0
        %1055 = vmatpush1.msra.mxu0 0.0
        %1056 = vmatprep.subr.mxu0 0.0
        %1057 = vmatpush1.msra.mxu0 0.0
        %1058 = vmatprep.subr.mxu0 0.0
        %1059 = vmatpush1.msra.mxu0 0.0
        %1060 = vmatprep.subr.mxu0 0.0
        %1061 = vmatpush1.msra.mxu0 0.0
        %1062 = vmatprep.subr.mxu0 0.0
        %1063 = vmatpush1.msra.mxu0 0.0
        %1064 = vmatprep.subr.mxu0 0.0
        %1065 = vmatpush1.msra.mxu0 0.0
        %1066 = vmatprep.subr.mxu0 0.0
        %1067 = vmatpush1.msra.mxu0 0.0
        %1068 = vmatprep.mubr.f32.mxu0 0.0
        %1069 = vmatmul.mubr.f32.gmra.mrb[0].mxu0 %v992
        %v1070 = vpop.f32.mrb[0].mxu0
        %v1071 = vadd.f32 0.0, %v1070
        %v1072 = vpop.f32.mrb[0].mxu0
        %1073 = vmatprep.mubr.f32.mxu0 0.0
        %1074 = vmatmul.mubr.f32.gmra.mrb[0].mxu0 %v1001
        %v1075 = vpop.f32.mrb[0].mxu0
        %v1076 = vadd.f32 0.0, %v1075
        %v1077 = vpop.f32.mrb[0].mxu0
        %1078 = vdwg.mxu0
        %v1079 = vadd.f32 %v973, %v1071
        %v1080 = vadd.f32 %v974, %v1076
        %v1081 = vrot.slane %v537, 7
        %v1082 = vrot.slane %v1081, 2
        %v1083 = vrot.slane %v545, 7
        %v1084 = vsel %vm577, %v1082, %v1083
        %v1085 = vrot.slane %v1083, 2
        %v1086 = vrot.slane %v544, 7
        %v1087 = vsel %vm577, %v1085, %v1086
        %s1088 = scalar_lea.vmem [#allocation7], 512
        %v1089 = vld [vmem:[%s1088] sm:$0xff]
        %v1090 = vld [vmem:[%s1088 + $0x8] sm:$0xff]
        %v1091 = vld [vmem:[%s1088 + $0x10] sm:$0xff]
        %v1092 = vld [vmem:[%s1088 + $0x18] sm:$0xff]
        %v1093 = vld [vmem:[%s1088 + $0x20] sm:$0xff]
        %v1094 = vld [vmem:[%s1088 + $0x28] sm:$0xff]
        %v1095 = vld [vmem:[%s1088 + $0x30] sm:$0xff]
        %v1096 = vld [vmem:[%s1088 + $0x38] sm:$0xff]
        %v1097 = vld [vmem:[%s1088 + $0x40] sm:$0xff]
        %v1098 = vld [vmem:[%s1088 + $0x48] sm:$0xff]
        %v1099 = vld [vmem:[%s1088 + $0x50] sm:$0xff]
        %v1100 = vld [vmem:[%s1088 + $0x58] sm:$0xff]
        %v1101 = vld [vmem:[%s1088 + $0x60] sm:$0xff]
        %v1102 = vld [vmem:[%s1088 + $0x68] sm:$0xff]
        %v1103 = vld [vmem:[%s1088 + $0x70] sm:$0xff]
        %v1104 = vld [vmem:[%s1088 + $0x78] sm:$0xff]
        %v1105 = vcombine.low %v638, %v648
        %v1106 = vcombine.low %v1084, %v1087
        %v1108 = vunpack.c.l.s4 1983009808
        %v1109 = vunpack.c.0.s8 %v1108
        %v1110 = vlaneseq
        %v1111 = vshrl.u32 %v1110, 7
        %v1112 = vsub.s32 %v1109, %v1111
        %v1113 = vrot.slane %v1106, %v1112
        %v1114 = vcombine.low %v655, %v1113
        %1117 = vmatprep.subr.mxu0 0.0
        %1118 = vmatpush1.msra.mxu0 %v1089
        %1119 = vmatprep.subr.mxu0 0.0
        %1120 = vmatpush1.msra.mxu0 %v1090
        %1121 = vmatprep.subr.mxu0 0.0
        %1122 = vmatpush1.msra.mxu0 %v1091
        %1123 = vmatprep.subr.mxu0 0.0
        %1124 = vmatpush1.msra.mxu0 %v1092
        %1125 = vmatprep.subr.mxu0 0.0
        %1126 = vmatpush1.msra.mxu0 %v1093
        %1127 = vmatprep.subr.mxu0 0.0
        %1128 = vmatpush1.msra.mxu0 %v1094
        %1129 = vmatprep.subr.mxu0 0.0
        %1130 = vmatpush1.msra.mxu0 %v1095
        %1131 = vmatprep.subr.mxu0 0.0
        %1132 = vmatpush1.msra.mxu0 %v1096
        %1133 = vmatprep.subr.mxu0 0.0
        %1134 = vmatpush1.msra.mxu0 %v1097
        %1135 = vmatprep.subr.mxu0 0.0
        %1136 = vmatpush1.msra.mxu0 %v1098
        %1137 = vmatprep.subr.mxu0 0.0
        %1138 = vmatpush1.msra.mxu0 %v1099
        %1139 = vmatprep.subr.mxu0 0.0
        %1140 = vmatpush1.msra.mxu0 %v1100
        %1141 = vmatprep.subr.mxu0 0.0
        %1142 = vmatpush1.msra.mxu0 %v1101
        %1143 = vmatprep.subr.mxu0 0.0
        %1144 = vmatpush1.msra.mxu0 %v1102
        %1145 = vmatprep.subr.mxu0 0.0
        %1146 = vmatpush1.msra.mxu0 %v1103
        %1147 = vmatprep.subr.mxu0 0.0
        %1148 = vmatpush1.msra.mxu0 %v1104
        %1149 = vmatprep.subr.mxu0 0.0
        %1150 = vmatpush1.msra.mxu0 0.0
        %1151 = vmatprep.subr.mxu0 0.0
        %1152 = vmatpush1.msra.mxu0 0.0
        %1153 = vmatprep.subr.mxu0 0.0
        %1154 = vmatpush1.msra.mxu0 0.0
        %1155 = vmatprep.subr.mxu0 0.0
        %1156 = vmatpush1.msra.mxu0 0.0
        %1157 = vmatprep.subr.mxu0 0.0
        %1158 = vmatpush1.msra.mxu0 0.0
        %1159 = vmatprep.subr.mxu0 0.0
        %1160 = vmatpush1.msra.mxu0 0.0
        %1161 = vmatprep.subr.mxu0 0.0
        %1162 = vmatpush1.msra.mxu0 0.0
        %1163 = vmatprep.subr.mxu0 0.0
        %1164 = vmatpush1.msra.mxu0 0.0
        %1165 = vmatprep.subr.mxu0 0.0
        %1166 = vmatpush1.msra.mxu0 0.0
        %1167 = vmatprep.subr.mxu0 0.0
        %1168 = vmatpush1.msra.mxu0 0.0
        %1169 = vmatprep.subr.mxu0 0.0
        %1170 = vmatpush1.msra.mxu0 0.0
        %1171 = vmatprep.subr.mxu0 0.0
        %1172 = vmatpush1.msra.mxu0 0.0
        %1173 = vmatprep.subr.mxu0 0.0
        %1174 = vmatpush1.msra.mxu0 0.0
        %1175 = vmatprep.subr.mxu0 0.0
        %1176 = vmatpush1.msra.mxu0 0.0
        %1177 = vmatprep.subr.mxu0 0.0
        %1178 = vmatpush1.msra.mxu0 0.0
        %1179 = vmatprep.subr.mxu0 0.0
        %1180 = vmatpush1.msra.mxu0 0.0
        %1181 = vmatprep.mubr.f32.mxu0 0.0
        %1182 = vmatmul.mubr.f32.gmra.mrb[0].mxu0 %v1105
        %v1183 = vpop.f32.mrb[0].mxu0
        %v1184 = vadd.f32 0.0, %v1183
        %v1185 = vpop.f32.mrb[0].mxu0
        %1186 = vmatprep.mubr.f32.mxu0 0.0
        %1187 = vmatmul.mubr.f32.gmra.mrb[0].mxu0 %v1114
        %v1188 = vpop.f32.mrb[0].mxu0
        %v1189 = vadd.f32 0.0, %v1188
        %v1190 = vpop.f32.mrb[0].mxu0
        %1191 = vdwg.mxu0
        %v1192 = vadd.f32 %v1079, %v1184
        %v1193 = vadd.f32 %v1080, %v1189
        %s1194 = scalar_lea.vmem [#allocation7], 640
        %v1195 = vld [vmem:[%s1194] sm:$0xff]
        %v1196 = vld [vmem:[%s1194 + $0x8] sm:$0xff]
        %v1197 = vld [vmem:[%s1194 + $0x10] sm:$0xff]
        %v1198 = vld [vmem:[%s1194 + $0x18] sm:$0xff]
        %v1199 = vld [vmem:[%s1194 + $0x20] sm:$0xff]
        %v1200 = vld [vmem:[%s1194 + $0x28] sm:$0xff]
        %v1201 = vld [vmem:[%s1194 + $0x30] sm:$0xff]
        %v1202 = vld [vmem:[%s1194 + $0x38] sm:$0xff]
        %v1203 = vld [vmem:[%s1194 + $0x40] sm:$0xff]
        %v1204 = vld [vmem:[%s1194 + $0x48] sm:$0xff]
        %v1205 = vld [vmem:[%s1194 + $0x50] sm:$0xff]
        %v1206 = vld [vmem:[%s1194 + $0x58] sm:$0xff]
        %v1207 = vld [vmem:[%s1194 + $0x60] sm:$0xff]
        %v1208 = vld [vmem:[%s1194 + $0x68] sm:$0xff]
        %v1209 = vld [vmem:[%s1194 + $0x70] sm:$0xff]
        %v1210 = vld [vmem:[%s1194 + $0x78] sm:$0xff]
        %v1211 = vcombine.low %v877, %v887
        %v1212 = vcombine.low %v545, %v544
        %v1214 = vunpack.c.l.s4 1983009808
        %v1215 = vunpack.c.0.s8 %v1214
        %v1216 = vlaneseq
        %v1217 = vshrl.u32 %v1216, 7
        %v1218 = vsub.s32 %v1215, %v1217
        %v1219 = vrot.slane %v1212, %v1218
        %v1220 = vcombine.low %v894, %v1219
        %1223 = vmatprep.subr.mxu0 0.0
        %1224 = vmatpush1.msra.mxu0 %v1195
        %1225 = vmatprep.subr.mxu0 0.0
        %1226 = vmatpush1.msra.mxu0 %v1196
        %1227 = vmatprep.subr.mxu0 0.0
        %1228 = vmatpush1.msra.mxu0 %v1197
        %1229 = vmatprep.subr.mxu0 0.0
        %1230 = vmatpush1.msra.mxu0 %v1198
        %1231 = vmatprep.subr.mxu0 0.0
        %1232 = vmatpush1.msra.mxu0 %v1199
        %1233 = vmatprep.subr.mxu0 0.0
        %1234 = vmatpush1.msra.mxu0 %v1200
        %1235 = vmatprep.subr.mxu0 0.0
        %1236 = vmatpush1.msra.mxu0 %v1201
        %1237 = vmatprep.subr.mxu0 0.0
        %1238 = vmatpush1.msra.mxu0 %v1202
        %1239 = vmatprep.subr.mxu0 0.0
        %1240 = vmatpush1.msra.mxu0 %v1203
        %1241 = vmatprep.subr.mxu0 0.0
        %1242 = vmatpush1.msra.mxu0 %v1204
        %1243 = vmatprep.subr.mxu0 0.0
        %1244 = vmatpush1.msra.mxu0 %v1205
        %1245 = vmatprep.subr.mxu0 0.0
        %1246 = vmatpush1.msra.mxu0 %v1206
        %1247 = vmatprep.subr.mxu0 0.0
        %1248 = vmatpush1.msra.mxu0 %v1207
        %1249 = vmatprep.subr.mxu0 0.0
        %1250 = vmatpush1.msra.mxu0 %v1208
        %1251 = vmatprep.subr.mxu0 0.0
        %1252 = vmatpush1.msra.mxu0 %v1209
        %1253 = vmatprep.subr.mxu0 0.0
        %1254 = vmatpush1.msra.mxu0 %v1210
        %1255 = vmatprep.subr.mxu0 0.0
        %1256 = vmatpush1.msra.mxu0 0.0
        %1257 = vmatprep.subr.mxu0 0.0
        %1258 = vmatpush1.msra.mxu0 0.0
        %1259 = vmatprep.subr.mxu0 0.0
        %1260 = vmatpush1.msra.mxu0 0.0
        %1261 = vmatprep.subr.mxu0 0.0
        %1262 = vmatpush1.msra.mxu0 0.0
        %1263 = vmatprep.subr.mxu0 0.0
        %1264 = vmatpush1.msra.mxu0 0.0
        %1265 = vmatprep.subr.mxu0 0.0
        %1266 = vmatpush1.msra.mxu0 0.0
        %1267 = vmatprep.subr.mxu0 0.0
        %1268 = vmatpush1.msra.mxu0 0.0
        %1269 = vmatprep.subr.mxu0 0.0
        %1270 = vmatpush1.msra.mxu0 0.0
        %1271 = vmatprep.subr.mxu0 0.0
        %1272 = vmatpush1.msra.mxu0 0.0
        %1273 = vmatprep.subr.mxu0 0.0
        %1274 = vmatpush1.msra.mxu0 0.0
        %1275 = vmatprep.subr.mxu0 0.0
        %1276 = vmatpush1.msra.mxu0 0.0
        %1277 = vmatprep.subr.mxu0 0.0
        %1278 = vmatpush1.msra.mxu0 0.0
        %1279 = vmatprep.subr.mxu0 0.0
        %1280 = vmatpush1.msra.mxu0 0.0
        %1281 = vmatprep.subr.mxu0 0.0
        %1282 = vmatpush1.msra.mxu0 0.0
        %1283 = vmatprep.subr.mxu0 0.0
        %1284 = vmatpush1.msra.mxu0 0.0
        %1285 = vmatprep.subr.mxu0 0.0
        %1286 = vmatpush1.msra.mxu0 0.0
        %1287 = vmatprep.mubr.f32.mxu0 0.0
        %1288 = vmatmul.mubr.f32.gmra.mrb[0].mxu0 %v1211
        %v1289 = vpop.f32.mrb[0].mxu0
        %v1290 = vadd.f32 0.0, %v1289
        %v1291 = vpop.f32.mrb[0].mxu0
        %1292 = vmatprep.mubr.f32.mxu0 0.0
        %1293 = vmatmul.mubr.f32.gmra.mrb[0].mxu0 %v1220
        %v1294 = vpop.f32.mrb[0].mxu0
        %v1295 = vadd.f32 0.0, %v1294
        %v1296 = vpop.f32.mrb[0].mxu0
        %1297 = vdwg.mxu0
        %v1298 = vadd.f32 %v1192, %v1290
        %v1299 = vadd.f32 %v1193, %v1295
        %s1300 = scalar_lea.vmem [#allocation7], 768
        %v1301 = vld [vmem:[%s1300] sm:$0xff]
        %v1302 = vld [vmem:[%s1300 + $0x8] sm:$0xff]
        %v1303 = vld [vmem:[%s1300 + $0x10] sm:$0xff]
        %v1304 = vld [vmem:[%s1300 + $0x18] sm:$0xff]
        %v1305 = vld [vmem:[%s1300 + $0x20] sm:$0xff]
        %v1306 = vld [vmem:[%s1300 + $0x28] sm:$0xff]
        %v1307 = vld [vmem:[%s1300 + $0x30] sm:$0xff]
        %v1308 = vld [vmem:[%s1300 + $0x38] sm:$0xff]
        %v1309 = vld [vmem:[%s1300 + $0x40] sm:$0xff]
        %v1310 = vld [vmem:[%s1300 + $0x48] sm:$0xff]
        %v1311 = vld [vmem:[%s1300 + $0x50] sm:$0xff]
        %v1312 = vld [vmem:[%s1300 + $0x58] sm:$0xff]
        %v1313 = vld [vmem:[%s1300 + $0x60] sm:$0xff]
        %v1314 = vld [vmem:[%s1300 + $0x68] sm:$0xff]
        %v1315 = vld [vmem:[%s1300 + $0x70] sm:$0xff]
        %v1316 = vld [vmem:[%s1300 + $0x78] sm:$0xff]
        %v1317 = vcombine.low %v546, %v553
        %v1319 = vunpack.c.l.s4 1983009808
        %v1320 = vunpack.c.0.s8 %v1319
        %v1321 = vlaneseq
        %v1322 = vshrl.u32 %v1321, 7
        %v1323 = vsub.s32 %v1320, %v1322
        %v1324 = vrot.slane %v1317, %v1323
        %v1325 = vcombine.low %v1000, %v1324
        %1327 = vmatprep.subr.mxu0 0.0
        %1328 = vmatpush1.msra.mxu0 %v1301
        %1329 = vmatprep.subr.mxu0 0.0
        %1330 = vmatpush1.msra.mxu0 %v1302
        %1331 = vmatprep.subr.mxu0 0.0
        %1332 = vmatpush1.msra.mxu0 %v1303
        %1333 = vmatprep.subr.mxu0 0.0
        %1334 = vmatpush1.msra.mxu0 %v1304
        %1335 = vmatprep.subr.mxu0 0.0
        %1336 = vmatpush1.msra.mxu0 %v1305
        %1337 = vmatprep.subr.mxu0 0.0
        %1338 = vmatpush1.msra.mxu0 %v1306
        %1339 = vmatprep.subr.mxu0 0.0
        %1340 = vmatpush1.msra.mxu0 %v1307
        %1341 = vmatprep.subr.mxu0 0.0
        %1342 = vmatpush1.msra.mxu0 %v1308
        %1343 = vmatprep.subr.mxu0 0.0
        %1344 = vmatpush1.msra.mxu0 %v1309
        %1345 = vmatprep.subr.mxu0 0.0
        %1346 = vmatpush1.msra.mxu0 %v1310
        %1347 = vmatprep.subr.mxu0 0.0
        %1348 = vmatpush1.msra.mxu0 %v1311
        %1349 = vmatprep.subr.mxu0 0.0
        %1350 = vmatpush1.msra.mxu0 %v1312
        %1351 = vmatprep.subr.mxu0 0.0
        %1352 = vmatpush1.msra.mxu0 %v1313
        %1353 = vmatprep.subr.mxu0 0.0
        %1354 = vmatpush1.msra.mxu0 %v1314
        %1355 = vmatprep.subr.mxu0 0.0
        %1356 = vmatpush1.msra.mxu0 %v1315
        %1357 = vmatprep.subr.mxu0 0.0
        %1358 = vmatpush1.msra.mxu0 %v1316
        %1359 = vmatprep.subr.mxu0 0.0
        %1360 = vmatpush1.msra.mxu0 0.0
        %1361 = vmatprep.subr.mxu0 0.0
        %1362 = vmatpush1.msra.mxu0 0.0
        %1363 = vmatprep.subr.mxu0 0.0
        %1364 = vmatpush1.msra.mxu0 0.0
        %1365 = vmatprep.subr.mxu0 0.0
        %1366 = vmatpush1.msra.mxu0 0.0
        %1367 = vmatprep.subr.mxu0 0.0
        %1368 = vmatpush1.msra.mxu0 0.0
        %1369 = vmatprep.subr.mxu0 0.0
        %1370 = vmatpush1.msra.mxu0 0.0
        %1371 = vmatprep.subr.mxu0 0.0
        %1372 = vmatpush1.msra.mxu0 0.0
        %1373 = vmatprep.subr.mxu0 0.0
        %1374 = vmatpush1.msra.mxu0 0.0
        %1375 = vmatprep.subr.mxu0 0.0
        %1376 = vmatpush1.msra.mxu0 0.0
        %1377 = vmatprep.subr.mxu0 0.0
        %1378 = vmatpush1.msra.mxu0 0.0
        %1379 = vmatprep.subr.mxu0 0.0
        %1380 = vmatpush1.msra.mxu0 0.0
        %1381 = vmatprep.subr.mxu0 0.0
        %1382 = vmatpush1.msra.mxu0 0.0
        %1383 = vmatprep.subr.mxu0 0.0
        %1384 = vmatpush1.msra.mxu0 0.0
        %1385 = vmatprep.subr.mxu0 0.0
        %1386 = vmatpush1.msra.mxu0 0.0
        %1387 = vmatprep.subr.mxu0 0.0
        %1388 = vmatpush1.msra.mxu0 0.0
        %1389 = vmatprep.subr.mxu0 0.0
        %1390 = vmatpush1.msra.mxu0 0.0
        %1391 = vmatprep.mubr.f32.mxu0 0.0
        %1392 = vmatmul.mubr.f32.gmra.mrb[0].mxu0 %v767
        %v1393 = vpop.f32.mrb[0].mxu0
        %v1394 = vadd.f32 0.0, %v1393
        %v1395 = vpop.f32.mrb[0].mxu0
        %1396 = vmatprep.mubr.f32.mxu0 0.0
        %1397 = vmatmul.mubr.f32.gmra.mrb[0].mxu0 %v1325
        %v1398 = vpop.f32.mrb[0].mxu0
        %v1399 = vadd.f32 0.0, %v1398
        %v1400 = vpop.f32.mrb[0].mxu0
        %1401 = vdwg.mxu0
        %v1402 = vadd.f32 %v1298, %v1394
        %v1403 = vadd.f32 %v1299, %v1399
        %v1404 = vrot.slane %v546, 7
        %v1405 = vrot.slane %v1404, 2
        %v1406 = vrot.slane %v553, 7
        %v1407 = vsel %vm577, %v1405, %v1406
        %v1408 = vrot.slane %v1406, 2
        %v1409 = vrot.slane %v554, 7
        %v1410 = vsel %vm577, %v1408, %v1409
        %s1411 = scalar_lea.vmem [#allocation7], 896
        %v1412 = vld [vmem:[%s1411] sm:$0xff]
        %v1413 = vld [vmem:[%s1411 + $0x8] sm:$0xff]
        %v1414 = vld [vmem:[%s1411 + $0x10] sm:$0xff]
        %v1415 = vld [vmem:[%s1411 + $0x18] sm:$0xff]
        %v1416 = vld [vmem:[%s1411 + $0x20] sm:$0xff]
        %v1417 = vld [vmem:[%s1411 + $0x28] sm:$0xff]
        %v1418 = vld [vmem:[%s1411 + $0x30] sm:$0xff]
        %v1419 = vld [vmem:[%s1411 + $0x38] sm:$0xff]
        %v1420 = vld [vmem:[%s1411 + $0x40] sm:$0xff]
        %v1421 = vld [vmem:[%s1411 + $0x48] sm:$0xff]
        %v1422 = vld [vmem:[%s1411 + $0x50] sm:$0xff]
        %v1423 = vld [vmem:[%s1411 + $0x58] sm:$0xff]
        %v1424 = vld [vmem:[%s1411 + $0x60] sm:$0xff]
        %v1425 = vld [vmem:[%s1411 + $0x68] sm:$0xff]
        %v1426 = vld [vmem:[%s1411 + $0x70] sm:$0xff]
        %v1427 = vld [vmem:[%s1411 + $0x78] sm:$0xff]
        %v1428 = vcombine.low %v1407, %v1410
        %v1430 = vunpack.c.l.s4 1983009808
        %v1431 = vunpack.c.0.s8 %v1430
        %v1432 = vlaneseq
        %v1433 = vshrl.u32 %v1432, 7
        %v1434 = vsub.s32 %v1431, %v1433
        %v1435 = vrot.slane %v1428, %v1434
        %v1436 = vcombine.low %v1113, %v1435
        %1438 = vmatprep.subr.mxu0 0.0
        %1439 = vmatpush1.msra.mxu0 %v1412
        %1440 = vmatprep.subr.mxu0 0.0
        %1441 = vmatpush1.msra.mxu0 %v1413
        %1442 = vmatprep.subr.mxu0 0.0
        %1443 = vmatpush1.msra.mxu0 %v1414
        %1444 = vmatprep.subr.mxu0 0.0
        %1445 = vmatpush1.msra.mxu0 %v1415
        %1446 = vmatprep.subr.mxu0 0.0
        %1447 = vmatpush1.msra.mxu0 %v1416
        %1448 = vmatprep.subr.mxu0 0.0
        %1449 = vmatpush1.msra.mxu0 %v1417
        %1450 = vmatprep.subr.mxu0 0.0
        %1451 = vmatpush1.msra.mxu0 %v1418
        %1452 = vmatprep.subr.mxu0 0.0
        %1453 = vmatpush1.msra.mxu0 %v1419
        %1454 = vmatprep.subr.mxu0 0.0
        %1455 = vmatpush1.msra.mxu0 %v1420
        %1456 = vmatprep.subr.mxu0 0.0
        %1457 = vmatpush1.msra.mxu0 %v1421
        %1458 = vmatprep.subr.mxu0 0.0
        %1459 = vmatpush1.msra.mxu0 %v1422
        %1460 = vmatprep.subr.mxu0 0.0
        %1461 = vmatpush1.msra.mxu0 %v1423
        %1462 = vmatprep.subr.mxu0 0.0
        %1463 = vmatpush1.msra.mxu0 %v1424
        %1464 = vmatprep.subr.mxu0 0.0
        %1465 = vmatpush1.msra.mxu0 %v1425
        %1466 = vmatprep.subr.mxu0 0.0
        %1467 = vmatpush1.msra.mxu0 %v1426
        %1468 = vmatprep.subr.mxu0 0.0
        %1469 = vmatpush1.msra.mxu0 %v1427
        %1470 = vmatprep.subr.mxu0 0.0
        %1471 = vmatpush1.msra.mxu0 0.0
        %1472 = vmatprep.subr.mxu0 0.0
        %1473 = vmatpush1.msra.mxu0 0.0
        %1474 = vmatprep.subr.mxu0 0.0
        %1475 = vmatpush1.msra.mxu0 0.0
        %1476 = vmatprep.subr.mxu0 0.0
        %1477 = vmatpush1.msra.mxu0 0.0
        %1478 = vmatprep.subr.mxu0 0.0
        %1479 = vmatpush1.msra.mxu0 0.0
        %1480 = vmatprep.subr.mxu0 0.0
        %1481 = vmatpush1.msra.mxu0 0.0
        %1482 = vmatprep.subr.mxu0 0.0
        %1483 = vmatpush1.msra.mxu0 0.0
        %1484 = vmatprep.subr.mxu0 0.0
        %1485 = vmatpush1.msra.mxu0 0.0
        %1486 = vmatprep.subr.mxu0 0.0
        %1487 = vmatpush1.msra.mxu0 0.0
        %1488 = vmatprep.subr.mxu0 0.0
        %1489 = vmatpush1.msra.mxu0 0.0
        %1490 = vmatprep.subr.mxu0 0.0
        %1491 = vmatpush1.msra.mxu0 0.0
        %1492 = vmatprep.subr.mxu0 0.0
        %1493 = vmatpush1.msra.mxu0 0.0
        %1494 = vmatprep.subr.mxu0 0.0
        %1495 = vmatpush1.msra.mxu0 0.0
        %1496 = vmatprep.subr.mxu0 0.0
        %1497 = vmatpush1.msra.mxu0 0.0
        %1498 = vmatprep.subr.mxu0 0.0
        %1499 = vmatpush1.msra.mxu0 0.0
        %1500 = vmatprep.subr.mxu0 0.0
        %1501 = vmatpush1.msra.mxu0 0.0
        %1502 = vmatprep.mubr.f32.mxu0 0.0
        %1503 = vmatmul.mubr.f32.gmra.mrb[0].mxu0 %v656
        %v1504 = vpop.f32.mrb[0].mxu0
        %v1505 = vadd.f32 0.0, %v1504
        %v1506 = vpop.f32.mrb[0].mxu0
        %1507 = vmatprep.mubr.f32.mxu0 0.0
        %1508 = vmatmul.mubr.f32.gmra.mrb[0].mxu0 %v1436
        %v1509 = vpop.f32.mrb[0].mxu0
        %v1510 = vadd.f32 0.0, %v1509
        %v1511 = vpop.f32.mrb[0].mxu0
        %1512 = vdwg.mxu0
        %v1513 = vadd.f32 %v1402, %v1505
        %v1514 = vadd.f32 %v1403, %v1510
        %s1515 = scalar_lea.vmem [#allocation7], 1024
        %v1516 = vld [vmem:[%s1515] sm:$0xff]
        %v1517 = vld [vmem:[%s1515 + $0x8] sm:$0xff]
        %v1518 = vld [vmem:[%s1515 + $0x10] sm:$0xff]
        %v1519 = vld [vmem:[%s1515 + $0x18] sm:$0xff]
        %v1520 = vld [vmem:[%s1515 + $0x20] sm:$0xff]
        %v1521 = vld [vmem:[%s1515 + $0x28] sm:$0xff]
        %v1522 = vld [vmem:[%s1515 + $0x30] sm:$0xff]
        %v1523 = vld [vmem:[%s1515 + $0x38] sm:$0xff]
        %v1524 = vld [vmem:[%s1515 + $0x40] sm:$0xff]
        %v1525 = vld [vmem:[%s1515 + $0x48] sm:$0xff]
        %v1526 = vld [vmem:[%s1515 + $0x50] sm:$0xff]
        %v1527 = vld [vmem:[%s1515 + $0x58] sm:$0xff]
        %v1528 = vld [vmem:[%s1515 + $0x60] sm:$0xff]
        %v1529 = vld [vmem:[%s1515 + $0x68] sm:$0xff]
        %v1530 = vld [vmem:[%s1515 + $0x70] sm:$0xff]
        %v1531 = vld [vmem:[%s1515 + $0x78] sm:$0xff]
        %v1532 = vcombine.low %v553, %v554
        %v1534 = vunpack.c.l.s4 1983009808
        %v1535 = vunpack.c.0.s8 %v1534
        %v1536 = vlaneseq
        %v1537 = vshrl.u32 %v1536, 7
        %v1538 = vsub.s32 %v1535, %v1537
        %v1539 = vrot.slane %v1532, %v1538
        %v1540 = vcombine.low %v1219, %v1539
        %1542 = vmatprep.subr.mxu0 0.0
        %1543 = vmatpush1.msra.mxu0 %v1516
        %1544 = vmatprep.subr.mxu0 0.0
        %1545 = vmatpush1.msra.mxu0 %v1517
        %1546 = vmatprep.subr.mxu0 0.0
        %1547 = vmatpush1.msra.mxu0 %v1518
        %1548 = vmatprep.subr.mxu0 0.0
        %1549 = vmatpush1.msra.mxu0 %v1519
        %1550 = vmatprep.subr.mxu0 0.0
        %1551 = vmatpush1.msra.mxu0 %v1520
        %1552 = vmatprep.subr.mxu0 0.0
        %1553 = vmatpush1.msra.mxu0 %v1521
        %1554 = vmatprep.subr.mxu0 0.0
        %1555 = vmatpush1.msra.mxu0 %v1522
        %1556 = vmatprep.subr.mxu0 0.0
        %1557 = vmatpush1.msra.mxu0 %v1523
        %1558 = vmatprep.subr.mxu0 0.0
        %1559 = vmatpush1.msra.mxu0 %v1524
        %1560 = vmatprep.subr.mxu0 0.0
        %1561 = vmatpush1.msra.mxu0 %v1525
        %1562 = vmatprep.subr.mxu0 0.0
        %1563 = vmatpush1.msra.mxu0 %v1526
        %1564 = vmatprep.subr.mxu0 0.0
        %1565 = vmatpush1.msra.mxu0 %v1527
        %1566 = vmatprep.subr.mxu0 0.0
        %1567 = vmatpush1.msra.mxu0 %v1528
        %1568 = vmatprep.subr.mxu0 0.0
        %1569 = vmatpush1.msra.mxu0 %v1529
        %1570 = vmatprep.subr.mxu0 0.0
        %1571 = vmatpush1.msra.mxu0 %v1530
        %1572 = vmatprep.subr.mxu0 0.0
        %1573 = vmatpush1.msra.mxu0 %v1531
        %1574 = vmatprep.subr.mxu0 0.0
        %1575 = vmatpush1.msra.mxu0 0.0
        %1576 = vmatprep.subr.mxu0 0.0
        %1577 = vmatpush1.msra.mxu0 0.0
        %1578 = vmatprep.subr.mxu0 0.0
        %1579 = vmatpush1.msra.mxu0 0.0
        %1580 = vmatprep.subr.mxu0 0.0
        %1581 = vmatpush1.msra.mxu0 0.0
        %1582 = vmatprep.subr.mxu0 0.0
        %1583 = vmatpush1.msra.mxu0 0.0
        %1584 = vmatprep.subr.mxu0 0.0
        %1585 = vmatpush1.msra.mxu0 0.0
        %1586 = vmatprep.subr.mxu0 0.0
        %1587 = vmatpush1.msra.mxu0 0.0
        %1588 = vmatprep.subr.mxu0 0.0
        %1589 = vmatpush1.msra.mxu0 0.0
        %1590 = vmatprep.subr.mxu0 0.0
        %1591 = vmatpush1.msra.mxu0 0.0
        %1592 = vmatprep.subr.mxu0 0.0
        %1593 = vmatpush1.msra.mxu0 0.0
        %1594 = vmatprep.subr.mxu0 0.0
        %1595 = vmatpush1.msra.mxu0 0.0
        %1596 = vmatprep.subr.mxu0 0.0
        %1597 = vmatpush1.msra.mxu0 0.0
        %1598 = vmatprep.subr.mxu0 0.0
        %1599 = vmatpush1.msra.mxu0 0.0
        %1600 = vmatprep.subr.mxu0 0.0
        %1601 = vmatpush1.msra.mxu0 0.0
        %1602 = vmatprep.subr.mxu0 0.0
        %1603 = vmatpush1.msra.mxu0 0.0
        %1604 = vmatprep.subr.mxu0 0.0
        %1605 = vmatpush1.msra.mxu0 0.0
        %1606 = vmatprep.mubr.f32.mxu0 0.0
        %1607 = vmatmul.mubr.f32.gmra.mrb[0].mxu0 %v895
        %v1608 = vpop.f32.mrb[0].mxu0
        %v1609 = vadd.f32 0.0, %v1608
        %v1610 = vpop.f32.mrb[0].mxu0
        %1611 = vmatprep.mubr.f32.mxu0 0.0
        %1612 = vmatmul.mubr.f32.gmra.mrb[0].mxu0 %v1540
        %v1613 = vpop.f32.mrb[0].mxu0
        %v1614 = vadd.f32 0.0, %v1613
        %v1615 = vpop.f32.mrb[0].mxu0
        %1616 = vdwg.mxu0
        %v1617 = vadd.f32 %v1513, %v1609
        %v1618 = vadd.f32 %v1514, %v1614
        %v1619 = vlaneseq
        %v1620 = vshrl.u32 %v1619, 7
        %v1621 = vsub.s32 0, %v1620
        %v1622 = vrot.slane %v341, %v1621
        %v1623 = vmul.f32 %v1617, %v1622
        %v1624 = vmul.f32 %v1618, %v1622
        %v1625 = vlaneseq
        %v1626 = vshrl.u32 %v1625, 7
        %v1627 = vsub.s32 1, %v1626
        %v1628 = vrot.slane %v341, %v1627
        %v1629 = vadd.f32 %v1623, %v1628
        %v1630 = vadd.f32 %v1624, %v1628
        %1631 = vst [vmem:[#allocation2] sm:$0xff] 0.0
        %1632 = vst [vmem:[#allocation2 + $0x8] sm:$0xff] 0.0
        %1633 = vst [vmem:[#allocation2 + $0x10] sm:$0x3] 0.0
        %s1634 = scalar_lea.vmem [#allocation2], 408
        %1635 = vst [vmem:[%s1634] sm:$0xff] 0.0
        %1636 = vst [vmem:[%s1634 + $0x8] sm:$0xff] 0.0
        %1637 = vst [vmem:[%s1634 + $0x10] sm:$0x3] 0.0
        %s1638 = scalar_lea.vmem [#allocation2], 24
        %1639 = vst [vmem:[%s1638] sm:$0x1] 0.0
        %1640 = vst [vmem:[%s1638 + $0x18] sm:$0x1] 0.0
        %1641 = vst [vmem:[%s1638 + $0x30] sm:$0x1] 0.0
        %1642 = vst [vmem:[%s1638 + $0x48] sm:$0x1] 0.0
        %1643 = vst [vmem:[%s1638 + $0x60] sm:$0x1] 0.0
        %1644 = vst [vmem:[%s1638 + $0x78] sm:$0x1] 0.0
        %1645 = vst [vmem:[%s1638 + $0x90] sm:$0x1] 0.0
        %1646 = vst [vmem:[%s1638 + $0xa8] sm:$0x1] 0.0
        %1647 = vst [vmem:[%s1638 + $0xc0] sm:$0x1] 0.0
        %1648 = vst [vmem:[%s1638 + $0xd8] sm:$0x1] 0.0
        %1649 = vst [vmem:[%s1638 + $0xf0] sm:$0x1] 0.0
        %1650 = vst [vmem:[%s1638 + $0x108] sm:$0x1] 0.0
        %1651 = vst [vmem:[%s1638 + $0x120] sm:$0x1] 0.0
        %1652 = vst [vmem:[%s1638 + $0x138] sm:$0x1] 0.0
        %1653 = vst [vmem:[%s1638 + $0x150] sm:$0x1] 0.0
        %1654 = vst [vmem:[%s1638 + $0x168] sm:$0x1] 0.0
        %1655 = vst [vmem:[%s1638 + $0x11] sm:$0x1] 0.0
        %1656 = vst [vmem:[%s1638 + $0x29] sm:$0x1] 0.0
        %1657 = vst [vmem:[%s1638 + $0x41] sm:$0x1] 0.0
        %1658 = vst [vmem:[%s1638 + $0x59] sm:$0x1] 0.0
        %1659 = vst [vmem:[%s1638 + $0x71] sm:$0x1] 0.0
        %1660 = vst [vmem:[%s1638 + $0x89] sm:$0x1] 0.0
        %1661 = vst [vmem:[%s1638 + $0xa1] sm:$0x1] 0.0
        %1662 = vst [vmem:[%s1638 + $0xb9] sm:$0x1] 0.0
        %1663 = vst [vmem:[%s1638 + $0xd1] sm:$0x1] 0.0
        %1664 = vst [vmem:[%s1638 + $0xe9] sm:$0x1] 0.0
        %1665 = vst [vmem:[%s1638 + $0x101] sm:$0x1] 0.0
        %1666 = vst [vmem:[%s1638 + $0x119] sm:$0x1] 0.0
        %1667 = vst [vmem:[%s1638 + $0x131] sm:$0x1] 0.0
        %1668 = vst [vmem:[%s1638 + $0x149] sm:$0x1] 0.0
        %1669 = vst [vmem:[%s1638 + $0x161] sm:$0x1] 0.0
        %1670 = vst [vmem:[%s1638 + $0x179] sm:$0x1] 0.0
        %1671 = vst [vmem:[%s1638 + $0x1] sm:$0xff] %v342
        %1672 = vst [vmem:[%s1638 + $0x9] sm:$0xff] %v343
        %1673 = vst [vmem:[%s1638 + $0x19] sm:$0xff] %v344
        %1674 = vst [vmem:[%s1638 + $0x21] sm:$0xff] %v345
        %1675 = vst [vmem:[%s1638 + $0x31] sm:$0xff] %v346
        %1676 = vst [vmem:[%s1638 + $0x39] sm:$0xff] %v347
        %1677 = vst [vmem:[%s1638 + $0x49] sm:$0xff] %v348
        %1678 = vst [vmem:[%s1638 + $0x51] sm:$0xff] %v349
        %1679 = vst [vmem:[%s1638 + $0x61] sm:$0xff] %v350
        %1680 = vst [vmem:[%s1638 + $0x69] sm:$0xff] %v351
        %1681 = vst [vmem:[%s1638 + $0x79] sm:$0xff] %v352
        %1682 = vst [vmem:[%s1638 + $0x81] sm:$0xff] %v353
        %1683 = vst [vmem:[%s1638 + $0x91] sm:$0xff] %v354
        %1684 = vst [vmem:[%s1638 + $0x99] sm:$0xff] %v355
        %1685 = vst [vmem:[%s1638 + $0xa9] sm:$0xff] %v356
        %1686 = vst [vmem:[%s1638 + $0xb1] sm:$0xff] %v357
        %1687 = vst [vmem:[%s1638 + $0xc1] sm:$0xff] %v358
        %1688 = vst [vmem:[%s1638 + $0xc9] sm:$0xff] %v359
        %1689 = vst [vmem:[%s1638 + $0xd9] sm:$0xff] %v360
        %1690 = vst [vmem:[%s1638 + $0xe1] sm:$0xff] %v361
        %1691 = vst [vmem:[%s1638 + $0xf1] sm:$0xff] %v362
        %1692 = vst [vmem:[%s1638 + $0xf9] sm:$0xff] %v363
        %1693 = vst [vmem:[%s1638 + $0x109] sm:$0xff] %v364
        %1694 = vst [vmem:[%s1638 + $0x111] sm:$0xff] %v365
        %1695 = vst [vmem:[%s1638 + $0x121] sm:$0xff] %v366
        %1696 = vst [vmem:[%s1638 + $0x129] sm:$0xff] %v367
        %1697 = vst [vmem:[%s1638 + $0x139] sm:$0xff] %v368
        %1698 = vst [vmem:[%s1638 + $0x141] sm:$0xff] %v369
        %1699 = vst [vmem:[%s1638 + $0x151] sm:$0xff] %v370
        %1700 = vst [vmem:[%s1638 + $0x159] sm:$0xff] %v371
        %1701 = vst [vmem:[%s1638 + $0x169] sm:$0xff] %v372
        %1702 = vst [vmem:[%s1638 + $0x171] sm:$0xff] %v373
        %v1703 = vld [vmem:[#allocation2] sm:$0xff]
        %v1704 = vld [vmem:[#allocation2 + $0x8] sm:$0xff]
        %v1705 = vld [vmem:[#allocation2 + $0x18] sm:$0xff]
        %v1706 = vld [vmem:[#allocation2 + $0x20] sm:$0xff]
        %v1707 = vld [vmem:[#allocation2 + $0x30] sm:$0xff]
        %v1708 = vld [vmem:[#allocation2 + $0x38] sm:$0xff]
        %v1709 = vld [vmem:[#allocation2 + $0x48] sm:$0xff]
        %v1710 = vld [vmem:[#allocation2 + $0x50] sm:$0xff]
        %v1711 = vld [vmem:[#allocation2 + $0x60] sm:$0xff]
        %v1712 = vld [vmem:[#allocation2 + $0x68] sm:$0xff]
        %v1713 = vld [vmem:[#allocation2 + $0x78] sm:$0xff]
        %v1714 = vld [vmem:[#allocation2 + $0x80] sm:$0xff]
        %v1715 = vld [vmem:[#allocation2 + $0x90] sm:$0xff]
        %v1716 = vld [vmem:[#allocation2 + $0x98] sm:$0xff]
        %v1717 = vld [vmem:[#allocation2 + $0xa8] sm:$0xff]
        %v1718 = vld [vmem:[#allocation2 + $0xb0] sm:$0xff]
        %v1719 = vld [vmem:[#allocation2 + $0xc0] sm:$0xff]
        %v1720 = vld [vmem:[#allocation2 + $0xc8] sm:$0xff]
        %v1721 = vld [vmem:[#allocation2 + $0xd8] sm:$0xff]
        %v1722 = vld [vmem:[#allocation2 + $0xe0] sm:$0xff]
        %v1723 = vld [vmem:[#allocation2 + $0xf0] sm:$0xff]
        %v1724 = vld [vmem:[#allocation2 + $0xf8] sm:$0xff]
        %v1725 = vld [vmem:[#allocation2 + $0x108] sm:$0xff]
        %v1726 = vld [vmem:[#allocation2 + $0x110] sm:$0xff]
        %v1727 = vld [vmem:[#allocation2 + $0x120] sm:$0xff]
        %v1728 = vld [vmem:[#allocation2 + $0x128] sm:$0xff]
        %v1729 = vld [vmem:[#allocation2 + $0x138] sm:$0xff]
        %v1730 = vld [vmem:[#allocation2 + $0x140] sm:$0xff]
        %v1731 = vld [vmem:[#allocation2 + $0x150] sm:$0xff]
        %v1732 = vld [vmem:[#allocation2 + $0x158] sm:$0xff]
        %v1733 = vld [vmem:[#allocation2 + $0x168] sm:$0xff]
        %v1734 = vld [vmem:[#allocation2 + $0x170] sm:$0xff]
        %v1735 = vld [vmem:[#allocation9] sm:$0xff]
        %v1736 = vld [vmem:[#allocation9 + $0x8] sm:$0xff]
        %v1737 = vld [vmem:[#allocation9 + $0x10] sm:$0xff]
        %v1738 = vld [vmem:[#allocation9 + $0x18] sm:$0xff]
        %v1739 = vld [vmem:[#allocation9 + $0x20] sm:$0xff]
        %v1740 = vld [vmem:[#allocation9 + $0x28] sm:$0xff]
        %v1741 = vld [vmem:[#allocation9 + $0x30] sm:$0xff]
        %v1742 = vld [vmem:[#allocation9 + $0x38] sm:$0xff]
        %v1743 = vld [vmem:[#allocation9 + $0x40] sm:$0xff]
        %v1744 = vld [vmem:[#allocation9 + $0x48] sm:$0xff]
        %v1745 = vld [vmem:[#allocation9 + $0x50] sm:$0xff]
        %v1746 = vld [vmem:[#allocation9 + $0x58] sm:$0xff]
        %v1747 = vld [vmem:[#allocation9 + $0x60] sm:$0xff]
        %v1748 = vld [vmem:[#allocation9 + $0x68] sm:$0xff]
        %v1749 = vld [vmem:[#allocation9 + $0x70] sm:$0xff]
        %v1750 = vld [vmem:[#allocation9 + $0x78] sm:$0xff]
        %v1751 = vld [vmem:[#allocation2 + $0x1] sm:$0xff]
        %v1752 = vld [vmem:[#allocation2 + $0x9] sm:$0xff]
        %v1753 = vld [vmem:[#allocation2 + $0x19] sm:$0xff]
        %v1754 = vld [vmem:[#allocation2 + $0x21] sm:$0xff]
        %v1755 = vld [vmem:[#allocation2 + $0x31] sm:$0xff]
        %v1756 = vld [vmem:[#allocation2 + $0x39] sm:$0xff]
        %v1757 = vld [vmem:[#allocation2 + $0x49] sm:$0xff]
        %v1758 = vld [vmem:[#allocation2 + $0x51] sm:$0xff]
        %v1759 = vld [vmem:[#allocation2 + $0x61] sm:$0xff]
        %v1760 = vld [vmem:[#allocation2 + $0x69] sm:$0xff]
        %v1761 = vld [vmem:[#allocation2 + $0x79] sm:$0xff]
        %v1762 = vld [vmem:[#allocation2 + $0x81] sm:$0xff]
        %v1763 = vld [vmem:[#allocation2 + $0x91] sm:$0xff]
        %v1764 = vld [vmem:[#allocation2 + $0x99] sm:$0xff]
        %v1765 = vld [vmem:[#allocation2 + $0xa9] sm:$0xff]
        %v1766 = vld [vmem:[#allocation2 + $0xb1] sm:$0xff]
        %v1767 = vld [vmem:[#allocation2 + $0xc1] sm:$0xff]
        %v1768 = vld [vmem:[#allocation2 + $0xc9] sm:$0xff]
        %v1769 = vld [vmem:[#allocation2 + $0xd9] sm:$0xff]
        %v1770 = vld [vmem:[#allocation2 + $0xe1] sm:$0xff]
        %v1771 = vld [vmem:[#allocation2 + $0xf1] sm:$0xff]
        %v1772 = vld [vmem:[#allocation2 + $0xf9] sm:$0xff]
        %v1773 = vld [vmem:[#allocation2 + $0x109] sm:$0xff]
        %v1774 = vld [vmem:[#allocation2 + $0x111] sm:$0xff]
        %v1775 = vld [vmem:[#allocation2 + $0x121] sm:$0xff]
        %v1776 = vld [vmem:[#allocation2 + $0x129] sm:$0xff]
        %v1777 = vld [vmem:[#allocation2 + $0x139] sm:$0xff]
        %v1778 = vld [vmem:[#allocation2 + $0x141] sm:$0xff]
        %v1779 = vld [vmem:[#allocation2 + $0x151] sm:$0xff]
        %v1780 = vld [vmem:[#allocation2 + $0x159] sm:$0xff]
        %v1781 = vld [vmem:[#allocation2 + $0x169] sm:$0xff]
        %v1782 = vld [vmem:[#allocation2 + $0x171] sm:$0xff]
        %s1783 = scalar_lea.vmem [#allocation9], 128
        %v1784 = vld [vmem:[%s1783] sm:$0xff]
        %v1785 = vld [vmem:[%s1783 + $0x8] sm:$0xff]
        %v1786 = vld [vmem:[%s1783 + $0x10] sm:$0xff]
        %v1787 = vld [vmem:[%s1783 + $0x18] sm:$0xff]
        %v1788 = vld [vmem:[%s1783 + $0x20] sm:$0xff]
        %v1789 = vld [vmem:[%s1783 + $0x28] sm:$0xff]
        %v1790 = vld [vmem:[%s1783 + $0x30] sm:$0xff]
        %v1791 = vld [vmem:[%s1783 + $0x38] sm:$0xff]
        %v1792 = vld [vmem:[%s1783 + $0x40] sm:$0xff]
        %v1793 = vld [vmem:[%s1783 + $0x48] sm:$0xff]
        %v1794 = vld [vmem:[%s1783 + $0x50] sm:$0xff]
        %v1795 = vld [vmem:[%s1783 + $0x58] sm:$0xff]
        %v1796 = vld [vmem:[%s1783 + $0x60] sm:$0xff]
        %v1797 = vld [vmem:[%s1783 + $0x68] sm:$0xff]
        %v1798 = vld [vmem:[%s1783 + $0x70] sm:$0xff]
        %v1799 = vld [vmem:[%s1783 + $0x78] sm:$0xff]
        %1800 = vmatprep.subr.mxu0 0.0
        %1801 = vmatpush1.msra.mxu0 %v1784
        %1802 = vmatprep.subr.mxu0 0.0
        %1803 = vmatpush1.msra.mxu0 %v1785
        %1804 = vmatprep.subr.mxu0 0.0
        %1805 = vmatpush1.msra.mxu0 %v1786
        %1806 = vmatprep.subr.mxu0 0.0
        %1807 = vmatpush1.msra.mxu0 %v1787
        %1808 = vmatprep.subr.mxu0 0.0
        %1809 = vmatpush1.msra.mxu0 %v1788
        %1810 = vmatprep.subr.mxu0 0.0
        %1811 = vmatpush1.msra.mxu0 %v1789
        %1812 = vmatprep.subr.mxu0 0.0
        %1813 = vmatpush1.msra.mxu0 %v1790
        %1814 = vmatprep.subr.mxu0 0.0
        %1815 = vmatpush1.msra.mxu0 %v1791
        %1816 = vmatprep.subr.mxu0 0.0
        %1817 = vmatpush1.msra.mxu0 %v1792
        %1818 = vmatprep.subr.mxu0 0.0
        %1819 = vmatpush1.msra.mxu0 %v1793
        %1820 = vmatprep.subr.mxu0 0.0
        %1821 = vmatpush1.msra.mxu0 %v1794
        %1822 = vmatprep.subr.mxu0 0.0
        %1823 = vmatpush1.msra.mxu0 %v1795
        %1824 = vmatprep.subr.mxu0 0.0
        %1825 = vmatpush1.msra.mxu0 %v1796
        %1826 = vmatprep.subr.mxu0 0.0
        %1827 = vmatpush1.msra.mxu0 %v1797
        %1828 = vmatprep.subr.mxu0 0.0
        %1829 = vmatpush1.msra.mxu0 %v1798
        %1830 = vmatprep.subr.mxu0 0.0
        %1831 = vmatpush1.msra.mxu0 %v1799
        %1832 = vmatprep.subr.mxu0 0.0
        %1833 = vmatpush1.msra.mxu0 0.0
        %1834 = vmatprep.subr.mxu0 0.0
        %1835 = vmatpush1.msra.mxu0 0.0
        %1836 = vmatprep.subr.mxu0 0.0
        %1837 = vmatpush1.msra.mxu0 0.0
        %1838 = vmatprep.subr.mxu0 0.0
        %1839 = vmatpush1.msra.mxu0 0.0
        %1840 = vmatprep.subr.mxu0 0.0
        %1841 = vmatpush1.msra.mxu0 0.0
        %1842 = vmatprep.subr.mxu0 0.0
        %1843 = vmatpush1.msra.mxu0 0.0
        %1844 = vmatprep.subr.mxu0 0.0
        %1845 = vmatpush1.msra.mxu0 0.0
        %1846 = vmatprep.subr.mxu0 0.0
        %1847 = vmatpush1.msra.mxu0 0.0
        %1848 = vmatprep.subr.mxu0 0.0
        %1849 = vmatpush1.msra.mxu0 0.0
        %1850 = vmatprep.subr.mxu0 0.0
        %1851 = vmatpush1.msra.mxu0 0.0
        %1852 = vmatprep.subr.mxu0 0.0
        %1853 = vmatpush1.msra.mxu0 0.0
        %1854 = vmatprep.subr.mxu0 0.0
        %1855 = vmatpush1.msra.mxu0 0.0
        %1856 = vmatprep.subr.mxu0 0.0
        %1857 = vmatpush1.msra.mxu0 0.0
        %1858 = vmatprep.subr.mxu0 0.0
        %1859 = vmatpush1.msra.mxu0 0.0
        %1860 = vmatprep.subr.mxu0 0.0
        %1861 = vmatpush1.msra.mxu0 0.0
        %1862 = vmatprep.subr.mxu0 0.0
        %1863 = vmatpush1.msra.mxu0 0.0
        %1864 = vmatprep.mubr.f32.mxu0 0.0
        %1865 = vmatmul.mubr.f32.gmra.mrb[0].mxu0 %v1751
        %v1866 = vpop.f32.mrb[0].mxu0
        %v1867 = vadd.f32 0.0, %v1866
        %v1868 = vpop.f32.mrb[0].mxu0
        %1869 = vmatprep.mubr.f32.mxu0 0.0
        %1870 = vmatmul.mubr.f32.gmra.mrb[0].mxu0 %v1752
        %v1871 = vpop.f32.mrb[0].mxu0
        %v1872 = vadd.f32 0.0, %v1871
        %v1873 = vpop.f32.mrb[0].mxu0
        %1874 = vmatprep.mubr.f32.mxu0 0.0
        %1875 = vmatmul.mubr.f32.gmra.mrb[0].mxu0 %v1753
        %v1876 = vpop.f32.mrb[0].mxu0
        %v1877 = vadd.f32 0.0, %v1876
        %v1878 = vpop.f32.mrb[0].mxu0
        %1879 = vmatprep.mubr.f32.mxu0 0.0
        %1880 = vmatmul.mubr.f32.gmra.mrb[0].mxu0 %v1754
        %v1881 = vpop.f32.mrb[0].mxu0
        %v1882 = vadd.f32 0.0, %v1881
        %v1883 = vpop.f32.mrb[0].mxu0
        %1884 = vmatprep.mubr.f32.mxu0 0.0
        %1885 = vmatmul.mubr.f32.gmra.mrb[0].mxu0 %v1755
        %v1886 = vpop.f32.mrb[0].mxu0
        %v1887 = vadd.f32 0.0, %v1886
        %v1888 = vpop.f32.mrb[0].mxu0
        %1889 = vmatprep.mubr.f32.mxu0 0.0
        %1890 = vmatmul.mubr.f32.gmra.mrb[0].mxu0 %v1756
        %v1891 = vpop.f32.mrb[0].mxu0
        %v1892 = vadd.f32 0.0, %v1891
        %v1893 = vpop.f32.mrb[0].mxu0
        %1894 = vmatprep.mubr.f32.mxu0 0.0
        %1895 = vmatmul.mubr.f32.gmra.mrb[0].mxu0 %v1757
        %v1896 = vpop.f32.mrb[0].mxu0
        %v1897 = vadd.f32 0.0, %v1896
        %v1898 = vpop.f32.mrb[0].mxu0
        %1899 = vmatprep.mubr.f32.mxu0 0.0
        %1900 = vmatmul.mubr.f32.gmra.mrb[0].mxu0 %v1758
        %v1901 = vpop.f32.mrb[0].mxu0
        %v1902 = vadd.f32 0.0, %v1901
        %v1903 = vpop.f32.mrb[0].mxu0
        %1904 = vmatprep.mubr.f32.mxu0 0.0
        %1905 = vmatmul.mubr.f32.gmra.mrb[0].mxu0 %v1759
        %v1906 = vpop.f32.mrb[0].mxu0
        %v1907 = vadd.f32 0.0, %v1906
        %v1908 = vpop.f32.mrb[0].mxu0
        %1909 = vmatprep.mubr.f32.mxu0 0.0
        %1910 = vmatmul.mubr.f32.gmra.mrb[0].mxu0 %v1760
        %v1911 = vpop.f32.mrb[0].mxu0
        %v1912 = vadd.f32 0.0, %v1911
        %v1913 = vpop.f32.mrb[0].mxu0
        %1914 = vmatprep.mubr.f32.mxu0 0.0
        %1915 = vmatmul.mubr.f32.gmra.mrb[0].mxu0 %v1761
        %v1916 = vpop.f32.mrb[0].mxu0
        %v1917 = vadd.f32 0.0, %v1916
        %v1918 = vpop.f32.mrb[0].mxu0
        %1919 = vmatprep.mubr.f32.mxu0 0.0
        %1920 = vmatmul.mubr.f32.gmra.mrb[0].mxu0 %v1762
        %v1921 = vpop.f32.mrb[0].mxu0
        %v1922 = vadd.f32 0.0, %v1921
        %v1923 = vpop.f32.mrb[0].mxu0
        %1924 = vmatprep.mubr.f32.mxu0 0.0
        %1925 = vmatmul.mubr.f32.gmra.mrb[0].mxu0 %v1763
        %v1926 = vpop.f32.mrb[0].mxu0
        %v1927 = vadd.f32 0.0, %v1926
        %v1928 = vpop.f32.mrb[0].mxu0
        %1929 = vmatprep.mubr.f32.mxu0 0.0
        %1930 = vmatmul.mubr.f32.gmra.mrb[0].mxu0 %v1764
        %v1931 = vpop.f32.mrb[0].mxu0
        %v1932 = vadd.f32 0.0, %v1931
        %v1933 = vpop.f32.mrb[0].mxu0
        %1934 = vmatprep.mubr.f32.mxu0 0.0
        %1935 = vmatmul.mubr.f32.gmra.mrb[0].mxu0 %v1765
        %v1936 = vpop.f32.mrb[0].mxu0
        %v1937 = vadd.f32 0.0, %v1936
        %v1938 = vpop.f32.mrb[0].mxu0
        %1939 = vmatprep.mubr.f32.mxu0 0.0
        %1940 = vmatmul.mubr.f32.gmra.mrb[0].mxu0 %v1766
        %v1941 = vpop.f32.mrb[0].mxu0
        %v1942 = vadd.f32 0.0, %v1941
        %v1943 = vpop.f32.mrb[0].mxu0
        %1944 = vmatprep.mubr.f32.mxu0 0.0
        %1945 = vmatmul.mubr.f32.gmra.mrb[0].mxu0 %v1767
        %v1946 = vpop.f32.mrb[0].mxu0
        %v1947 = vadd.f32 0.0, %v1946
        %v1948 = vpop.f32.mrb[0].mxu0
        %1949 = vmatprep.mubr.f32.mxu0 0.0
        %1950 = vmatmul.mubr.f32.gmra.mrb[0].mxu0 %v1768
        %v1951 = vpop.f32.mrb[0].mxu0
        %v1952 = vadd.f32 0.0, %v1951
        %v1953 = vpop.f32.mrb[0].mxu0
        %1954 = vmatprep.mubr.f32.mxu0 0.0
        %1955 = vmatmul.mubr.f32.gmra.mrb[0].mxu0 %v1769
        %v1956 = vpop.f32.mrb[0].mxu0
        %v1957 = vadd.f32 0.0, %v1956
        %v1958 = vpop.f32.mrb[0].mxu0
        %1959 = vmatprep.mubr.f32.mxu0 0.0
        %1960 = vmatmul.mubr.f32.gmra.mrb[0].mxu0 %v1770
        %v1961 = vpop.f32.mrb[0].mxu0
        %v1962 = vadd.f32 0.0, %v1961
        %v1963 = vpop.f32.mrb[0].mxu0
        %1964 = vmatprep.mubr.f32.mxu0 0.0
        %1965 = vmatmul.mubr.f32.gmra.mrb[0].mxu0 %v1771
        %v1966 = vpop.f32.mrb[0].mxu0
        %v1967 = vadd.f32 0.0, %v1966
        %v1968 = vpop.f32.mrb[0].mxu0
        %1969 = vmatprep.mubr.f32.mxu0 0.0
        %1970 = vmatmul.mubr.f32.gmra.mrb[0].mxu0 %v1772
        %v1971 = vpop.f32.mrb[0].mxu0
        %v1972 = vadd.f32 0.0, %v1971
        %v1973 = vpop.f32.mrb[0].mxu0
        %1974 = vmatprep.mubr.f32.mxu0 0.0
        %1975 = vmatmul.mubr.f32.gmra.mrb[0].mxu0 %v1773
        %v1976 = vpop.f32.mrb[0].mxu0
        %v1977 = vadd.f32 0.0, %v1976
        %v1978 = vpop.f32.mrb[0].mxu0
        %1979 = vmatprep.mubr.f32.mxu0 0.0
        %1980 = vmatmul.mubr.f32.gmra.mrb[0].mxu0 %v1774
        %v1981 = vpop.f32.mrb[0].mxu0
        %v1982 = vadd.f32 0.0, %v1981
        %v1983 = vpop.f32.mrb[0].mxu0
        %1984 = vmatprep.mubr.f32.mxu0 0.0
        %1985 = vmatmul.mubr.f32.gmra.mrb[0].mxu0 %v1775
        %v1986 = vpop.f32.mrb[0].mxu0
        %v1987 = vadd.f32 0.0, %v1986
        %v1988 = vpop.f32.mrb[0].mxu0
        %1989 = vmatprep.mubr.f32.mxu0 0.0
        %1990 = vmatmul.mubr.f32.gmra.mrb[0].mxu0 %v1776
        %v1991 = vpop.f32.mrb[0].mxu0
        %v1992 = vadd.f32 0.0, %v1991
        %v1993 = vpop.f32.mrb[0].mxu0
        %1994 = vmatprep.mubr.f32.mxu0 0.0
        %1995 = vmatmul.mubr.f32.gmra.mrb[0].mxu0 %v1777
        %v1996 = vpop.f32.mrb[0].mxu0
        %v1997 = vadd.f32 0.0, %v1996
        %v1998 = vpop.f32.mrb[0].mxu0
        %1999 = vmatprep.mubr.f32.mxu0 0.0
        %2000 = vmatmul.mubr.f32.gmra.mrb[0].mxu0 %v1778
        %v2001 = vpop.f32.mrb[0].mxu0
        %v2002 = vadd.f32 0.0, %v2001
        %v2003 = vpop.f32.mrb[0].mxu0
        %2004 = vmatprep.mubr.f32.mxu0 0.0
        %2005 = vmatmul.mubr.f32.gmra.mrb[0].mxu0 %v1779
        %v2006 = vpop.f32.mrb[0].mxu0
        %v2007 = vadd.f32 0.0, %v2006
        %v2008 = vpop.f32.mrb[0].mxu0
        %2009 = vmatprep.mubr.f32.mxu0 0.0
        %2010 = vmatmul.mubr.f32.gmra.mrb[0].mxu0 %v1780
        %v2011 = vpop.f32.mrb[0].mxu0
        %v2012 = vadd.f32 0.0, %v2011
        %v2013 = vpop.f32.mrb[0].mxu0
        %2014 = vmatprep.mubr.f32.mxu0 0.0
        %2015 = vmatmul.mubr.f32.gmra.mrb[0].mxu0 %v1781
        %v2016 = vpop.f32.mrb[0].mxu0
        %v2017 = vadd.f32 0.0, %v2016
        %v2018 = vpop.f32.mrb[0].mxu0
        %2019 = vmatprep.mubr.f32.mxu0 0.0
        %2020 = vmatmul.mubr.f32.gmra.mrb[0].mxu0 %v1782
        %v2021 = vpop.f32.mrb[0].mxu0
        %v2022 = vadd.f32 0.0, %v2021
        %v2023 = vpop.f32.mrb[0].mxu0
        %2024 = vdwg.mxu0
        %2025 = vmatprep.subr.mxu0 0.0
        %2026 = vmatpush1.msra.mxu0 %v1735
        %2027 = vmatprep.subr.mxu0 0.0
        %2028 = vmatpush1.msra.mxu0 %v1736
        %2029 = vmatprep.subr.mxu0 0.0
        %2030 = vmatpush1.msra.mxu0 %v1737
        %2031 = vmatprep.subr.mxu0 0.0
        %2032 = vmatpush1.msra.mxu0 %v1738
        %2033 = vmatprep.subr.mxu0 0.0
        %2034 = vmatpush1.msra.mxu0 %v1739
        %2035 = vmatprep.subr.mxu0 0.0
        %2036 = vmatpush1.msra.mxu0 %v1740
        %2037 = vmatprep.subr.mxu0 0.0
        %2038 = vmatpush1.msra.mxu0 %v1741
        %2039 = vmatprep.subr.mxu0 0.0
        %2040 = vmatpush1.msra.mxu0 %v1742
        %2041 = vmatprep.subr.mxu0 0.0
        %2042 = vmatpush1.msra.mxu0 %v1743
        %2043 = vmatprep.subr.mxu0 0.0
        %2044 = vmatpush1.msra.mxu0 %v1744
        %2045 = vmatprep.subr.mxu0 0.0
        %2046 = vmatpush1.msra.mxu0 %v1745
        %2047 = vmatprep.subr.mxu0 0.0
        %2048 = vmatpush1.msra.mxu0 %v1746
        %2049 = vmatprep.subr.mxu0 0.0
        %2050 = vmatpush1.msra.mxu0 %v1747
        %2051 = vmatprep.subr.mxu0 0.0
        %2052 = vmatpush1.msra.mxu0 %v1748
        %2053 = vmatprep.subr.mxu0 0.0
        %2054 = vmatpush1.msra.mxu0 %v1749
        %2055 = vmatprep.subr.mxu0 0.0
        %2056 = vmatpush1.msra.mxu0 %v1750
        %2057 = vmatprep.subr.mxu0 0.0
        %2058 = vmatpush1.msra.mxu0 0.0
        %2059 = vmatprep.subr.mxu0 0.0
        %2060 = vmatpush1.msra.mxu0 0.0
        %2061 = vmatprep.subr.mxu0 0.0
        %2062 = vmatpush1.msra.mxu0 0.0
        %2063 = vmatprep.subr.mxu0 0.0
        %2064 = vmatpush1.msra.mxu0 0.0
        %2065 = vmatprep.subr.mxu0 0.0
        %2066 = vmatpush1.msra.mxu0 0.0
        %2067 = vmatprep.subr.mxu0 0.0
        %2068 = vmatpush1.msra.mxu0 0.0
        %2069 = vmatprep.subr.mxu0 0.0
        %2070 = vmatpush1.msra.mxu0 0.0
        %2071 = vmatprep.subr.mxu0 0.0
        %2072 = vmatpush1.msra.mxu0 0.0
        %2073 = vmatprep.subr.mxu0 0.0
        %2074 = vmatpush1.msra.mxu0 0.0
        %2075 = vmatprep.subr.mxu0 0.0
        %2076 = vmatpush1.msra.mxu0 0.0
        %2077 = vmatprep.subr.mxu0 0.0
        %2078 = vmatpush1.msra.mxu0 0.0
        %2079 = vmatprep.subr.mxu0 0.0
        %2080 = vmatpush1.msra.mxu0 0.0
        %2081 = vmatprep.subr.mxu0 0.0
        %2082 = vmatpush1.msra.mxu0 0.0
        %2083 = vmatprep.subr.mxu0 0.0
        %2084 = vmatpush1.msra.mxu0 0.0
        %2085 = vmatprep.subr.mxu0 0.0
        %2086 = vmatpush1.msra.mxu0 0.0
        %2087 = vmatprep.subr.mxu0 0.0
        %2088 = vmatpush1.msra.mxu0 0.0
        %2089 = vmatprep.mubr.f32.mxu0 0.0
        %2090 = vmatmul.mubr.f32.gmra.mrb[0].mxu0 %v1703
        %v2091 = vpop.f32.mrb[0].mxu0
        %v2092 = vadd.f32 %v1867, %v2091
        %v2093 = vpop.f32.mrb[0].mxu0
        %2094 = vmatprep.mubr.f32.mxu0 0.0
        %2095 = vmatmul.mubr.f32.gmra.mrb[0].mxu0 %v1704
        %v2096 = vpop.f32.mrb[0].mxu0
        %v2097 = vadd.f32 %v1872, %v2096
        %v2098 = vpop.f32.mrb[0].mxu0
        %2099 = vmatprep.mubr.f32.mxu0 0.0
        %2100 = vmatmul.mubr.f32.gmra.mrb[0].mxu0 %v1705
        %v2101 = vpop.f32.mrb[0].mxu0
        %v2102 = vadd.f32 %v1877, %v2101
        %v2103 = vpop.f32.mrb[0].mxu0
        %2104 = vmatprep.mubr.f32.mxu0 0.0
        %2105 = vmatmul.mubr.f32.gmra.mrb[0].mxu0 %v1706
        %v2106 = vpop.f32.mrb[0].mxu0
        %v2107 = vadd.f32 %v1882, %v2106
        %v2108 = vpop.f32.mrb[0].mxu0
        %2109 = vmatprep.mubr.f32.mxu0 0.0
        %2110 = vmatmul.mubr.f32.gmra.mrb[0].mxu0 %v1707
        %v2111 = vpop.f32.mrb[0].mxu0
        %v2112 = vadd.f32 %v1887, %v2111
        %v2113 = vpop.f32.mrb[0].mxu0
        %2114 = vmatprep.mubr.f32.mxu0 0.0
        %2115 = vmatmul.mubr.f32.gmra.mrb[0].mxu0 %v1708
        %v2116 = vpop.f32.mrb[0].mxu0
        %v2117 = vadd.f32 %v1892, %v2116
        %v2118 = vpop.f32.mrb[0].mxu0
        %2119 = vmatprep.mubr.f32.mxu0 0.0
        %2120 = vmatmul.mubr.f32.gmra.mrb[0].mxu0 %v1709
        %v2121 = vpop.f32.mrb[0].mxu0
        %v2122 = vadd.f32 %v1897, %v2121
        %v2123 = vpop.f32.mrb[0].mxu0
        %2124 = vmatprep.mubr.f32.mxu0 0.0
        %2125 = vmatmul.mubr.f32.gmra.mrb[0].mxu0 %v1710
        %v2126 = vpop.f32.mrb[0].mxu0
        %v2127 = vadd.f32 %v1902, %v2126
        %v2128 = vpop.f32.mrb[0].mxu0
        %2129 = vmatprep.mubr.f32.mxu0 0.0
        %2130 = vmatmul.mubr.f32.gmra.mrb[0].mxu0 %v1711
        %v2131 = vpop.f32.mrb[0].mxu0
        %v2132 = vadd.f32 %v1907, %v2131
        %v2133 = vpop.f32.mrb[0].mxu0
        %2134 = vmatprep.mubr.f32.mxu0 0.0
        %2135 = vmatmul.mubr.f32.gmra.mrb[0].mxu0 %v1712
        %v2136 = vpop.f32.mrb[0].mxu0
        %v2137 = vadd.f32 %v1912, %v2136
        %v2138 = vpop.f32.mrb[0].mxu0
        %2139 = vmatprep.mubr.f32.mxu0 0.0
        %2140 = vmatmul.mubr.f32.gmra.mrb[0].mxu0 %v1713
        %v2141 = vpop.f32.mrb[0].mxu0
        %v2142 = vadd.f32 %v1917, %v2141
        %v2143 = vpop.f32.mrb[0].mxu0
        %2144 = vmatprep.mubr.f32.mxu0 0.0
        %2145 = vmatmul.mubr.f32.gmra.mrb[0].mxu0 %v1714
        %v2146 = vpop.f32.mrb[0].mxu0
        %v2147 = vadd.f32 %v1922, %v2146
        %v2148 = vpop.f32.mrb[0].mxu0
        %2149 = vmatprep.mubr.f32.mxu0 0.0
        %2150 = vmatmul.mubr.f32.gmra.mrb[0].mxu0 %v1715
        %v2151 = vpop.f32.mrb[0].mxu0
        %v2152 = vadd.f32 %v1927, %v2151
        %v2153 = vpop.f32.mrb[0].mxu0
        %2154 = vmatprep.mubr.f32.mxu0 0.0
        %2155 = vmatmul.mubr.f32.gmra.mrb[0].mxu0 %v1716
        %v2156 = vpop.f32.mrb[0].mxu0
        %v2157 = vadd.f32 %v1932, %v2156
        %v2158 = vpop.f32.mrb[0].mxu0
        %2159 = vmatprep.mubr.f32.mxu0 0.0
        %2160 = vmatmul.mubr.f32.gmra.mrb[0].mxu0 %v1717
        %v2161 = vpop.f32.mrb[0].mxu0
        %v2162 = vadd.f32 %v1937, %v2161
        %v2163 = vpop.f32.mrb[0].mxu0
        %2164 = vmatprep.mubr.f32.mxu0 0.0
        %2165 = vmatmul.mubr.f32.gmra.mrb[0].mxu0 %v1718
        %v2166 = vpop.f32.mrb[0].mxu0
        %v2167 = vadd.f32 %v1942, %v2166
        %v2168 = vpop.f32.mrb[0].mxu0
        %2169 = vmatprep.mubr.f32.mxu0 0.0
        %2170 = vmatmul.mubr.f32.gmra.mrb[0].mxu0 %v1719
        %v2171 = vpop.f32.mrb[0].mxu0
        %v2172 = vadd.f32 %v1947, %v2171
        %v2173 = vpop.f32.mrb[0].mxu0
        %2174 = vmatprep.mubr.f32.mxu0 0.0
        %2175 = vmatmul.mubr.f32.gmra.mrb[0].mxu0 %v1720
        %v2176 = vpop.f32.mrb[0].mxu0
        %v2177 = vadd.f32 %v1952, %v2176
        %v2178 = vpop.f32.mrb[0].mxu0
        %2179 = vmatprep.mubr.f32.mxu0 0.0
        %2180 = vmatmul.mubr.f32.gmra.mrb[0].mxu0 %v1721
        %v2181 = vpop.f32.mrb[0].mxu0
        %v2182 = vadd.f32 %v1957, %v2181
        %v2183 = vpop.f32.mrb[0].mxu0
        %2184 = vmatprep.mubr.f32.mxu0 0.0
        %2185 = vmatmul.mubr.f32.gmra.mrb[0].mxu0 %v1722
        %v2186 = vpop.f32.mrb[0].mxu0
        %v2187 = vadd.f32 %v1962, %v2186
        %v2188 = vpop.f32.mrb[0].mxu0
        %2189 = vmatprep.mubr.f32.mxu0 0.0
        %2190 = vmatmul.mubr.f32.gmra.mrb[0].mxu0 %v1723
        %v2191 = vpop.f32.mrb[0].mxu0
        %v2192 = vadd.f32 %v1967, %v2191
        %v2193 = vpop.f32.mrb[0].mxu0
        %2194 = vmatprep.mubr.f32.mxu0 0.0
        %2195 = vmatmul.mubr.f32.gmra.mrb[0].mxu0 %v1724
        %v2196 = vpop.f32.mrb[0].mxu0
        %v2197 = vadd.f32 %v1972, %v2196
        %v2198 = vpop.f32.mrb[0].mxu0
        %2199 = vmatprep.mubr.f32.mxu0 0.0
        %2200 = vmatmul.mubr.f32.gmra.mrb[0].mxu0 %v1725
        %v2201 = vpop.f32.mrb[0].mxu0
        %v2202 = vadd.f32 %v1977, %v2201
        %v2203 = vpop.f32.mrb[0].mxu0
        %2204 = vmatprep.mubr.f32.mxu0 0.0
        %2205 = vmatmul.mubr.f32.gmra.mrb[0].mxu0 %v1726
        %v2206 = vpop.f32.mrb[0].mxu0
        %v2207 = vadd.f32 %v1982, %v2206
        %v2208 = vpop.f32.mrb[0].mxu0
        %2209 = vmatprep.mubr.f32.mxu0 0.0
        %2210 = vmatmul.mubr.f32.gmra.mrb[0].mxu0 %v1727
        %v2211 = vpop.f32.mrb[0].mxu0
        %v2212 = vadd.f32 %v1987, %v2211
        %v2213 = vpop.f32.mrb[0].mxu0
        %2214 = vmatprep.mubr.f32.mxu0 0.0
        %2215 = vmatmul.mubr.f32.gmra.mrb[0].mxu0 %v1728
        %v2216 = vpop.f32.mrb[0].mxu0
        %v2217 = vadd.f32 %v1992, %v2216
        %v2218 = vpop.f32.mrb[0].mxu0
        %2219 = vmatprep.mubr.f32.mxu0 0.0
        %2220 = vmatmul.mubr.f32.gmra.mrb[0].mxu0 %v1729
        %v2221 = vpop.f32.mrb[0].mxu0
        %v2222 = vadd.f32 %v1997, %v2221
        %v2223 = vpop.f32.mrb[0].mxu0
        %2224 = vmatprep.mubr.f32.mxu0 0.0
        %2225 = vmatmul.mubr.f32.gmra.mrb[0].mxu0 %v1730
        %v2226 = vpop.f32.mrb[0].mxu0
        %v2227 = vadd.f32 %v2002, %v2226
        %v2228 = vpop.f32.mrb[0].mxu0
        %2229 = vmatprep.mubr.f32.mxu0 0.0
        %2230 = vmatmul.mubr.f32.gmra.mrb[0].mxu0 %v1731
        %v2231 = vpop.f32.mrb[0].mxu0
        %v2232 = vadd.f32 %v2007, %v2231
        %v2233 = vpop.f32.mrb[0].mxu0
        %2234 = vmatprep.mubr.f32.mxu0 0.0
        %2235 = vmatmul.mubr.f32.gmra.mrb[0].mxu0 %v1732
        %v2236 = vpop.f32.mrb[0].mxu0
        %v2237 = vadd.f32 %v2012, %v2236
        %v2238 = vpop.f32.mrb[0].mxu0
        %2239 = vmatprep.mubr.f32.mxu0 0.0
        %2240 = vmatmul.mubr.f32.gmra.mrb[0].mxu0 %v1733
        %v2241 = vpop.f32.mrb[0].mxu0
        %v2242 = vadd.f32 %v2017, %v2241
        %v2243 = vpop.f32.mrb[0].mxu0
        %2244 = vmatprep.mubr.f32.mxu0 0.0
        %2245 = vmatmul.mubr.f32.gmra.mrb[0].mxu0 %v1734
        %v2246 = vpop.f32.mrb[0].mxu0
        %v2247 = vadd.f32 %v2022, %v2246
        %v2248 = vpop.f32.mrb[0].mxu0
        %2249 = vdwg.mxu0
        %v2250 = vld [vmem:[#allocation2 + $0x2] sm:$0xff]
        %v2251 = vld [vmem:[#allocation2 + $0xa] sm:$0xff]
        %v2252 = vld [vmem:[#allocation2 + $0x1a] sm:$0xff]
        %v2253 = vld [vmem:[#allocation2 + $0x22] sm:$0xff]
        %v2254 = vld [vmem:[#allocation2 + $0x32] sm:$0xff]
        %v2255 = vld [vmem:[#allocation2 + $0x3a] sm:$0xff]
        %v2256 = vld [vmem:[#allocation2 + $0x4a] sm:$0xff]
        %v2257 = vld [vmem:[#allocation2 + $0x52] sm:$0xff]
        %v2258 = vld [vmem:[#allocation2 + $0x62] sm:$0xff]
        %v2259 = vld [vmem:[#allocation2 + $0x6a] sm:$0xff]
        %v2260 = vld [vmem:[#allocation2 + $0x7a] sm:$0xff]
        %v2261 = vld [vmem:[#allocation2 + $0x82] sm:$0xff]
        %v2262 = vld [vmem:[#allocation2 + $0x92] sm:$0xff]
        %v2263 = vld [vmem:[#allocation2 + $0x9a] sm:$0xff]
        %v2264 = vld [vmem:[#allocation2 + $0xaa] sm:$0xff]
        %v2265 = vld [vmem:[#allocation2 + $0xb2] sm:$0xff]
        %v2266 = vld [vmem:[#allocation2 + $0xc2] sm:$0xff]
        %v2267 = vld [vmem:[#allocation2 + $0xca] sm:$0xff]
        %v2268 = vld [vmem:[#allocation2 + $0xda] sm:$0xff]
        %v2269 = vld [vmem:[#allocation2 + $0xe2] sm:$0xff]
        %v2270 = vld [vmem:[#allocation2 + $0xf2] sm:$0xff]
        %v2271 = vld [vmem:[#allocation2 + $0xfa] sm:$0xff]
        %v2272 = vld [vmem:[#allocation2 + $0x10a] sm:$0xff]
        %v2273 = vld [vmem:[#allocation2 + $0x112] sm:$0xff]
        %v2274 = vld [vmem:[#allocation2 + $0x122] sm:$0xff]
        %v2275 = vld [vmem:[#allocation2 + $0x12a] sm:$0xff]
        %v2276 = vld [vmem:[#allocation2 + $0x13a] sm:$0xff]
        %v2277 = vld [vmem:[#allocation2 + $0x142] sm:$0xff]
        %v2278 = vld [vmem:[#allocation2 + $0x152] sm:$0xff]
        %v2279 = vld [vmem:[#allocation2 + $0x15a] sm:$0xff]
        %v2280 = vld [vmem:[#allocation2 + $0x16a] sm:$0xff]
        %v2281 = vld [vmem:[#allocation2 + $0x172] sm:$0xff]
        %s2282 = scalar_lea.vmem [#allocation9], 256
        %v2283 = vld [vmem:[%s2282] sm:$0xff]
        %v2284 = vld [vmem:[%s2282 + $0x8] sm:$0xff]
        %v2285 = vld [vmem:[%s2282 + $0x10] sm:$0xff]
        %v2286 = vld [vmem:[%s2282 + $0x18] sm:$0xff]
        %v2287 = vld [vmem:[%s2282 + $0x20] sm:$0xff]
        %v2288 = vld [vmem:[%s2282 + $0x28] sm:$0xff]
        %v2289 = vld [vmem:[%s2282 + $0x30] sm:$0xff]
        %v2290 = vld [vmem:[%s2282 + $0x38] sm:$0xff]
        %v2291 = vld [vmem:[%s2282 + $0x40] sm:$0xff]
        %v2292 = vld [vmem:[%s2282 + $0x48] sm:$0xff]
        %v2293 = vld [vmem:[%s2282 + $0x50] sm:$0xff]
        %v2294 = vld [vmem:[%s2282 + $0x58] sm:$0xff]
        %v2295 = vld [vmem:[%s2282 + $0x60] sm:$0xff]
        %v2296 = vld [vmem:[%s2282 + $0x68] sm:$0xff]
        %v2297 = vld [vmem:[%s2282 + $0x70] sm:$0xff]
        %v2298 = vld [vmem:[%s2282 + $0x78] sm:$0xff]
        %2299 = vmatprep.subr.mxu0 0.0
        %2300 = vmatpush1.msra.mxu0 %v2283
        %2301 = vmatprep.subr.mxu0 0.0
        %2302 = vmatpush1.msra.mxu0 %v2284
        %2303 = vmatprep.subr.mxu0 0.0
        %2304 = vmatpush1.msra.mxu0 %v2285
        %2305 = vmatprep.subr.mxu0 0.0
        %2306 = vmatpush1.msra.mxu0 %v2286
        %2307 = vmatprep.subr.mxu0 0.0
        %2308 = vmatpush1.msra.mxu0 %v2287
        %2309 = vmatprep.subr.mxu0 0.0
        %2310 = vmatpush1.msra.mxu0 %v2288
        %2311 = vmatprep.subr.mxu0 0.0
        %2312 = vmatpush1.msra.mxu0 %v2289
        %2313 = vmatprep.subr.mxu0 0.0
        %2314 = vmatpush1.msra.mxu0 %v2290
        %2315 = vmatprep.subr.mxu0 0.0
        %2316 = vmatpush1.msra.mxu0 %v2291
        %2317 = vmatprep.subr.mxu0 0.0
        %2318 = vmatpush1.msra.mxu0 %v2292
        %2319 = vmatprep.subr.mxu0 0.0
        %2320 = vmatpush1.msra.mxu0 %v2293
        %2321 = vmatprep.subr.mxu0 0.0
        %2322 = vmatpush1.msra.mxu0 %v2294
        %2323 = vmatprep.subr.mxu0 0.0
        %2324 = vmatpush1.msra.mxu0 %v2295
        %2325 = vmatprep.subr.mxu0 0.0
        %2326 = vmatpush1.msra.mxu0 %v2296
        %2327 = vmatprep.subr.mxu0 0.0
        %2328 = vmatpush1.msra.mxu0 %v2297
        %2329 = vmatprep.subr.mxu0 0.0
        %2330 = vmatpush1.msra.mxu0 %v2298
        %2331 = vmatprep.subr.mxu0 0.0
        %2332 = vmatpush1.msra.mxu0 0.0
        %2333 = vmatprep.subr.mxu0 0.0
        %2334 = vmatpush1.msra.mxu0 0.0
        %2335 = vmatprep.subr.mxu0 0.0
        %2336 = vmatpush1.msra.mxu0 0.0
        %2337 = vmatprep.subr.mxu0 0.0
        %2338 = vmatpush1.msra.mxu0 0.0
        %2339 = vmatprep.subr.mxu0 0.0
        %2340 = vmatpush1.msra.mxu0 0.0
        %2341 = vmatprep.subr.mxu0 0.0
        %2342 = vmatpush1.msra.mxu0 0.0
        %2343 = vmatprep.subr.mxu0 0.0
        %2344 = vmatpush1.msra.mxu0 0.0
        %2345 = vmatprep.subr.mxu0 0.0
        %2346 = vmatpush1.msra.mxu0 0.0
        %2347 = vmatprep.subr.mxu0 0.0
        %2348 = vmatpush1.msra.mxu0 0.0
        %2349 = vmatprep.subr.mxu0 0.0
        %2350 = vmatpush1.msra.mxu0 0.0
        %2351 = vmatprep.subr.mxu0 0.0
        %2352 = vmatpush1.msra.mxu0 0.0
        %2353 = vmatprep.subr.mxu0 0.0
        %2354 = vmatpush1.msra.mxu0 0.0
        %2355 = vmatprep.subr.mxu0 0.0
        %2356 = vmatpush1.msra.mxu0 0.0
        %2357 = vmatprep.subr.mxu0 0.0
        %2358 = vmatpush1.msra.mxu0 0.0
        %2359 = vmatprep.subr.mxu0 0.0
        %2360 = vmatpush1.msra.mxu0 0.0
        %2361 = vmatprep.subr.mxu0 0.0
        %2362 = vmatpush1.msra.mxu0 0.0
        %2363 = vmatprep.mubr.f32.mxu0 0.0
        %2364 = vmatmul.mubr.f32.gmra.mrb[0].mxu0 %v2250
        %v2365 = vpop.f32.mrb[0].mxu0
        %v2366 = vadd.f32 0.0, %v2365
        %v2367 = vpop.f32.mrb[0].mxu0
        %2368 = vmatprep.mubr.f32.mxu0 0.0
        %2369 = vmatmul.mubr.f32.gmra.mrb[0].mxu0 %v2251
        %v2370 = vpop.f32.mrb[0].mxu0
        %v2371 = vadd.f32 0.0, %v2370
        %v2372 = vpop.f32.mrb[0].mxu0
        %2373 = vmatprep.mubr.f32.mxu0 0.0
        %2374 = vmatmul.mubr.f32.gmra.mrb[0].mxu0 %v2252
        %v2375 = vpop.f32.mrb[0].mxu0
        %v2376 = vadd.f32 0.0, %v2375
        %v2377 = vpop.f32.mrb[0].mxu0
        %2378 = vmatprep.mubr.f32.mxu0 0.0
        %2379 = vmatmul.mubr.f32.gmra.mrb[0].mxu0 %v2253
        %v2380 = vpop.f32.mrb[0].mxu0
        %v2381 = vadd.f32 0.0, %v2380
        %v2382 = vpop.f32.mrb[0].mxu0
        %2383 = vmatprep.mubr.f32.mxu0 0.0
        %2384 = vmatmul.mubr.f32.gmra.mrb[0].mxu0 %v2254
        %v2385 = vpop.f32.mrb[0].mxu0
        %v2386 = vadd.f32 0.0, %v2385
        %v2387 = vpop.f32.mrb[0].mxu0
        %2388 = vmatprep.mubr.f32.mxu0 0.0
        %2389 = vmatmul.mubr.f32.gmra.mrb[0].mxu0 %v2255
        %v2390 = vpop.f32.mrb[0].mxu0
        %v2391 = vadd.f32 0.0, %v2390
        %v2392 = vpop.f32.mrb[0].mxu0
        %2393 = vmatprep.mubr.f32.mxu0 0.0
        %2394 = vmatmul.mubr.f32.gmra.mrb[0].mxu0 %v2256
        %v2395 = vpop.f32.mrb[0].mxu0
        %v2396 = vadd.f32 0.0, %v2395
        %v2397 = vpop.f32.mrb[0].mxu0
        %2398 = vmatprep.mubr.f32.mxu0 0.0
        %2399 = vmatmul.mubr.f32.gmra.mrb[0].mxu0 %v2257
        %v2400 = vpop.f32.mrb[0].mxu0
        %v2401 = vadd.f32 0.0, %v2400
        %v2402 = vpop.f32.mrb[0].mxu0
        %2403 = vmatprep.mubr.f32.mxu0 0.0
        %2404 = vmatmul.mubr.f32.gmra.mrb[0].mxu0 %v2258
        %v2405 = vpop.f32.mrb[0].mxu0
        %v2406 = vadd.f32 0.0, %v2405
        %v2407 = vpop.f32.mrb[0].mxu0
        %2408 = vmatprep.mubr.f32.mxu0 0.0
        %2409 = vmatmul.mubr.f32.gmra.mrb[0].mxu0 %v2259
        %v2410 = vpop.f32.mrb[0].mxu0
        %v2411 = vadd.f32 0.0, %v2410
        %v2412 = vpop.f32.mrb[0].mxu0
        %2413 = vmatprep.mubr.f32.mxu0 0.0
        %2414 = vmatmul.mubr.f32.gmra.mrb[0].mxu0 %v2260
        %v2415 = vpop.f32.mrb[0].mxu0
        %v2416 = vadd.f32 0.0, %v2415
        %v2417 = vpop.f32.mrb[0].mxu0
        %2418 = vmatprep.mubr.f32.mxu0 0.0
        %2419 = vmatmul.mubr.f32.gmra.mrb[0].mxu0 %v2261
        %v2420 = vpop.f32.mrb[0].mxu0
        %v2421 = vadd.f32 0.0, %v2420
        %v2422 = vpop.f32.mrb[0].mxu0
        %2423 = vmatprep.mubr.f32.mxu0 0.0
        %2424 = vmatmul.mubr.f32.gmra.mrb[0].mxu0 %v2262
        %v2425 = vpop.f32.mrb[0].mxu0
        %v2426 = vadd.f32 0.0, %v2425
        %v2427 = vpop.f32.mrb[0].mxu0
        %2428 = vmatprep.mubr.f32.mxu0 0.0
        %2429 = vmatmul.mubr.f32.gmra.mrb[0].mxu0 %v2263
        %v2430 = vpop.f32.mrb[0].mxu0
        %v2431 = vadd.f32 0.0, %v2430
        %v2432 = vpop.f32.mrb[0].mxu0
        %2433 = vmatprep.mubr.f32.mxu0 0.0
        %2434 = vmatmul.mubr.f32.gmra.mrb[0].mxu0 %v2264
        %v2435 = vpop.f32.mrb[0].mxu0
        %v2436 = vadd.f32 0.0, %v2435
        %v2437 = vpop.f32.mrb[0].mxu0
        %2438 = vmatprep.mubr.f32.mxu0 0.0
        %2439 = vmatmul.mubr.f32.gmra.mrb[0].mxu0 %v2265
        %v2440 = vpop.f32.mrb[0].mxu0
        %v2441 = vadd.f32 0.0, %v2440
        %v2442 = vpop.f32.mrb[0].mxu0
        %2443 = vmatprep.mubr.f32.mxu0 0.0
        %2444 = vmatmul.mubr.f32.gmra.mrb[0].mxu0 %v2266
        %v2445 = vpop.f32.mrb[0].mxu0
        %v2446 = vadd.f32 0.0, %v2445
        %v2447 = vpop.f32.mrb[0].mxu0
        %2448 = vmatprep.mubr.f32.mxu0 0.0
        %2449 = vmatmul.mubr.f32.gmra.mrb[0].mxu0 %v2267
        %v2450 = vpop.f32.mrb[0].mxu0
        %v2451 = vadd.f32 0.0, %v2450
        %v2452 = vpop.f32.mrb[0].mxu0
        %2453 = vmatprep.mubr.f32.mxu0 0.0
        %2454 = vmatmul.mubr.f32.gmra.mrb[0].mxu0 %v2268
        %v2455 = vpop.f32.mrb[0].mxu0
        %v2456 = vadd.f32 0.0, %v2455
        %v2457 = vpop.f32.mrb[0].mxu0
        %2458 = vmatprep.mubr.f32.mxu0 0.0
        %2459 = vmatmul.mubr.f32.gmra.mrb[0].mxu0 %v2269
        %v2460 = vpop.f32.mrb[0].mxu0
        %v2461 = vadd.f32 0.0, %v2460
        %v2462 = vpop.f32.mrb[0].mxu0
        %2463 = vmatprep.mubr.f32.mxu0 0.0
        %2464 = vmatmul.mubr.f32.gmra.mrb[0].mxu0 %v2270
        %v2465 = vpop.f32.mrb[0].mxu0
        %v2466 = vadd.f32 0.0, %v2465
        %v2467 = vpop.f32.mrb[0].mxu0
        %2468 = vmatprep.mubr.f32.mxu0 0.0
        %2469 = vmatmul.mubr.f32.gmra.mrb[0].mxu0 %v2271
        %v2470 = vpop.f32.mrb[0].mxu0
        %v2471 = vadd.f32 0.0, %v2470
        %v2472 = vpop.f32.mrb[0].mxu0
        %2473 = vmatprep.mubr.f32.mxu0 0.0
        %2474 = vmatmul.mubr.f32.gmra.mrb[0].mxu0 %v2272
        %v2475 = vpop.f32.mrb[0].mxu0
        %v2476 = vadd.f32 0.0, %v2475
        %v2477 = vpop.f32.mrb[0].mxu0
        %2478 = vmatprep.mubr.f32.mxu0 0.0
        %2479 = vmatmul.mubr.f32.gmra.mrb[0].mxu0 %v2273
        %v2480 = vpop.f32.mrb[0].mxu0
        %v2481 = vadd.f32 0.0, %v2480
        %v2482 = vpop.f32.mrb[0].mxu0
        %2483 = vmatprep.mubr.f32.mxu0 0.0
        %2484 = vmatmul.mubr.f32.gmra.mrb[0].mxu0 %v2274
        %v2485 = vpop.f32.mrb[0].mxu0
        %v2486 = vadd.f32 0.0, %v2485
        %v2487 = vpop.f32.mrb[0].mxu0
        %2488 = vmatprep.mubr.f32.mxu0 0.0
        %2489 = vmatmul.mubr.f32.gmra.mrb[0].mxu0 %v2275
        %v2490 = vpop.f32.mrb[0].mxu0
        %v2491 = vadd.f32 0.0, %v2490
        %v2492 = vpop.f32.mrb[0].mxu0
        %2493 = vmatprep.mubr.f32.mxu0 0.0
        %2494 = vmatmul.mubr.f32.gmra.mrb[0].mxu0 %v2276
        %v2495 = vpop.f32.mrb[0].mxu0
        %v2496 = vadd.f32 0.0, %v2495
        %v2497 = vpop.f32.mrb[0].mxu0
        %2498 = vmatprep.mubr.f32.mxu0 0.0
        %2499 = vmatmul.mubr.f32.gmra.mrb[0].mxu0 %v2277
        %v2500 = vpop.f32.mrb[0].mxu0
        %v2501 = vadd.f32 0.0, %v2500
        %v2502 = vpop.f32.mrb[0].mxu0
        %2503 = vmatprep.mubr.f32.mxu0 0.0
        %2504 = vmatmul.mubr.f32.gmra.mrb[0].mxu0 %v2278
        %v2505 = vpop.f32.mrb[0].mxu0
        %v2506 = vadd.f32 0.0, %v2505
        %v2507 = vpop.f32.mrb[0].mxu0
        %2508 = vmatprep.mubr.f32.mxu0 0.0
        %2509 = vmatmul.mubr.f32.gmra.mrb[0].mxu0 %v2279
        %v2510 = vpop.f32.mrb[0].mxu0
        %v2511 = vadd.f32 0.0, %v2510
        %v2512 = vpop.f32.mrb[0].mxu0
        %2513 = vmatprep.mubr.f32.mxu0 0.0
        %2514 = vmatmul.mubr.f32.gmra.mrb[0].mxu0 %v2280
        %v2515 = vpop.f32.mrb[0].mxu0
        %v2516 = vadd.f32 0.0, %v2515
        %v2517 = vpop.f32.mrb[0].mxu0
        %2518 = vmatprep.mubr.f32.mxu0 0.0
        %2519 = vmatmul.mubr.f32.gmra.mrb[0].mxu0 %v2281
        %v2520 = vpop.f32.mrb[0].mxu0
        %v2521 = vadd.f32 0.0, %v2520
        %v2522 = vpop.f32.mrb[0].mxu0
        %2523 = vdwg.mxu0
        %v2524 = vadd.f32 %v2092, %v2366
        %v2525 = vadd.f32 %v2097, %v2371
        %v2526 = vadd.f32 %v2102, %v2376
        %v2527 = vadd.f32 %v2107, %v2381
        %v2528 = vadd.f32 %v2112, %v2386
        %v2529 = vadd.f32 %v2117, %v2391
        %v2530 = vadd.f32 %v2122, %v2396
        %v2531 = vadd.f32 %v2127, %v2401
        %v2532 = vadd.f32 %v2132, %v2406
        %v2533 = vadd.f32 %v2137, %v2411
        %v2534 = vadd.f32 %v2142, %v2416
        %v2535 = vadd.f32 %v2147, %v2421
        %v2536 = vadd.f32 %v2152, %v2426
        %v2537 = vadd.f32 %v2157, %v2431
        %v2538 = vadd.f32 %v2162, %v2436
        %v2539 = vadd.f32 %v2167, %v2441
        %v2540 = vadd.f32 %v2172, %v2446
        %v2541 = vadd.f32 %v2177, %v2451
        %v2542 = vadd.f32 %v2182, %v2456
        %v2543 = vadd.f32 %v2187, %v2461
        %v2544 = vadd.f32 %v2192, %v2466
        %v2545 = vadd.f32 %v2197, %v2471
        %v2546 = vadd.f32 %v2202, %v2476
        %v2547 = vadd.f32 %v2207, %v2481
        %v2548 = vadd.f32 %v2212, %v2486
        %v2549 = vadd.f32 %v2217, %v2491
        %v2550 = vadd.f32 %v2222, %v2496
        %v2551 = vadd.f32 %v2227, %v2501
        %v2552 = vadd.f32 %v2232, %v2506
        %v2553 = vadd.f32 %v2237, %v2511
        %v2554 = vadd.f32 %v2242, %v2516
        %v2555 = vadd.f32 %v2247, %v2521
        %v2556 = vld [vmem:[%s1638] sm:$0xff]
        %v2557 = vld [vmem:[%s1638 + $0x8] sm:$0xff]
        %v2558 = vld [vmem:[%s1638 + $0x18] sm:$0xff]
        %v2559 = vld [vmem:[%s1638 + $0x20] sm:$0xff]
        %v2560 = vld [vmem:[%s1638 + $0x30] sm:$0xff]
        %v2561 = vld [vmem:[%s1638 + $0x38] sm:$0xff]
        %v2562 = vld [vmem:[%s1638 + $0x48] sm:$0xff]
        %v2563 = vld [vmem:[%s1638 + $0x50] sm:$0xff]
        %v2564 = vld [vmem:[%s1638 + $0x60] sm:$0xff]
        %v2565 = vld [vmem:[%s1638 + $0x68] sm:$0xff]
        %v2566 = vld [vmem:[%s1638 + $0x78] sm:$0xff]
        %v2567 = vld [vmem:[%s1638 + $0x80] sm:$0xff]
        %v2568 = vld [vmem:[%s1638 + $0x90] sm:$0xff]
        %v2569 = vld [vmem:[%s1638 + $0x98] sm:$0xff]
        %v2570 = vld [vmem:[%s1638 + $0xa8] sm:$0xff]
        %v2571 = vld [vmem:[%s1638 + $0xb0] sm:$0xff]
        %v2572 = vld [vmem:[%s1638 + $0xc0] sm:$0xff]
        %v2573 = vld [vmem:[%s1638 + $0xc8] sm:$0xff]
        %v2574 = vld [vmem:[%s1638 + $0xd8] sm:$0xff]
        %v2575 = vld [vmem:[%s1638 + $0xe0] sm:$0xff]
        %v2576 = vld [vmem:[%s1638 + $0xf0] sm:$0xff]
        %v2577 = vld [vmem:[%s1638 + $0xf8] sm:$0xff]
        %v2578 = vld [vmem:[%s1638 + $0x108] sm:$0xff]
        %v2579 = vld [vmem:[%s1638 + $0x110] sm:$0xff]
        %v2580 = vld [vmem:[%s1638 + $0x120] sm:$0xff]
        %v2581 = vld [vmem:[%s1638 + $0x128] sm:$0xff]
        %v2582 = vld [vmem:[%s1638 + $0x138] sm:$0xff]
        %v2583 = vld [vmem:[%s1638 + $0x140] sm:$0xff]
        %v2584 = vld [vmem:[%s1638 + $0x150] sm:$0xff]
        %v2585 = vld [vmem:[%s1638 + $0x158] sm:$0xff]
        %v2586 = vld [vmem:[%s1638 + $0x168] sm:$0xff]
        %v2587 = vld [vmem:[%s1638 + $0x170] sm:$0xff]
        %s2588 = scalar_lea.vmem [#allocation9], 384
        %v2589 = vld [vmem:[%s2588] sm:$0xff]
        %v2590 = vld [vmem:[%s2588 + $0x8] sm:$0xff]
        %v2591 = vld [vmem:[%s2588 + $0x10] sm:$0xff]
        %v2592 = vld [vmem:[%s2588 + $0x18] sm:$0xff]
        %v2593 = vld [vmem:[%s2588 + $0x20] sm:$0xff]
        %v2594 = vld [vmem:[%s2588 + $0x28] sm:$0xff]
        %v2595 = vld [vmem:[%s2588 + $0x30] sm:$0xff]
        %v2596 = vld [vmem:[%s2588 + $0x38] sm:$0xff]
        %v2597 = vld [vmem:[%s2588 + $0x40] sm:$0xff]
        %v2598 = vld [vmem:[%s2588 + $0x48] sm:$0xff]
        %v2599 = vld [vmem:[%s2588 + $0x50] sm:$0xff]
        %v2600 = vld [vmem:[%s2588 + $0x58] sm:$0xff]
        %v2601 = vld [vmem:[%s2588 + $0x60] sm:$0xff]
        %v2602 = vld [vmem:[%s2588 + $0x68] sm:$0xff]
        %v2603 = vld [vmem:[%s2588 + $0x70] sm:$0xff]
        %v2604 = vld [vmem:[%s2588 + $0x78] sm:$0xff]
        %2605 = vmatprep.subr.mxu0 0.0
        %2606 = vmatpush1.msra.mxu0 %v2589
        %2607 = vmatprep.subr.mxu0 0.0
        %2608 = vmatpush1.msra.mxu0 %v2590
        %2609 = vmatprep.subr.mxu0 0.0
        %2610 = vmatpush1.msra.mxu0 %v2591
        %2611 = vmatprep.subr.mxu0 0.0
        %2612 = vmatpush1.msra.mxu0 %v2592
        %2613 = vmatprep.subr.mxu0 0.0
        %2614 = vmatpush1.msra.mxu0 %v2593
        %2615 = vmatprep.subr.mxu0 0.0
        %2616 = vmatpush1.msra.mxu0 %v2594
        %2617 = vmatprep.subr.mxu0 0.0
        %2618 = vmatpush1.msra.mxu0 %v2595
        %2619 = vmatprep.subr.mxu0 0.0
        %2620 = vmatpush1.msra.mxu0 %v2596
        %2621 = vmatprep.subr.mxu0 0.0
        %2622 = vmatpush1.msra.mxu0 %v2597
        %2623 = vmatprep.subr.mxu0 0.0
        %2624 = vmatpush1.msra.mxu0 %v2598
        %2625 = vmatprep.subr.mxu0 0.0
        %2626 = vmatpush1.msra.mxu0 %v2599
        %2627 = vmatprep.subr.mxu0 0.0
        %2628 = vmatpush1.msra.mxu0 %v2600
        %2629 = vmatprep.subr.mxu0 0.0
        %2630 = vmatpush1.msra.mxu0 %v2601
        %2631 = vmatprep.subr.mxu0 0.0
        %2632 = vmatpush1.msra.mxu0 %v2602
        %2633 = vmatprep.subr.mxu0 0.0
        %2634 = vmatpush1.msra.mxu0 %v2603
        %2635 = vmatprep.subr.mxu0 0.0
        %2636 = vmatpush1.msra.mxu0 %v2604
        %2637 = vmatprep.subr.mxu0 0.0
        %2638 = vmatpush1.msra.mxu0 0.0
        %2639 = vmatprep.subr.mxu0 0.0
        %2640 = vmatpush1.msra.mxu0 0.0
        %2641 = vmatprep.subr.mxu0 0.0
        %2642 = vmatpush1.msra.mxu0 0.0
        %2643 = vmatprep.subr.mxu0 0.0
        %2644 = vmatpush1.msra.mxu0 0.0
        %2645 = vmatprep.subr.mxu0 0.0
        %2646 = vmatpush1.msra.mxu0 0.0
        %2647 = vmatprep.subr.mxu0 0.0
        %2648 = vmatpush1.msra.mxu0 0.0
        %2649 = vmatprep.subr.mxu0 0.0
        %2650 = vmatpush1.msra.mxu0 0.0
        %2651 = vmatprep.subr.mxu0 0.0
        %2652 = vmatpush1.msra.mxu0 0.0
        %2653 = vmatprep.subr.mxu0 0.0
        %2654 = vmatpush1.msra.mxu0 0.0
        %2655 = vmatprep.subr.mxu0 0.0
        %2656 = vmatpush1.msra.mxu0 0.0
        %2657 = vmatprep.subr.mxu0 0.0
        %2658 = vmatpush1.msra.mxu0 0.0
        %2659 = vmatprep.subr.mxu0 0.0
        %2660 = vmatpush1.msra.mxu0 0.0
        %2661 = vmatprep.subr.mxu0 0.0
        %2662 = vmatpush1.msra.mxu0 0.0
        %2663 = vmatprep.subr.mxu0 0.0
        %2664 = vmatpush1.msra.mxu0 0.0
        %2665 = vmatprep.subr.mxu0 0.0
        %2666 = vmatpush1.msra.mxu0 0.0
        %2667 = vmatprep.subr.mxu0 0.0
        %2668 = vmatpush1.msra.mxu0 0.0
        %2669 = vmatprep.mubr.f32.mxu0 0.0
        %2670 = vmatmul.mubr.f32.gmra.mrb[0].mxu0 %v2556
        %v2671 = vpop.f32.mrb[0].mxu0
        %v2672 = vadd.f32 0.0, %v2671
        %v2673 = vpop.f32.mrb[0].mxu0
        %2674 = vmatprep.mubr.f32.mxu0 0.0
        %2675 = vmatmul.mubr.f32.gmra.mrb[0].mxu0 %v2557
        %v2676 = vpop.f32.mrb[0].mxu0
        %v2677 = vadd.f32 0.0, %v2676
        %v2678 = vpop.f32.mrb[0].mxu0
        %2679 = vmatprep.mubr.f32.mxu0 0.0
        %2680 = vmatmul.mubr.f32.gmra.mrb[0].mxu0 %v2558
        %v2681 = vpop.f32.mrb[0].mxu0
        %v2682 = vadd.f32 0.0, %v2681
        %v2683 = vpop.f32.mrb[0].mxu0
        %2684 = vmatprep.mubr.f32.mxu0 0.0
        %2685 = vmatmul.mubr.f32.gmra.mrb[0].mxu0 %v2559
        %v2686 = vpop.f32.mrb[0].mxu0
        %v2687 = vadd.f32 0.0, %v2686
        %v2688 = vpop.f32.mrb[0].mxu0
        %2689 = vmatprep.mubr.f32.mxu0 0.0
        %2690 = vmatmul.mubr.f32.gmra.mrb[0].mxu0 %v2560
        %v2691 = vpop.f32.mrb[0].mxu0
        %v2692 = vadd.f32 0.0, %v2691
        %v2693 = vpop.f32.mrb[0].mxu0
        %2694 = vmatprep.mubr.f32.mxu0 0.0
        %2695 = vmatmul.mubr.f32.gmra.mrb[0].mxu0 %v2561
        %v2696 = vpop.f32.mrb[0].mxu0
        %v2697 = vadd.f32 0.0, %v2696
        %v2698 = vpop.f32.mrb[0].mxu0
        %2699 = vmatprep.mubr.f32.mxu0 0.0
        %2700 = vmatmul.mubr.f32.gmra.mrb[0].mxu0 %v2562
        %v2701 = vpop.f32.mrb[0].mxu0
        %v2702 = vadd.f32 0.0, %v2701
        %v2703 = vpop.f32.mrb[0].mxu0
        %2704 = vmatprep.mubr.f32.mxu0 0.0
        %2705 = vmatmul.mubr.f32.gmra.mrb[0].mxu0 %v2563
        %v2706 = vpop.f32.mrb[0].mxu0
        %v2707 = vadd.f32 0.0, %v2706
        %v2708 = vpop.f32.mrb[0].mxu0
        %2709 = vmatprep.mubr.f32.mxu0 0.0
        %2710 = vmatmul.mubr.f32.gmra.mrb[0].mxu0 %v2564
        %v2711 = vpop.f32.mrb[0].mxu0
        %v2712 = vadd.f32 0.0, %v2711
        %v2713 = vpop.f32.mrb[0].mxu0
        %2714 = vmatprep.mubr.f32.mxu0 0.0
        %2715 = vmatmul.mubr.f32.gmra.mrb[0].mxu0 %v2565
        %v2716 = vpop.f32.mrb[0].mxu0
        %v2717 = vadd.f32 0.0, %v2716
        %v2718 = vpop.f32.mrb[0].mxu0
        %2719 = vmatprep.mubr.f32.mxu0 0.0
        %2720 = vmatmul.mubr.f32.gmra.mrb[0].mxu0 %v2566
        %v2721 = vpop.f32.mrb[0].mxu0
        %v2722 = vadd.f32 0.0, %v2721
        %v2723 = vpop.f32.mrb[0].mxu0
        %2724 = vmatprep.mubr.f32.mxu0 0.0
        %2725 = vmatmul.mubr.f32.gmra.mrb[0].mxu0 %v2567
        %v2726 = vpop.f32.mrb[0].mxu0
        %v2727 = vadd.f32 0.0, %v2726
        %v2728 = vpop.f32.mrb[0].mxu0
        %2729 = vmatprep.mubr.f32.mxu0 0.0
        %2730 = vmatmul.mubr.f32.gmra.mrb[0].mxu0 %v2568
        %v2731 = vpop.f32.mrb[0].mxu0
        %v2732 = vadd.f32 0.0, %v2731
        %v2733 = vpop.f32.mrb[0].mxu0
        %2734 = vmatprep.mubr.f32.mxu0 0.0
        %2735 = vmatmul.mubr.f32.gmra.mrb[0].mxu0 %v2569
        %v2736 = vpop.f32.mrb[0].mxu0
        %v2737 = vadd.f32 0.0, %v2736
        %v2738 = vpop.f32.mrb[0].mxu0
        %2739 = vmatprep.mubr.f32.mxu0 0.0
        %2740 = vmatmul.mubr.f32.gmra.mrb[0].mxu0 %v2570
        %v2741 = vpop.f32.mrb[0].mxu0
        %v2742 = vadd.f32 0.0, %v2741
        %v2743 = vpop.f32.mrb[0].mxu0
        %2744 = vmatprep.mubr.f32.mxu0 0.0
        %2745 = vmatmul.mubr.f32.gmra.mrb[0].mxu0 %v2571
        %v2746 = vpop.f32.mrb[0].mxu0
        %v2747 = vadd.f32 0.0, %v2746
        %v2748 = vpop.f32.mrb[0].mxu0
        %2749 = vmatprep.mubr.f32.mxu0 0.0
        %2750 = vmatmul.mubr.f32.gmra.mrb[0].mxu0 %v2572
        %v2751 = vpop.f32.mrb[0].mxu0
        %v2752 = vadd.f32 0.0, %v2751
        %v2753 = vpop.f32.mrb[0].mxu0
        %2754 = vmatprep.mubr.f32.mxu0 0.0
        %2755 = vmatmul.mubr.f32.gmra.mrb[0].mxu0 %v2573
        %v2756 = vpop.f32.mrb[0].mxu0
        %v2757 = vadd.f32 0.0, %v2756
        %v2758 = vpop.f32.mrb[0].mxu0
        %2759 = vmatprep.mubr.f32.mxu0 0.0
        %2760 = vmatmul.mubr.f32.gmra.mrb[0].mxu0 %v2574
        %v2761 = vpop.f32.mrb[0].mxu0
        %v2762 = vadd.f32 0.0, %v2761
        %v2763 = vpop.f32.mrb[0].mxu0
        %2764 = vmatprep.mubr.f32.mxu0 0.0
        %2765 = vmatmul.mubr.f32.gmra.mrb[0].mxu0 %v2575
        %v2766 = vpop.f32.mrb[0].mxu0
        %v2767 = vadd.f32 0.0, %v2766
        %v2768 = vpop.f32.mrb[0].mxu0
        %2769 = vmatprep.mubr.f32.mxu0 0.0
        %2770 = vmatmul.mubr.f32.gmra.mrb[0].mxu0 %v2576
        %v2771 = vpop.f32.mrb[0].mxu0
        %v2772 = vadd.f32 0.0, %v2771
        %v2773 = vpop.f32.mrb[0].mxu0
        %2774 = vmatprep.mubr.f32.mxu0 0.0
        %2775 = vmatmul.mubr.f32.gmra.mrb[0].mxu0 %v2577
        %v2776 = vpop.f32.mrb[0].mxu0
        %v2777 = vadd.f32 0.0, %v2776
        %v2778 = vpop.f32.mrb[0].mxu0
        %2779 = vmatprep.mubr.f32.mxu0 0.0
        %2780 = vmatmul.mubr.f32.gmra.mrb[0].mxu0 %v2578
        %v2781 = vpop.f32.mrb[0].mxu0
        %v2782 = vadd.f32 0.0, %v2781
        %v2783 = vpop.f32.mrb[0].mxu0
        %2784 = vmatprep.mubr.f32.mxu0 0.0
        %2785 = vmatmul.mubr.f32.gmra.mrb[0].mxu0 %v2579
        %v2786 = vpop.f32.mrb[0].mxu0
        %v2787 = vadd.f32 0.0, %v2786
        %v2788 = vpop.f32.mrb[0].mxu0
        %2789 = vmatprep.mubr.f32.mxu0 0.0
        %2790 = vmatmul.mubr.f32.gmra.mrb[0].mxu0 %v2580
        %v2791 = vpop.f32.mrb[0].mxu0
        %v2792 = vadd.f32 0.0, %v2791
        %v2793 = vpop.f32.mrb[0].mxu0
        %2794 = vmatprep.mubr.f32.mxu0 0.0
        %2795 = vmatmul.mubr.f32.gmra.mrb[0].mxu0 %v2581
        %v2796 = vpop.f32.mrb[0].mxu0
        %v2797 = vadd.f32 0.0, %v2796
        %v2798 = vpop.f32.mrb[0].mxu0
        %2799 = vmatprep.mubr.f32.mxu0 0.0
        %2800 = vmatmul.mubr.f32.gmra.mrb[0].mxu0 %v2582
        %v2801 = vpop.f32.mrb[0].mxu0
        %v2802 = vadd.f32 0.0, %v2801
        %v2803 = vpop.f32.mrb[0].mxu0
        %2804 = vmatprep.mubr.f32.mxu0 0.0
        %2805 = vmatmul.mubr.f32.gmra.mrb[0].mxu0 %v2583
        %v2806 = vpop.f32.mrb[0].mxu0
        %v2807 = vadd.f32 0.0, %v2806
        %v2808 = vpop.f32.mrb[0].mxu0
        %2809 = vmatprep.mubr.f32.mxu0 0.0
        %2810 = vmatmul.mubr.f32.gmra.mrb[0].mxu0 %v2584
        %v2811 = vpop.f32.mrb[0].mxu0
        %v2812 = vadd.f32 0.0, %v2811
        %v2813 = vpop.f32.mrb[0].mxu0
        %2814 = vmatprep.mubr.f32.mxu0 0.0
        %2815 = vmatmul.mubr.f32.gmra.mrb[0].mxu0 %v2585
        %v2816 = vpop.f32.mrb[0].mxu0
        %v2817 = vadd.f32 0.0, %v2816
        %v2818 = vpop.f32.mrb[0].mxu0
        %2819 = vmatprep.mubr.f32.mxu0 0.0
        %2820 = vmatmul.mubr.f32.gmra.mrb[0].mxu0 %v2586
        %v2821 = vpop.f32.mrb[0].mxu0
        %v2822 = vadd.f32 0.0, %v2821
        %v2823 = vpop.f32.mrb[0].mxu0
        %2824 = vmatprep.mubr.f32.mxu0 0.0
        %2825 = vmatmul.mubr.f32.gmra.mrb[0].mxu0 %v2587
        %v2826 = vpop.f32.mrb[0].mxu0
        %v2827 = vadd.f32 0.0, %v2826
        %v2828 = vpop.f32.mrb[0].mxu0
        %2829 = vdwg.mxu0
        %v2830 = vadd.f32 %v2524, %v2672
        %v2831 = vadd.f32 %v2525, %v2677
        %v2832 = vadd.f32 %v2526, %v2682
        %v2833 = vadd.f32 %v2527, %v2687
        %v2834 = vadd.f32 %v2528, %v2692
        %v2835 = vadd.f32 %v2529, %v2697
        %v2836 = vadd.f32 %v2530, %v2702
        %v2837 = vadd.f32 %v2531, %v2707
        %v2838 = vadd.f32 %v2532, %v2712
        %v2839 = vadd.f32 %v2533, %v2717
        %v2840 = vadd.f32 %v2534, %v2722
        %v2841 = vadd.f32 %v2535, %v2727
        %v2842 = vadd.f32 %v2536, %v2732
        %v2843 = vadd.f32 %v2537, %v2737
        %v2844 = vadd.f32 %v2538, %v2742
        %v2845 = vadd.f32 %v2539, %v2747
        %v2846 = vadd.f32 %v2540, %v2752
        %v2847 = vadd.f32 %v2541, %v2757
        %v2848 = vadd.f32 %v2542, %v2762
        %v2849 = vadd.f32 %v2543, %v2767
        %v2850 = vadd.f32 %v2544, %v2772
        %v2851 = vadd.f32 %v2545, %v2777
        %v2852 = vadd.f32 %v2546, %v2782
        %v2853 = vadd.f32 %v2547, %v2787
        %v2854 = vadd.f32 %v2548, %v2792
        %v2855 = vadd.f32 %v2549, %v2797
        %v2856 = vadd.f32 %v2550, %v2802
        %v2857 = vadd.f32 %v2551, %v2807
        %v2858 = vadd.f32 %v2552, %v2812
        %v2859 = vadd.f32 %v2553, %v2817
        %v2860 = vadd.f32 %v2554, %v2822
        %v2861 = vadd.f32 %v2555, %v2827
        %v2862 = vld [vmem:[%s1638 + $0x1] sm:$0xff]
        %v2863 = vld [vmem:[%s1638 + $0x9] sm:$0xff]
        %v2864 = vld [vmem:[%s1638 + $0x19] sm:$0xff]
        %v2865 = vld [vmem:[%s1638 + $0x21] sm:$0xff]
        %v2866 = vld [vmem:[%s1638 + $0x31] sm:$0xff]
        %v2867 = vld [vmem:[%s1638 + $0x39] sm:$0xff]
        %v2868 = vld [vmem:[%s1638 + $0x49] sm:$0xff]
        %v2869 = vld [vmem:[%s1638 + $0x51] sm:$0xff]
        %v2870 = vld [vmem:[%s1638 + $0x61] sm:$0xff]
        %v2871 = vld [vmem:[%s1638 + $0x69] sm:$0xff]
        %v2872 = vld [vmem:[%s1638 + $0x79] sm:$0xff]
        %v2873 = vld [vmem:[%s1638 + $0x81] sm:$0xff]
        %v2874 = vld [vmem:[%s1638 + $0x91] sm:$0xff]
        %v2875 = vld [vmem:[%s1638 + $0x99] sm:$0xff]
        %v2876 = vld [vmem:[%s1638 + $0xa9] sm:$0xff]
        %v2877 = vld [vmem:[%s1638 + $0xb1] sm:$0xff]
        %v2878 = vld [vmem:[%s1638 + $0xc1] sm:$0xff]
        %v2879 = vld [vmem:[%s1638 + $0xc9] sm:$0xff]
        %v2880 = vld [vmem:[%s1638 + $0xd9] sm:$0xff]
        %v2881 = vld [vmem:[%s1638 + $0xe1] sm:$0xff]
        %v2882 = vld [vmem:[%s1638 + $0xf1] sm:$0xff]
        %v2883 = vld [vmem:[%s1638 + $0xf9] sm:$0xff]
        %v2884 = vld [vmem:[%s1638 + $0x109] sm:$0xff]
        %v2885 = vld [vmem:[%s1638 + $0x111] sm:$0xff]
        %v2886 = vld [vmem:[%s1638 + $0x121] sm:$0xff]
        %v2887 = vld [vmem:[%s1638 + $0x129] sm:$0xff]
        %v2888 = vld [vmem:[%s1638 + $0x139] sm:$0xff]
        %v2889 = vld [vmem:[%s1638 + $0x141] sm:$0xff]
        %v2890 = vld [vmem:[%s1638 + $0x151] sm:$0xff]
        %v2891 = vld [vmem:[%s1638 + $0x159] sm:$0xff]
        %v2892 = vld [vmem:[%s1638 + $0x169] sm:$0xff]
        %v2893 = vld [vmem:[%s1638 + $0x171] sm:$0xff]
        %s2894 = scalar_lea.vmem [#allocation9], 512
        %v2895 = vld [vmem:[%s2894] sm:$0xff]
        %v2896 = vld [vmem:[%s2894 + $0x8] sm:$0xff]
        %v2897 = vld [vmem:[%s2894 + $0x10] sm:$0xff]
        %v2898 = vld [vmem:[%s2894 + $0x18] sm:$0xff]
        %v2899 = vld [vmem:[%s2894 + $0x20] sm:$0xff]
        %v2900 = vld [vmem:[%s2894 + $0x28] sm:$0xff]
        %v2901 = vld [vmem:[%s2894 + $0x30] sm:$0xff]
        %v2902 = vld [vmem:[%s2894 + $0x38] sm:$0xff]
        %v2903 = vld [vmem:[%s2894 + $0x40] sm:$0xff]
        %v2904 = vld [vmem:[%s2894 + $0x48] sm:$0xff]
        %v2905 = vld [vmem:[%s2894 + $0x50] sm:$0xff]
        %v2906 = vld [vmem:[%s2894 + $0x58] sm:$0xff]
        %v2907 = vld [vmem:[%s2894 + $0x60] sm:$0xff]
        %v2908 = vld [vmem:[%s2894 + $0x68] sm:$0xff]
        %v2909 = vld [vmem:[%s2894 + $0x70] sm:$0xff]
        %v2910 = vld [vmem:[%s2894 + $0x78] sm:$0xff]
        %2911 = vmatprep.subr.mxu0 0.0
        %2912 = vmatpush1.msra.mxu0 %v2895
        %2913 = vmatprep.subr.mxu0 0.0
        %2914 = vmatpush1.msra.mxu0 %v2896
        %2915 = vmatprep.subr.mxu0 0.0
        %2916 = vmatpush1.msra.mxu0 %v2897
        %2917 = vmatprep.subr.mxu0 0.0
        %2918 = vmatpush1.msra.mxu0 %v2898
        %2919 = vmatprep.subr.mxu0 0.0
        %2920 = vmatpush1.msra.mxu0 %v2899
        %2921 = vmatprep.subr.mxu0 0.0
        %2922 = vmatpush1.msra.mxu0 %v2900
        %2923 = vmatprep.subr.mxu0 0.0
        %2924 = vmatpush1.msra.mxu0 %v2901
        %2925 = vmatprep.subr.mxu0 0.0
        %2926 = vmatpush1.msra.mxu0 %v2902
        %2927 = vmatprep.subr.mxu0 0.0
        %2928 = vmatpush1.msra.mxu0 %v2903
        %2929 = vmatprep.subr.mxu0 0.0
        %2930 = vmatpush1.msra.mxu0 %v2904
        %2931 = vmatprep.subr.mxu0 0.0
        %2932 = vmatpush1.msra.mxu0 %v2905
        %2933 = vmatprep.subr.mxu0 0.0
        %2934 = vmatpush1.msra.mxu0 %v2906
        %2935 = vmatprep.subr.mxu0 0.0
        %2936 = vmatpush1.msra.mxu0 %v2907
        %2937 = vmatprep.subr.mxu0 0.0
        %2938 = vmatpush1.msra.mxu0 %v2908
        %2939 = vmatprep.subr.mxu0 0.0
        %2940 = vmatpush1.msra.mxu0 %v2909
        %2941 = vmatprep.subr.mxu0 0.0
        %2942 = vmatpush1.msra.mxu0 %v2910
        %2943 = vmatprep.subr.mxu0 0.0
        %2944 = vmatpush1.msra.mxu0 0.0
        %2945 = vmatprep.subr.mxu0 0.0
        %2946 = vmatpush1.msra.mxu0 0.0
        %2947 = vmatprep.subr.mxu0 0.0
        %2948 = vmatpush1.msra.mxu0 0.0
        %2949 = vmatprep.subr.mxu0 0.0
        %2950 = vmatpush1.msra.mxu0 0.0
        %2951 = vmatprep.subr.mxu0 0.0
        %2952 = vmatpush1.msra.mxu0 0.0
        %2953 = vmatprep.subr.mxu0 0.0
        %2954 = vmatpush1.msra.mxu0 0.0
        %2955 = vmatprep.subr.mxu0 0.0
        %2956 = vmatpush1.msra.mxu0 0.0
        %2957 = vmatprep.subr.mxu0 0.0
        %2958 = vmatpush1.msra.mxu0 0.0
        %2959 = vmatprep.subr.mxu0 0.0
        %2960 = vmatpush1.msra.mxu0 0.0
        %2961 = vmatprep.subr.mxu0 0.0
        %2962 = vmatpush1.msra.mxu0 0.0
        %2963 = vmatprep.subr.mxu0 0.0
        %2964 = vmatpush1.msra.mxu0 0.0
        %2965 = vmatprep.subr.mxu0 0.0
        %2966 = vmatpush1.msra.mxu0 0.0
        %2967 = vmatprep.subr.mxu0 0.0
        %2968 = vmatpush1.msra.mxu0 0.0
        %2969 = vmatprep.subr.mxu0 0.0
        %2970 = vmatpush1.msra.mxu0 0.0
        %2971 = vmatprep.subr.mxu0 0.0
        %2972 = vmatpush1.msra.mxu0 0.0
        %2973 = vmatprep.subr.mxu0 0.0
        %2974 = vmatpush1.msra.mxu0 0.0
        %2975 = vmatprep.mubr.f32.mxu0 0.0
        %2976 = vmatmul.mubr.f32.gmra.mrb[0].mxu0 %v2862
        %v2977 = vpop.f32.mrb[0].mxu0
        %v2978 = vadd.f32 0.0, %v2977
        %v2979 = vpop.f32.mrb[0].mxu0
        %2980 = vmatprep.mubr.f32.mxu0 0.0
        %2981 = vmatmul.mubr.f32.gmra.mrb[0].mxu0 %v2863
        %v2982 = vpop.f32.mrb[0].mxu0
        %v2983 = vadd.f32 0.0, %v2982
        %v2984 = vpop.f32.mrb[0].mxu0
        %2985 = vmatprep.mubr.f32.mxu0 0.0
        %2986 = vmatmul.mubr.f32.gmra.mrb[0].mxu0 %v2864
        %v2987 = vpop.f32.mrb[0].mxu0
        %v2988 = vadd.f32 0.0, %v2987
        %v2989 = vpop.f32.mrb[0].mxu0
        %2990 = vmatprep.mubr.f32.mxu0 0.0
        %2991 = vmatmul.mubr.f32.gmra.mrb[0].mxu0 %v2865
        %v2992 = vpop.f32.mrb[0].mxu0
        %v2993 = vadd.f32 0.0, %v2992
        %v2994 = vpop.f32.mrb[0].mxu0
        %2995 = vmatprep.mubr.f32.mxu0 0.0
        %2996 = vmatmul.mubr.f32.gmra.mrb[0].mxu0 %v2866
        %v2997 = vpop.f32.mrb[0].mxu0
        %v2998 = vadd.f32 0.0, %v2997
        %v2999 = vpop.f32.mrb[0].mxu0
        %3000 = vmatprep.mubr.f32.mxu0 0.0
        %3001 = vmatmul.mubr.f32.gmra.mrb[0].mxu0 %v2867
        %v3002 = vpop.f32.mrb[0].mxu0
        %v3003 = vadd.f32 0.0, %v3002
        %v3004 = vpop.f32.mrb[0].mxu0
        %3005 = vmatprep.mubr.f32.mxu0 0.0
        %3006 = vmatmul.mubr.f32.gmra.mrb[0].mxu0 %v2868
        %v3007 = vpop.f32.mrb[0].mxu0
        %v3008 = vadd.f32 0.0, %v3007
        %v3009 = vpop.f32.mrb[0].mxu0
        %3010 = vmatprep.mubr.f32.mxu0 0.0
        %3011 = vmatmul.mubr.f32.gmra.mrb[0].mxu0 %v2869
        %v3012 = vpop.f32.mrb[0].mxu0
        %v3013 = vadd.f32 0.0, %v3012
        %v3014 = vpop.f32.mrb[0].mxu0
        %3015 = vmatprep.mubr.f32.mxu0 0.0
        %3016 = vmatmul.mubr.f32.gmra.mrb[0].mxu0 %v2870
        %v3017 = vpop.f32.mrb[0].mxu0
        %v3018 = vadd.f32 0.0, %v3017
        %v3019 = vpop.f32.mrb[0].mxu0
        %3020 = vmatprep.mubr.f32.mxu0 0.0
        %3021 = vmatmul.mubr.f32.gmra.mrb[0].mxu0 %v2871
        %v3022 = vpop.f32.mrb[0].mxu0
        %v3023 = vadd.f32 0.0, %v3022
        %v3024 = vpop.f32.mrb[0].mxu0
        %3025 = vmatprep.mubr.f32.mxu0 0.0
        %3026 = vmatmul.mubr.f32.gmra.mrb[0].mxu0 %v2872
        %v3027 = vpop.f32.mrb[0].mxu0
        %v3028 = vadd.f32 0.0, %v3027
        %v3029 = vpop.f32.mrb[0].mxu0
        %3030 = vmatprep.mubr.f32.mxu0 0.0
        %3031 = vmatmul.mubr.f32.gmra.mrb[0].mxu0 %v2873
        %v3032 = vpop.f32.mrb[0].mxu0
        %v3033 = vadd.f32 0.0, %v3032
        %v3034 = vpop.f32.mrb[0].mxu0
        %3035 = vmatprep.mubr.f32.mxu0 0.0
        %3036 = vmatmul.mubr.f32.gmra.mrb[0].mxu0 %v2874
        %v3037 = vpop.f32.mrb[0].mxu0
        %v3038 = vadd.f32 0.0, %v3037
        %v3039 = vpop.f32.mrb[0].mxu0
        %3040 = vmatprep.mubr.f32.mxu0 0.0
        %3041 = vmatmul.mubr.f32.gmra.mrb[0].mxu0 %v2875
        %v3042 = vpop.f32.mrb[0].mxu0
        %v3043 = vadd.f32 0.0, %v3042
        %v3044 = vpop.f32.mrb[0].mxu0
        %3045 = vmatprep.mubr.f32.mxu0 0.0
        %3046 = vmatmul.mubr.f32.gmra.mrb[0].mxu0 %v2876
        %v3047 = vpop.f32.mrb[0].mxu0
        %v3048 = vadd.f32 0.0, %v3047
        %v3049 = vpop.f32.mrb[0].mxu0
        %3050 = vmatprep.mubr.f32.mxu0 0.0
        %3051 = vmatmul.mubr.f32.gmra.mrb[0].mxu0 %v2877
        %v3052 = vpop.f32.mrb[0].mxu0
        %v3053 = vadd.f32 0.0, %v3052
        %v3054 = vpop.f32.mrb[0].mxu0
        %3055 = vmatprep.mubr.f32.mxu0 0.0
        %3056 = vmatmul.mubr.f32.gmra.mrb[0].mxu0 %v2878
        %v3057 = vpop.f32.mrb[0].mxu0
        %v3058 = vadd.f32 0.0, %v3057
        %v3059 = vpop.f32.mrb[0].mxu0
        %3060 = vmatprep.mubr.f32.mxu0 0.0
        %3061 = vmatmul.mubr.f32.gmra.mrb[0].mxu0 %v2879
        %v3062 = vpop.f32.mrb[0].mxu0
        %v3063 = vadd.f32 0.0, %v3062
        %v3064 = vpop.f32.mrb[0].mxu0
        %3065 = vmatprep.mubr.f32.mxu0 0.0
        %3066 = vmatmul.mubr.f32.gmra.mrb[0].mxu0 %v2880
        %v3067 = vpop.f32.mrb[0].mxu0
        %v3068 = vadd.f32 0.0, %v3067
        %v3069 = vpop.f32.mrb[0].mxu0
        %3070 = vmatprep.mubr.f32.mxu0 0.0
        %3071 = vmatmul.mubr.f32.gmra.mrb[0].mxu0 %v2881
        %v3072 = vpop.f32.mrb[0].mxu0
        %v3073 = vadd.f32 0.0, %v3072
        %v3074 = vpop.f32.mrb[0].mxu0
        %3075 = vmatprep.mubr.f32.mxu0 0.0
        %3076 = vmatmul.mubr.f32.gmra.mrb[0].mxu0 %v2882
        %v3077 = vpop.f32.mrb[0].mxu0
        %v3078 = vadd.f32 0.0, %v3077
        %v3079 = vpop.f32.mrb[0].mxu0
        %3080 = vmatprep.mubr.f32.mxu0 0.0
        %3081 = vmatmul.mubr.f32.gmra.mrb[0].mxu0 %v2883
        %v3082 = vpop.f32.mrb[0].mxu0
        %v3083 = vadd.f32 0.0, %v3082
        %v3084 = vpop.f32.mrb[0].mxu0
        %3085 = vmatprep.mubr.f32.mxu0 0.0
        %3086 = vmatmul.mubr.f32.gmra.mrb[0].mxu0 %v2884
        %v3087 = vpop.f32.mrb[0].mxu0
        %v3088 = vadd.f32 0.0, %v3087
        %v3089 = vpop.f32.mrb[0].mxu0
        %3090 = vmatprep.mubr.f32.mxu0 0.0
        %3091 = vmatmul.mubr.f32.gmra.mrb[0].mxu0 %v2885
        %v3092 = vpop.f32.mrb[0].mxu0
        %v3093 = vadd.f32 0.0, %v3092
        %v3094 = vpop.f32.mrb[0].mxu0
        %3095 = vmatprep.mubr.f32.mxu0 0.0
        %3096 = vmatmul.mubr.f32.gmra.mrb[0].mxu0 %v2886
        %v3097 = vpop.f32.mrb[0].mxu0
        %v3098 = vadd.f32 0.0, %v3097
        %v3099 = vpop.f32.mrb[0].mxu0
        %3100 = vmatprep.mubr.f32.mxu0 0.0
        %3101 = vmatmul.mubr.f32.gmra.mrb[0].mxu0 %v2887
        %v3102 = vpop.f32.mrb[0].mxu0
        %v3103 = vadd.f32 0.0, %v3102
        %v3104 = vpop.f32.mrb[0].mxu0
        %3105 = vmatprep.mubr.f32.mxu0 0.0
        %3106 = vmatmul.mubr.f32.gmra.mrb[0].mxu0 %v2888
        %v3107 = vpop.f32.mrb[0].mxu0
        %v3108 = vadd.f32 0.0, %v3107
        %v3109 = vpop.f32.mrb[0].mxu0
        %3110 = vmatprep.mubr.f32.mxu0 0.0
        %3111 = vmatmul.mubr.f32.gmra.mrb[0].mxu0 %v2889
        %v3112 = vpop.f32.mrb[0].mxu0
        %v3113 = vadd.f32 0.0, %v3112
        %v3114 = vpop.f32.mrb[0].mxu0
        %3115 = vmatprep.mubr.f32.mxu0 0.0
        %3116 = vmatmul.mubr.f32.gmra.mrb[0].mxu0 %v2890
        %v3117 = vpop.f32.mrb[0].mxu0
        %v3118 = vadd.f32 0.0, %v3117
        %v3119 = vpop.f32.mrb[0].mxu0
        %3120 = vmatprep.mubr.f32.mxu0 0.0
        %3121 = vmatmul.mubr.f32.gmra.mrb[0].mxu0 %v2891
        %v3122 = vpop.f32.mrb[0].mxu0
        %v3123 = vadd.f32 0.0, %v3122
        %v3124 = vpop.f32.mrb[0].mxu0
        %3125 = vmatprep.mubr.f32.mxu0 0.0
        %3126 = vmatmul.mubr.f32.gmra.mrb[0].mxu0 %v2892
        %v3127 = vpop.f32.mrb[0].mxu0
        %v3128 = vadd.f32 0.0, %v3127
        %v3129 = vpop.f32.mrb[0].mxu0
        %3130 = vmatprep.mubr.f32.mxu0 0.0
        %3131 = vmatmul.mubr.f32.gmra.mrb[0].mxu0 %v2893
        %v3132 = vpop.f32.mrb[0].mxu0
        %v3133 = vadd.f32 0.0, %v3132
        %v3134 = vpop.f32.mrb[0].mxu0
        %3135 = vdwg.mxu0
        %v3136 = vadd.f32 %v2830, %v2978
        %v3137 = vadd.f32 %v2831, %v2983
        %v3138 = vadd.f32 %v2832, %v2988
        %v3139 = vadd.f32 %v2833, %v2993
        %v3140 = vadd.f32 %v2834, %v2998
        %v3141 = vadd.f32 %v2835, %v3003
        %v3142 = vadd.f32 %v2836, %v3008
        %v3143 = vadd.f32 %v2837, %v3013
        %v3144 = vadd.f32 %v2838, %v3018
        %v3145 = vadd.f32 %v2839, %v3023
        %v3146 = vadd.f32 %v2840, %v3028
        %v3147 = vadd.f32 %v2841, %v3033
        %v3148 = vadd.f32 %v2842, %v3038
        %v3149 = vadd.f32 %v2843, %v3043
        %v3150 = vadd.f32 %v2844, %v3048
        %v3151 = vadd.f32 %v2845, %v3053
        %v3152 = vadd.f32 %v2846, %v3058
        %v3153 = vadd.f32 %v2847, %v3063
        %v3154 = vadd.f32 %v2848, %v3068
        %v3155 = vadd.f32 %v2849, %v3073
        %v3156 = vadd.f32 %v2850, %v3078
        %v3157 = vadd.f32 %v2851, %v3083
        %v3158 = vadd.f32 %v2852, %v3088
        %v3159 = vadd.f32 %v2853, %v3093
        %v3160 = vadd.f32 %v2854, %v3098
        %v3161 = vadd.f32 %v2855, %v3103
        %v3162 = vadd.f32 %v2856, %v3108
        %v3163 = vadd.f32 %v2857, %v3113
        %v3164 = vadd.f32 %v2858, %v3118
        %v3165 = vadd.f32 %v2859, %v3123
        %v3166 = vadd.f32 %v2860, %v3128
        %v3167 = vadd.f32 %v2861, %v3133
        %v3168 = vld [vmem:[%s1638 + $0x2] sm:$0xff]
        %v3169 = vld [vmem:[%s1638 + $0xa] sm:$0xff]
        %v3170 = vld [vmem:[%s1638 + $0x1a] sm:$0xff]
        %v3171 = vld [vmem:[%s1638 + $0x22] sm:$0xff]
        %v3172 = vld [vmem:[%s1638 + $0x32] sm:$0xff]
        %v3173 = vld [vmem:[%s1638 + $0x3a] sm:$0xff]
        %v3174 = vld [vmem:[%s1638 + $0x4a] sm:$0xff]
        %v3175 = vld [vmem:[%s1638 + $0x52] sm:$0xff]
        %v3176 = vld [vmem:[%s1638 + $0x62] sm:$0xff]
        %v3177 = vld [vmem:[%s1638 + $0x6a] sm:$0xff]
        %v3178 = vld [vmem:[%s1638 + $0x7a] sm:$0xff]
        %v3179 = vld [vmem:[%s1638 + $0x82] sm:$0xff]
        %v3180 = vld [vmem:[%s1638 + $0x92] sm:$0xff]
        %v3181 = vld [vmem:[%s1638 + $0x9a] sm:$0xff]
        %v3182 = vld [vmem:[%s1638 + $0xaa] sm:$0xff]
        %v3183 = vld [vmem:[%s1638 + $0xb2] sm:$0xff]
        %v3184 = vld [vmem:[%s1638 + $0xc2] sm:$0xff]
        %v3185 = vld [vmem:[%s1638 + $0xca] sm:$0xff]
        %v3186 = vld [vmem:[%s1638 + $0xda] sm:$0xff]
        %v3187 = vld [vmem:[%s1638 + $0xe2] sm:$0xff]
        %v3188 = vld [vmem:[%s1638 + $0xf2] sm:$0xff]
        %v3189 = vld [vmem:[%s1638 + $0xfa] sm:$0xff]
        %v3190 = vld [vmem:[%s1638 + $0x10a] sm:$0xff]
        %v3191 = vld [vmem:[%s1638 + $0x112] sm:$0xff]
        %v3192 = vld [vmem:[%s1638 + $0x122] sm:$0xff]
        %v3193 = vld [vmem:[%s1638 + $0x12a] sm:$0xff]
        %v3194 = vld [vmem:[%s1638 + $0x13a] sm:$0xff]
        %v3195 = vld [vmem:[%s1638 + $0x142] sm:$0xff]
        %v3196 = vld [vmem:[%s1638 + $0x152] sm:$0xff]
        %v3197 = vld [vmem:[%s1638 + $0x15a] sm:$0xff]
        %v3198 = vld [vmem:[%s1638 + $0x16a] sm:$0xff]
        %v3199 = vld [vmem:[%s1638 + $0x172] sm:$0xff]
        %s3200 = scalar_lea.vmem [#allocation9], 640
        %v3201 = vld [vmem:[%s3200] sm:$0xff]
        %v3202 = vld [vmem:[%s3200 + $0x8] sm:$0xff]
        %v3203 = vld [vmem:[%s3200 + $0x10] sm:$0xff]
        %v3204 = vld [vmem:[%s3200 + $0x18] sm:$0xff]
        %v3205 = vld [vmem:[%s3200 + $0x20] sm:$0xff]
        %v3206 = vld [vmem:[%s3200 + $0x28] sm:$0xff]
        %v3207 = vld [vmem:[%s3200 + $0x30] sm:$0xff]
        %v3208 = vld [vmem:[%s3200 + $0x38] sm:$0xff]
        %v3209 = vld [vmem:[%s3200 + $0x40] sm:$0xff]
        %v3210 = vld [vmem:[%s3200 + $0x48] sm:$0xff]
        %v3211 = vld [vmem:[%s3200 + $0x50] sm:$0xff]
        %v3212 = vld [vmem:[%s3200 + $0x58] sm:$0xff]
        %v3213 = vld [vmem:[%s3200 + $0x60] sm:$0xff]
        %v3214 = vld [vmem:[%s3200 + $0x68] sm:$0xff]
        %v3215 = vld [vmem:[%s3200 + $0x70] sm:$0xff]
        %v3216 = vld [vmem:[%s3200 + $0x78] sm:$0xff]
        %3217 = vmatprep.subr.mxu0 0.0
        %3218 = vmatpush1.msra.mxu0 %v3201
        %3219 = vmatprep.subr.mxu0 0.0
        %3220 = vmatpush1.msra.mxu0 %v3202
        %3221 = vmatprep.subr.mxu0 0.0
        %3222 = vmatpush1.msra.mxu0 %v3203
        %3223 = vmatprep.subr.mxu0 0.0
        %3224 = vmatpush1.msra.mxu0 %v3204
        %3225 = vmatprep.subr.mxu0 0.0
        %3226 = vmatpush1.msra.mxu0 %v3205
        %3227 = vmatprep.subr.mxu0 0.0
        %3228 = vmatpush1.msra.mxu0 %v3206
        %3229 = vmatprep.subr.mxu0 0.0
        %3230 = vmatpush1.msra.mxu0 %v3207
        %3231 = vmatprep.subr.mxu0 0.0
        %3232 = vmatpush1.msra.mxu0 %v3208
        %3233 = vmatprep.subr.mxu0 0.0
        %3234 = vmatpush1.msra.mxu0 %v3209
        %3235 = vmatprep.subr.mxu0 0.0
        %3236 = vmatpush1.msra.mxu0 %v3210
        %3237 = vmatprep.subr.mxu0 0.0
        %3238 = vmatpush1.msra.mxu0 %v3211
        %3239 = vmatprep.subr.mxu0 0.0
        %3240 = vmatpush1.msra.mxu0 %v3212
        %3241 = vmatprep.subr.mxu0 0.0
        %3242 = vmatpush1.msra.mxu0 %v3213
        %3243 = vmatprep.subr.mxu0 0.0
        %3244 = vmatpush1.msra.mxu0 %v3214
        %3245 = vmatprep.subr.mxu0 0.0
        %3246 = vmatpush1.msra.mxu0 %v3215
        %3247 = vmatprep.subr.mxu0 0.0
        %3248 = vmatpush1.msra.mxu0 %v3216
        %3249 = vmatprep.subr.mxu0 0.0
        %3250 = vmatpush1.msra.mxu0 0.0
        %3251 = vmatprep.subr.mxu0 0.0
        %3252 = vmatpush1.msra.mxu0 0.0
        %3253 = vmatprep.subr.mxu0 0.0
        %3254 = vmatpush1.msra.mxu0 0.0
        %3255 = vmatprep.subr.mxu0 0.0
        %3256 = vmatpush1.msra.mxu0 0.0
        %3257 = vmatprep.subr.mxu0 0.0
        %3258 = vmatpush1.msra.mxu0 0.0
        %3259 = vmatprep.subr.mxu0 0.0
        %3260 = vmatpush1.msra.mxu0 0.0
        %3261 = vmatprep.subr.mxu0 0.0
        %3262 = vmatpush1.msra.mxu0 0.0
        %3263 = vmatprep.subr.mxu0 0.0
        %3264 = vmatpush1.msra.mxu0 0.0
        %3265 = vmatprep.subr.mxu0 0.0
        %3266 = vmatpush1.msra.mxu0 0.0
        %3267 = vmatprep.subr.mxu0 0.0
        %3268 = vmatpush1.msra.mxu0 0.0
        %3269 = vmatprep.subr.mxu0 0.0
        %3270 = vmatpush1.msra.mxu0 0.0
        %3271 = vmatprep.subr.mxu0 0.0
        %3272 = vmatpush1.msra.mxu0 0.0
        %3273 = vmatprep.subr.mxu0 0.0
        %3274 = vmatpush1.msra.mxu0 0.0
        %3275 = vmatprep.subr.mxu0 0.0
        %3276 = vmatpush1.msra.mxu0 0.0
        %3277 = vmatprep.subr.mxu0 0.0
        %3278 = vmatpush1.msra.mxu0 0.0
        %3279 = vmatprep.subr.mxu0 0.0
        %3280 = vmatpush1.msra.mxu0 0.0
        %3281 = vmatprep.mubr.f32.mxu0 0.0
        %3282 = vmatmul.mubr.f32.gmra.mrb[0].mxu0 %v3168
        %v3283 = vpop.f32.mrb[0].mxu0
        %v3284 = vadd.f32 0.0, %v3283
        %v3285 = vpop.f32.mrb[0].mxu0
        %3286 = vmatprep.mubr.f32.mxu0 0.0
        %3287 = vmatmul.mubr.f32.gmra.mrb[0].mxu0 %v3169
        %v3288 = vpop.f32.mrb[0].mxu0
        %v3289 = vadd.f32 0.0, %v3288
        %v3290 = vpop.f32.mrb[0].mxu0
        %3291 = vmatprep.mubr.f32.mxu0 0.0
        %3292 = vmatmul.mubr.f32.gmra.mrb[0].mxu0 %v3170
        %v3293 = vpop.f32.mrb[0].mxu0
        %v3294 = vadd.f32 0.0, %v3293
        %v3295 = vpop.f32.mrb[0].mxu0
        %3296 = vmatprep.mubr.f32.mxu0 0.0
        %3297 = vmatmul.mubr.f32.gmra.mrb[0].mxu0 %v3171
        %v3298 = vpop.f32.mrb[0].mxu0
        %v3299 = vadd.f32 0.0, %v3298
        %v3300 = vpop.f32.mrb[0].mxu0
        %3301 = vmatprep.mubr.f32.mxu0 0.0
        %3302 = vmatmul.mubr.f32.gmra.mrb[0].mxu0 %v3172
        %v3303 = vpop.f32.mrb[0].mxu0
        %v3304 = vadd.f32 0.0, %v3303
        %v3305 = vpop.f32.mrb[0].mxu0
        %3306 = vmatprep.mubr.f32.mxu0 0.0
        %3307 = vmatmul.mubr.f32.gmra.mrb[0].mxu0 %v3173
        %v3308 = vpop.f32.mrb[0].mxu0
        %v3309 = vadd.f32 0.0, %v3308
        %v3310 = vpop.f32.mrb[0].mxu0
        %3311 = vmatprep.mubr.f32.mxu0 0.0
        %3312 = vmatmul.mubr.f32.gmra.mrb[0].mxu0 %v3174
        %v3313 = vpop.f32.mrb[0].mxu0
        %v3314 = vadd.f32 0.0, %v3313
        %v3315 = vpop.f32.mrb[0].mxu0
        %3316 = vmatprep.mubr.f32.mxu0 0.0
        %3317 = vmatmul.mubr.f32.gmra.mrb[0].mxu0 %v3175
        %v3318 = vpop.f32.mrb[0].mxu0
        %v3319 = vadd.f32 0.0, %v3318
        %v3320 = vpop.f32.mrb[0].mxu0
        %3321 = vmatprep.mubr.f32.mxu0 0.0
        %3322 = vmatmul.mubr.f32.gmra.mrb[0].mxu0 %v3176
        %v3323 = vpop.f32.mrb[0].mxu0
        %v3324 = vadd.f32 0.0, %v3323
        %v3325 = vpop.f32.mrb[0].mxu0
        %3326 = vmatprep.mubr.f32.mxu0 0.0
        %3327 = vmatmul.mubr.f32.gmra.mrb[0].mxu0 %v3177
        %v3328 = vpop.f32.mrb[0].mxu0
        %v3329 = vadd.f32 0.0, %v3328
        %v3330 = vpop.f32.mrb[0].mxu0
        %3331 = vmatprep.mubr.f32.mxu0 0.0
        %3332 = vmatmul.mubr.f32.gmra.mrb[0].mxu0 %v3178
        %v3333 = vpop.f32.mrb[0].mxu0
        %v3334 = vadd.f32 0.0, %v3333
        %v3335 = vpop.f32.mrb[0].mxu0
        %3336 = vmatprep.mubr.f32.mxu0 0.0
        %3337 = vmatmul.mubr.f32.gmra.mrb[0].mxu0 %v3179
        %v3338 = vpop.f32.mrb[0].mxu0
        %v3339 = vadd.f32 0.0, %v3338
        %v3340 = vpop.f32.mrb[0].mxu0
        %3341 = vmatprep.mubr.f32.mxu0 0.0
        %3342 = vmatmul.mubr.f32.gmra.mrb[0].mxu0 %v3180
        %v3343 = vpop.f32.mrb[0].mxu0
        %v3344 = vadd.f32 0.0, %v3343
        %v3345 = vpop.f32.mrb[0].mxu0
        %3346 = vmatprep.mubr.f32.mxu0 0.0
        %3347 = vmatmul.mubr.f32.gmra.mrb[0].mxu0 %v3181
        %v3348 = vpop.f32.mrb[0].mxu0
        %v3349 = vadd.f32 0.0, %v3348
        %v3350 = vpop.f32.mrb[0].mxu0
        %3351 = vmatprep.mubr.f32.mxu0 0.0
        %3352 = vmatmul.mubr.f32.gmra.mrb[0].mxu0 %v3182
        %v3353 = vpop.f32.mrb[0].mxu0
        %v3354 = vadd.f32 0.0, %v3353
        %v3355 = vpop.f32.mrb[0].mxu0
        %3356 = vmatprep.mubr.f32.mxu0 0.0
        %3357 = vmatmul.mubr.f32.gmra.mrb[0].mxu0 %v3183
        %v3358 = vpop.f32.mrb[0].mxu0
        %v3359 = vadd.f32 0.0, %v3358
        %v3360 = vpop.f32.mrb[0].mxu0
        %3361 = vmatprep.mubr.f32.mxu0 0.0
        %3362 = vmatmul.mubr.f32.gmra.mrb[0].mxu0 %v3184
        %v3363 = vpop.f32.mrb[0].mxu0
        %v3364 = vadd.f32 0.0, %v3363
        %v3365 = vpop.f32.mrb[0].mxu0
        %3366 = vmatprep.mubr.f32.mxu0 0.0
        %3367 = vmatmul.mubr.f32.gmra.mrb[0].mxu0 %v3185
        %v3368 = vpop.f32.mrb[0].mxu0
        %v3369 = vadd.f32 0.0, %v3368
        %v3370 = vpop.f32.mrb[0].mxu0
        %3371 = vmatprep.mubr.f32.mxu0 0.0
        %3372 = vmatmul.mubr.f32.gmra.mrb[0].mxu0 %v3186
        %v3373 = vpop.f32.mrb[0].mxu0
        %v3374 = vadd.f32 0.0, %v3373
        %v3375 = vpop.f32.mrb[0].mxu0
        %3376 = vmatprep.mubr.f32.mxu0 0.0
        %3377 = vmatmul.mubr.f32.gmra.mrb[0].mxu0 %v3187
        %v3378 = vpop.f32.mrb[0].mxu0
        %v3379 = vadd.f32 0.0, %v3378
        %v3380 = vpop.f32.mrb[0].mxu0
        %3381 = vmatprep.mubr.f32.mxu0 0.0
        %3382 = vmatmul.mubr.f32.gmra.mrb[0].mxu0 %v3188
        %v3383 = vpop.f32.mrb[0].mxu0
        %v3384 = vadd.f32 0.0, %v3383
        %v3385 = vpop.f32.mrb[0].mxu0
        %3386 = vmatprep.mubr.f32.mxu0 0.0
        %3387 = vmatmul.mubr.f32.gmra.mrb[0].mxu0 %v3189
        %v3388 = vpop.f32.mrb[0].mxu0
        %v3389 = vadd.f32 0.0, %v3388
        %v3390 = vpop.f32.mrb[0].mxu0
        %3391 = vmatprep.mubr.f32.mxu0 0.0
        %3392 = vmatmul.mubr.f32.gmra.mrb[0].mxu0 %v3190
        %v3393 = vpop.f32.mrb[0].mxu0
        %v3394 = vadd.f32 0.0, %v3393
        %v3395 = vpop.f32.mrb[0].mxu0
        %3396 = vmatprep.mubr.f32.mxu0 0.0
        %3397 = vmatmul.mubr.f32.gmra.mrb[0].mxu0 %v3191
        %v3398 = vpop.f32.mrb[0].mxu0
        %v3399 = vadd.f32 0.0, %v3398
        %v3400 = vpop.f32.mrb[0].mxu0
        %3401 = vmatprep.mubr.f32.mxu0 0.0
        %3402 = vmatmul.mubr.f32.gmra.mrb[0].mxu0 %v3192
        %v3403 = vpop.f32.mrb[0].mxu0
        %v3404 = vadd.f32 0.0, %v3403
        %v3405 = vpop.f32.mrb[0].mxu0
        %3406 = vmatprep.mubr.f32.mxu0 0.0
        %3407 = vmatmul.mubr.f32.gmra.mrb[0].mxu0 %v3193
        %v3408 = vpop.f32.mrb[0].mxu0
        %v3409 = vadd.f32 0.0, %v3408
        %v3410 = vpop.f32.mrb[0].mxu0
        %3411 = vmatprep.mubr.f32.mxu0 0.0
        %3412 = vmatmul.mubr.f32.gmra.mrb[0].mxu0 %v3194
        %v3413 = vpop.f32.mrb[0].mxu0
        %v3414 = vadd.f32 0.0, %v3413
        %v3415 = vpop.f32.mrb[0].mxu0
        %3416 = vmatprep.mubr.f32.mxu0 0.0
        %3417 = vmatmul.mubr.f32.gmra.mrb[0].mxu0 %v3195
        %v3418 = vpop.f32.mrb[0].mxu0
        %v3419 = vadd.f32 0.0, %v3418
        %v3420 = vpop.f32.mrb[0].mxu0
        %3421 = vmatprep.mubr.f32.mxu0 0.0
        %3422 = vmatmul.mubr.f32.gmra.mrb[0].mxu0 %v3196
        %v3423 = vpop.f32.mrb[0].mxu0
        %v3424 = vadd.f32 0.0, %v3423
        %v3425 = vpop.f32.mrb[0].mxu0
        %3426 = vmatprep.mubr.f32.mxu0 0.0
        %3427 = vmatmul.mubr.f32.gmra.mrb[0].mxu0 %v3197
        %v3428 = vpop.f32.mrb[0].mxu0
        %v3429 = vadd.f32 0.0, %v3428
        %v3430 = vpop.f32.mrb[0].mxu0
        %3431 = vmatprep.mubr.f32.mxu0 0.0
        %3432 = vmatmul.mubr.f32.gmra.mrb[0].mxu0 %v3198
        %v3433 = vpop.f32.mrb[0].mxu0
        %v3434 = vadd.f32 0.0, %v3433
        %v3435 = vpop.f32.mrb[0].mxu0
        %3436 = vmatprep.mubr.f32.mxu0 0.0
        %3437 = vmatmul.mubr.f32.gmra.mrb[0].mxu0 %v3199
        %v3438 = vpop.f32.mrb[0].mxu0
        %v3439 = vadd.f32 0.0, %v3438
        %v3440 = vpop.f32.mrb[0].mxu0
        %3441 = vdwg.mxu0
        %v3442 = vadd.f32 %v3136, %v3284
        %v3443 = vadd.f32 %v3137, %v3289
        %v3444 = vadd.f32 %v3138, %v3294
        %v3445 = vadd.f32 %v3139, %v3299
        %v3446 = vadd.f32 %v3140, %v3304
        %v3447 = vadd.f32 %v3141, %v3309
        %v3448 = vadd.f32 %v3142, %v3314
        %v3449 = vadd.f32 %v3143, %v3319
        %v3450 = vadd.f32 %v3144, %v3324
        %v3451 = vadd.f32 %v3145, %v3329
        %v3452 = vadd.f32 %v3146, %v3334
        %v3453 = vadd.f32 %v3147, %v3339
        %v3454 = vadd.f32 %v3148, %v3344
        %v3455 = vadd.f32 %v3149, %v3349
        %v3456 = vadd.f32 %v3150, %v3354
        %v3457 = vadd.f32 %v3151, %v3359
        %v3458 = vadd.f32 %v3152, %v3364
        %v3459 = vadd.f32 %v3153, %v3369
        %v3460 = vadd.f32 %v3154, %v3374
        %v3461 = vadd.f32 %v3155, %v3379
        %v3462 = vadd.f32 %v3156, %v3384
        %v3463 = vadd.f32 %v3157, %v3389
        %v3464 = vadd.f32 %v3158, %v3394
        %v3465 = vadd.f32 %v3159, %v3399
        %v3466 = vadd.f32 %v3160, %v3404
        %v3467 = vadd.f32 %v3161, %v3409
        %v3468 = vadd.f32 %v3162, %v3414
        %v3469 = vadd.f32 %v3163, %v3419
        %v3470 = vadd.f32 %v3164, %v3424
        %v3471 = vadd.f32 %v3165, %v3429
        %v3472 = vadd.f32 %v3166, %v3434
        %v3473 = vadd.f32 %v3167, %v3439
        %s3474 = scalar_lea.vmem [#allocation2], 48
        %v3475 = vld [vmem:[%s3474] sm:$0xff]
        %v3476 = vld [vmem:[%s3474 + $0x8] sm:$0xff]
        %v3477 = vld [vmem:[%s3474 + $0x18] sm:$0xff]
        %v3478 = vld [vmem:[%s3474 + $0x20] sm:$0xff]
        %v3479 = vld [vmem:[%s3474 + $0x30] sm:$0xff]
        %v3480 = vld [vmem:[%s3474 + $0x38] sm:$0xff]
        %v3481 = vld [vmem:[%s3474 + $0x48] sm:$0xff]
        %v3482 = vld [vmem:[%s3474 + $0x50] sm:$0xff]
        %v3483 = vld [vmem:[%s3474 + $0x60] sm:$0xff]
        %v3484 = vld [vmem:[%s3474 + $0x68] sm:$0xff]
        %v3485 = vld [vmem:[%s3474 + $0x78] sm:$0xff]
        %v3486 = vld [vmem:[%s3474 + $0x80] sm:$0xff]
        %v3487 = vld [vmem:[%s3474 + $0x90] sm:$0xff]
        %v3488 = vld [vmem:[%s3474 + $0x98] sm:$0xff]
        %v3489 = vld [vmem:[%s3474 + $0xa8] sm:$0xff]
        %v3490 = vld [vmem:[%s3474 + $0xb0] sm:$0xff]
        %v3491 = vld [vmem:[%s3474 + $0xc0] sm:$0xff]
        %v3492 = vld [vmem:[%s3474 + $0xc8] sm:$0xff]
        %v3493 = vld [vmem:[%s3474 + $0xd8] sm:$0xff]
        %v3494 = vld [vmem:[%s3474 + $0xe0] sm:$0xff]
        %v3495 = vld [vmem:[%s3474 + $0xf0] sm:$0xff]
        %v3496 = vld [vmem:[%s3474 + $0xf8] sm:$0xff]
        %v3497 = vld [vmem:[%s3474 + $0x108] sm:$0xff]
        %v3498 = vld [vmem:[%s3474 + $0x110] sm:$0xff]
        %v3499 = vld [vmem:[%s3474 + $0x120] sm:$0xff]
        %v3500 = vld [vmem:[%s3474 + $0x128] sm:$0xff]
        %v3501 = vld [vmem:[%s3474 + $0x138] sm:$0xff]
        %v3502 = vld [vmem:[%s3474 + $0x140] sm:$0xff]
        %v3503 = vld [vmem:[%s3474 + $0x150] sm:$0xff]
        %v3504 = vld [vmem:[%s3474 + $0x158] sm:$0xff]
        %v3505 = vld [vmem:[%s3474 + $0x168] sm:$0xff]
        %v3506 = vld [vmem:[%s3474 + $0x170] sm:$0xff]
        %s3507 = scalar_lea.vmem [#allocation9], 768
        %v3508 = vld [vmem:[%s3507] sm:$0xff]
        %v3509 = vld [vmem:[%s3507 + $0x8] sm:$0xff]
        %v3510 = vld [vmem:[%s3507 + $0x10] sm:$0xff]
        %v3511 = vld [vmem:[%s3507 + $0x18] sm:$0xff]
        %v3512 = vld [vmem:[%s3507 + $0x20] sm:$0xff]
        %v3513 = vld [vmem:[%s3507 + $0x28] sm:$0xff]
        %v3514 = vld [vmem:[%s3507 + $0x30] sm:$0xff]
        %v3515 = vld [vmem:[%s3507 + $0x38] sm:$0xff]
        %v3516 = vld [vmem:[%s3507 + $0x40] sm:$0xff]
        %v3517 = vld [vmem:[%s3507 + $0x48] sm:$0xff]
        %v3518 = vld [vmem:[%s3507 + $0x50] sm:$0xff]
        %v3519 = vld [vmem:[%s3507 + $0x58] sm:$0xff]
        %v3520 = vld [vmem:[%s3507 + $0x60] sm:$0xff]
        %v3521 = vld [vmem:[%s3507 + $0x68] sm:$0xff]
        %v3522 = vld [vmem:[%s3507 + $0x70] sm:$0xff]
        %v3523 = vld [vmem:[%s3507 + $0x78] sm:$0xff]
        %3524 = vmatprep.subr.mxu0 0.0
        %3525 = vmatpush1.msra.mxu0 %v3508
        %3526 = vmatprep.subr.mxu0 0.0
        %3527 = vmatpush1.msra.mxu0 %v3509
        %3528 = vmatprep.subr.mxu0 0.0
        %3529 = vmatpush1.msra.mxu0 %v3510
        %3530 = vmatprep.subr.mxu0 0.0
        %3531 = vmatpush1.msra.mxu0 %v3511
        %3532 = vmatprep.subr.mxu0 0.0
        %3533 = vmatpush1.msra.mxu0 %v3512
        %3534 = vmatprep.subr.mxu0 0.0
        %3535 = vmatpush1.msra.mxu0 %v3513
        %3536 = vmatprep.subr.mxu0 0.0
        %3537 = vmatpush1.msra.mxu0 %v3514
        %3538 = vmatprep.subr.mxu0 0.0
        %3539 = vmatpush1.msra.mxu0 %v3515
        %3540 = vmatprep.subr.mxu0 0.0
        %3541 = vmatpush1.msra.mxu0 %v3516
        %3542 = vmatprep.subr.mxu0 0.0
        %3543 = vmatpush1.msra.mxu0 %v3517
        %3544 = vmatprep.subr.mxu0 0.0
        %3545 = vmatpush1.msra.mxu0 %v3518
        %3546 = vmatprep.subr.mxu0 0.0
        %3547 = vmatpush1.msra.mxu0 %v3519
        %3548 = vmatprep.subr.mxu0 0.0
        %3549 = vmatpush1.msra.mxu0 %v3520
        %3550 = vmatprep.subr.mxu0 0.0
        %3551 = vmatpush1.msra.mxu0 %v3521
        %3552 = vmatprep.subr.mxu0 0.0
        %3553 = vmatpush1.msra.mxu0 %v3522
        %3554 = vmatprep.subr.mxu0 0.0
        %3555 = vmatpush1.msra.mxu0 %v3523
        %3556 = vmatprep.subr.mxu0 0.0
        %3557 = vmatpush1.msra.mxu0 0.0
        %3558 = vmatprep.subr.mxu0 0.0
        %3559 = vmatpush1.msra.mxu0 0.0
        %3560 = vmatprep.subr.mxu0 0.0
        %3561 = vmatpush1.msra.mxu0 0.0
        %3562 = vmatprep.subr.mxu0 0.0
        %3563 = vmatpush1.msra.mxu0 0.0
        %3564 = vmatprep.subr.mxu0 0.0
        %3565 = vmatpush1.msra.mxu0 0.0
        %3566 = vmatprep.subr.mxu0 0.0
        %3567 = vmatpush1.msra.mxu0 0.0
        %3568 = vmatprep.subr.mxu0 0.0
        %3569 = vmatpush1.msra.mxu0 0.0
        %3570 = vmatprep.subr.mxu0 0.0
        %3571 = vmatpush1.msra.mxu0 0.0
        %3572 = vmatprep.subr.mxu0 0.0
        %3573 = vmatpush1.msra.mxu0 0.0
        %3574 = vmatprep.subr.mxu0 0.0
        %3575 = vmatpush1.msra.mxu0 0.0
        %3576 = vmatprep.subr.mxu0 0.0
        %3577 = vmatpush1.msra.mxu0 0.0
        %3578 = vmatprep.subr.mxu0 0.0
        %3579 = vmatpush1.msra.mxu0 0.0
        %3580 = vmatprep.subr.mxu0 0.0
        %3581 = vmatpush1.msra.mxu0 0.0
        %3582 = vmatprep.subr.mxu0 0.0
        %3583 = vmatpush1.msra.mxu0 0.0
        %3584 = vmatprep.subr.mxu0 0.0
        %3585 = vmatpush1.msra.mxu0 0.0
        %3586 = vmatprep.subr.mxu0 0.0
        %3587 = vmatpush1.msra.mxu0 0.0
        %3588 = vmatprep.mubr.f32.mxu0 0.0
        %3589 = vmatmul.mubr.f32.gmra.mrb[0].mxu0 %v3475
        %v3590 = vpop.f32.mrb[0].mxu0
        %v3591 = vadd.f32 0.0, %v3590
        %v3592 = vpop.f32.mrb[0].mxu0
        %3593 = vmatprep.mubr.f32.mxu0 0.0
        %3594 = vmatmul.mubr.f32.gmra.mrb[0].mxu0 %v3476
        %v3595 = vpop.f32.mrb[0].mxu0
        %v3596 = vadd.f32 0.0, %v3595
        %v3597 = vpop.f32.mrb[0].mxu0
        %3598 = vmatprep.mubr.f32.mxu0 0.0
        %3599 = vmatmul.mubr.f32.gmra.mrb[0].mxu0 %v3477
        %v3600 = vpop.f32.mrb[0].mxu0
        %v3601 = vadd.f32 0.0, %v3600
        %v3602 = vpop.f32.mrb[0].mxu0
        %3603 = vmatprep.mubr.f32.mxu0 0.0
        %3604 = vmatmul.mubr.f32.gmra.mrb[0].mxu0 %v3478
        %v3605 = vpop.f32.mrb[0].mxu0
        %v3606 = vadd.f32 0.0, %v3605
        %v3607 = vpop.f32.mrb[0].mxu0
        %3608 = vmatprep.mubr.f32.mxu0 0.0
        %3609 = vmatmul.mubr.f32.gmra.mrb[0].mxu0 %v3479
        %v3610 = vpop.f32.mrb[0].mxu0
        %v3611 = vadd.f32 0.0, %v3610
        %v3612 = vpop.f32.mrb[0].mxu0
        %3613 = vmatprep.mubr.f32.mxu0 0.0
        %3614 = vmatmul.mubr.f32.gmra.mrb[0].mxu0 %v3480
        %v3615 = vpop.f32.mrb[0].mxu0
        %v3616 = vadd.f32 0.0, %v3615
        %v3617 = vpop.f32.mrb[0].mxu0
        %3618 = vmatprep.mubr.f32.mxu0 0.0
        %3619 = vmatmul.mubr.f32.gmra.mrb[0].mxu0 %v3481
        %v3620 = vpop.f32.mrb[0].mxu0
        %v3621 = vadd.f32 0.0, %v3620
        %v3622 = vpop.f32.mrb[0].mxu0
        %3623 = vmatprep.mubr.f32.mxu0 0.0
        %3624 = vmatmul.mubr.f32.gmra.mrb[0].mxu0 %v3482
        %v3625 = vpop.f32.mrb[0].mxu0
        %v3626 = vadd.f32 0.0, %v3625
        %v3627 = vpop.f32.mrb[0].mxu0
        %3628 = vmatprep.mubr.f32.mxu0 0.0
        %3629 = vmatmul.mubr.f32.gmra.mrb[0].mxu0 %v3483
        %v3630 = vpop.f32.mrb[0].mxu0
        %v3631 = vadd.f32 0.0, %v3630
        %v3632 = vpop.f32.mrb[0].mxu0
        %3633 = vmatprep.mubr.f32.mxu0 0.0
        %3634 = vmatmul.mubr.f32.gmra.mrb[0].mxu0 %v3484
        %v3635 = vpop.f32.mrb[0].mxu0
        %v3636 = vadd.f32 0.0, %v3635
        %v3637 = vpop.f32.mrb[0].mxu0
        %3638 = vmatprep.mubr.f32.mxu0 0.0
        %3639 = vmatmul.mubr.f32.gmra.mrb[0].mxu0 %v3485
        %v3640 = vpop.f32.mrb[0].mxu0
        %v3641 = vadd.f32 0.0, %v3640
        %v3642 = vpop.f32.mrb[0].mxu0
        %3643 = vmatprep.mubr.f32.mxu0 0.0
        %3644 = vmatmul.mubr.f32.gmra.mrb[0].mxu0 %v3486
        %v3645 = vpop.f32.mrb[0].mxu0
        %v3646 = vadd.f32 0.0, %v3645
        %v3647 = vpop.f32.mrb[0].mxu0
        %3648 = vmatprep.mubr.f32.mxu0 0.0
        %3649 = vmatmul.mubr.f32.gmra.mrb[0].mxu0 %v3487
        %v3650 = vpop.f32.mrb[0].mxu0
        %v3651 = vadd.f32 0.0, %v3650
        %v3652 = vpop.f32.mrb[0].mxu0
        %3653 = vmatprep.mubr.f32.mxu0 0.0
        %3654 = vmatmul.mubr.f32.gmra.mrb[0].mxu0 %v3488
        %v3655 = vpop.f32.mrb[0].mxu0
        %v3656 = vadd.f32 0.0, %v3655
        %v3657 = vpop.f32.mrb[0].mxu0
        %3658 = vmatprep.mubr.f32.mxu0 0.0
        %3659 = vmatmul.mubr.f32.gmra.mrb[0].mxu0 %v3489
        %v3660 = vpop.f32.mrb[0].mxu0
        %v3661 = vadd.f32 0.0, %v3660
        %v3662 = vpop.f32.mrb[0].mxu0
        %3663 = vmatprep.mubr.f32.mxu0 0.0
        %3664 = vmatmul.mubr.f32.gmra.mrb[0].mxu0 %v3490
        %v3665 = vpop.f32.mrb[0].mxu0
        %v3666 = vadd.f32 0.0, %v3665
        %v3667 = vpop.f32.mrb[0].mxu0
        %3668 = vmatprep.mubr.f32.mxu0 0.0
        %3669 = vmatmul.mubr.f32.gmra.mrb[0].mxu0 %v3491
        %v3670 = vpop.f32.mrb[0].mxu0
        %v3671 = vadd.f32 0.0, %v3670
        %v3672 = vpop.f32.mrb[0].mxu0
        %3673 = vmatprep.mubr.f32.mxu0 0.0
        %3674 = vmatmul.mubr.f32.gmra.mrb[0].mxu0 %v3492
        %v3675 = vpop.f32.mrb[0].mxu0
        %v3676 = vadd.f32 0.0, %v3675
        %v3677 = vpop.f32.mrb[0].mxu0
        %3678 = vmatprep.mubr.f32.mxu0 0.0
        %3679 = vmatmul.mubr.f32.gmra.mrb[0].mxu0 %v3493
        %v3680 = vpop.f32.mrb[0].mxu0
        %v3681 = vadd.f32 0.0, %v3680
        %v3682 = vpop.f32.mrb[0].mxu0
        %3683 = vmatprep.mubr.f32.mxu0 0.0
        %3684 = vmatmul.mubr.f32.gmra.mrb[0].mxu0 %v3494
        %v3685 = vpop.f32.mrb[0].mxu0
        %v3686 = vadd.f32 0.0, %v3685
        %v3687 = vpop.f32.mrb[0].mxu0
        %3688 = vmatprep.mubr.f32.mxu0 0.0
        %3689 = vmatmul.mubr.f32.gmra.mrb[0].mxu0 %v3495
        %v3690 = vpop.f32.mrb[0].mxu0
        %v3691 = vadd.f32 0.0, %v3690
        %v3692 = vpop.f32.mrb[0].mxu0
        %3693 = vmatprep.mubr.f32.mxu0 0.0
        %3694 = vmatmul.mubr.f32.gmra.mrb[0].mxu0 %v3496
        %v3695 = vpop.f32.mrb[0].mxu0
        %v3696 = vadd.f32 0.0, %v3695
        %v3697 = vpop.f32.mrb[0].mxu0
        %3698 = vmatprep.mubr.f32.mxu0 0.0
        %3699 = vmatmul.mubr.f32.gmra.mrb[0].mxu0 %v3497
        %v3700 = vpop.f32.mrb[0].mxu0
        %v3701 = vadd.f32 0.0, %v3700
        %v3702 = vpop.f32.mrb[0].mxu0
        %3703 = vmatprep.mubr.f32.mxu0 0.0
        %3704 = vmatmul.mubr.f32.gmra.mrb[0].mxu0 %v3498
        %v3705 = vpop.f32.mrb[0].mxu0
        %v3706 = vadd.f32 0.0, %v3705
        %v3707 = vpop.f32.mrb[0].mxu0
        %3708 = vmatprep.mubr.f32.mxu0 0.0
        %3709 = vmatmul.mubr.f32.gmra.mrb[0].mxu0 %v3499
        %v3710 = vpop.f32.mrb[0].mxu0
        %v3711 = vadd.f32 0.0, %v3710
        %v3712 = vpop.f32.mrb[0].mxu0
        %3713 = vmatprep.mubr.f32.mxu0 0.0
        %3714 = vmatmul.mubr.f32.gmra.mrb[0].mxu0 %v3500
        %v3715 = vpop.f32.mrb[0].mxu0
        %v3716 = vadd.f32 0.0, %v3715
        %v3717 = vpop.f32.mrb[0].mxu0
        %3718 = vmatprep.mubr.f32.mxu0 0.0
        %3719 = vmatmul.mubr.f32.gmra.mrb[0].mxu0 %v3501
        %v3720 = vpop.f32.mrb[0].mxu0
        %v3721 = vadd.f32 0.0, %v3720
        %v3722 = vpop.f32.mrb[0].mxu0
        %3723 = vmatprep.mubr.f32.mxu0 0.0
        %3724 = vmatmul.mubr.f32.gmra.mrb[0].mxu0 %v3502
        %v3725 = vpop.f32.mrb[0].mxu0
        %v3726 = vadd.f32 0.0, %v3725
        %v3727 = vpop.f32.mrb[0].mxu0
        %3728 = vmatprep.mubr.f32.mxu0 0.0
        %3729 = vmatmul.mubr.f32.gmra.mrb[0].mxu0 %v3503
        %v3730 = vpop.f32.mrb[0].mxu0
        %v3731 = vadd.f32 0.0, %v3730
        %v3732 = vpop.f32.mrb[0].mxu0
        %3733 = vmatprep.mubr.f32.mxu0 0.0
        %3734 = vmatmul.mubr.f32.gmra.mrb[0].mxu0 %v3504
        %v3735 = vpop.f32.mrb[0].mxu0
        %v3736 = vadd.f32 0.0, %v3735
        %v3737 = vpop.f32.mrb[0].mxu0
        %3738 = vmatprep.mubr.f32.mxu0 0.0
        %3739 = vmatmul.mubr.f32.gmra.mrb[0].mxu0 %v3505
        %v3740 = vpop.f32.mrb[0].mxu0
        %v3741 = vadd.f32 0.0, %v3740
        %v3742 = vpop.f32.mrb[0].mxu0
        %3743 = vmatprep.mubr.f32.mxu0 0.0
        %3744 = vmatmul.mubr.f32.gmra.mrb[0].mxu0 %v3506
        %v3745 = vpop.f32.mrb[0].mxu0
        %v3746 = vadd.f32 0.0, %v3745
        %v3747 = vpop.f32.mrb[0].mxu0
        %3748 = vdwg.mxu0
        %v3749 = vadd.f32 %v3442, %v3591
        %v3750 = vadd.f32 %v3443, %v3596
        %v3751 = vadd.f32 %v3444, %v3601
        %v3752 = vadd.f32 %v3445, %v3606
        %v3753 = vadd.f32 %v3446, %v3611
        %v3754 = vadd.f32 %v3447, %v3616
        %v3755 = vadd.f32 %v3448, %v3621
        %v3756 = vadd.f32 %v3449, %v3626
        %v3757 = vadd.f32 %v3450, %v3631
        %v3758 = vadd.f32 %v3451, %v3636
        %v3759 = vadd.f32 %v3452, %v3641
        %v3760 = vadd.f32 %v3453, %v3646
        %v3761 = vadd.f32 %v3454, %v3651
        %v3762 = vadd.f32 %v3455, %v3656
        %v3763 = vadd.f32 %v3456, %v3661
        %v3764 = vadd.f32 %v3457, %v3666
        %v3765 = vadd.f32 %v3458, %v3671
        %v3766 = vadd.f32 %v3459, %v3676
        %v3767 = vadd.f32 %v3460, %v3681
        %v3768 = vadd.f32 %v3461, %v3686
        %v3769 = vadd.f32 %v3462, %v3691
        %v3770 = vadd.f32 %v3463, %v3696
        %v3771 = vadd.f32 %v3464, %v3701
        %v3772 = vadd.f32 %v3465, %v3706
        %v3773 = vadd.f32 %v3466, %v3711
        %v3774 = vadd.f32 %v3467, %v3716
        %v3775 = vadd.f32 %v3468, %v3721
        %v3776 = vadd.f32 %v3469, %v3726
        %v3777 = vadd.f32 %v3470, %v3731
        %v3778 = vadd.f32 %v3471, %v3736
        %v3779 = vadd.f32 %v3472, %v3741
        %v3780 = vadd.f32 %v3473, %v3746
        %v3781 = vld [vmem:[%s3474 + $0x1] sm:$0xff]
        %v3782 = vld [vmem:[%s3474 + $0x9] sm:$0xff]
        %v3783 = vld [vmem:[%s3474 + $0x19] sm:$0xff]
        %v3784 = vld [vmem:[%s3474 + $0x21] sm:$0xff]
        %v3785 = vld [vmem:[%s3474 + $0x31] sm:$0xff]
        %v3786 = vld [vmem:[%s3474 + $0x39] sm:$0xff]
        %v3787 = vld [vmem:[%s3474 + $0x49] sm:$0xff]
        %v3788 = vld [vmem:[%s3474 + $0x51] sm:$0xff]
        %v3789 = vld [vmem:[%s3474 + $0x61] sm:$0xff]
        %v3790 = vld [vmem:[%s3474 + $0x69] sm:$0xff]
        %v3791 = vld [vmem:[%s3474 + $0x79] sm:$0xff]
        %v3792 = vld [vmem:[%s3474 + $0x81] sm:$0xff]
        %v3793 = vld [vmem:[%s3474 + $0x91] sm:$0xff]
        %v3794 = vld [vmem:[%s3474 + $0x99] sm:$0xff]
        %v3795 = vld [vmem:[%s3474 + $0xa9] sm:$0xff]
        %v3796 = vld [vmem:[%s3474 + $0xb1] sm:$0xff]
        %v3797 = vld [vmem:[%s3474 + $0xc1] sm:$0xff]
        %v3798 = vld [vmem:[%s3474 + $0xc9] sm:$0xff]
        %v3799 = vld [vmem:[%s3474 + $0xd9] sm:$0xff]
        %v3800 = vld [vmem:[%s3474 + $0xe1] sm:$0xff]
        %v3801 = vld [vmem:[%s3474 + $0xf1] sm:$0xff]
        %v3802 = vld [vmem:[%s3474 + $0xf9] sm:$0xff]
        %v3803 = vld [vmem:[%s3474 + $0x109] sm:$0xff]
        %v3804 = vld [vmem:[%s3474 + $0x111] sm:$0xff]
        %v3805 = vld [vmem:[%s3474 + $0x121] sm:$0xff]
        %v3806 = vld [vmem:[%s3474 + $0x129] sm:$0xff]
        %v3807 = vld [vmem:[%s3474 + $0x139] sm:$0xff]
        %v3808 = vld [vmem:[%s3474 + $0x141] sm:$0xff]
        %v3809 = vld [vmem:[%s3474 + $0x151] sm:$0xff]
        %v3810 = vld [vmem:[%s3474 + $0x159] sm:$0xff]
        %v3811 = vld [vmem:[%s3474 + $0x169] sm:$0xff]
        %v3812 = vld [vmem:[%s3474 + $0x171] sm:$0xff]
        %s3813 = scalar_lea.vmem [#allocation9], 896
        %v3814 = vld [vmem:[%s3813] sm:$0xff]
        %v3815 = vld [vmem:[%s3813 + $0x8] sm:$0xff]
        %v3816 = vld [vmem:[%s3813 + $0x10] sm:$0xff]
        %v3817 = vld [vmem:[%s3813 + $0x18] sm:$0xff]
        %v3818 = vld [vmem:[%s3813 + $0x20] sm:$0xff]
        %v3819 = vld [vmem:[%s3813 + $0x28] sm:$0xff]
        %v3820 = vld [vmem:[%s3813 + $0x30] sm:$0xff]
        %v3821 = vld [vmem:[%s3813 + $0x38] sm:$0xff]
        %v3822 = vld [vmem:[%s3813 + $0x40] sm:$0xff]
        %v3823 = vld [vmem:[%s3813 + $0x48] sm:$0xff]
        %v3824 = vld [vmem:[%s3813 + $0x50] sm:$0xff]
        %v3825 = vld [vmem:[%s3813 + $0x58] sm:$0xff]
        %v3826 = vld [vmem:[%s3813 + $0x60] sm:$0xff]
        %v3827 = vld [vmem:[%s3813 + $0x68] sm:$0xff]
        %v3828 = vld [vmem:[%s3813 + $0x70] sm:$0xff]
        %v3829 = vld [vmem:[%s3813 + $0x78] sm:$0xff]
        %3830 = vmatprep.subr.mxu0 0.0
        %3831 = vmatpush1.msra.mxu0 %v3814
        %3832 = vmatprep.subr.mxu0 0.0
        %3833 = vmatpush1.msra.mxu0 %v3815
        %3834 = vmatprep.subr.mxu0 0.0
        %3835 = vmatpush1.msra.mxu0 %v3816
        %3836 = vmatprep.subr.mxu0 0.0
        %3837 = vmatpush1.msra.mxu0 %v3817
        %3838 = vmatprep.subr.mxu0 0.0
        %3839 = vmatpush1.msra.mxu0 %v3818
        %3840 = vmatprep.subr.mxu0 0.0
        %3841 = vmatpush1.msra.mxu0 %v3819
        %3842 = vmatprep.subr.mxu0 0.0
        %3843 = vmatpush1.msra.mxu0 %v3820
        %3844 = vmatprep.subr.mxu0 0.0
        %3845 = vmatpush1.msra.mxu0 %v3821
        %3846 = vmatprep.subr.mxu0 0.0
        %3847 = vmatpush1.msra.mxu0 %v3822
        %3848 = vmatprep.subr.mxu0 0.0
        %3849 = vmatpush1.msra.mxu0 %v3823
        %3850 = vmatprep.subr.mxu0 0.0
        %3851 = vmatpush1.msra.mxu0 %v3824
        %3852 = vmatprep.subr.mxu0 0.0
        %3853 = vmatpush1.msra.mxu0 %v3825
        %3854 = vmatprep.subr.mxu0 0.0
        %3855 = vmatpush1.msra.mxu0 %v3826
        %3856 = vmatprep.subr.mxu0 0.0
        %3857 = vmatpush1.msra.mxu0 %v3827
        %3858 = vmatprep.subr.mxu0 0.0
        %3859 = vmatpush1.msra.mxu0 %v3828
        %3860 = vmatprep.subr.mxu0 0.0
        %3861 = vmatpush1.msra.mxu0 %v3829
        %3862 = vmatprep.subr.mxu0 0.0
        %3863 = vmatpush1.msra.mxu0 0.0
        %3864 = vmatprep.subr.mxu0 0.0
        %3865 = vmatpush1.msra.mxu0 0.0
        %3866 = vmatprep.subr.mxu0 0.0
        %3867 = vmatpush1.msra.mxu0 0.0
        %3868 = vmatprep.subr.mxu0 0.0
        %3869 = vmatpush1.msra.mxu0 0.0
        %3870 = vmatprep.subr.mxu0 0.0
        %3871 = vmatpush1.msra.mxu0 0.0
        %3872 = vmatprep.subr.mxu0 0.0
        %3873 = vmatpush1.msra.mxu0 0.0
        %3874 = vmatprep.subr.mxu0 0.0
        %3875 = vmatpush1.msra.mxu0 0.0
        %3876 = vmatprep.subr.mxu0 0.0
        %3877 = vmatpush1.msra.mxu0 0.0
        %3878 = vmatprep.subr.mxu0 0.0
        %3879 = vmatpush1.msra.mxu0 0.0
        %3880 = vmatprep.subr.mxu0 0.0
        %3881 = vmatpush1.msra.mxu0 0.0
        %3882 = vmatprep.subr.mxu0 0.0
        %3883 = vmatpush1.msra.mxu0 0.0
        %3884 = vmatprep.subr.mxu0 0.0
        %3885 = vmatpush1.msra.mxu0 0.0
        %3886 = vmatprep.subr.mxu0 0.0
        %3887 = vmatpush1.msra.mxu0 0.0
        %3888 = vmatprep.subr.mxu0 0.0
        %3889 = vmatpush1.msra.mxu0 0.0
        %3890 = vmatprep.subr.mxu0 0.0
        %3891 = vmatpush1.msra.mxu0 0.0
        %3892 = vmatprep.subr.mxu0 0.0
        %3893 = vmatpush1.msra.mxu0 0.0
        %3894 = vmatprep.mubr.f32.mxu0 0.0
        %3895 = vmatmul.mubr.f32.gmra.mrb[0].mxu0 %v3781
        %v3896 = vpop.f32.mrb[0].mxu0
        %v3897 = vadd.f32 0.0, %v3896
        %v3898 = vpop.f32.mrb[0].mxu0
        %3899 = vmatprep.mubr.f32.mxu0 0.0
        %3900 = vmatmul.mubr.f32.gmra.mrb[0].mxu0 %v3782
        %v3901 = vpop.f32.mrb[0].mxu0
        %v3902 = vadd.f32 0.0, %v3901
        %v3903 = vpop.f32.mrb[0].mxu0
        %3904 = vmatprep.mubr.f32.mxu0 0.0
        %3905 = vmatmul.mubr.f32.gmra.mrb[0].mxu0 %v3783
        %v3906 = vpop.f32.mrb[0].mxu0
        %v3907 = vadd.f32 0.0, %v3906
        %v3908 = vpop.f32.mrb[0].mxu0
        %3909 = vmatprep.mubr.f32.mxu0 0.0
        %3910 = vmatmul.mubr.f32.gmra.mrb[0].mxu0 %v3784
        %v3911 = vpop.f32.mrb[0].mxu0
        %v3912 = vadd.f32 0.0, %v3911
        %v3913 = vpop.f32.mrb[0].mxu0
        %3914 = vmatprep.mubr.f32.mxu0 0.0
        %3915 = vmatmul.mubr.f32.gmra.mrb[0].mxu0 %v3785
        %v3916 = vpop.f32.mrb[0].mxu0
        %v3917 = vadd.f32 0.0, %v3916
        %v3918 = vpop.f32.mrb[0].mxu0
        %3919 = vmatprep.mubr.f32.mxu0 0.0
        %3920 = vmatmul.mubr.f32.gmra.mrb[0].mxu0 %v3786
        %v3921 = vpop.f32.mrb[0].mxu0
        %v3922 = vadd.f32 0.0, %v3921
        %v3923 = vpop.f32.mrb[0].mxu0
        %3924 = vmatprep.mubr.f32.mxu0 0.0
        %3925 = vmatmul.mubr.f32.gmra.mrb[0].mxu0 %v3787
        %v3926 = vpop.f32.mrb[0].mxu0
        %v3927 = vadd.f32 0.0, %v3926
        %v3928 = vpop.f32.mrb[0].mxu0
        %3929 = vmatprep.mubr.f32.mxu0 0.0
        %3930 = vmatmul.mubr.f32.gmra.mrb[0].mxu0 %v3788
        %v3931 = vpop.f32.mrb[0].mxu0
        %v3932 = vadd.f32 0.0, %v3931
        %v3933 = vpop.f32.mrb[0].mxu0
        %3934 = vmatprep.mubr.f32.mxu0 0.0
        %3935 = vmatmul.mubr.f32.gmra.mrb[0].mxu0 %v3789
        %v3936 = vpop.f32.mrb[0].mxu0
        %v3937 = vadd.f32 0.0, %v3936
        %v3938 = vpop.f32.mrb[0].mxu0
        %3939 = vmatprep.mubr.f32.mxu0 0.0
        %3940 = vmatmul.mubr.f32.gmra.mrb[0].mxu0 %v3790
        %v3941 = vpop.f32.mrb[0].mxu0
        %v3942 = vadd.f32 0.0, %v3941
        %v3943 = vpop.f32.mrb[0].mxu0
        %3944 = vmatprep.mubr.f32.mxu0 0.0
        %3945 = vmatmul.mubr.f32.gmra.mrb[0].mxu0 %v3791
        %v3946 = vpop.f32.mrb[0].mxu0
        %v3947 = vadd.f32 0.0, %v3946
        %v3948 = vpop.f32.mrb[0].mxu0
        %3949 = vmatprep.mubr.f32.mxu0 0.0
        %3950 = vmatmul.mubr.f32.gmra.mrb[0].mxu0 %v3792
        %v3951 = vpop.f32.mrb[0].mxu0
        %v3952 = vadd.f32 0.0, %v3951
        %v3953 = vpop.f32.mrb[0].mxu0
        %3954 = vmatprep.mubr.f32.mxu0 0.0
        %3955 = vmatmul.mubr.f32.gmra.mrb[0].mxu0 %v3793
        %v3956 = vpop.f32.mrb[0].mxu0
        %v3957 = vadd.f32 0.0, %v3956
        %v3958 = vpop.f32.mrb[0].mxu0
        %3959 = vmatprep.mubr.f32.mxu0 0.0
        %3960 = vmatmul.mubr.f32.gmra.mrb[0].mxu0 %v3794
        %v3961 = vpop.f32.mrb[0].mxu0
        %v3962 = vadd.f32 0.0, %v3961
        %v3963 = vpop.f32.mrb[0].mxu0
        %3964 = vmatprep.mubr.f32.mxu0 0.0
        %3965 = vmatmul.mubr.f32.gmra.mrb[0].mxu0 %v3795
        %v3966 = vpop.f32.mrb[0].mxu0
        %v3967 = vadd.f32 0.0, %v3966
        %v3968 = vpop.f32.mrb[0].mxu0
        %3969 = vmatprep.mubr.f32.mxu0 0.0
        %3970 = vmatmul.mubr.f32.gmra.mrb[0].mxu0 %v3796
        %v3971 = vpop.f32.mrb[0].mxu0
        %v3972 = vadd.f32 0.0, %v3971
        %v3973 = vpop.f32.mrb[0].mxu0
        %3974 = vmatprep.mubr.f32.mxu0 0.0
        %3975 = vmatmul.mubr.f32.gmra.mrb[0].mxu0 %v3797
        %v3976 = vpop.f32.mrb[0].mxu0
        %v3977 = vadd.f32 0.0, %v3976
        %v3978 = vpop.f32.mrb[0].mxu0
        %3979 = vmatprep.mubr.f32.mxu0 0.0
        %3980 = vmatmul.mubr.f32.gmra.mrb[0].mxu0 %v3798
        %v3981 = vpop.f32.mrb[0].mxu0
        %v3982 = vadd.f32 0.0, %v3981
        %v3983 = vpop.f32.mrb[0].mxu0
        %3984 = vmatprep.mubr.f32.mxu0 0.0
        %3985 = vmatmul.mubr.f32.gmra.mrb[0].mxu0 %v3799
        %v3986 = vpop.f32.mrb[0].mxu0
        %v3987 = vadd.f32 0.0, %v3986
        %v3988 = vpop.f32.mrb[0].mxu0
        %3989 = vmatprep.mubr.f32.mxu0 0.0
        %3990 = vmatmul.mubr.f32.gmra.mrb[0].mxu0 %v3800
        %v3991 = vpop.f32.mrb[0].mxu0
        %v3992 = vadd.f32 0.0, %v3991
        %v3993 = vpop.f32.mrb[0].mxu0
        %3994 = vmatprep.mubr.f32.mxu0 0.0
        %3995 = vmatmul.mubr.f32.gmra.mrb[0].mxu0 %v3801
        %v3996 = vpop.f32.mrb[0].mxu0
        %v3997 = vadd.f32 0.0, %v3996
        %v3998 = vpop.f32.mrb[0].mxu0
        %3999 = vmatprep.mubr.f32.mxu0 0.0
        %4000 = vmatmul.mubr.f32.gmra.mrb[0].mxu0 %v3802
        %v4001 = vpop.f32.mrb[0].mxu0
        %v4002 = vadd.f32 0.0, %v4001
        %v4003 = vpop.f32.mrb[0].mxu0
        %4004 = vmatprep.mubr.f32.mxu0 0.0
        %4005 = vmatmul.mubr.f32.gmra.mrb[0].mxu0 %v3803
        %v4006 = vpop.f32.mrb[0].mxu0
        %v4007 = vadd.f32 0.0, %v4006
        %v4008 = vpop.f32.mrb[0].mxu0
        %4009 = vmatprep.mubr.f32.mxu0 0.0
        %4010 = vmatmul.mubr.f32.gmra.mrb[0].mxu0 %v3804
        %v4011 = vpop.f32.mrb[0].mxu0
        %v4012 = vadd.f32 0.0, %v4011
        %v4013 = vpop.f32.mrb[0].mxu0
        %4014 = vmatprep.mubr.f32.mxu0 0.0
        %4015 = vmatmul.mubr.f32.gmra.mrb[0].mxu0 %v3805
        %v4016 = vpop.f32.mrb[0].mxu0
        %v4017 = vadd.f32 0.0, %v4016
        %v4018 = vpop.f32.mrb[0].mxu0
        %4019 = vmatprep.mubr.f32.mxu0 0.0
        %4020 = vmatmul.mubr.f32.gmra.mrb[0].mxu0 %v3806
        %v4021 = vpop.f32.mrb[0].mxu0
        %v4022 = vadd.f32 0.0, %v4021
        %v4023 = vpop.f32.mrb[0].mxu0
        %4024 = vmatprep.mubr.f32.mxu0 0.0
        %4025 = vmatmul.mubr.f32.gmra.mrb[0].mxu0 %v3807
        %v4026 = vpop.f32.mrb[0].mxu0
        %v4027 = vadd.f32 0.0, %v4026
        %v4028 = vpop.f32.mrb[0].mxu0
        %4029 = vmatprep.mubr.f32.mxu0 0.0
        %4030 = vmatmul.mubr.f32.gmra.mrb[0].mxu0 %v3808
        %v4031 = vpop.f32.mrb[0].mxu0
        %v4032 = vadd.f32 0.0, %v4031
        %v4033 = vpop.f32.mrb[0].mxu0
        %4034 = vmatprep.mubr.f32.mxu0 0.0
        %4035 = vmatmul.mubr.f32.gmra.mrb[0].mxu0 %v3809
        %v4036 = vpop.f32.mrb[0].mxu0
        %v4037 = vadd.f32 0.0, %v4036
        %v4038 = vpop.f32.mrb[0].mxu0
        %4039 = vmatprep.mubr.f32.mxu0 0.0
        %4040 = vmatmul.mubr.f32.gmra.mrb[0].mxu0 %v3810
        %v4041 = vpop.f32.mrb[0].mxu0
        %v4042 = vadd.f32 0.0, %v4041
        %v4043 = vpop.f32.mrb[0].mxu0
        %4044 = vmatprep.mubr.f32.mxu0 0.0
        %4045 = vmatmul.mubr.f32.gmra.mrb[0].mxu0 %v3811
        %v4046 = vpop.f32.mrb[0].mxu0
        %v4047 = vadd.f32 0.0, %v4046
        %v4048 = vpop.f32.mrb[0].mxu0
        %4049 = vmatprep.mubr.f32.mxu0 0.0
        %4050 = vmatmul.mubr.f32.gmra.mrb[0].mxu0 %v3812
        %v4051 = vpop.f32.mrb[0].mxu0
        %v4052 = vadd.f32 0.0, %v4051
        %v4053 = vpop.f32.mrb[0].mxu0
        %4054 = vdwg.mxu0
        %v4055 = vadd.f32 %v3749, %v3897
        %v4056 = vadd.f32 %v3750, %v3902
        %v4057 = vadd.f32 %v3751, %v3907
        %v4058 = vadd.f32 %v3752, %v3912
        %v4059 = vadd.f32 %v3753, %v3917
        %v4060 = vadd.f32 %v3754, %v3922
        %v4061 = vadd.f32 %v3755, %v3927
        %v4062 = vadd.f32 %v3756, %v3932
        %v4063 = vadd.f32 %v3757, %v3937
        %v4064 = vadd.f32 %v3758, %v3942
        %v4065 = vadd.f32 %v3759, %v3947
        %v4066 = vadd.f32 %v3760, %v3952
        %v4067 = vadd.f32 %v3761, %v3957
        %v4068 = vadd.f32 %v3762, %v3962
        %v4069 = vadd.f32 %v3763, %v3967
        %v4070 = vadd.f32 %v3764, %v3972
        %v4071 = vadd.f32 %v3765, %v3977
        %v4072 = vadd.f32 %v3766, %v3982
        %v4073 = vadd.f32 %v3767, %v3987
        %v4074 = vadd.f32 %v3768, %v3992
        %v4075 = vadd.f32 %v3769, %v3997
        %v4076 = vadd.f32 %v3770, %v4002
        %v4077 = vadd.f32 %v3771, %v4007
        %v4078 = vadd.f32 %v3772, %v4012
        %v4079 = vadd.f32 %v3773, %v4017
        %v4080 = vadd.f32 %v3774, %v4022
        %v4081 = vadd.f32 %v3775, %v4027
        %v4082 = vadd.f32 %v3776, %v4032
        %v4083 = vadd.f32 %v3777, %v4037
        %v4084 = vadd.f32 %v3778, %v4042
        %v4085 = vadd.f32 %v3779, %v4047
        %v4086 = vadd.f32 %v3780, %v4052
        %v4087 = vld [vmem:[%s3474 + $0x2] sm:$0xff]
        %v4088 = vld [vmem:[%s3474 + $0xa] sm:$0xff]
        %v4089 = vld [vmem:[%s3474 + $0x1a] sm:$0xff]
        %v4090 = vld [vmem:[%s3474 + $0x22] sm:$0xff]
        %v4091 = vld [vmem:[%s3474 + $0x32] sm:$0xff]
        %v4092 = vld [vmem:[%s3474 + $0x3a] sm:$0xff]
        %v4093 = vld [vmem:[%s3474 + $0x4a] sm:$0xff]
        %v4094 = vld [vmem:[%s3474 + $0x52] sm:$0xff]
        %v4095 = vld [vmem:[%s3474 + $0x62] sm:$0xff]
        %v4096 = vld [vmem:[%s3474 + $0x6a] sm:$0xff]
        %v4097 = vld [vmem:[%s3474 + $0x7a] sm:$0xff]
        %v4098 = vld [vmem:[%s3474 + $0x82] sm:$0xff]
        %v4099 = vld [vmem:[%s3474 + $0x92] sm:$0xff]
        %v4100 = vld [vmem:[%s3474 + $0x9a] sm:$0xff]
        %v4101 = vld [vmem:[%s3474 + $0xaa] sm:$0xff]
        %v4102 = vld [vmem:[%s3474 + $0xb2] sm:$0xff]
        %v4103 = vld [vmem:[%s3474 + $0xc2] sm:$0xff]
        %v4104 = vld [vmem:[%s3474 + $0xca] sm:$0xff]
        %v4105 = vld [vmem:[%s3474 + $0xda] sm:$0xff]
        %v4106 = vld [vmem:[%s3474 + $0xe2] sm:$0xff]
        %v4107 = vld [vmem:[%s3474 + $0xf2] sm:$0xff]
        %v4108 = vld [vmem:[%s3474 + $0xfa] sm:$0xff]
        %v4109 = vld [vmem:[%s3474 + $0x10a] sm:$0xff]
        %v4110 = vld [vmem:[%s3474 + $0x112] sm:$0xff]
        %v4111 = vld [vmem:[%s3474 + $0x122] sm:$0xff]
        %v4112 = vld [vmem:[%s3474 + $0x12a] sm:$0xff]
        %v4113 = vld [vmem:[%s3474 + $0x13a] sm:$0xff]
        %v4114 = vld [vmem:[%s3474 + $0x142] sm:$0xff]
        %v4115 = vld [vmem:[%s3474 + $0x152] sm:$0xff]
        %v4116 = vld [vmem:[%s3474 + $0x15a] sm:$0xff]
        %v4117 = vld [vmem:[%s3474 + $0x16a] sm:$0xff]
        %v4118 = vld [vmem:[%s3474 + $0x172] sm:$0xff]
        %s4119 = scalar_lea.vmem [#allocation9], 1024
        %v4120 = vld [vmem:[%s4119] sm:$0xff]
        %v4121 = vld [vmem:[%s4119 + $0x8] sm:$0xff]
        %v4122 = vld [vmem:[%s4119 + $0x10] sm:$0xff]
        %v4123 = vld [vmem:[%s4119 + $0x18] sm:$0xff]
        %v4124 = vld [vmem:[%s4119 + $0x20] sm:$0xff]
        %v4125 = vld [vmem:[%s4119 + $0x28] sm:$0xff]
        %v4126 = vld [vmem:[%s4119 + $0x30] sm:$0xff]
        %v4127 = vld [vmem:[%s4119 + $0x38] sm:$0xff]
        %v4128 = vld [vmem:[%s4119 + $0x40] sm:$0xff]
        %v4129 = vld [vmem:[%s4119 + $0x48] sm:$0xff]
        %v4130 = vld [vmem:[%s4119 + $0x50] sm:$0xff]
        %v4131 = vld [vmem:[%s4119 + $0x58] sm:$0xff]
        %v4132 = vld [vmem:[%s4119 + $0x60] sm:$0xff]
        %v4133 = vld [vmem:[%s4119 + $0x68] sm:$0xff]
        %v4134 = vld [vmem:[%s4119 + $0x70] sm:$0xff]
        %v4135 = vld [vmem:[%s4119 + $0x78] sm:$0xff]
        %4136 = vmatprep.subr.mxu0 0.0
        %4137 = vmatpush1.msra.mxu0 %v4120
        %4138 = vmatprep.subr.mxu0 0.0
        %4139 = vmatpush1.msra.mxu0 %v4121
        %4140 = vmatprep.subr.mxu0 0.0
        %4141 = vmatpush1.msra.mxu0 %v4122
        %4142 = vmatprep.subr.mxu0 0.0
        %4143 = vmatpush1.msra.mxu0 %v4123
        %4144 = vmatprep.subr.mxu0 0.0
        %4145 = vmatpush1.msra.mxu0 %v4124
        %4146 = vmatprep.subr.mxu0 0.0
        %4147 = vmatpush1.msra.mxu0 %v4125
        %4148 = vmatprep.subr.mxu0 0.0
        %4149 = vmatpush1.msra.mxu0 %v4126
        %4150 = vmatprep.subr.mxu0 0.0
        %4151 = vmatpush1.msra.mxu0 %v4127
        %4152 = vmatprep.subr.mxu0 0.0
        %4153 = vmatpush1.msra.mxu0 %v4128
        %4154 = vmatprep.subr.mxu0 0.0
        %4155 = vmatpush1.msra.mxu0 %v4129
        %4156 = vmatprep.subr.mxu0 0.0
        %4157 = vmatpush1.msra.mxu0 %v4130
        %4158 = vmatprep.subr.mxu0 0.0
        %4159 = vmatpush1.msra.mxu0 %v4131
        %4160 = vmatprep.subr.mxu0 0.0
        %4161 = vmatpush1.msra.mxu0 %v4132
        %4162 = vmatprep.subr.mxu0 0.0
        %4163 = vmatpush1.msra.mxu0 %v4133
        %4164 = vmatprep.subr.mxu0 0.0
        %4165 = vmatpush1.msra.mxu0 %v4134
        %4166 = vmatprep.subr.mxu0 0.0
        %4167 = vmatpush1.msra.mxu0 %v4135
        %4168 = vmatprep.subr.mxu0 0.0
        %4169 = vmatpush1.msra.mxu0 0.0
        %4170 = vmatprep.subr.mxu0 0.0
        %4171 = vmatpush1.msra.mxu0 0.0
        %4172 = vmatprep.subr.mxu0 0.0
        %4173 = vmatpush1.msra.mxu0 0.0
        %4174 = vmatprep.subr.mxu0 0.0
        %4175 = vmatpush1.msra.mxu0 0.0
        %4176 = vmatprep.subr.mxu0 0.0
        %4177 = vmatpush1.msra.mxu0 0.0
        %4178 = vmatprep.subr.mxu0 0.0
        %4179 = vmatpush1.msra.mxu0 0.0
        %4180 = vmatprep.subr.mxu0 0.0
        %4181 = vmatpush1.msra.mxu0 0.0
        %4182 = vmatprep.subr.mxu0 0.0
        %4183 = vmatpush1.msra.mxu0 0.0
        %4184 = vmatprep.subr.mxu0 0.0
        %4185 = vmatpush1.msra.mxu0 0.0
        %4186 = vmatprep.subr.mxu0 0.0
        %4187 = vmatpush1.msra.mxu0 0.0
        %4188 = vmatprep.subr.mxu0 0.0
        %4189 = vmatpush1.msra.mxu0 0.0
        %4190 = vmatprep.subr.mxu0 0.0
        %4191 = vmatpush1.msra.mxu0 0.0
        %4192 = vmatprep.subr.mxu0 0.0
        %4193 = vmatpush1.msra.mxu0 0.0
        %4194 = vmatprep.subr.mxu0 0.0
        %4195 = vmatpush1.msra.mxu0 0.0
        %4196 = vmatprep.subr.mxu0 0.0
        %4197 = vmatpush1.msra.mxu0 0.0
        %4198 = vmatprep.subr.mxu0 0.0
        %4199 = vmatpush1.msra.mxu0 0.0
        %4200 = vmatprep.mubr.f32.mxu0 0.0
        %4201 = vmatmul.mubr.f32.gmra.mrb[0].mxu0 %v4087
        %v4202 = vpop.f32.mrb[0].mxu0
        %v4203 = vadd.f32 0.0, %v4202
        %v4204 = vpop.f32.mrb[0].mxu0
        %4205 = vmatprep.mubr.f32.mxu0 0.0
        %4206 = vmatmul.mubr.f32.gmra.mrb[0].mxu0 %v4088
        %v4207 = vpop.f32.mrb[0].mxu0
        %v4208 = vadd.f32 0.0, %v4207
        %v4209 = vpop.f32.mrb[0].mxu0
        %4210 = vmatprep.mubr.f32.mxu0 0.0
        %4211 = vmatmul.mubr.f32.gmra.mrb[0].mxu0 %v4089
        %v4212 = vpop.f32.mrb[0].mxu0
        %v4213 = vadd.f32 0.0, %v4212
        %v4214 = vpop.f32.mrb[0].mxu0
        %4215 = vmatprep.mubr.f32.mxu0 0.0
        %4216 = vmatmul.mubr.f32.gmra.mrb[0].mxu0 %v4090
        %v4217 = vpop.f32.mrb[0].mxu0
        %v4218 = vadd.f32 0.0, %v4217
        %v4219 = vpop.f32.mrb[0].mxu0
        %4220 = vmatprep.mubr.f32.mxu0 0.0
        %4221 = vmatmul.mubr.f32.gmra.mrb[0].mxu0 %v4091
        %v4222 = vpop.f32.mrb[0].mxu0
        %v4223 = vadd.f32 0.0, %v4222
        %v4224 = vpop.f32.mrb[0].mxu0
        %4225 = vmatprep.mubr.f32.mxu0 0.0
        %4226 = vmatmul.mubr.f32.gmra.mrb[0].mxu0 %v4092
        %v4227 = vpop.f32.mrb[0].mxu0
        %v4228 = vadd.f32 0.0, %v4227
        %v4229 = vpop.f32.mrb[0].mxu0
        %4230 = vmatprep.mubr.f32.mxu0 0.0
        %4231 = vmatmul.mubr.f32.gmra.mrb[0].mxu0 %v4093
        %v4232 = vpop.f32.mrb[0].mxu0
        %v4233 = vadd.f32 0.0, %v4232
        %v4234 = vpop.f32.mrb[0].mxu0
        %4235 = vmatprep.mubr.f32.mxu0 0.0
        %4236 = vmatmul.mubr.f32.gmra.mrb[0].mxu0 %v4094
        %v4237 = vpop.f32.mrb[0].mxu0
        %v4238 = vadd.f32 0.0, %v4237
        %v4239 = vpop.f32.mrb[0].mxu0
        %4240 = vmatprep.mubr.f32.mxu0 0.0
        %4241 = vmatmul.mubr.f32.gmra.mrb[0].mxu0 %v4095
        %v4242 = vpop.f32.mrb[0].mxu0
        %v4243 = vadd.f32 0.0, %v4242
        %v4244 = vpop.f32.mrb[0].mxu0
        %4245 = vmatprep.mubr.f32.mxu0 0.0
        %4246 = vmatmul.mubr.f32.gmra.mrb[0].mxu0 %v4096
        %v4247 = vpop.f32.mrb[0].mxu0
        %v4248 = vadd.f32 0.0, %v4247
        %v4249 = vpop.f32.mrb[0].mxu0
        %4250 = vmatprep.mubr.f32.mxu0 0.0
        %4251 = vmatmul.mubr.f32.gmra.mrb[0].mxu0 %v4097
        %v4252 = vpop.f32.mrb[0].mxu0
        %v4253 = vadd.f32 0.0, %v4252
        %v4254 = vpop.f32.mrb[0].mxu0
        %4255 = vmatprep.mubr.f32.mxu0 0.0
        %4256 = vmatmul.mubr.f32.gmra.mrb[0].mxu0 %v4098
        %v4257 = vpop.f32.mrb[0].mxu0
        %v4258 = vadd.f32 0.0, %v4257
        %v4259 = vpop.f32.mrb[0].mxu0
        %4260 = vmatprep.mubr.f32.mxu0 0.0
        %4261 = vmatmul.mubr.f32.gmra.mrb[0].mxu0 %v4099
        %v4262 = vpop.f32.mrb[0].mxu0
        %v4263 = vadd.f32 0.0, %v4262
        %v4264 = vpop.f32.mrb[0].mxu0
        %4265 = vmatprep.mubr.f32.mxu0 0.0
        %4266 = vmatmul.mubr.f32.gmra.mrb[0].mxu0 %v4100
        %v4267 = vpop.f32.mrb[0].mxu0
        %v4268 = vadd.f32 0.0, %v4267
        %v4269 = vpop.f32.mrb[0].mxu0
        %4270 = vmatprep.mubr.f32.mxu0 0.0
        %4271 = vmatmul.mubr.f32.gmra.mrb[0].mxu0 %v4101
        %v4272 = vpop.f32.mrb[0].mxu0
        %v4273 = vadd.f32 0.0, %v4272
        %v4274 = vpop.f32.mrb[0].mxu0
        %4275 = vmatprep.mubr.f32.mxu0 0.0
        %4276 = vmatmul.mubr.f32.gmra.mrb[0].mxu0 %v4102
        %v4277 = vpop.f32.mrb[0].mxu0
        %v4278 = vadd.f32 0.0, %v4277
        %v4279 = vpop.f32.mrb[0].mxu0
        %4280 = vmatprep.mubr.f32.mxu0 0.0
        %4281 = vmatmul.mubr.f32.gmra.mrb[0].mxu0 %v4103
        %v4282 = vpop.f32.mrb[0].mxu0
        %v4283 = vadd.f32 0.0, %v4282
        %v4284 = vpop.f32.mrb[0].mxu0
        %4285 = vmatprep.mubr.f32.mxu0 0.0
        %4286 = vmatmul.mubr.f32.gmra.mrb[0].mxu0 %v4104
        %v4287 = vpop.f32.mrb[0].mxu0
        %v4288 = vadd.f32 0.0, %v4287
        %v4289 = vpop.f32.mrb[0].mxu0
        %4290 = vmatprep.mubr.f32.mxu0 0.0
        %4291 = vmatmul.mubr.f32.gmra.mrb[0].mxu0 %v4105
        %v4292 = vpop.f32.mrb[0].mxu0
        %v4293 = vadd.f32 0.0, %v4292
        %v4294 = vpop.f32.mrb[0].mxu0
        %4295 = vmatprep.mubr.f32.mxu0 0.0
        %4296 = vmatmul.mubr.f32.gmra.mrb[0].mxu0 %v4106
        %v4297 = vpop.f32.mrb[0].mxu0
        %v4298 = vadd.f32 0.0, %v4297
        %v4299 = vpop.f32.mrb[0].mxu0
        %4300 = vmatprep.mubr.f32.mxu0 0.0
        %4301 = vmatmul.mubr.f32.gmra.mrb[0].mxu0 %v4107
        %v4302 = vpop.f32.mrb[0].mxu0
        %v4303 = vadd.f32 0.0, %v4302
        %v4304 = vpop.f32.mrb[0].mxu0
        %4305 = vmatprep.mubr.f32.mxu0 0.0
        %4306 = vmatmul.mubr.f32.gmra.mrb[0].mxu0 %v4108
        %v4307 = vpop.f32.mrb[0].mxu0
        %v4308 = vadd.f32 0.0, %v4307
        %v4309 = vpop.f32.mrb[0].mxu0
        %4310 = vmatprep.mubr.f32.mxu0 0.0
        %4311 = vmatmul.mubr.f32.gmra.mrb[0].mxu0 %v4109
        %v4312 = vpop.f32.mrb[0].mxu0
        %v4313 = vadd.f32 0.0, %v4312
        %v4314 = vpop.f32.mrb[0].mxu0
        %4315 = vmatprep.mubr.f32.mxu0 0.0
        %4316 = vmatmul.mubr.f32.gmra.mrb[0].mxu0 %v4110
        %v4317 = vpop.f32.mrb[0].mxu0
        %v4318 = vadd.f32 0.0, %v4317
        %v4319 = vpop.f32.mrb[0].mxu0
        %4320 = vmatprep.mubr.f32.mxu0 0.0
        %4321 = vmatmul.mubr.f32.gmra.mrb[0].mxu0 %v4111
        %v4322 = vpop.f32.mrb[0].mxu0
        %v4323 = vadd.f32 0.0, %v4322
        %v4324 = vpop.f32.mrb[0].mxu0
        %4325 = vmatprep.mubr.f32.mxu0 0.0
        %4326 = vmatmul.mubr.f32.gmra.mrb[0].mxu0 %v4112
        %v4327 = vpop.f32.mrb[0].mxu0
        %v4328 = vadd.f32 0.0, %v4327
        %v4329 = vpop.f32.mrb[0].mxu0
        %4330 = vmatprep.mubr.f32.mxu0 0.0
        %4331 = vmatmul.mubr.f32.gmra.mrb[0].mxu0 %v4113
        %v4332 = vpop.f32.mrb[0].mxu0
        %v4333 = vadd.f32 0.0, %v4332
        %v4334 = vpop.f32.mrb[0].mxu0
        %4335 = vmatprep.mubr.f32.mxu0 0.0
        %4336 = vmatmul.mubr.f32.gmra.mrb[0].mxu0 %v4114
        %v4337 = vpop.f32.mrb[0].mxu0
        %v4338 = vadd.f32 0.0, %v4337
        %v4339 = vpop.f32.mrb[0].mxu0
        %4340 = vmatprep.mubr.f32.mxu0 0.0
        %4341 = vmatmul.mubr.f32.gmra.mrb[0].mxu0 %v4115
        %v4342 = vpop.f32.mrb[0].mxu0
        %v4343 = vadd.f32 0.0, %v4342
        %v4344 = vpop.f32.mrb[0].mxu0
        %4345 = vmatprep.mubr.f32.mxu0 0.0
        %4346 = vmatmul.mubr.f32.gmra.mrb[0].mxu0 %v4116
        %v4347 = vpop.f32.mrb[0].mxu0
        %v4348 = vadd.f32 0.0, %v4347
        %v4349 = vpop.f32.mrb[0].mxu0
        %4350 = vmatprep.mubr.f32.mxu0 0.0
        %4351 = vmatmul.mubr.f32.gmra.mrb[0].mxu0 %v4117
        %v4352 = vpop.f32.mrb[0].mxu0
        %v4353 = vadd.f32 0.0, %v4352
        %v4354 = vpop.f32.mrb[0].mxu0
        %4355 = vmatprep.mubr.f32.mxu0 0.0
        %4356 = vmatmul.mubr.f32.gmra.mrb[0].mxu0 %v4118
        %v4357 = vpop.f32.mrb[0].mxu0
        %v4358 = vadd.f32 0.0, %v4357
        %v4359 = vpop.f32.mrb[0].mxu0
        %4360 = vdwg.mxu0
        %v4361 = vadd.f32 %v4055, %v4203
        %v4362 = vadd.f32 %v4056, %v4208
        %v4363 = vadd.f32 %v4057, %v4213
        %v4364 = vadd.f32 %v4058, %v4218
        %v4365 = vadd.f32 %v4059, %v4223
        %v4366 = vadd.f32 %v4060, %v4228
        %v4367 = vadd.f32 %v4061, %v4233
        %v4368 = vadd.f32 %v4062, %v4238
        %v4369 = vadd.f32 %v4063, %v4243
        %v4370 = vadd.f32 %v4064, %v4248
        %v4371 = vadd.f32 %v4065, %v4253
        %v4372 = vadd.f32 %v4066, %v4258
        %v4373 = vadd.f32 %v4067, %v4263
        %v4374 = vadd.f32 %v4068, %v4268
        %v4375 = vadd.f32 %v4069, %v4273
        %v4376 = vadd.f32 %v4070, %v4278
        %v4377 = vadd.f32 %v4071, %v4283
        %v4378 = vadd.f32 %v4072, %v4288
        %v4379 = vadd.f32 %v4073, %v4293
        %v4380 = vadd.f32 %v4074, %v4298
        %v4381 = vadd.f32 %v4075, %v4303
        %v4382 = vadd.f32 %v4076, %v4308
        %v4383 = vadd.f32 %v4077, %v4313
        %v4384 = vadd.f32 %v4078, %v4318
        %v4385 = vadd.f32 %v4079, %v4323
        %v4386 = vadd.f32 %v4080, %v4328
        %v4387 = vadd.f32 %v4081, %v4333
        %v4388 = vadd.f32 %v4082, %v4338
        %v4389 = vadd.f32 %v4083, %v4343
        %v4390 = vadd.f32 %v4084, %v4348
        %v4391 = vadd.f32 %v4085, %v4353
        %v4392 = vadd.f32 %v4086, %v4358
        %v4393 = vlaneseq
        %v4394 = vshrl.u32 %v4393, 7
        %v4395 = vsub.s32 2, %v4394
        %v4396 = vrot.slane %v341, %v4395
        %v4397 = vmul.f32 %v4361, %v4396
        %v4398 = vmul.f32 %v4362, %v4396
        %v4399 = vmul.f32 %v4363, %v4396
        %v4400 = vmul.f32 %v4364, %v4396
        %v4401 = vmul.f32 %v4365, %v4396
        %v4402 = vmul.f32 %v4366, %v4396
        %v4403 = vmul.f32 %v4367, %v4396
        %v4404 = vmul.f32 %v4368, %v4396
        %v4405 = vmul.f32 %v4369, %v4396
        %v4406 = vmul.f32 %v4370, %v4396
        %v4407 = vmul.f32 %v4371, %v4396
        %v4408 = vmul.f32 %v4372, %v4396
        %v4409 = vmul.f32 %v4373, %v4396
        %v4410 = vmul.f32 %v4374, %v4396
        %v4411 = vmul.f32 %v4375, %v4396
        %v4412 = vmul.f32 %v4376, %v4396
        %v4413 = vmul.f32 %v4377, %v4396
        %v4414 = vmul.f32 %v4378, %v4396
        %v4415 = vmul.f32 %v4379, %v4396
        %v4416 = vmul.f32 %v4380, %v4396
        %v4417 = vmul.f32 %v4381, %v4396
        %v4418 = vmul.f32 %v4382, %v4396
        %v4419 = vmul.f32 %v4383, %v4396
        %v4420 = vmul.f32 %v4384, %v4396
        %v4421 = vmul.f32 %v4385, %v4396
        %v4422 = vmul.f32 %v4386, %v4396
        %v4423 = vmul.f32 %v4387, %v4396
        %v4424 = vmul.f32 %v4388, %v4396
        %v4425 = vmul.f32 %v4389, %v4396
        %v4426 = vmul.f32 %v4390, %v4396
        %v4427 = vmul.f32 %v4391, %v4396
        %v4428 = vmul.f32 %v4392, %v4396
        %v4429 = vlaneseq
        %v4430 = vshrl.u32 %v4429, 7
        %v4431 = vsub.s32 3, %v4430
        %v4432 = vrot.slane %v341, %v4431
        %v4433 = vadd.f32 %v4397, %v4432
        %v4434 = vadd.f32 %v4398, %v4432
        %v4435 = vadd.f32 %v4399, %v4432
        %v4436 = vadd.f32 %v4400, %v4432
        %v4437 = vadd.f32 %v4401, %v4432
        %v4438 = vadd.f32 %v4402, %v4432
        %v4439 = vadd.f32 %v4403, %v4432
        %v4440 = vadd.f32 %v4404, %v4432
        %v4441 = vadd.f32 %v4405, %v4432
        %v4442 = vadd.f32 %v4406, %v4432
        %v4443 = vadd.f32 %v4407, %v4432
        %v4444 = vadd.f32 %v4408, %v4432
        %v4445 = vadd.f32 %v4409, %v4432
        %v4446 = vadd.f32 %v4410, %v4432
        %v4447 = vadd.f32 %v4411, %v4432
        %v4448 = vadd.f32 %v4412, %v4432
        %v4449 = vadd.f32 %v4413, %v4432
        %v4450 = vadd.f32 %v4414, %v4432
        %v4451 = vadd.f32 %v4415, %v4432
        %v4452 = vadd.f32 %v4416, %v4432
        %v4453 = vadd.f32 %v4417, %v4432
        %v4454 = vadd.f32 %v4418, %v4432
        %v4455 = vadd.f32 %v4419, %v4432
        %v4456 = vadd.f32 %v4420, %v4432
        %v4457 = vadd.f32 %v4421, %v4432
        %v4458 = vadd.f32 %v4422, %v4432
        %v4459 = vadd.f32 %v4423, %v4432
        %v4460 = vadd.f32 %v4424, %v4432
        %v4461 = vadd.f32 %v4425, %v4432
        %v4462 = vadd.f32 %v4426, %v4432
        %v4463 = vadd.f32 %v4427, %v4432
        %v4464 = vadd.f32 %v4428, %v4432
        %v4465 = vld [vmem:[%s2] sm:$0xff]
        %v4466 = vld [vmem:[%s2 + $0x8] sm:$0xff]
        %v4467 = vld [vmem:[%s2 + $0x10] sm:$0xff]
        %v4468 = vld [vmem:[%s2 + $0x18] sm:$0xff]
        %v4469 = vld [vmem:[%s2 + $0x20] sm:$0xff]
        %v4470 = vld [vmem:[%s2 + $0x28] sm:$0xff]
        %v4471 = vld [vmem:[%s2 + $0x30] sm:$0xff]
        %v4472 = vld [vmem:[%s2 + $0x38] sm:$0xff]
        %v4473 = vld [vmem:[%s2 + $0x40] sm:$0xff]
        %v4474 = vld [vmem:[%s2 + $0x48] sm:$0xff]
        %v4475 = vld [vmem:[%s2 + $0x50] sm:$0xff]
        %v4476 = vld [vmem:[%s2 + $0x58] sm:$0xff]
        %v4477 = vld [vmem:[%s2 + $0x60] sm:$0xff]
        %v4478 = vld [vmem:[%s2 + $0x68] sm:$0xff]
        %v4479 = vld [vmem:[%s2 + $0x70] sm:$0xff]
        %v4480 = vld [vmem:[%s2 + $0x78] sm:$0xff]
        %v4481 = vld [vmem:[%s2 + $0x80] sm:$0xff]
        %v4482 = vld [vmem:[%s2 + $0x88] sm:$0xff]
        %v4483 = vld [vmem:[%s2 + $0x90] sm:$0xff]
        %v4484 = vld [vmem:[%s2 + $0x98] sm:$0xff]
        %v4485 = vld [vmem:[%s2 + $0xa0] sm:$0xff]
        %v4486 = vld [vmem:[%s2 + $0xa8] sm:$0xff]
        %v4487 = vld [vmem:[%s2 + $0xb0] sm:$0xff]
        %v4488 = vld [vmem:[%s2 + $0xb8] sm:$0xff]
        %v4489 = vld [vmem:[%s2 + $0xc0] sm:$0xff]
        %v4490 = vld [vmem:[%s2 + $0xc8] sm:$0xff]
        %v4491 = vld [vmem:[%s2 + $0xd0] sm:$0xff]
        %v4492 = vld [vmem:[%s2 + $0xd8] sm:$0xff]
        %v4493 = vld [vmem:[%s2 + $0xe0] sm:$0xff]
        %v4494 = vld [vmem:[%s2 + $0xe8] sm:$0xff]
        %v4495 = vld [vmem:[%s2 + $0xf0] sm:$0xff]
        %v4496 = vld [vmem:[%s2 + $0xf8] sm:$0xff]
        %vm4497 = vcmask 130048
        %v4499 = vsel %vm4497, %v4465, 0
        %v4502 = vsel %vm4497, %v4466, 0
        %v4505 = vsel %vm4497, %v4467, 0
        %v4508 = vsel %vm4497, %v4468, 0
        %v4511 = vsel %vm4497, %v4469, 0
        %v4514 = vsel %vm4497, %v4470, 0
        %v4517 = vsel %vm4497, %v4471, 0
        %v4520 = vsel %vm4497, %v4472, 0
        %v4523 = vsel %vm4497, %v4473, 0
        %v4526 = vsel %vm4497, %v4474, 0
        %v4529 = vsel %vm4497, %v4475, 0
        %v4532 = vsel %vm4497, %v4476, 0
        %v4535 = vsel %vm4497, %v4477, 0
        %v4538 = vsel %vm4497, %v4478, 0
        %v4541 = vsel %vm4497, %v4479, 0
        %v4544 = vsel %vm4497, %v4480, 0
        %v4547 = vsel %vm4497, %v4481, 0
        %v4550 = vsel %vm4497, %v4482, 0
        %v4553 = vsel %vm4497, %v4483, 0
        %v4556 = vsel %vm4497, %v4484, 0
        %v4559 = vsel %vm4497, %v4485, 0
        %v4562 = vsel %vm4497, %v4486, 0
        %v4565 = vsel %vm4497, %v4487, 0
        %v4568 = vsel %vm4497, %v4488, 0
        %v4571 = vsel %vm4497, %v4489, 0
        %v4574 = vsel %vm4497, %v4490, 0
        %v4577 = vsel %vm4497, %v4491, 0
        %v4580 = vsel %vm4497, %v4492, 0
        %v4583 = vsel %vm4497, %v4493, 0
        %v4586 = vsel %vm4497, %v4494, 0
        %v4589 = vsel %vm4497, %v4495, 0
        %v4592 = vsel %vm4497, %v4496, 0
        %4594 = vmatprep.subr.mxu0 0.0
        %4595 = vmatpush1.msra.mxu0 %v1629
        %4596 = vmatprep.subr.mxu0 0.0
        %4597 = vmatpush1.msra.mxu0 %v1630
        %4598 = vmatprep.subr.mxu0 0.0
        %4599 = vmatpush1.msra.mxu0 0.0
        %4600 = vmatprep.subr.mxu0 0.0
        %4601 = vmatpush1.msra.mxu0 0.0
        %4602 = vmatprep.subr.mxu0 0.0
        %4603 = vmatpush1.msra.mxu0 0.0
        %4604 = vmatprep.subr.mxu0 0.0
        %4605 = vmatpush1.msra.mxu0 0.0
        %4606 = vmatprep.subr.mxu0 0.0
        %4607 = vmatpush1.msra.mxu0 0.0
        %4608 = vmatprep.subr.mxu0 0.0
        %4609 = vmatpush1.msra.mxu0 0.0
        %4610 = vmatprep.subr.mxu0 0.0
        %4611 = vmatpush1.msra.mxu0 0.0
        %4612 = vmatprep.subr.mxu0 0.0
        %4613 = vmatpush1.msra.mxu0 0.0
        %4614 = vmatprep.subr.mxu0 0.0
        %4615 = vmatpush1.msra.mxu0 0.0
        %4616 = vmatprep.subr.mxu0 0.0
        %4617 = vmatpush1.msra.mxu0 0.0
        %4618 = vmatprep.subr.mxu0 0.0
        %4619 = vmatpush1.msra.mxu0 0.0
        %4620 = vmatprep.subr.mxu0 0.0
        %4621 = vmatpush1.msra.mxu0 0.0
        %4622 = vmatprep.subr.mxu0 0.0
        %4623 = vmatpush1.msra.mxu0 0.0
        %4624 = vmatprep.subr.mxu0 0.0
        %4625 = vmatpush1.msra.mxu0 0.0
        %4626 = vmatprep.subr.mxu0 0.0
        %4627 = vmatpush1.msra.mxu0 0.0
        %4628 = vmatprep.subr.mxu0 0.0
        %4629 = vmatpush1.msra.mxu0 0.0
        %4630 = vmatprep.subr.mxu0 0.0
        %4631 = vmatpush1.msra.mxu0 0.0
        %4632 = vmatprep.subr.mxu0 0.0
        %4633 = vmatpush1.msra.mxu0 0.0
        %4634 = vmatprep.subr.mxu0 0.0
        %4635 = vmatpush1.msra.mxu0 0.0
        %4636 = vmatprep.subr.mxu0 0.0
        %4637 = vmatpush1.msra.mxu0 0.0
        %4638 = vmatprep.subr.mxu0 0.0
        %4639 = vmatpush1.msra.mxu0 0.0
        %4640 = vmatprep.subr.mxu0 0.0
        %4641 = vmatpush1.msra.mxu0 0.0
        %4642 = vmatprep.subr.mxu0 0.0
        %4643 = vmatpush1.msra.mxu0 0.0
        %4644 = vmatprep.subr.mxu0 0.0
        %4645 = vmatpush1.msra.mxu0 0.0
        %4646 = vmatprep.subr.mxu0 0.0
        %4647 = vmatpush1.msra.mxu0 0.0
        %4648 = vmatprep.subr.mxu0 0.0
        %4649 = vmatpush1.msra.mxu0 0.0
        %4650 = vmatprep.subr.mxu0 0.0
        %4651 = vmatpush1.msra.mxu0 0.0
        %4652 = vmatprep.subr.mxu0 0.0
        %4653 = vmatpush1.msra.mxu0 0.0
        %4654 = vmatprep.subr.mxu0 0.0
        %4655 = vmatpush1.msra.mxu0 0.0
        %4656 = vmatprep.subr.mxu0 0.0
        %4657 = vmatpush1.msra.mxu0 0.0
        %4658 = vmatprep.mubr.f32.mxu0 0.0
        %4659 = vmatmul.mubr.f32.gmra.mrb[0].mxu0 %v4499
        %v4660 = vpop.f32.mrb[0].mxu0
        %v4661 = vadd.f32 0.0, %v4660
        %v4662 = vpop.f32.mrb[0].mxu0
        %4663 = vmatprep.mubr.f32.mxu0 0.0
        %4664 = vmatmul.mubr.f32.gmra.mrb[0].mxu0 %v4502
        %v4665 = vpop.f32.mrb[0].mxu0
        %v4666 = vadd.f32 0.0, %v4665
        %v4667 = vpop.f32.mrb[0].mxu0
        %4668 = vmatprep.mubr.f32.mxu0 0.0
        %4669 = vmatmul.mubr.f32.gmra.mrb[0].mxu0 %v4505
        %v4670 = vpop.f32.mrb[0].mxu0
        %v4671 = vadd.f32 0.0, %v4670
        %v4672 = vpop.f32.mrb[0].mxu0
        %4673 = vmatprep.mubr.f32.mxu0 0.0
        %4674 = vmatmul.mubr.f32.gmra.mrb[0].mxu0 %v4508
        %v4675 = vpop.f32.mrb[0].mxu0
        %v4676 = vadd.f32 0.0, %v4675
        %v4677 = vpop.f32.mrb[0].mxu0
        %4678 = vmatprep.mubr.f32.mxu0 0.0
        %4679 = vmatmul.mubr.f32.gmra.mrb[0].mxu0 %v4511
        %v4680 = vpop.f32.mrb[0].mxu0
        %v4681 = vadd.f32 0.0, %v4680
        %v4682 = vpop.f32.mrb[0].mxu0
        %4683 = vmatprep.mubr.f32.mxu0 0.0
        %4684 = vmatmul.mubr.f32.gmra.mrb[0].mxu0 %v4514
        %v4685 = vpop.f32.mrb[0].mxu0
        %v4686 = vadd.f32 0.0, %v4685
        %v4687 = vpop.f32.mrb[0].mxu0
        %4688 = vmatprep.mubr.f32.mxu0 0.0
        %4689 = vmatmul.mubr.f32.gmra.mrb[0].mxu0 %v4517
        %v4690 = vpop.f32.mrb[0].mxu0
        %v4691 = vadd.f32 0.0, %v4690
        %v4692 = vpop.f32.mrb[0].mxu0
        %4693 = vmatprep.mubr.f32.mxu0 0.0
        %4694 = vmatmul.mubr.f32.gmra.mrb[0].mxu0 %v4520
        %v4695 = vpop.f32.mrb[0].mxu0
        %v4696 = vadd.f32 0.0, %v4695
        %v4697 = vpop.f32.mrb[0].mxu0
        %4698 = vmatprep.mubr.f32.mxu0 0.0
        %4699 = vmatmul.mubr.f32.gmra.mrb[0].mxu0 %v4523
        %v4700 = vpop.f32.mrb[0].mxu0
        %v4701 = vadd.f32 0.0, %v4700
        %v4702 = vpop.f32.mrb[0].mxu0
        %4703 = vmatprep.mubr.f32.mxu0 0.0
        %4704 = vmatmul.mubr.f32.gmra.mrb[0].mxu0 %v4526
        %v4705 = vpop.f32.mrb[0].mxu0
        %v4706 = vadd.f32 0.0, %v4705
        %v4707 = vpop.f32.mrb[0].mxu0
        %4708 = vmatprep.mubr.f32.mxu0 0.0
        %4709 = vmatmul.mubr.f32.gmra.mrb[0].mxu0 %v4529
        %v4710 = vpop.f32.mrb[0].mxu0
        %v4711 = vadd.f32 0.0, %v4710
        %v4712 = vpop.f32.mrb[0].mxu0
        %4713 = vmatprep.mubr.f32.mxu0 0.0
        %4714 = vmatmul.mubr.f32.gmra.mrb[0].mxu0 %v4532
        %v4715 = vpop.f32.mrb[0].mxu0
        %v4716 = vadd.f32 0.0, %v4715
        %v4717 = vpop.f32.mrb[0].mxu0
        %4718 = vmatprep.mubr.f32.mxu0 0.0
        %4719 = vmatmul.mubr.f32.gmra.mrb[0].mxu0 %v4535
        %v4720 = vpop.f32.mrb[0].mxu0
        %v4721 = vadd.f32 0.0, %v4720
        %v4722 = vpop.f32.mrb[0].mxu0
        %4723 = vmatprep.mubr.f32.mxu0 0.0
        %4724 = vmatmul.mubr.f32.gmra.mrb[0].mxu0 %v4538
        %v4725 = vpop.f32.mrb[0].mxu0
        %v4726 = vadd.f32 0.0, %v4725
        %v4727 = vpop.f32.mrb[0].mxu0
        %4728 = vmatprep.mubr.f32.mxu0 0.0
        %4729 = vmatmul.mubr.f32.gmra.mrb[0].mxu0 %v4541
        %v4730 = vpop.f32.mrb[0].mxu0
        %v4731 = vadd.f32 0.0, %v4730
        %v4732 = vpop.f32.mrb[0].mxu0
        %4733 = vmatprep.mubr.f32.mxu0 0.0
        %4734 = vmatmul.mubr.f32.gmra.mrb[0].mxu0 %v4544
        %v4735 = vpop.f32.mrb[0].mxu0
        %v4736 = vadd.f32 0.0, %v4735
        %v4737 = vpop.f32.mrb[0].mxu0
        %4738 = vmatprep.mubr.f32.mxu0 0.0
        %4739 = vmatmul.mubr.f32.gmra.mrb[0].mxu0 %v4547
        %v4740 = vpop.f32.mrb[0].mxu0
        %v4741 = vadd.f32 0.0, %v4740
        %v4742 = vpop.f32.mrb[0].mxu0
        %4743 = vmatprep.mubr.f32.mxu0 0.0
        %4744 = vmatmul.mubr.f32.gmra.mrb[0].mxu0 %v4550
        %v4745 = vpop.f32.mrb[0].mxu0
        %v4746 = vadd.f32 0.0, %v4745
        %v4747 = vpop.f32.mrb[0].mxu0
        %4748 = vmatprep.mubr.f32.mxu0 0.0
        %4749 = vmatmul.mubr.f32.gmra.mrb[0].mxu0 %v4553
        %v4750 = vpop.f32.mrb[0].mxu0
        %v4751 = vadd.f32 0.0, %v4750
        %v4752 = vpop.f32.mrb[0].mxu0
        %4753 = vmatprep.mubr.f32.mxu0 0.0
        %4754 = vmatmul.mubr.f32.gmra.mrb[0].mxu0 %v4556
        %v4755 = vpop.f32.mrb[0].mxu0
        %v4756 = vadd.f32 0.0, %v4755
        %v4757 = vpop.f32.mrb[0].mxu0
        %4758 = vmatprep.mubr.f32.mxu0 0.0
        %4759 = vmatmul.mubr.f32.gmra.mrb[0].mxu0 %v4559
        %v4760 = vpop.f32.mrb[0].mxu0
        %v4761 = vadd.f32 0.0, %v4760
        %v4762 = vpop.f32.mrb[0].mxu0
        %4763 = vmatprep.mubr.f32.mxu0 0.0
        %4764 = vmatmul.mubr.f32.gmra.mrb[0].mxu0 %v4562
        %v4765 = vpop.f32.mrb[0].mxu0
        %v4766 = vadd.f32 0.0, %v4765
        %v4767 = vpop.f32.mrb[0].mxu0
        %4768 = vmatprep.mubr.f32.mxu0 0.0
        %4769 = vmatmul.mubr.f32.gmra.mrb[0].mxu0 %v4565
        %v4770 = vpop.f32.mrb[0].mxu0
        %v4771 = vadd.f32 0.0, %v4770
        %v4772 = vpop.f32.mrb[0].mxu0
        %4773 = vmatprep.mubr.f32.mxu0 0.0
        %4774 = vmatmul.mubr.f32.gmra.mrb[0].mxu0 %v4568
        %v4775 = vpop.f32.mrb[0].mxu0
        %v4776 = vadd.f32 0.0, %v4775
        %v4777 = vpop.f32.mrb[0].mxu0
        %4778 = vmatprep.mubr.f32.mxu0 0.0
        %4779 = vmatmul.mubr.f32.gmra.mrb[0].mxu0 %v4571
        %v4780 = vpop.f32.mrb[0].mxu0
        %v4781 = vadd.f32 0.0, %v4780
        %v4782 = vpop.f32.mrb[0].mxu0
        %4783 = vmatprep.mubr.f32.mxu0 0.0
        %4784 = vmatmul.mubr.f32.gmra.mrb[0].mxu0 %v4574
        %v4785 = vpop.f32.mrb[0].mxu0
        %v4786 = vadd.f32 0.0, %v4785
        %v4787 = vpop.f32.mrb[0].mxu0
        %4788 = vmatprep.mubr.f32.mxu0 0.0
        %4789 = vmatmul.mubr.f32.gmra.mrb[0].mxu0 %v4577
        %v4790 = vpop.f32.mrb[0].mxu0
        %v4791 = vadd.f32 0.0, %v4790
        %v4792 = vpop.f32.mrb[0].mxu0
        %4793 = vmatprep.mubr.f32.mxu0 0.0
        %4794 = vmatmul.mubr.f32.gmra.mrb[0].mxu0 %v4580
        %v4795 = vpop.f32.mrb[0].mxu0
        %v4796 = vadd.f32 0.0, %v4795
        %v4797 = vpop.f32.mrb[0].mxu0
        %4798 = vmatprep.mubr.f32.mxu0 0.0
        %4799 = vmatmul.mubr.f32.gmra.mrb[0].mxu0 %v4583
        %v4800 = vpop.f32.mrb[0].mxu0
        %v4801 = vadd.f32 0.0, %v4800
        %v4802 = vpop.f32.mrb[0].mxu0
        %4803 = vmatprep.mubr.f32.mxu0 0.0
        %4804 = vmatmul.mubr.f32.gmra.mrb[0].mxu0 %v4586
        %v4805 = vpop.f32.mrb[0].mxu0
        %v4806 = vadd.f32 0.0, %v4805
        %v4807 = vpop.f32.mrb[0].mxu0
        %4808 = vmatprep.mubr.f32.mxu0 0.0
        %4809 = vmatmul.mubr.f32.gmra.mrb[0].mxu0 %v4589
        %v4810 = vpop.f32.mrb[0].mxu0
        %v4811 = vadd.f32 0.0, %v4810
        %v4812 = vpop.f32.mrb[0].mxu0
        %4813 = vmatprep.mubr.f32.mxu0 0.0
        %4814 = vmatmul.mubr.f32.gmra.mrb[0].mxu0 %v4592
        %v4815 = vpop.f32.mrb[0].mxu0
        %v4816 = vadd.f32 0.0, %v4815
        %v4817 = vpop.f32.mrb[0].mxu0
        %4818 = vdwg.mxu0
        %v4819 = vadd.f32 %v342, %v4661
        %v4820 = vadd.f32 %v343, %v4666
        %v4821 = vadd.f32 %v344, %v4671
        %v4822 = vadd.f32 %v345, %v4676
        %v4823 = vadd.f32 %v346, %v4681
        %v4824 = vadd.f32 %v347, %v4686
        %v4825 = vadd.f32 %v348, %v4691
        %v4826 = vadd.f32 %v349, %v4696
        %v4827 = vadd.f32 %v350, %v4701
        %v4828 = vadd.f32 %v351, %v4706
        %v4829 = vadd.f32 %v352, %v4711
        %v4830 = vadd.f32 %v353, %v4716
        %v4831 = vadd.f32 %v354, %v4721
        %v4832 = vadd.f32 %v355, %v4726
        %v4833 = vadd.f32 %v356, %v4731
        %v4834 = vadd.f32 %v357, %v4736
        %v4835 = vadd.f32 %v358, %v4741
        %v4836 = vadd.f32 %v359, %v4746
        %v4837 = vadd.f32 %v360, %v4751
        %v4838 = vadd.f32 %v361, %v4756
        %v4839 = vadd.f32 %v362, %v4761
        %v4840 = vadd.f32 %v363, %v4766
        %v4841 = vadd.f32 %v364, %v4771
        %v4842 = vadd.f32 %v365, %v4776
        %v4843 = vadd.f32 %v366, %v4781
        %v4844 = vadd.f32 %v367, %v4786
        %v4845 = vadd.f32 %v368, %v4791
        %v4846 = vadd.f32 %v369, %v4796
        %v4847 = vadd.f32 %v370, %v4801
        %v4848 = vadd.f32 %v371, %v4806
        %v4849 = vadd.f32 %v372, %v4811
        %v4850 = vadd.f32 %v373, %v4816
        %v4851 = vxor.u32 %v4819, 2147483648
        %v4852 = vxor.u32 %v4820, 2147483648
        %v4853 = vxor.u32 %v4821, 2147483648
        %v4854 = vxor.u32 %v4822, 2147483648
        %v4855 = vxor.u32 %v4823, 2147483648
        %v4856 = vxor.u32 %v4824, 2147483648
        %v4857 = vxor.u32 %v4825, 2147483648
        %v4858 = vxor.u32 %v4826, 2147483648
        %v4859 = vxor.u32 %v4827, 2147483648
        %v4860 = vxor.u32 %v4828, 2147483648
        %v4861 = vxor.u32 %v4829, 2147483648
        %v4862 = vxor.u32 %v4830, 2147483648
        %v4863 = vxor.u32 %v4831, 2147483648
        %v4864 = vxor.u32 %v4832, 2147483648
        %v4865 = vxor.u32 %v4833, 2147483648
        %v4866 = vxor.u32 %v4834, 2147483648
        %v4867 = vxor.u32 %v4835, 2147483648
        %v4868 = vxor.u32 %v4836, 2147483648
        %v4869 = vxor.u32 %v4837, 2147483648
        %v4870 = vxor.u32 %v4838, 2147483648
        %v4871 = vxor.u32 %v4839, 2147483648
        %v4872 = vxor.u32 %v4840, 2147483648
        %v4873 = vxor.u32 %v4841, 2147483648
        %v4874 = vxor.u32 %v4842, 2147483648
        %v4875 = vxor.u32 %v4843, 2147483648
        %v4876 = vxor.u32 %v4844, 2147483648
        %v4877 = vxor.u32 %v4845, 2147483648
        %v4878 = vxor.u32 %v4846, 2147483648
        %v4879 = vxor.u32 %v4847, 2147483648
        %v4880 = vxor.u32 %v4848, 2147483648
        %v4881 = vxor.u32 %v4849, 2147483648
        %v4882 = vxor.u32 %v4850, 2147483648
        %v4883 = vmul.f32 %v4851, 1.442695
        %v4884 = vpow.pop %v4883
        %v4885 = vmul.f32 %v4852, 1.442695
        %v4886 = vpow.pop %v4885
        %v4887 = vmul.f32 %v4853, 1.442695
        %v4888 = vpow.pop %v4887
        %v4889 = vmul.f32 %v4854, 1.442695
        %v4890 = vpow.pop %v4889
        %v4891 = vmul.f32 %v4855, 1.442695
        %v4892 = vpow.pop %v4891
        %v4893 = vmul.f32 %v4856, 1.442695
        %v4894 = vpow.pop %v4893
        %v4895 = vmul.f32 %v4857, 1.442695
        %v4896 = vpow.pop %v4895
        %v4897 = vmul.f32 %v4858, 1.442695
        %v4898 = vpow.pop %v4897
        %v4899 = vmul.f32 %v4859, 1.442695
        %v4900 = vpow.pop %v4899
        %v4901 = vmul.f32 %v4860, 1.442695
        %v4902 = vpow.pop %v4901
        %v4903 = vmul.f32 %v4861, 1.442695
        %v4904 = vpow.pop %v4903
        %v4905 = vmul.f32 %v4862, 1.442695
        %v4906 = vpow.pop %v4905
        %v4907 = vmul.f32 %v4863, 1.442695
        %v4908 = vpow.pop %v4907
        %v4909 = vmul.f32 %v4864, 1.442695
        %v4910 = vpow.pop %v4909
        %v4911 = vmul.f32 %v4865, 1.442695
        %v4912 = vpow.pop %v4911
        %v4913 = vmul.f32 %v4866, 1.442695
        %v4914 = vpow.pop %v4913
        %v4915 = vmul.f32 %v4867, 1.442695
        %v4916 = vpow.pop %v4915
        %v4917 = vmul.f32 %v4868, 1.442695
        %v4918 = vpow.pop %v4917
        %v4919 = vmul.f32 %v4869, 1.442695
        %v4920 = vpow.pop %v4919
        %v4921 = vmul.f32 %v4870, 1.442695
        %v4922 = vpow.pop %v4921
        %v4923 = vmul.f32 %v4871, 1.442695
        %v4924 = vpow.pop %v4923
        %v4925 = vmul.f32 %v4872, 1.442695
        %v4926 = vpow.pop %v4925
        %v4927 = vmul.f32 %v4873, 1.442695
        %v4928 = vpow.pop %v4927
        %v4929 = vmul.f32 %v4874, 1.442695
        %v4930 = vpow.pop %v4929
        %v4931 = vmul.f32 %v4875, 1.442695
        %v4932 = vpow.pop %v4931
        %v4933 = vmul.f32 %v4876, 1.442695
        %v4934 = vpow.pop %v4933
        %v4935 = vmul.f32 %v4877, 1.442695
        %v4936 = vpow.pop %v4935
        %v4937 = vmul.f32 %v4878, 1.442695
        %v4938 = vpow.pop %v4937
        %v4939 = vmul.f32 %v4879, 1.442695
        %v4940 = vpow.pop %v4939
        %v4941 = vmul.f32 %v4880, 1.442695
        %v4942 = vpow.pop %v4941
        %v4943 = vmul.f32 %v4881, 1.442695
        %v4944 = vpow.pop %v4943
        %v4945 = vmul.f32 %v4882, 1.442695
        %v4946 = vpow.pop %v4945
        %v4947 = vadd.f32 %v4884, 1.0
        %v4948 = vadd.f32 %v4886, 1.0
        %v4949 = vadd.f32 %v4888, 1.0
        %v4950 = vadd.f32 %v4890, 1.0
        %v4951 = vadd.f32 %v4892, 1.0
        %v4952 = vadd.f32 %v4894, 1.0
        %v4953 = vadd.f32 %v4896, 1.0
        %v4954 = vadd.f32 %v4898, 1.0
        %v4955 = vadd.f32 %v4900, 1.0
        %v4956 = vadd.f32 %v4902, 1.0
        %v4957 = vadd.f32 %v4904, 1.0
        %v4958 = vadd.f32 %v4906, 1.0
        %v4959 = vadd.f32 %v4908, 1.0
        %v4960 = vadd.f32 %v4910, 1.0
        %v4961 = vadd.f32 %v4912, 1.0
        %v4962 = vadd.f32 %v4914, 1.0
        %v4963 = vadd.f32 %v4916, 1.0
        %v4964 = vadd.f32 %v4918, 1.0
        %v4965 = vadd.f32 %v4920, 1.0
        %v4966 = vadd.f32 %v4922, 1.0
        %v4967 = vadd.f32 %v4924, 1.0
        %v4968 = vadd.f32 %v4926, 1.0
        %v4969 = vadd.f32 %v4928, 1.0
        %v4970 = vadd.f32 %v4930, 1.0
        %v4971 = vadd.f32 %v4932, 1.0
        %v4972 = vadd.f32 %v4934, 1.0
        %v4973 = vadd.f32 %v4936, 1.0
        %v4974 = vadd.f32 %v4938, 1.0
        %v4975 = vadd.f32 %v4940, 1.0
        %v4976 = vadd.f32 %v4942, 1.0
        %v4977 = vadd.f32 %v4944, 1.0
        %v4978 = vadd.f32 %v4946, 1.0
        %v4979 = vrcp.pop %v4947
        %v4980 = vmul.f32 1.0, %v4979
        %v4981 = vrcp.pop %v4948
        %v4982 = vmul.f32 1.0, %v4981
        %v4983 = vrcp.pop %v4949
        %v4984 = vmul.f32 1.0, %v4983
        %v4985 = vrcp.pop %v4950
        %v4986 = vmul.f32 1.0, %v4985
        %v4987 = vrcp.pop %v4951
        %v4988 = vmul.f32 1.0, %v4987
        %v4989 = vrcp.pop %v4952
        %v4990 = vmul.f32 1.0, %v4989
        %v4991 = vrcp.pop %v4953
        %v4992 = vmul.f32 1.0, %v4991
        %v4993 = vrcp.pop %v4954
        %v4994 = vmul.f32 1.0, %v4993
        %v4995 = vrcp.pop %v4955
        %v4996 = vmul.f32 1.0, %v4995
        %v4997 = vrcp.pop %v4956
        %v4998 = vmul.f32 1.0, %v4997
        %v4999 = vrcp.pop %v4957
        %v5000 = vmul.f32 1.0, %v4999
        %v5001 = vrcp.pop %v4958
        %v5002 = vmul.f32 1.0, %v5001
        %v5003 = vrcp.pop %v4959
        %v5004 = vmul.f32 1.0, %v5003
        %v5005 = vrcp.pop %v4960
        %v5006 = vmul.f32 1.0, %v5005
        %v5007 = vrcp.pop %v4961
        %v5008 = vmul.f32 1.0, %v5007
        %v5009 = vrcp.pop %v4962
        %v5010 = vmul.f32 1.0, %v5009
        %v5011 = vrcp.pop %v4963
        %v5012 = vmul.f32 1.0, %v5011
        %v5013 = vrcp.pop %v4964
        %v5014 = vmul.f32 1.0, %v5013
        %v5015 = vrcp.pop %v4965
        %v5016 = vmul.f32 1.0, %v5015
        %v5017 = vrcp.pop %v4966
        %v5018 = vmul.f32 1.0, %v5017
        %v5019 = vrcp.pop %v4967
        %v5020 = vmul.f32 1.0, %v5019
        %v5021 = vrcp.pop %v4968
        %v5022 = vmul.f32 1.0, %v5021
        %v5023 = vrcp.pop %v4969
        %v5024 = vmul.f32 1.0, %v5023
        %v5025 = vrcp.pop %v4970
        %v5026 = vmul.f32 1.0, %v5025
        %v5027 = vrcp.pop %v4971
        %v5028 = vmul.f32 1.0, %v5027
        %v5029 = vrcp.pop %v4972
        %v5030 = vmul.f32 1.0, %v5029
        %v5031 = vrcp.pop %v4973
        %v5032 = vmul.f32 1.0, %v5031
        %v5033 = vrcp.pop %v4974
        %v5034 = vmul.f32 1.0, %v5033
        %v5035 = vrcp.pop %v4975
        %v5036 = vmul.f32 1.0, %v5035
        %v5037 = vrcp.pop %v4976
        %v5038 = vmul.f32 1.0, %v5037
        %v5039 = vrcp.pop %v4977
        %v5040 = vmul.f32 1.0, %v5039
        %v5041 = vrcp.pop %v4978
        %v5042 = vmul.f32 1.0, %v5041
        %v5043 = vmul.f32 %v4433, %v4980
        %v5044 = vmul.f32 %v4434, %v4982
        %v5045 = vmul.f32 %v4435, %v4984
        %v5046 = vmul.f32 %v4436, %v4986
        %v5047 = vmul.f32 %v4437, %v4988
        %v5048 = vmul.f32 %v4438, %v4990
        %v5049 = vmul.f32 %v4439, %v4992
        %v5050 = vmul.f32 %v4440, %v4994
        %v5051 = vmul.f32 %v4441, %v4996
        %v5052 = vmul.f32 %v4442, %v4998
        %v5053 = vmul.f32 %v4443, %v5000
        %v5054 = vmul.f32 %v4444, %v5002
        %v5055 = vmul.f32 %v4445, %v5004
        %v5056 = vmul.f32 %v4446, %v5006
        %v5057 = vmul.f32 %v4447, %v5008
        %v5058 = vmul.f32 %v4448, %v5010
        %v5059 = vmul.f32 %v4449, %v5012
        %v5060 = vmul.f32 %v4450, %v5014
        %v5061 = vmul.f32 %v4451, %v5016
        %v5062 = vmul.f32 %v4452, %v5018
        %v5063 = vmul.f32 %v4453, %v5020
        %v5064 = vmul.f32 %v4454, %v5022
        %v5065 = vmul.f32 %v4455, %v5024
        %v5066 = vmul.f32 %v4456, %v5026
        %v5067 = vmul.f32 %v4457, %v5028
        %v5068 = vmul.f32 %v4458, %v5030
        %v5069 = vmul.f32 %v4459, %v5032
        %v5070 = vmul.f32 %v4460, %v5034
        %v5071 = vmul.f32 %v4461, %v5036
        %v5072 = vmul.f32 %v4462, %v5038
        %v5073 = vmul.f32 %v4463, %v5040
        %v5074 = vmul.f32 %v4464, %v5042
        %5075 = vst [vmem:[#allocation3] sm:$0xff] 0.0
        %5076 = vst [vmem:[#allocation3 + $0x8] sm:$0xff] 0.0
        %5077 = vst [vmem:[#allocation3 + $0x10] sm:$0x3] 0.0
        %s5078 = scalar_lea.vmem [#allocation3], 408
        %5079 = vst [vmem:[%s5078] sm:$0xff] 0.0
        %5080 = vst [vmem:[%s5078 + $0x8] sm:$0xff] 0.0
        %5081 = vst [vmem:[%s5078 + $0x10] sm:$0x3] 0.0
        %s5082 = scalar_lea.vmem [#allocation3], 24
        %5083 = vst [vmem:[%s5082] sm:$0x1] 0.0
        %5084 = vst [vmem:[%s5082 + $0x18] sm:$0x1] 0.0
        %5085 = vst [vmem:[%s5082 + $0x30] sm:$0x1] 0.0
        %5086 = vst [vmem:[%s5082 + $0x48] sm:$0x1] 0.0
        %5087 = vst [vmem:[%s5082 + $0x60] sm:$0x1] 0.0
        %5088 = vst [vmem:[%s5082 + $0x78] sm:$0x1] 0.0
        %5089 = vst [vmem:[%s5082 + $0x90] sm:$0x1] 0.0
        %5090 = vst [vmem:[%s5082 + $0xa8] sm:$0x1] 0.0
        %5091 = vst [vmem:[%s5082 + $0xc0] sm:$0x1] 0.0
        %5092 = vst [vmem:[%s5082 + $0xd8] sm:$0x1] 0.0
        %5093 = vst [vmem:[%s5082 + $0xf0] sm:$0x1] 0.0
        %5094 = vst [vmem:[%s5082 + $0x108] sm:$0x1] 0.0
        %5095 = vst [vmem:[%s5082 + $0x120] sm:$0x1] 0.0
        %5096 = vst [vmem:[%s5082 + $0x138] sm:$0x1] 0.0
        %5097 = vst [vmem:[%s5082 + $0x150] sm:$0x1] 0.0
        %5098 = vst [vmem:[%s5082 + $0x168] sm:$0x1] 0.0
        %5099 = vst [vmem:[%s5082 + $0x11] sm:$0x1] 0.0
        %5100 = vst [vmem:[%s5082 + $0x29] sm:$0x1] 0.0
        %5101 = vst [vmem:[%s5082 + $0x41] sm:$0x1] 0.0
        %5102 = vst [vmem:[%s5082 + $0x59] sm:$0x1] 0.0
        %5103 = vst [vmem:[%s5082 + $0x71] sm:$0x1] 0.0
        %5104 = vst [vmem:[%s5082 + $0x89] sm:$0x1] 0.0
        %5105 = vst [vmem:[%s5082 + $0xa1] sm:$0x1] 0.0
        %5106 = vst [vmem:[%s5082 + $0xb9] sm:$0x1] 0.0
        %5107 = vst [vmem:[%s5082 + $0xd1] sm:$0x1] 0.0
        %5108 = vst [vmem:[%s5082 + $0xe9] sm:$0x1] 0.0
        %5109 = vst [vmem:[%s5082 + $0x101] sm:$0x1] 0.0
        %5110 = vst [vmem:[%s5082 + $0x119] sm:$0x1] 0.0
        %5111 = vst [vmem:[%s5082 + $0x131] sm:$0x1] 0.0
        %5112 = vst [vmem:[%s5082 + $0x149] sm:$0x1] 0.0
        %5113 = vst [vmem:[%s5082 + $0x161] sm:$0x1] 0.0
        %5114 = vst [vmem:[%s5082 + $0x179] sm:$0x1] 0.0
        %5115 = vst [vmem:[%s5082 + $0x1] sm:$0xff] %v5043
        %5116 = vst [vmem:[%s5082 + $0x9] sm:$0xff] %v5044
        %5117 = vst [vmem:[%s5082 + $0x19] sm:$0xff] %v5045
        %5118 = vst [vmem:[%s5082 + $0x21] sm:$0xff] %v5046
        %5119 = vst [vmem:[%s5082 + $0x31] sm:$0xff] %v5047
        %5120 = vst [vmem:[%s5082 + $0x39] sm:$0xff] %v5048
        %5121 = vst [vmem:[%s5082 + $0x49] sm:$0xff] %v5049
        %5122 = vst [vmem:[%s5082 + $0x51] sm:$0xff] %v5050
        %5123 = vst [vmem:[%s5082 + $0x61] sm:$0xff] %v5051
        %5124 = vst [vmem:[%s5082 + $0x69] sm:$0xff] %v5052
        %5125 = vst [vmem:[%s5082 + $0x79] sm:$0xff] %v5053
        %5126 = vst [vmem:[%s5082 + $0x81] sm:$0xff] %v5054
        %5127 = vst [vmem:[%s5082 + $0x91] sm:$0xff] %v5055
        %5128 = vst [vmem:[%s5082 + $0x99] sm:$0xff] %v5056
        %5129 = vst [vmem:[%s5082 + $0xa9] sm:$0xff] %v5057
        %5130 = vst [vmem:[%s5082 + $0xb1] sm:$0xff] %v5058
        %5131 = vst [vmem:[%s5082 + $0xc1] sm:$0xff] %v5059
        %5132 = vst [vmem:[%s5082 + $0xc9] sm:$0xff] %v5060
        %5133 = vst [vmem:[%s5082 + $0xd9] sm:$0xff] %v5061
        %5134 = vst [vmem:[%s5082 + $0xe1] sm:$0xff] %v5062
        %5135 = vst [vmem:[%s5082 + $0xf1] sm:$0xff] %v5063
        %5136 = vst [vmem:[%s5082 + $0xf9] sm:$0xff] %v5064
        %5137 = vst [vmem:[%s5082 + $0x109] sm:$0xff] %v5065
        %5138 = vst [vmem:[%s5082 + $0x111] sm:$0xff] %v5066
        %5139 = vst [vmem:[%s5082 + $0x121] sm:$0xff] %v5067
        %5140 = vst [vmem:[%s5082 + $0x129] sm:$0xff] %v5068
        %5141 = vst [vmem:[%s5082 + $0x139] sm:$0xff] %v5069
        %5142 = vst [vmem:[%s5082 + $0x141] sm:$0xff] %v5070
        %5143 = vst [vmem:[%s5082 + $0x151] sm:$0xff] %v5071
        %5144 = vst [vmem:[%s5082 + $0x159] sm:$0xff] %v5072
        %5145 = vst [vmem:[%s5082 + $0x169] sm:$0xff] %v5073
        %5146 = vst [vmem:[%s5082 + $0x171] sm:$0xff] %v5074
        %v5147 = vld [vmem:[#allocation3] sm:$0xff]
        %v5148 = vld [vmem:[#allocation3 + $0x8] sm:$0xff]
        %v5149 = vld [vmem:[#allocation3 + $0x18] sm:$0xff]
        %v5150 = vld [vmem:[#allocation3 + $0x20] sm:$0xff]
        %v5151 = vld [vmem:[#allocation3 + $0x30] sm:$0xff]
        %v5152 = vld [vmem:[#allocation3 + $0x38] sm:$0xff]
        %v5153 = vld [vmem:[#allocation3 + $0x48] sm:$0xff]
        %v5154 = vld [vmem:[#allocation3 + $0x50] sm:$0xff]
        %v5155 = vld [vmem:[#allocation3 + $0x60] sm:$0xff]
        %v5156 = vld [vmem:[#allocation3 + $0x68] sm:$0xff]
        %v5157 = vld [vmem:[#allocation3 + $0x78] sm:$0xff]
        %v5158 = vld [vmem:[#allocation3 + $0x80] sm:$0xff]
        %v5159 = vld [vmem:[#allocation3 + $0x90] sm:$0xff]
        %v5160 = vld [vmem:[#allocation3 + $0x98] sm:$0xff]
        %v5161 = vld [vmem:[#allocation3 + $0xa8] sm:$0xff]
        %v5162 = vld [vmem:[#allocation3 + $0xb0] sm:$0xff]
        %v5163 = vld [vmem:[#allocation3 + $0xc0] sm:$0xff]
        %v5164 = vld [vmem:[#allocation3 + $0xc8] sm:$0xff]
        %v5165 = vld [vmem:[#allocation3 + $0xd8] sm:$0xff]
        %v5166 = vld [vmem:[#allocation3 + $0xe0] sm:$0xff]
        %v5167 = vld [vmem:[#allocation3 + $0xf0] sm:$0xff]
        %v5168 = vld [vmem:[#allocation3 + $0xf8] sm:$0xff]
        %v5169 = vld [vmem:[#allocation3 + $0x108] sm:$0xff]
        %v5170 = vld [vmem:[#allocation3 + $0x110] sm:$0xff]
        %v5171 = vld [vmem:[#allocation3 + $0x120] sm:$0xff]
        %v5172 = vld [vmem:[#allocation3 + $0x128] sm:$0xff]
        %v5173 = vld [vmem:[#allocation3 + $0x138] sm:$0xff]
        %v5174 = vld [vmem:[#allocation3 + $0x140] sm:$0xff]
        %v5175 = vld [vmem:[#allocation3 + $0x150] sm:$0xff]
        %v5176 = vld [vmem:[#allocation3 + $0x158] sm:$0xff]
        %v5177 = vld [vmem:[#allocation3 + $0x168] sm:$0xff]
        %v5178 = vld [vmem:[#allocation3 + $0x170] sm:$0xff]
        %v5179 = vld [vmem:[#allocation10] sm:$0xff]
        %v5180 = vld [vmem:[#allocation10 + $0x8] sm:$0xff]
        %v5181 = vld [vmem:[#allocation10 + $0x10] sm:$0xff]
        %v5182 = vld [vmem:[#allocation10 + $0x18] sm:$0xff]
        %v5183 = vld [vmem:[#allocation10 + $0x20] sm:$0xff]
        %v5184 = vld [vmem:[#allocation10 + $0x28] sm:$0xff]
        %v5185 = vld [vmem:[#allocation10 + $0x30] sm:$0xff]
        %v5186 = vld [vmem:[#allocation10 + $0x38] sm:$0xff]
        %v5187 = vld [vmem:[#allocation10 + $0x40] sm:$0xff]
        %v5188 = vld [vmem:[#allocation10 + $0x48] sm:$0xff]
        %v5189 = vld [vmem:[#allocation10 + $0x50] sm:$0xff]
        %v5190 = vld [vmem:[#allocation10 + $0x58] sm:$0xff]
        %v5191 = vld [vmem:[#allocation10 + $0x60] sm:$0xff]
        %v5192 = vld [vmem:[#allocation10 + $0x68] sm:$0xff]
        %v5193 = vld [vmem:[#allocation10 + $0x70] sm:$0xff]
        %v5194 = vld [vmem:[#allocation10 + $0x78] sm:$0xff]
        %v5195 = vld [vmem:[#allocation3 + $0x1] sm:$0xff]
        %v5196 = vld [vmem:[#allocation3 + $0x9] sm:$0xff]
        %v5197 = vld [vmem:[#allocation3 + $0x19] sm:$0xff]
        %v5198 = vld [vmem:[#allocation3 + $0x21] sm:$0xff]
        %v5199 = vld [vmem:[#allocation3 + $0x31] sm:$0xff]
        %v5200 = vld [vmem:[#allocation3 + $0x39] sm:$0xff]
        %v5201 = vld [vmem:[#allocation3 + $0x49] sm:$0xff]
        %v5202 = vld [vmem:[#allocation3 + $0x51] sm:$0xff]
        %v5203 = vld [vmem:[#allocation3 + $0x61] sm:$0xff]
        %v5204 = vld [vmem:[#allocation3 + $0x69] sm:$0xff]
        %v5205 = vld [vmem:[#allocation3 + $0x79] sm:$0xff]
        %v5206 = vld [vmem:[#allocation3 + $0x81] sm:$0xff]
        %v5207 = vld [vmem:[#allocation3 + $0x91] sm:$0xff]
        %v5208 = vld [vmem:[#allocation3 + $0x99] sm:$0xff]
        %v5209 = vld [vmem:[#allocation3 + $0xa9] sm:$0xff]
        %v5210 = vld [vmem:[#allocation3 + $0xb1] sm:$0xff]
        %v5211 = vld [vmem:[#allocation3 + $0xc1] sm:$0xff]
        %v5212 = vld [vmem:[#allocation3 + $0xc9] sm:$0xff]
        %v5213 = vld [vmem:[#allocation3 + $0xd9] sm:$0xff]
        %v5214 = vld [vmem:[#allocation3 + $0xe1] sm:$0xff]
        %v5215 = vld [vmem:[#allocation3 + $0xf1] sm:$0xff]
        %v5216 = vld [vmem:[#allocation3 + $0xf9] sm:$0xff]
        %v5217 = vld [vmem:[#allocation3 + $0x109] sm:$0xff]
        %v5218 = vld [vmem:[#allocation3 + $0x111] sm:$0xff]
        %v5219 = vld [vmem:[#allocation3 + $0x121] sm:$0xff]
        %v5220 = vld [vmem:[#allocation3 + $0x129] sm:$0xff]
        %v5221 = vld [vmem:[#allocation3 + $0x139] sm:$0xff]
        %v5222 = vld [vmem:[#allocation3 + $0x141] sm:$0xff]
        %v5223 = vld [vmem:[#allocation3 + $0x151] sm:$0xff]
        %v5224 = vld [vmem:[#allocation3 + $0x159] sm:$0xff]
        %v5225 = vld [vmem:[#allocation3 + $0x169] sm:$0xff]
        %v5226 = vld [vmem:[#allocation3 + $0x171] sm:$0xff]
        %s5227 = scalar_lea.vmem [#allocation10], 128
        %v5228 = vld [vmem:[%s5227] sm:$0xff]
        %v5229 = vld [vmem:[%s5227 + $0x8] sm:$0xff]
        %v5230 = vld [vmem:[%s5227 + $0x10] sm:$0xff]
        %v5231 = vld [vmem:[%s5227 + $0x18] sm:$0xff]
        %v5232 = vld [vmem:[%s5227 + $0x20] sm:$0xff]
        %v5233 = vld [vmem:[%s5227 + $0x28] sm:$0xff]
        %v5234 = vld [vmem:[%s5227 + $0x30] sm:$0xff]
        %v5235 = vld [vmem:[%s5227 + $0x38] sm:$0xff]
        %v5236 = vld [vmem:[%s5227 + $0x40] sm:$0xff]
        %v5237 = vld [vmem:[%s5227 + $0x48] sm:$0xff]
        %v5238 = vld [vmem:[%s5227 + $0x50] sm:$0xff]
        %v5239 = vld [vmem:[%s5227 + $0x58] sm:$0xff]
        %v5240 = vld [vmem:[%s5227 + $0x60] sm:$0xff]
        %v5241 = vld [vmem:[%s5227 + $0x68] sm:$0xff]
        %v5242 = vld [vmem:[%s5227 + $0x70] sm:$0xff]
        %v5243 = vld [vmem:[%s5227 + $0x78] sm:$0xff]
        %5244 = vmatprep.subr.mxu0 0.0
        %5245 = vmatpush1.msra.mxu0 %v5228
        %5246 = vmatprep.subr.mxu0 0.0
        %5247 = vmatpush1.msra.mxu0 %v5229
        %5248 = vmatprep.subr.mxu0 0.0
        %5249 = vmatpush1.msra.mxu0 %v5230
        %5250 = vmatprep.subr.mxu0 0.0
        %5251 = vmatpush1.msra.mxu0 %v5231
        %5252 = vmatprep.subr.mxu0 0.0
        %5253 = vmatpush1.msra.mxu0 %v5232
        %5254 = vmatprep.subr.mxu0 0.0
        %5255 = vmatpush1.msra.mxu0 %v5233
        %5256 = vmatprep.subr.mxu0 0.0
        %5257 = vmatpush1.msra.mxu0 %v5234
        %5258 = vmatprep.subr.mxu0 0.0
        %5259 = vmatpush1.msra.mxu0 %v5235
        %5260 = vmatprep.subr.mxu0 0.0
        %5261 = vmatpush1.msra.mxu0 %v5236
        %5262 = vmatprep.subr.mxu0 0.0
        %5263 = vmatpush1.msra.mxu0 %v5237
        %5264 = vmatprep.subr.mxu0 0.0
        %5265 = vmatpush1.msra.mxu0 %v5238
        %5266 = vmatprep.subr.mxu0 0.0
        %5267 = vmatpush1.msra.mxu0 %v5239
        %5268 = vmatprep.subr.mxu0 0.0
        %5269 = vmatpush1.msra.mxu0 %v5240
        %5270 = vmatprep.subr.mxu0 0.0
        %5271 = vmatpush1.msra.mxu0 %v5241
        %5272 = vmatprep.subr.mxu0 0.0
        %5273 = vmatpush1.msra.mxu0 %v5242
        %5274 = vmatprep.subr.mxu0 0.0
        %5275 = vmatpush1.msra.mxu0 %v5243
        %5276 = vmatprep.subr.mxu0 0.0
        %5277 = vmatpush1.msra.mxu0 0.0
        %5278 = vmatprep.subr.mxu0 0.0
        %5279 = vmatpush1.msra.mxu0 0.0
        %5280 = vmatprep.subr.mxu0 0.0
        %5281 = vmatpush1.msra.mxu0 0.0
        %5282 = vmatprep.subr.mxu0 0.0
        %5283 = vmatpush1.msra.mxu0 0.0
        %5284 = vmatprep.subr.mxu0 0.0
        %5285 = vmatpush1.msra.mxu0 0.0
        %5286 = vmatprep.subr.mxu0 0.0
        %5287 = vmatpush1.msra.mxu0 0.0
        %5288 = vmatprep.subr.mxu0 0.0
        %5289 = vmatpush1.msra.mxu0 0.0
        %5290 = vmatprep.subr.mxu0 0.0
        %5291 = vmatpush1.msra.mxu0 0.0
        %5292 = vmatprep.subr.mxu0 0.0
        %5293 = vmatpush1.msra.mxu0 0.0
        %5294 = vmatprep.subr.mxu0 0.0
        %5295 = vmatpush1.msra.mxu0 0.0
        %5296 = vmatprep.subr.mxu0 0.0
        %5297 = vmatpush1.msra.mxu0 0.0
        %5298 = vmatprep.subr.mxu0 0.0
        %5299 = vmatpush1.msra.mxu0 0.0
        %5300 = vmatprep.subr.mxu0 0.0
        %5301 = vmatpush1.msra.mxu0 0.0
        %5302 = vmatprep.subr.mxu0 0.0
        %5303 = vmatpush1.msra.mxu0 0.0
        %5304 = vmatprep.subr.mxu0 0.0
        %5305 = vmatpush1.msra.mxu0 0.0
        %5306 = vmatprep.subr.mxu0 0.0
        %5307 = vmatpush1.msra.mxu0 0.0
        %5308 = vmatprep.mubr.f32.mxu0 0.0
        %5309 = vmatmul.mubr.f32.gmra.mrb[0].mxu0 %v5195
        %v5310 = vpop.f32.mrb[0].mxu0
        %v5311 = vadd.f32 0.0, %v5310
        %v5312 = vpop.f32.mrb[0].mxu0
        %5313 = vmatprep.mubr.f32.mxu0 0.0
        %5314 = vmatmul.mubr.f32.gmra.mrb[0].mxu0 %v5196
        %v5315 = vpop.f32.mrb[0].mxu0
        %v5316 = vadd.f32 0.0, %v5315
        %v5317 = vpop.f32.mrb[0].mxu0
        %5318 = vmatprep.mubr.f32.mxu0 0.0
        %5319 = vmatmul.mubr.f32.gmra.mrb[0].mxu0 %v5197
        %v5320 = vpop.f32.mrb[0].mxu0
        %v5321 = vadd.f32 0.0, %v5320
        %v5322 = vpop.f32.mrb[0].mxu0
        %5323 = vmatprep.mubr.f32.mxu0 0.0
        %5324 = vmatmul.mubr.f32.gmra.mrb[0].mxu0 %v5198
        %v5325 = vpop.f32.mrb[0].mxu0
        %v5326 = vadd.f32 0.0, %v5325
        %v5327 = vpop.f32.mrb[0].mxu0
        %5328 = vmatprep.mubr.f32.mxu0 0.0
        %5329 = vmatmul.mubr.f32.gmra.mrb[0].mxu0 %v5199
        %v5330 = vpop.f32.mrb[0].mxu0
        %v5331 = vadd.f32 0.0, %v5330
        %v5332 = vpop.f32.mrb[0].mxu0
        %5333 = vmatprep.mubr.f32.mxu0 0.0
        %5334 = vmatmul.mubr.f32.gmra.mrb[0].mxu0 %v5200
        %v5335 = vpop.f32.mrb[0].mxu0
        %v5336 = vadd.f32 0.0, %v5335
        %v5337 = vpop.f32.mrb[0].mxu0
        %5338 = vmatprep.mubr.f32.mxu0 0.0
        %5339 = vmatmul.mubr.f32.gmra.mrb[0].mxu0 %v5201
        %v5340 = vpop.f32.mrb[0].mxu0
        %v5341 = vadd.f32 0.0, %v5340
        %v5342 = vpop.f32.mrb[0].mxu0
        %5343 = vmatprep.mubr.f32.mxu0 0.0
        %5344 = vmatmul.mubr.f32.gmra.mrb[0].mxu0 %v5202
        %v5345 = vpop.f32.mrb[0].mxu0
        %v5346 = vadd.f32 0.0, %v5345
        %v5347 = vpop.f32.mrb[0].mxu0
        %5348 = vmatprep.mubr.f32.mxu0 0.0
        %5349 = vmatmul.mubr.f32.gmra.mrb[0].mxu0 %v5203
        %v5350 = vpop.f32.mrb[0].mxu0
        %v5351 = vadd.f32 0.0, %v5350
        %v5352 = vpop.f32.mrb[0].mxu0
        %5353 = vmatprep.mubr.f32.mxu0 0.0
        %5354 = vmatmul.mubr.f32.gmra.mrb[0].mxu0 %v5204
        %v5355 = vpop.f32.mrb[0].mxu0
        %v5356 = vadd.f32 0.0, %v5355
        %v5357 = vpop.f32.mrb[0].mxu0
        %5358 = vmatprep.mubr.f32.mxu0 0.0
        %5359 = vmatmul.mubr.f32.gmra.mrb[0].mxu0 %v5205
        %v5360 = vpop.f32.mrb[0].mxu0
        %v5361 = vadd.f32 0.0, %v5360
        %v5362 = vpop.f32.mrb[0].mxu0
        %5363 = vmatprep.mubr.f32.mxu0 0.0
        %5364 = vmatmul.mubr.f32.gmra.mrb[0].mxu0 %v5206
        %v5365 = vpop.f32.mrb[0].mxu0
        %v5366 = vadd.f32 0.0, %v5365
        %v5367 = vpop.f32.mrb[0].mxu0
        %5368 = vmatprep.mubr.f32.mxu0 0.0
        %5369 = vmatmul.mubr.f32.gmra.mrb[0].mxu0 %v5207
        %v5370 = vpop.f32.mrb[0].mxu0
        %v5371 = vadd.f32 0.0, %v5370
        %v5372 = vpop.f32.mrb[0].mxu0
        %5373 = vmatprep.mubr.f32.mxu0 0.0
        %5374 = vmatmul.mubr.f32.gmra.mrb[0].mxu0 %v5208
        %v5375 = vpop.f32.mrb[0].mxu0
        %v5376 = vadd.f32 0.0, %v5375
        %v5377 = vpop.f32.mrb[0].mxu0
        %5378 = vmatprep.mubr.f32.mxu0 0.0
        %5379 = vmatmul.mubr.f32.gmra.mrb[0].mxu0 %v5209
        %v5380 = vpop.f32.mrb[0].mxu0
        %v5381 = vadd.f32 0.0, %v5380
        %v5382 = vpop.f32.mrb[0].mxu0
        %5383 = vmatprep.mubr.f32.mxu0 0.0
        %5384 = vmatmul.mubr.f32.gmra.mrb[0].mxu0 %v5210
        %v5385 = vpop.f32.mrb[0].mxu0
        %v5386 = vadd.f32 0.0, %v5385
        %v5387 = vpop.f32.mrb[0].mxu0
        %5388 = vmatprep.mubr.f32.mxu0 0.0
        %5389 = vmatmul.mubr.f32.gmra.mrb[0].mxu0 %v5211
        %v5390 = vpop.f32.mrb[0].mxu0
        %v5391 = vadd.f32 0.0, %v5390
        %v5392 = vpop.f32.mrb[0].mxu0
        %5393 = vmatprep.mubr.f32.mxu0 0.0
        %5394 = vmatmul.mubr.f32.gmra.mrb[0].mxu0 %v5212
        %v5395 = vpop.f32.mrb[0].mxu0
        %v5396 = vadd.f32 0.0, %v5395
        %v5397 = vpop.f32.mrb[0].mxu0
        %5398 = vmatprep.mubr.f32.mxu0 0.0
        %5399 = vmatmul.mubr.f32.gmra.mrb[0].mxu0 %v5213
        %v5400 = vpop.f32.mrb[0].mxu0
        %v5401 = vadd.f32 0.0, %v5400
        %v5402 = vpop.f32.mrb[0].mxu0
        %5403 = vmatprep.mubr.f32.mxu0 0.0
        %5404 = vmatmul.mubr.f32.gmra.mrb[0].mxu0 %v5214
        %v5405 = vpop.f32.mrb[0].mxu0
        %v5406 = vadd.f32 0.0, %v5405
        %v5407 = vpop.f32.mrb[0].mxu0
        %5408 = vmatprep.mubr.f32.mxu0 0.0
        %5409 = vmatmul.mubr.f32.gmra.mrb[0].mxu0 %v5215
        %v5410 = vpop.f32.mrb[0].mxu0
        %v5411 = vadd.f32 0.0, %v5410
        %v5412 = vpop.f32.mrb[0].mxu0
        %5413 = vmatprep.mubr.f32.mxu0 0.0
        %5414 = vmatmul.mubr.f32.gmra.mrb[0].mxu0 %v5216
        %v5415 = vpop.f32.mrb[0].mxu0
        %v5416 = vadd.f32 0.0, %v5415
        %v5417 = vpop.f32.mrb[0].mxu0
        %5418 = vmatprep.mubr.f32.mxu0 0.0
        %5419 = vmatmul.mubr.f32.gmra.mrb[0].mxu0 %v5217
        %v5420 = vpop.f32.mrb[0].mxu0
        %v5421 = vadd.f32 0.0, %v5420
        %v5422 = vpop.f32.mrb[0].mxu0
        %5423 = vmatprep.mubr.f32.mxu0 0.0
        %5424 = vmatmul.mubr.f32.gmra.mrb[0].mxu0 %v5218
        %v5425 = vpop.f32.mrb[0].mxu0
        %v5426 = vadd.f32 0.0, %v5425
        %v5427 = vpop.f32.mrb[0].mxu0
        %5428 = vmatprep.mubr.f32.mxu0 0.0
        %5429 = vmatmul.mubr.f32.gmra.mrb[0].mxu0 %v5219
        %v5430 = vpop.f32.mrb[0].mxu0
        %v5431 = vadd.f32 0.0, %v5430
        %v5432 = vpop.f32.mrb[0].mxu0
        %5433 = vmatprep.mubr.f32.mxu0 0.0
        %5434 = vmatmul.mubr.f32.gmra.mrb[0].mxu0 %v5220
        %v5435 = vpop.f32.mrb[0].mxu0
        %v5436 = vadd.f32 0.0, %v5435
        %v5437 = vpop.f32.mrb[0].mxu0
        %5438 = vmatprep.mubr.f32.mxu0 0.0
        %5439 = vmatmul.mubr.f32.gmra.mrb[0].mxu0 %v5221
        %v5440 = vpop.f32.mrb[0].mxu0
        %v5441 = vadd.f32 0.0, %v5440
        %v5442 = vpop.f32.mrb[0].mxu0
        %5443 = vmatprep.mubr.f32.mxu0 0.0
        %5444 = vmatmul.mubr.f32.gmra.mrb[0].mxu0 %v5222
        %v5445 = vpop.f32.mrb[0].mxu0
        %v5446 = vadd.f32 0.0, %v5445
        %v5447 = vpop.f32.mrb[0].mxu0
        %5448 = vmatprep.mubr.f32.mxu0 0.0
        %5449 = vmatmul.mubr.f32.gmra.mrb[0].mxu0 %v5223
        %v5450 = vpop.f32.mrb[0].mxu0
        %v5451 = vadd.f32 0.0, %v5450
        %v5452 = vpop.f32.mrb[0].mxu0
        %5453 = vmatprep.mubr.f32.mxu0 0.0
        %5454 = vmatmul.mubr.f32.gmra.mrb[0].mxu0 %v5224
        %v5455 = vpop.f32.mrb[0].mxu0
        %v5456 = vadd.f32 0.0, %v5455
        %v5457 = vpop.f32.mrb[0].mxu0
        %5458 = vmatprep.mubr.f32.mxu0 0.0
        %5459 = vmatmul.mubr.f32.gmra.mrb[0].mxu0 %v5225
        %v5460 = vpop.f32.mrb[0].mxu0
        %v5461 = vadd.f32 0.0, %v5460
        %v5462 = vpop.f32.mrb[0].mxu0
        %5463 = vmatprep.mubr.f32.mxu0 0.0
        %5464 = vmatmul.mubr.f32.gmra.mrb[0].mxu0 %v5226
        %v5465 = vpop.f32.mrb[0].mxu0
        %v5466 = vadd.f32 0.0, %v5465
        %v5467 = vpop.f32.mrb[0].mxu0
        %5468 = vdwg.mxu0
        %5469 = vmatprep.subr.mxu0 0.0
        %5470 = vmatpush1.msra.mxu0 %v5179
        %5471 = vmatprep.subr.mxu0 0.0
        %5472 = vmatpush1.msra.mxu0 %v5180
        %5473 = vmatprep.subr.mxu0 0.0
        %5474 = vmatpush1.msra.mxu0 %v5181
        %5475 = vmatprep.subr.mxu0 0.0
        %5476 = vmatpush1.msra.mxu0 %v5182
        %5477 = vmatprep.subr.mxu0 0.0
        %5478 = vmatpush1.msra.mxu0 %v5183
        %5479 = vmatprep.subr.mxu0 0.0
        %5480 = vmatpush1.msra.mxu0 %v5184
        %5481 = vmatprep.subr.mxu0 0.0
        %5482 = vmatpush1.msra.mxu0 %v5185
        %5483 = vmatprep.subr.mxu0 0.0
        %5484 = vmatpush1.msra.mxu0 %v5186
        %5485 = vmatprep.subr.mxu0 0.0
        %5486 = vmatpush1.msra.mxu0 %v5187
        %5487 = vmatprep.subr.mxu0 0.0
        %5488 = vmatpush1.msra.mxu0 %v5188
        %5489 = vmatprep.subr.mxu0 0.0
        %5490 = vmatpush1.msra.mxu0 %v5189
        %5491 = vmatprep.subr.mxu0 0.0
        %5492 = vmatpush1.msra.mxu0 %v5190
        %5493 = vmatprep.subr.mxu0 0.0
        %5494 = vmatpush1.msra.mxu0 %v5191
        %5495 = vmatprep.subr.mxu0 0.0
        %5496 = vmatpush1.msra.mxu0 %v5192
        %5497 = vmatprep.subr.mxu0 0.0
        %5498 = vmatpush1.msra.mxu0 %v5193
        %5499 = vmatprep.subr.mxu0 0.0
        %5500 = vmatpush1.msra.mxu0 %v5194
        %5501 = vmatprep.subr.mxu0 0.0
        %5502 = vmatpush1.msra.mxu0 0.0
        %5503 = vmatprep.subr.mxu0 0.0
        %5504 = vmatpush1.msra.mxu0 0.0
        %5505 = vmatprep.subr.mxu0 0.0
        %5506 = vmatpush1.msra.mxu0 0.0
        %5507 = vmatprep.subr.mxu0 0.0
        %5508 = vmatpush1.msra.mxu0 0.0
        %5509 = vmatprep.subr.mxu0 0.0
        %5510 = vmatpush1.msra.mxu0 0.0
        %5511 = vmatprep.subr.mxu0 0.0
        %5512 = vmatpush1.msra.mxu0 0.0
        %5513 = vmatprep.subr.mxu0 0.0
        %5514 = vmatpush1.msra.mxu0 0.0
        %5515 = vmatprep.subr.mxu0 0.0
        %5516 = vmatpush1.msra.mxu0 0.0
        %5517 = vmatprep.subr.mxu0 0.0
        %5518 = vmatpush1.msra.mxu0 0.0
        %5519 = vmatprep.subr.mxu0 0.0
        %5520 = vmatpush1.msra.mxu0 0.0
        %5521 = vmatprep.subr.mxu0 0.0
        %5522 = vmatpush1.msra.mxu0 0.0
        %5523 = vmatprep.subr.mxu0 0.0
        %5524 = vmatpush1.msra.mxu0 0.0
        %5525 = vmatprep.subr.mxu0 0.0
        %5526 = vmatpush1.msra.mxu0 0.0
        %5527 = vmatprep.subr.mxu0 0.0
        %5528 = vmatpush1.msra.mxu0 0.0
        %5529 = vmatprep.subr.mxu0 0.0
        %5530 = vmatpush1.msra.mxu0 0.0
        %5531 = vmatprep.subr.mxu0 0.0
        %5532 = vmatpush1.msra.mxu0 0.0
        %5533 = vmatprep.mubr.f32.mxu0 0.0
        %5534 = vmatmul.mubr.f32.gmra.mrb[0].mxu0 %v5147
        %v5535 = vpop.f32.mrb[0].mxu0
        %v5536 = vadd.f32 %v5311, %v5535
        %v5537 = vpop.f32.mrb[0].mxu0
        %5538 = vmatprep.mubr.f32.mxu0 0.0
        %5539 = vmatmul.mubr.f32.gmra.mrb[0].mxu0 %v5148
        %v5540 = vpop.f32.mrb[0].mxu0
        %v5541 = vadd.f32 %v5316, %v5540
        %v5542 = vpop.f32.mrb[0].mxu0
        %5543 = vmatprep.mubr.f32.mxu0 0.0
        %5544 = vmatmul.mubr.f32.gmra.mrb[0].mxu0 %v5149
        %v5545 = vpop.f32.mrb[0].mxu0
        %v5546 = vadd.f32 %v5321, %v5545
        %v5547 = vpop.f32.mrb[0].mxu0
        %5548 = vmatprep.mubr.f32.mxu0 0.0
        %5549 = vmatmul.mubr.f32.gmra.mrb[0].mxu0 %v5150
        %v5550 = vpop.f32.mrb[0].mxu0
        %v5551 = vadd.f32 %v5326, %v5550
        %v5552 = vpop.f32.mrb[0].mxu0
        %5553 = vmatprep.mubr.f32.mxu0 0.0
        %5554 = vmatmul.mubr.f32.gmra.mrb[0].mxu0 %v5151
        %v5555 = vpop.f32.mrb[0].mxu0
        %v5556 = vadd.f32 %v5331, %v5555
        %v5557 = vpop.f32.mrb[0].mxu0
        %5558 = vmatprep.mubr.f32.mxu0 0.0
        %5559 = vmatmul.mubr.f32.gmra.mrb[0].mxu0 %v5152
        %v5560 = vpop.f32.mrb[0].mxu0
        %v5561 = vadd.f32 %v5336, %v5560
        %v5562 = vpop.f32.mrb[0].mxu0
        %5563 = vmatprep.mubr.f32.mxu0 0.0
        %5564 = vmatmul.mubr.f32.gmra.mrb[0].mxu0 %v5153
        %v5565 = vpop.f32.mrb[0].mxu0
        %v5566 = vadd.f32 %v5341, %v5565
        %v5567 = vpop.f32.mrb[0].mxu0
        %5568 = vmatprep.mubr.f32.mxu0 0.0
        %5569 = vmatmul.mubr.f32.gmra.mrb[0].mxu0 %v5154
        %v5570 = vpop.f32.mrb[0].mxu0
        %v5571 = vadd.f32 %v5346, %v5570
        %v5572 = vpop.f32.mrb[0].mxu0
        %5573 = vmatprep.mubr.f32.mxu0 0.0
        %5574 = vmatmul.mubr.f32.gmra.mrb[0].mxu0 %v5155
        %v5575 = vpop.f32.mrb[0].mxu0
        %v5576 = vadd.f32 %v5351, %v5575
        %v5577 = vpop.f32.mrb[0].mxu0
        %5578 = vmatprep.mubr.f32.mxu0 0.0
        %5579 = vmatmul.mubr.f32.gmra.mrb[0].mxu0 %v5156
        %v5580 = vpop.f32.mrb[0].mxu0
        %v5581 = vadd.f32 %v5356, %v5580
        %v5582 = vpop.f32.mrb[0].mxu0
        %5583 = vmatprep.mubr.f32.mxu0 0.0
        %5584 = vmatmul.mubr.f32.gmra.mrb[0].mxu0 %v5157
        %v5585 = vpop.f32.mrb[0].mxu0
        %v5586 = vadd.f32 %v5361, %v5585
        %v5587 = vpop.f32.mrb[0].mxu0
        %5588 = vmatprep.mubr.f32.mxu0 0.0
        %5589 = vmatmul.mubr.f32.gmra.mrb[0].mxu0 %v5158
        %v5590 = vpop.f32.mrb[0].mxu0
        %v5591 = vadd.f32 %v5366, %v5590
        %v5592 = vpop.f32.mrb[0].mxu0
        %5593 = vmatprep.mubr.f32.mxu0 0.0
        %5594 = vmatmul.mubr.f32.gmra.mrb[0].mxu0 %v5159
        %v5595 = vpop.f32.mrb[0].mxu0
        %v5596 = vadd.f32 %v5371, %v5595
        %v5597 = vpop.f32.mrb[0].mxu0
        %5598 = vmatprep.mubr.f32.mxu0 0.0
        %5599 = vmatmul.mubr.f32.gmra.mrb[0].mxu0 %v5160
        %v5600 = vpop.f32.mrb[0].mxu0
        %v5601 = vadd.f32 %v5376, %v5600
        %v5602 = vpop.f32.mrb[0].mxu0
        %5603 = vmatprep.mubr.f32.mxu0 0.0
        %5604 = vmatmul.mubr.f32.gmra.mrb[0].mxu0 %v5161
        %v5605 = vpop.f32.mrb[0].mxu0
        %v5606 = vadd.f32 %v5381, %v5605
        %v5607 = vpop.f32.mrb[0].mxu0
        %5608 = vmatprep.mubr.f32.mxu0 0.0
        %5609 = vmatmul.mubr.f32.gmra.mrb[0].mxu0 %v5162
        %v5610 = vpop.f32.mrb[0].mxu0
        %v5611 = vadd.f32 %v5386, %v5610
        %v5612 = vpop.f32.mrb[0].mxu0
        %5613 = vmatprep.mubr.f32.mxu0 0.0
        %5614 = vmatmul.mubr.f32.gmra.mrb[0].mxu0 %v5163
        %v5615 = vpop.f32.mrb[0].mxu0
        %v5616 = vadd.f32 %v5391, %v5615
        %v5617 = vpop.f32.mrb[0].mxu0
        %5618 = vmatprep.mubr.f32.mxu0 0.0
        %5619 = vmatmul.mubr.f32.gmra.mrb[0].mxu0 %v5164
        %v5620 = vpop.f32.mrb[0].mxu0
        %v5621 = vadd.f32 %v5396, %v5620
        %v5622 = vpop.f32.mrb[0].mxu0
        %5623 = vmatprep.mubr.f32.mxu0 0.0
        %5624 = vmatmul.mubr.f32.gmra.mrb[0].mxu0 %v5165
        %v5625 = vpop.f32.mrb[0].mxu0
        %v5626 = vadd.f32 %v5401, %v5625
        %v5627 = vpop.f32.mrb[0].mxu0
        %5628 = vmatprep.mubr.f32.mxu0 0.0
        %5629 = vmatmul.mubr.f32.gmra.mrb[0].mxu0 %v5166
        %v5630 = vpop.f32.mrb[0].mxu0
        %v5631 = vadd.f32 %v5406, %v5630
        %v5632 = vpop.f32.mrb[0].mxu0
        %5633 = vmatprep.mubr.f32.mxu0 0.0
        %5634 = vmatmul.mubr.f32.gmra.mrb[0].mxu0 %v5167
        %v5635 = vpop.f32.mrb[0].mxu0
        %v5636 = vadd.f32 %v5411, %v5635
        %v5637 = vpop.f32.mrb[0].mxu0
        %5638 = vmatprep.mubr.f32.mxu0 0.0
        %5639 = vmatmul.mubr.f32.gmra.mrb[0].mxu0 %v5168
        %v5640 = vpop.f32.mrb[0].mxu0
        %v5641 = vadd.f32 %v5416, %v5640
        %v5642 = vpop.f32.mrb[0].mxu0
        %5643 = vmatprep.mubr.f32.mxu0 0.0
        %5644 = vmatmul.mubr.f32.gmra.mrb[0].mxu0 %v5169
        %v5645 = vpop.f32.mrb[0].mxu0
        %v5646 = vadd.f32 %v5421, %v5645
        %v5647 = vpop.f32.mrb[0].mxu0
        %5648 = vmatprep.mubr.f32.mxu0 0.0
        %5649 = vmatmul.mubr.f32.gmra.mrb[0].mxu0 %v5170
        %v5650 = vpop.f32.mrb[0].mxu0
        %v5651 = vadd.f32 %v5426, %v5650
        %v5652 = vpop.f32.mrb[0].mxu0
        %5653 = vmatprep.mubr.f32.mxu0 0.0
        %5654 = vmatmul.mubr.f32.gmra.mrb[0].mxu0 %v5171
        %v5655 = vpop.f32.mrb[0].mxu0
        %v5656 = vadd.f32 %v5431, %v5655
        %v5657 = vpop.f32.mrb[0].mxu0
        %5658 = vmatprep.mubr.f32.mxu0 0.0
        %5659 = vmatmul.mubr.f32.gmra.mrb[0].mxu0 %v5172
        %v5660 = vpop.f32.mrb[0].mxu0
        %v5661 = vadd.f32 %v5436, %v5660
        %v5662 = vpop.f32.mrb[0].mxu0
        %5663 = vmatprep.mubr.f32.mxu0 0.0
        %5664 = vmatmul.mubr.f32.gmra.mrb[0].mxu0 %v5173
        %v5665 = vpop.f32.mrb[0].mxu0
        %v5666 = vadd.f32 %v5441, %v5665
        %v5667 = vpop.f32.mrb[0].mxu0
        %5668 = vmatprep.mubr.f32.mxu0 0.0
        %5669 = vmatmul.mubr.f32.gmra.mrb[0].mxu0 %v5174
        %v5670 = vpop.f32.mrb[0].mxu0
        %v5671 = vadd.f32 %v5446, %v5670
        %v5672 = vpop.f32.mrb[0].mxu0
        %5673 = vmatprep.mubr.f32.mxu0 0.0
        %5674 = vmatmul.mubr.f32.gmra.mrb[0].mxu0 %v5175
        %v5675 = vpop.f32.mrb[0].mxu0
        %v5676 = vadd.f32 %v5451, %v5675
        %v5677 = vpop.f32.mrb[0].mxu0
        %5678 = vmatprep.mubr.f32.mxu0 0.0
        %5679 = vmatmul.mubr.f32.gmra.mrb[0].mxu0 %v5176
        %v5680 = vpop.f32.mrb[0].mxu0
        %v5681 = vadd.f32 %v5456, %v5680
        %v5682 = vpop.f32.mrb[0].mxu0
        %5683 = vmatprep.mubr.f32.mxu0 0.0
        %5684 = vmatmul.mubr.f32.gmra.mrb[0].mxu0 %v5177
        %v5685 = vpop.f32.mrb[0].mxu0
        %v5686 = vadd.f32 %v5461, %v5685
        %v5687 = vpop.f32.mrb[0].mxu0
        %5688 = vmatprep.mubr.f32.mxu0 0.0
        %5689 = vmatmul.mubr.f32.gmra.mrb[0].mxu0 %v5178
        %v5690 = vpop.f32.mrb[0].mxu0
        %v5691 = vadd.f32 %v5466, %v5690
        %v5692 = vpop.f32.mrb[0].mxu0
        %5693 = vdwg.mxu0
        %v5694 = vld [vmem:[#allocation3 + $0x2] sm:$0xff]
        %v5695 = vld [vmem:[#allocation3 + $0xa] sm:$0xff]
        %v5696 = vld [vmem:[#allocation3 + $0x1a] sm:$0xff]
        %v5697 = vld [vmem:[#allocation3 + $0x22] sm:$0xff]
        %v5698 = vld [vmem:[#allocation3 + $0x32] sm:$0xff]
        %v5699 = vld [vmem:[#allocation3 + $0x3a] sm:$0xff]
        %v5700 = vld [vmem:[#allocation3 + $0x4a] sm:$0xff]
        %v5701 = vld [vmem:[#allocation3 + $0x52] sm:$0xff]
        %v5702 = vld [vmem:[#allocation3 + $0x62] sm:$0xff]
        %v5703 = vld [vmem:[#allocation3 + $0x6a] sm:$0xff]
        %v5704 = vld [vmem:[#allocation3 + $0x7a] sm:$0xff]
        %v5705 = vld [vmem:[#allocation3 + $0x82] sm:$0xff]
        %v5706 = vld [vmem:[#allocation3 + $0x92] sm:$0xff]
        %v5707 = vld [vmem:[#allocation3 + $0x9a] sm:$0xff]
        %v5708 = vld [vmem:[#allocation3 + $0xaa] sm:$0xff]
        %v5709 = vld [vmem:[#allocation3 + $0xb2] sm:$0xff]
        %v5710 = vld [vmem:[#allocation3 + $0xc2] sm:$0xff]
        %v5711 = vld [vmem:[#allocation3 + $0xca] sm:$0xff]
        %v5712 = vld [vmem:[#allocation3 + $0xda] sm:$0xff]
        %v5713 = vld [vmem:[#allocation3 + $0xe2] sm:$0xff]
        %v5714 = vld [vmem:[#allocation3 + $0xf2] sm:$0xff]
        %v5715 = vld [vmem:[#allocation3 + $0xfa] sm:$0xff]
        %v5716 = vld [vmem:[#allocation3 + $0x10a] sm:$0xff]
        %v5717 = vld [vmem:[#allocation3 + $0x112] sm:$0xff]
        %v5718 = vld [vmem:[#allocation3 + $0x122] sm:$0xff]
        %v5719 = vld [vmem:[#allocation3 + $0x12a] sm:$0xff]
        %v5720 = vld [vmem:[#allocation3 + $0x13a] sm:$0xff]
        %v5721 = vld [vmem:[#allocation3 + $0x142] sm:$0xff]
        %v5722 = vld [vmem:[#allocation3 + $0x152] sm:$0xff]
        %v5723 = vld [vmem:[#allocation3 + $0x15a] sm:$0xff]
        %v5724 = vld [vmem:[#allocation3 + $0x16a] sm:$0xff]
        %v5725 = vld [vmem:[#allocation3 + $0x172] sm:$0xff]
        %s5726 = scalar_lea.vmem [#allocation10], 256
        %v5727 = vld [vmem:[%s5726] sm:$0xff]
        %v5728 = vld [vmem:[%s5726 + $0x8] sm:$0xff]
        %v5729 = vld [vmem:[%s5726 + $0x10] sm:$0xff]
        %v5730 = vld [vmem:[%s5726 + $0x18] sm:$0xff]
        %v5731 = vld [vmem:[%s5726 + $0x20] sm:$0xff]
        %v5732 = vld [vmem:[%s5726 + $0x28] sm:$0xff]
        %v5733 = vld [vmem:[%s5726 + $0x30] sm:$0xff]
        %v5734 = vld [vmem:[%s5726 + $0x38] sm:$0xff]
        %v5735 = vld [vmem:[%s5726 + $0x40] sm:$0xff]
        %v5736 = vld [vmem:[%s5726 + $0x48] sm:$0xff]
        %v5737 = vld [vmem:[%s5726 + $0x50] sm:$0xff]
        %v5738 = vld [vmem:[%s5726 + $0x58] sm:$0xff]
        %v5739 = vld [vmem:[%s5726 + $0x60] sm:$0xff]
        %v5740 = vld [vmem:[%s5726 + $0x68] sm:$0xff]
        %v5741 = vld [vmem:[%s5726 + $0x70] sm:$0xff]
        %v5742 = vld [vmem:[%s5726 + $0x78] sm:$0xff]
        %5743 = vmatprep.subr.mxu0 0.0
        %5744 = vmatpush1.msra.mxu0 %v5727
        %5745 = vmatprep.subr.mxu0 0.0
        %5746 = vmatpush1.msra.mxu0 %v5728
        %5747 = vmatprep.subr.mxu0 0.0
        %5748 = vmatpush1.msra.mxu0 %v5729
        %5749 = vmatprep.subr.mxu0 0.0
        %5750 = vmatpush1.msra.mxu0 %v5730
        %5751 = vmatprep.subr.mxu0 0.0
        %5752 = vmatpush1.msra.mxu0 %v5731
        %5753 = vmatprep.subr.mxu0 0.0
        %5754 = vmatpush1.msra.mxu0 %v5732
        %5755 = vmatprep.subr.mxu0 0.0
        %5756 = vmatpush1.msra.mxu0 %v5733
        %5757 = vmatprep.subr.mxu0 0.0
        %5758 = vmatpush1.msra.mxu0 %v5734
        %5759 = vmatprep.subr.mxu0 0.0
        %5760 = vmatpush1.msra.mxu0 %v5735
        %5761 = vmatprep.subr.mxu0 0.0
        %5762 = vmatpush1.msra.mxu0 %v5736
        %5763 = vmatprep.subr.mxu0 0.0
        %5764 = vmatpush1.msra.mxu0 %v5737
        %5765 = vmatprep.subr.mxu0 0.0
        %5766 = vmatpush1.msra.mxu0 %v5738
        %5767 = vmatprep.subr.mxu0 0.0
        %5768 = vmatpush1.msra.mxu0 %v5739
        %5769 = vmatprep.subr.mxu0 0.0
        %5770 = vmatpush1.msra.mxu0 %v5740
        %5771 = vmatprep.subr.mxu0 0.0
        %5772 = vmatpush1.msra.mxu0 %v5741
        %5773 = vmatprep.subr.mxu0 0.0
        %5774 = vmatpush1.msra.mxu0 %v5742
        %5775 = vmatprep.subr.mxu0 0.0
        %5776 = vmatpush1.msra.mxu0 0.0
        %5777 = vmatprep.subr.mxu0 0.0
        %5778 = vmatpush1.msra.mxu0 0.0
        %5779 = vmatprep.subr.mxu0 0.0
        %5780 = vmatpush1.msra.mxu0 0.0
        %5781 = vmatprep.subr.mxu0 0.0
        %5782 = vmatpush1.msra.mxu0 0.0
        %5783 = vmatprep.subr.mxu0 0.0
        %5784 = vmatpush1.msra.mxu0 0.0
        %5785 = vmatprep.subr.mxu0 0.0
        %5786 = vmatpush1.msra.mxu0 0.0
        %5787 = vmatprep.subr.mxu0 0.0
        %5788 = vmatpush1.msra.mxu0 0.0
        %5789 = vmatprep.subr.mxu0 0.0
        %5790 = vmatpush1.msra.mxu0 0.0
        %5791 = vmatprep.subr.mxu0 0.0
        %5792 = vmatpush1.msra.mxu0 0.0
        %5793 = vmatprep.subr.mxu0 0.0
        %5794 = vmatpush1.msra.mxu0 0.0
        %5795 = vmatprep.subr.mxu0 0.0
        %5796 = vmatpush1.msra.mxu0 0.0
        %5797 = vmatprep.subr.mxu0 0.0
        %5798 = vmatpush1.msra.mxu0 0.0
        %5799 = vmatprep.subr.mxu0 0.0
        %5800 = vmatpush1.msra.mxu0 0.0
        %5801 = vmatprep.subr.mxu0 0.0
        %5802 = vmatpush1.msra.mxu0 0.0
        %5803 = vmatprep.subr.mxu0 0.0
        %5804 = vmatpush1.msra.mxu0 0.0
        %5805 = vmatprep.subr.mxu0 0.0
        %5806 = vmatpush1.msra.mxu0 0.0
        %5807 = vmatprep.mubr.f32.mxu0 0.0
        %5808 = vmatmul.mubr.f32.gmra.mrb[0].mxu0 %v5694
        %v5809 = vpop.f32.mrb[0].mxu0
        %v5810 = vadd.f32 0.0, %v5809
        %v5811 = vpop.f32.mrb[0].mxu0
        %5812 = vmatprep.mubr.f32.mxu0 0.0
        %5813 = vmatmul.mubr.f32.gmra.mrb[0].mxu0 %v5695
        %v5814 = vpop.f32.mrb[0].mxu0
        %v5815 = vadd.f32 0.0, %v5814
        %v5816 = vpop.f32.mrb[0].mxu0
        %5817 = vmatprep.mubr.f32.mxu0 0.0
        %5818 = vmatmul.mubr.f32.gmra.mrb[0].mxu0 %v5696
        %v5819 = vpop.f32.mrb[0].mxu0
        %v5820 = vadd.f32 0.0, %v5819
        %v5821 = vpop.f32.mrb[0].mxu0
        %5822 = vmatprep.mubr.f32.mxu0 0.0
        %5823 = vmatmul.mubr.f32.gmra.mrb[0].mxu0 %v5697
        %v5824 = vpop.f32.mrb[0].mxu0
        %v5825 = vadd.f32 0.0, %v5824
        %v5826 = vpop.f32.mrb[0].mxu0
        %5827 = vmatprep.mubr.f32.mxu0 0.0
        %5828 = vmatmul.mubr.f32.gmra.mrb[0].mxu0 %v5698
        %v5829 = vpop.f32.mrb[0].mxu0
        %v5830 = vadd.f32 0.0, %v5829
        %v5831 = vpop.f32.mrb[0].mxu0
        %5832 = vmatprep.mubr.f32.mxu0 0.0
        %5833 = vmatmul.mubr.f32.gmra.mrb[0].mxu0 %v5699
        %v5834 = vpop.f32.mrb[0].mxu0
        %v5835 = vadd.f32 0.0, %v5834
        %v5836 = vpop.f32.mrb[0].mxu0
        %5837 = vmatprep.mubr.f32.mxu0 0.0
        %5838 = vmatmul.mubr.f32.gmra.mrb[0].mxu0 %v5700
        %v5839 = vpop.f32.mrb[0].mxu0
        %v5840 = vadd.f32 0.0, %v5839
        %v5841 = vpop.f32.mrb[0].mxu0
        %5842 = vmatprep.mubr.f32.mxu0 0.0
        %5843 = vmatmul.mubr.f32.gmra.mrb[0].mxu0 %v5701
        %v5844 = vpop.f32.mrb[0].mxu0
        %v5845 = vadd.f32 0.0, %v5844
        %v5846 = vpop.f32.mrb[0].mxu0
        %5847 = vmatprep.mubr.f32.mxu0 0.0
        %5848 = vmatmul.mubr.f32.gmra.mrb[0].mxu0 %v5702
        %v5849 = vpop.f32.mrb[0].mxu0
        %v5850 = vadd.f32 0.0, %v5849
        %v5851 = vpop.f32.mrb[0].mxu0
        %5852 = vmatprep.mubr.f32.mxu0 0.0
        %5853 = vmatmul.mubr.f32.gmra.mrb[0].mxu0 %v5703
        %v5854 = vpop.f32.mrb[0].mxu0
        %v5855 = vadd.f32 0.0, %v5854
        %v5856 = vpop.f32.mrb[0].mxu0
        %5857 = vmatprep.mubr.f32.mxu0 0.0
        %5858 = vmatmul.mubr.f32.gmra.mrb[0].mxu0 %v5704
        %v5859 = vpop.f32.mrb[0].mxu0
        %v5860 = vadd.f32 0.0, %v5859
        %v5861 = vpop.f32.mrb[0].mxu0
        %5862 = vmatprep.mubr.f32.mxu0 0.0
        %5863 = vmatmul.mubr.f32.gmra.mrb[0].mxu0 %v5705
        %v5864 = vpop.f32.mrb[0].mxu0
        %v5865 = vadd.f32 0.0, %v5864
        %v5866 = vpop.f32.mrb[0].mxu0
        %5867 = vmatprep.mubr.f32.mxu0 0.0
        %5868 = vmatmul.mubr.f32.gmra.mrb[0].mxu0 %v5706
        %v5869 = vpop.f32.mrb[0].mxu0
        %v5870 = vadd.f32 0.0, %v5869
        %v5871 = vpop.f32.mrb[0].mxu0
        %5872 = vmatprep.mubr.f32.mxu0 0.0
        %5873 = vmatmul.mubr.f32.gmra.mrb[0].mxu0 %v5707
        %v5874 = vpop.f32.mrb[0].mxu0
        %v5875 = vadd.f32 0.0, %v5874
        %v5876 = vpop.f32.mrb[0].mxu0
        %5877 = vmatprep.mubr.f32.mxu0 0.0
        %5878 = vmatmul.mubr.f32.gmra.mrb[0].mxu0 %v5708
        %v5879 = vpop.f32.mrb[0].mxu0
        %v5880 = vadd.f32 0.0, %v5879
        %v5881 = vpop.f32.mrb[0].mxu0
        %5882 = vmatprep.mubr.f32.mxu0 0.0
        %5883 = vmatmul.mubr.f32.gmra.mrb[0].mxu0 %v5709
        %v5884 = vpop.f32.mrb[0].mxu0
        %v5885 = vadd.f32 0.0, %v5884
        %v5886 = vpop.f32.mrb[0].mxu0
        %5887 = vmatprep.mubr.f32.mxu0 0.0
        %5888 = vmatmul.mubr.f32.gmra.mrb[0].mxu0 %v5710
        %v5889 = vpop.f32.mrb[0].mxu0
        %v5890 = vadd.f32 0.0, %v5889
        %v5891 = vpop.f32.mrb[0].mxu0
        %5892 = vmatprep.mubr.f32.mxu0 0.0
        %5893 = vmatmul.mubr.f32.gmra.mrb[0].mxu0 %v5711
        %v5894 = vpop.f32.mrb[0].mxu0
        %v5895 = vadd.f32 0.0, %v5894
        %v5896 = vpop.f32.mrb[0].mxu0
        %5897 = vmatprep.mubr.f32.mxu0 0.0
        %5898 = vmatmul.mubr.f32.gmra.mrb[0].mxu0 %v5712
        %v5899 = vpop.f32.mrb[0].mxu0
        %v5900 = vadd.f32 0.0, %v5899
        %v5901 = vpop.f32.mrb[0].mxu0
        %5902 = vmatprep.mubr.f32.mxu0 0.0
        %5903 = vmatmul.mubr.f32.gmra.mrb[0].mxu0 %v5713
        %v5904 = vpop.f32.mrb[0].mxu0
        %v5905 = vadd.f32 0.0, %v5904
        %v5906 = vpop.f32.mrb[0].mxu0
        %5907 = vmatprep.mubr.f32.mxu0 0.0
        %5908 = vmatmul.mubr.f32.gmra.mrb[0].mxu0 %v5714
        %v5909 = vpop.f32.mrb[0].mxu0
        %v5910 = vadd.f32 0.0, %v5909
        %v5911 = vpop.f32.mrb[0].mxu0
        %5912 = vmatprep.mubr.f32.mxu0 0.0
        %5913 = vmatmul.mubr.f32.gmra.mrb[0].mxu0 %v5715
        %v5914 = vpop.f32.mrb[0].mxu0
        %v5915 = vadd.f32 0.0, %v5914
        %v5916 = vpop.f32.mrb[0].mxu0
        %5917 = vmatprep.mubr.f32.mxu0 0.0
        %5918 = vmatmul.mubr.f32.gmra.mrb[0].mxu0 %v5716
        %v5919 = vpop.f32.mrb[0].mxu0
        %v5920 = vadd.f32 0.0, %v5919
        %v5921 = vpop.f32.mrb[0].mxu0
        %5922 = vmatprep.mubr.f32.mxu0 0.0
        %5923 = vmatmul.mubr.f32.gmra.mrb[0].mxu0 %v5717
        %v5924 = vpop.f32.mrb[0].mxu0
        %v5925 = vadd.f32 0.0, %v5924
        %v5926 = vpop.f32.mrb[0].mxu0
        %5927 = vmatprep.mubr.f32.mxu0 0.0
        %5928 = vmatmul.mubr.f32.gmra.mrb[0].mxu0 %v5718
        %v5929 = vpop.f32.mrb[0].mxu0
        %v5930 = vadd.f32 0.0, %v5929
        %v5931 = vpop.f32.mrb[0].mxu0
        %5932 = vmatprep.mubr.f32.mxu0 0.0
        %5933 = vmatmul.mubr.f32.gmra.mrb[0].mxu0 %v5719
        %v5934 = vpop.f32.mrb[0].mxu0
        %v5935 = vadd.f32 0.0, %v5934
        %v5936 = vpop.f32.mrb[0].mxu0
        %5937 = vmatprep.mubr.f32.mxu0 0.0
        %5938 = vmatmul.mubr.f32.gmra.mrb[0].mxu0 %v5720
        %v5939 = vpop.f32.mrb[0].mxu0
        %v5940 = vadd.f32 0.0, %v5939
        %v5941 = vpop.f32.mrb[0].mxu0
        %5942 = vmatprep.mubr.f32.mxu0 0.0
        %5943 = vmatmul.mubr.f32.gmra.mrb[0].mxu0 %v5721
        %v5944 = vpop.f32.mrb[0].mxu0
        %v5945 = vadd.f32 0.0, %v5944
        %v5946 = vpop.f32.mrb[0].mxu0
        %5947 = vmatprep.mubr.f32.mxu0 0.0
        %5948 = vmatmul.mubr.f32.gmra.mrb[0].mxu0 %v5722
        %v5949 = vpop.f32.mrb[0].mxu0
        %v5950 = vadd.f32 0.0, %v5949
        %v5951 = vpop.f32.mrb[0].mxu0
        %5952 = vmatprep.mubr.f32.mxu0 0.0
        %5953 = vmatmul.mubr.f32.gmra.mrb[0].mxu0 %v5723
        %v5954 = vpop.f32.mrb[0].mxu0
        %v5955 = vadd.f32 0.0, %v5954
        %v5956 = vpop.f32.mrb[0].mxu0
        %5957 = vmatprep.mubr.f32.mxu0 0.0
        %5958 = vmatmul.mubr.f32.gmra.mrb[0].mxu0 %v5724
        %v5959 = vpop.f32.mrb[0].mxu0
        %v5960 = vadd.f32 0.0, %v5959
        %v5961 = vpop.f32.mrb[0].mxu0
        %5962 = vmatprep.mubr.f32.mxu0 0.0
        %5963 = vmatmul.mubr.f32.gmra.mrb[0].mxu0 %v5725
        %v5964 = vpop.f32.mrb[0].mxu0
        %v5965 = vadd.f32 0.0, %v5964
        %v5966 = vpop.f32.mrb[0].mxu0
        %5967 = vdwg.mxu0
        %v5968 = vadd.f32 %v5536, %v5810
        %v5969 = vadd.f32 %v5541, %v5815
        %v5970 = vadd.f32 %v5546, %v5820
        %v5971 = vadd.f32 %v5551, %v5825
        %v5972 = vadd.f32 %v5556, %v5830
        %v5973 = vadd.f32 %v5561, %v5835
        %v5974 = vadd.f32 %v5566, %v5840
        %v5975 = vadd.f32 %v5571, %v5845
        %v5976 = vadd.f32 %v5576, %v5850
        %v5977 = vadd.f32 %v5581, %v5855
        %v5978 = vadd.f32 %v5586, %v5860
        %v5979 = vadd.f32 %v5591, %v5865
        %v5980 = vadd.f32 %v5596, %v5870
        %v5981 = vadd.f32 %v5601, %v5875
        %v5982 = vadd.f32 %v5606, %v5880
        %v5983 = vadd.f32 %v5611, %v5885
        %v5984 = vadd.f32 %v5616, %v5890
        %v5985 = vadd.f32 %v5621, %v5895
        %v5986 = vadd.f32 %v5626, %v5900
        %v5987 = vadd.f32 %v5631, %v5905
        %v5988 = vadd.f32 %v5636, %v5910
        %v5989 = vadd.f32 %v5641, %v5915
        %v5990 = vadd.f32 %v5646, %v5920
        %v5991 = vadd.f32 %v5651, %v5925
        %v5992 = vadd.f32 %v5656, %v5930
        %v5993 = vadd.f32 %v5661, %v5935
        %v5994 = vadd.f32 %v5666, %v5940
        %v5995 = vadd.f32 %v5671, %v5945
        %v5996 = vadd.f32 %v5676, %v5950
        %v5997 = vadd.f32 %v5681, %v5955
        %v5998 = vadd.f32 %v5686, %v5960
        %v5999 = vadd.f32 %v5691, %v5965
        %v6000 = vld [vmem:[%s5082] sm:$0xff]
        %v6001 = vld [vmem:[%s5082 + $0x8] sm:$0xff]
        %v6002 = vld [vmem:[%s5082 + $0x18] sm:$0xff]
        %v6003 = vld [vmem:[%s5082 + $0x20] sm:$0xff]
        %v6004 = vld [vmem:[%s5082 + $0x30] sm:$0xff]
        %v6005 = vld [vmem:[%s5082 + $0x38] sm:$0xff]
        %v6006 = vld [vmem:[%s5082 + $0x48] sm:$0xff]
        %v6007 = vld [vmem:[%s5082 + $0x50] sm:$0xff]
        %v6008 = vld [vmem:[%s5082 + $0x60] sm:$0xff]
        %v6009 = vld [vmem:[%s5082 + $0x68] sm:$0xff]
        %v6010 = vld [vmem:[%s5082 + $0x78] sm:$0xff]
        %v6011 = vld [vmem:[%s5082 + $0x80] sm:$0xff]
        %v6012 = vld [vmem:[%s5082 + $0x90] sm:$0xff]
        %v6013 = vld [vmem:[%s5082 + $0x98] sm:$0xff]
        %v6014 = vld [vmem:[%s5082 + $0xa8] sm:$0xff]
        %v6015 = vld [vmem:[%s5082 + $0xb0] sm:$0xff]
        %v6016 = vld [vmem:[%s5082 + $0xc0] sm:$0xff]
        %v6017 = vld [vmem:[%s5082 + $0xc8] sm:$0xff]
        %v6018 = vld [vmem:[%s5082 + $0xd8] sm:$0xff]
        %v6019 = vld [vmem:[%s5082 + $0xe0] sm:$0xff]
        %v6020 = vld [vmem:[%s5082 + $0xf0] sm:$0xff]
        %v6021 = vld [vmem:[%s5082 + $0xf8] sm:$0xff]
        %v6022 = vld [vmem:[%s5082 + $0x108] sm:$0xff]
        %v6023 = vld [vmem:[%s5082 + $0x110] sm:$0xff]
        %v6024 = vld [vmem:[%s5082 + $0x120] sm:$0xff]
        %v6025 = vld [vmem:[%s5082 + $0x128] sm:$0xff]
        %v6026 = vld [vmem:[%s5082 + $0x138] sm:$0xff]
        %v6027 = vld [vmem:[%s5082 + $0x140] sm:$0xff]
        %v6028 = vld [vmem:[%s5082 + $0x150] sm:$0xff]
        %v6029 = vld [vmem:[%s5082 + $0x158] sm:$0xff]
        %v6030 = vld [vmem:[%s5082 + $0x168] sm:$0xff]
        %v6031 = vld [vmem:[%s5082 + $0x170] sm:$0xff]
        %s6032 = scalar_lea.vmem [#allocation10], 384
        %v6033 = vld [vmem:[%s6032] sm:$0xff]
        %v6034 = vld [vmem:[%s6032 + $0x8] sm:$0xff]
        %v6035 = vld [vmem:[%s6032 + $0x10] sm:$0xff]
        %v6036 = vld [vmem:[%s6032 + $0x18] sm:$0xff]
        %v6037 = vld [vmem:[%s6032 + $0x20] sm:$0xff]
        %v6038 = vld [vmem:[%s6032 + $0x28] sm:$0xff]
        %v6039 = vld [vmem:[%s6032 + $0x30] sm:$0xff]
        %v6040 = vld [vmem:[%s6032 + $0x38] sm:$0xff]
        %v6041 = vld [vmem:[%s6032 + $0x40] sm:$0xff]
        %v6042 = vld [vmem:[%s6032 + $0x48] sm:$0xff]
        %v6043 = vld [vmem:[%s6032 + $0x50] sm:$0xff]
        %v6044 = vld [vmem:[%s6032 + $0x58] sm:$0xff]
        %v6045 = vld [vmem:[%s6032 + $0x60] sm:$0xff]
        %v6046 = vld [vmem:[%s6032 + $0x68] sm:$0xff]
        %v6047 = vld [vmem:[%s6032 + $0x70] sm:$0xff]
        %v6048 = vld [vmem:[%s6032 + $0x78] sm:$0xff]
        %6049 = vmatprep.subr.mxu0 0.0
        %6050 = vmatpush1.msra.mxu0 %v6033
        %6051 = vmatprep.subr.mxu0 0.0
        %6052 = vmatpush1.msra.mxu0 %v6034
        %6053 = vmatprep.subr.mxu0 0.0
        %6054 = vmatpush1.msra.mxu0 %v6035
        %6055 = vmatprep.subr.mxu0 0.0
        %6056 = vmatpush1.msra.mxu0 %v6036
        %6057 = vmatprep.subr.mxu0 0.0
        %6058 = vmatpush1.msra.mxu0 %v6037
        %6059 = vmatprep.subr.mxu0 0.0
        %6060 = vmatpush1.msra.mxu0 %v6038
        %6061 = vmatprep.subr.mxu0 0.0
        %6062 = vmatpush1.msra.mxu0 %v6039
        %6063 = vmatprep.subr.mxu0 0.0
        %6064 = vmatpush1.msra.mxu0 %v6040
        %6065 = vmatprep.subr.mxu0 0.0
        %6066 = vmatpush1.msra.mxu0 %v6041
        %6067 = vmatprep.subr.mxu0 0.0
        %6068 = vmatpush1.msra.mxu0 %v6042
        %6069 = vmatprep.subr.mxu0 0.0
        %6070 = vmatpush1.msra.mxu0 %v6043
        %6071 = vmatprep.subr.mxu0 0.0
        %6072 = vmatpush1.msra.mxu0 %v6044
        %6073 = vmatprep.subr.mxu0 0.0
        %6074 = vmatpush1.msra.mxu0 %v6045
        %6075 = vmatprep.subr.mxu0 0.0
        %6076 = vmatpush1.msra.mxu0 %v6046
        %6077 = vmatprep.subr.mxu0 0.0
        %6078 = vmatpush1.msra.mxu0 %v6047
        %6079 = vmatprep.subr.mxu0 0.0
        %6080 = vmatpush1.msra.mxu0 %v6048
        %6081 = vmatprep.subr.mxu0 0.0
        %6082 = vmatpush1.msra.mxu0 0.0
        %6083 = vmatprep.subr.mxu0 0.0
        %6084 = vmatpush1.msra.mxu0 0.0
        %6085 = vmatprep.subr.mxu0 0.0
        %6086 = vmatpush1.msra.mxu0 0.0
        %6087 = vmatprep.subr.mxu0 0.0
        %6088 = vmatpush1.msra.mxu0 0.0
        %6089 = vmatprep.subr.mxu0 0.0
        %6090 = vmatpush1.msra.mxu0 0.0
        %6091 = vmatprep.subr.mxu0 0.0
        %6092 = vmatpush1.msra.mxu0 0.0
        %6093 = vmatprep.subr.mxu0 0.0
        %6094 = vmatpush1.msra.mxu0 0.0
        %6095 = vmatprep.subr.mxu0 0.0
        %6096 = vmatpush1.msra.mxu0 0.0
        %6097 = vmatprep.subr.mxu0 0.0
        %6098 = vmatpush1.msra.mxu0 0.0
        %6099 = vmatprep.subr.mxu0 0.0
        %6100 = vmatpush1.msra.mxu0 0.0
        %6101 = vmatprep.subr.mxu0 0.0
        %6102 = vmatpush1.msra.mxu0 0.0
        %6103 = vmatprep.subr.mxu0 0.0
        %6104 = vmatpush1.msra.mxu0 0.0
        %6105 = vmatprep.subr.mxu0 0.0
        %6106 = vmatpush1.msra.mxu0 0.0
        %6107 = vmatprep.subr.mxu0 0.0
        %6108 = vmatpush1.msra.mxu0 0.0
        %6109 = vmatprep.subr.mxu0 0.0
        %6110 = vmatpush1.msra.mxu0 0.0
        %6111 = vmatprep.subr.mxu0 0.0
        %6112 = vmatpush1.msra.mxu0 0.0
        %6113 = vmatprep.mubr.f32.mxu0 0.0
        %6114 = vmatmul.mubr.f32.gmra.mrb[0].mxu0 %v6000
        %v6115 = vpop.f32.mrb[0].mxu0
        %v6116 = vadd.f32 0.0, %v6115
        %v6117 = vpop.f32.mrb[0].mxu0
        %6118 = vmatprep.mubr.f32.mxu0 0.0
        %6119 = vmatmul.mubr.f32.gmra.mrb[0].mxu0 %v6001
        %v6120 = vpop.f32.mrb[0].mxu0
        %v6121 = vadd.f32 0.0, %v6120
        %v6122 = vpop.f32.mrb[0].mxu0
        %6123 = vmatprep.mubr.f32.mxu0 0.0
        %6124 = vmatmul.mubr.f32.gmra.mrb[0].mxu0 %v6002
        %v6125 = vpop.f32.mrb[0].mxu0
        %v6126 = vadd.f32 0.0, %v6125
        %v6127 = vpop.f32.mrb[0].mxu0
        %6128 = vmatprep.mubr.f32.mxu0 0.0
        %6129 = vmatmul.mubr.f32.gmra.mrb[0].mxu0 %v6003
        %v6130 = vpop.f32.mrb[0].mxu0
        %v6131 = vadd.f32 0.0, %v6130
        %v6132 = vpop.f32.mrb[0].mxu0
        %6133 = vmatprep.mubr.f32.mxu0 0.0
        %6134 = vmatmul.mubr.f32.gmra.mrb[0].mxu0 %v6004
        %v6135 = vpop.f32.mrb[0].mxu0
        %v6136 = vadd.f32 0.0, %v6135
        %v6137 = vpop.f32.mrb[0].mxu0
        %6138 = vmatprep.mubr.f32.mxu0 0.0
        %6139 = vmatmul.mubr.f32.gmra.mrb[0].mxu0 %v6005
        %v6140 = vpop.f32.mrb[0].mxu0
        %v6141 = vadd.f32 0.0, %v6140
        %v6142 = vpop.f32.mrb[0].mxu0
        %6143 = vmatprep.mubr.f32.mxu0 0.0
        %6144 = vmatmul.mubr.f32.gmra.mrb[0].mxu0 %v6006
        %v6145 = vpop.f32.mrb[0].mxu0
        %v6146 = vadd.f32 0.0, %v6145
        %v6147 = vpop.f32.mrb[0].mxu0
        %6148 = vmatprep.mubr.f32.mxu0 0.0
        %6149 = vmatmul.mubr.f32.gmra.mrb[0].mxu0 %v6007
        %v6150 = vpop.f32.mrb[0].mxu0
        %v6151 = vadd.f32 0.0, %v6150
        %v6152 = vpop.f32.mrb[0].mxu0
        %6153 = vmatprep.mubr.f32.mxu0 0.0
        %6154 = vmatmul.mubr.f32.gmra.mrb[0].mxu0 %v6008
        %v6155 = vpop.f32.mrb[0].mxu0
        %v6156 = vadd.f32 0.0, %v6155
        %v6157 = vpop.f32.mrb[0].mxu0
        %6158 = vmatprep.mubr.f32.mxu0 0.0
        %6159 = vmatmul.mubr.f32.gmra.mrb[0].mxu0 %v6009
        %v6160 = vpop.f32.mrb[0].mxu0
        %v6161 = vadd.f32 0.0, %v6160
        %v6162 = vpop.f32.mrb[0].mxu0
        %6163 = vmatprep.mubr.f32.mxu0 0.0
        %6164 = vmatmul.mubr.f32.gmra.mrb[0].mxu0 %v6010
        %v6165 = vpop.f32.mrb[0].mxu0
        %v6166 = vadd.f32 0.0, %v6165
        %v6167 = vpop.f32.mrb[0].mxu0
        %6168 = vmatprep.mubr.f32.mxu0 0.0
        %6169 = vmatmul.mubr.f32.gmra.mrb[0].mxu0 %v6011
        %v6170 = vpop.f32.mrb[0].mxu0
        %v6171 = vadd.f32 0.0, %v6170
        %v6172 = vpop.f32.mrb[0].mxu0
        %6173 = vmatprep.mubr.f32.mxu0 0.0
        %6174 = vmatmul.mubr.f32.gmra.mrb[0].mxu0 %v6012
        %v6175 = vpop.f32.mrb[0].mxu0
        %v6176 = vadd.f32 0.0, %v6175
        %v6177 = vpop.f32.mrb[0].mxu0
        %6178 = vmatprep.mubr.f32.mxu0 0.0
        %6179 = vmatmul.mubr.f32.gmra.mrb[0].mxu0 %v6013
        %v6180 = vpop.f32.mrb[0].mxu0
        %v6181 = vadd.f32 0.0, %v6180
        %v6182 = vpop.f32.mrb[0].mxu0
        %6183 = vmatprep.mubr.f32.mxu0 0.0
        %6184 = vmatmul.mubr.f32.gmra.mrb[0].mxu0 %v6014
        %v6185 = vpop.f32.mrb[0].mxu0
        %v6186 = vadd.f32 0.0, %v6185
        %v6187 = vpop.f32.mrb[0].mxu0
        %6188 = vmatprep.mubr.f32.mxu0 0.0
        %6189 = vmatmul.mubr.f32.gmra.mrb[0].mxu0 %v6015
        %v6190 = vpop.f32.mrb[0].mxu0
        %v6191 = vadd.f32 0.0, %v6190
        %v6192 = vpop.f32.mrb[0].mxu0
        %6193 = vmatprep.mubr.f32.mxu0 0.0
        %6194 = vmatmul.mubr.f32.gmra.mrb[0].mxu0 %v6016
        %v6195 = vpop.f32.mrb[0].mxu0
        %v6196 = vadd.f32 0.0, %v6195
        %v6197 = vpop.f32.mrb[0].mxu0
        %6198 = vmatprep.mubr.f32.mxu0 0.0
        %6199 = vmatmul.mubr.f32.gmra.mrb[0].mxu0 %v6017
        %v6200 = vpop.f32.mrb[0].mxu0
        %v6201 = vadd.f32 0.0, %v6200
        %v6202 = vpop.f32.mrb[0].mxu0
        %6203 = vmatprep.mubr.f32.mxu0 0.0
        %6204 = vmatmul.mubr.f32.gmra.mrb[0].mxu0 %v6018
        %v6205 = vpop.f32.mrb[0].mxu0
        %v6206 = vadd.f32 0.0, %v6205
        %v6207 = vpop.f32.mrb[0].mxu0
        %6208 = vmatprep.mubr.f32.mxu0 0.0
        %6209 = vmatmul.mubr.f32.gmra.mrb[0].mxu0 %v6019
        %v6210 = vpop.f32.mrb[0].mxu0
        %v6211 = vadd.f32 0.0, %v6210
        %v6212 = vpop.f32.mrb[0].mxu0
        %6213 = vmatprep.mubr.f32.mxu0 0.0
        %6214 = vmatmul.mubr.f32.gmra.mrb[0].mxu0 %v6020
        %v6215 = vpop.f32.mrb[0].mxu0
        %v6216 = vadd.f32 0.0, %v6215
        %v6217 = vpop.f32.mrb[0].mxu0
        %6218 = vmatprep.mubr.f32.mxu0 0.0
        %6219 = vmatmul.mubr.f32.gmra.mrb[0].mxu0 %v6021
        %v6220 = vpop.f32.mrb[0].mxu0
        %v6221 = vadd.f32 0.0, %v6220
        %v6222 = vpop.f32.mrb[0].mxu0
        %6223 = vmatprep.mubr.f32.mxu0 0.0
        %6224 = vmatmul.mubr.f32.gmra.mrb[0].mxu0 %v6022
        %v6225 = vpop.f32.mrb[0].mxu0
        %v6226 = vadd.f32 0.0, %v6225
        %v6227 = vpop.f32.mrb[0].mxu0
        %6228 = vmatprep.mubr.f32.mxu0 0.0
        %6229 = vmatmul.mubr.f32.gmra.mrb[0].mxu0 %v6023
        %v6230 = vpop.f32.mrb[0].mxu0
        %v6231 = vadd.f32 0.0, %v6230
        %v6232 = vpop.f32.mrb[0].mxu0
        %6233 = vmatprep.mubr.f32.mxu0 0.0
        %6234 = vmatmul.mubr.f32.gmra.mrb[0].mxu0 %v6024
        %v6235 = vpop.f32.mrb[0].mxu0
        %v6236 = vadd.f32 0.0, %v6235
        %v6237 = vpop.f32.mrb[0].mxu0
        %6238 = vmatprep.mubr.f32.mxu0 0.0
        %6239 = vmatmul.mubr.f32.gmra.mrb[0].mxu0 %v6025
        %v6240 = vpop.f32.mrb[0].mxu0
        %v6241 = vadd.f32 0.0, %v6240
        %v6242 = vpop.f32.mrb[0].mxu0
        %6243 = vmatprep.mubr.f32.mxu0 0.0
        %6244 = vmatmul.mubr.f32.gmra.mrb[0].mxu0 %v6026
        %v6245 = vpop.f32.mrb[0].mxu0
        %v6246 = vadd.f32 0.0, %v6245
        %v6247 = vpop.f32.mrb[0].mxu0
        %6248 = vmatprep.mubr.f32.mxu0 0.0
        %6249 = vmatmul.mubr.f32.gmra.mrb[0].mxu0 %v6027
        %v6250 = vpop.f32.mrb[0].mxu0
        %v6251 = vadd.f32 0.0, %v6250
        %v6252 = vpop.f32.mrb[0].mxu0
        %6253 = vmatprep.mubr.f32.mxu0 0.0
        %6254 = vmatmul.mubr.f32.gmra.mrb[0].mxu0 %v6028
        %v6255 = vpop.f32.mrb[0].mxu0
        %v6256 = vadd.f32 0.0, %v6255
        %v6257 = vpop.f32.mrb[0].mxu0
        %6258 = vmatprep.mubr.f32.mxu0 0.0
        %6259 = vmatmul.mubr.f32.gmra.mrb[0].mxu0 %v6029
        %v6260 = vpop.f32.mrb[0].mxu0
        %v6261 = vadd.f32 0.0, %v6260
        %v6262 = vpop.f32.mrb[0].mxu0
        %6263 = vmatprep.mubr.f32.mxu0 0.0
        %6264 = vmatmul.mubr.f32.gmra.mrb[0].mxu0 %v6030
        %v6265 = vpop.f32.mrb[0].mxu0
        %v6266 = vadd.f32 0.0, %v6265
        %v6267 = vpop.f32.mrb[0].mxu0
        %6268 = vmatprep.mubr.f32.mxu0 0.0
        %6269 = vmatmul.mubr.f32.gmra.mrb[0].mxu0 %v6031
        %v6270 = vpop.f32.mrb[0].mxu0
        %v6271 = vadd.f32 0.0, %v6270
        %v6272 = vpop.f32.mrb[0].mxu0
        %6273 = vdwg.mxu0
        %v6274 = vadd.f32 %v5968, %v6116
        %v6275 = vadd.f32 %v5969, %v6121
        %v6276 = vadd.f32 %v5970, %v6126
        %v6277 = vadd.f32 %v5971, %v6131
        %v6278 = vadd.f32 %v5972, %v6136
        %v6279 = vadd.f32 %v5973, %v6141
        %v6280 = vadd.f32 %v5974, %v6146
        %v6281 = vadd.f32 %v5975, %v6151
        %v6282 = vadd.f32 %v5976, %v6156
        %v6283 = vadd.f32 %v5977, %v6161
        %v6284 = vadd.f32 %v5978, %v6166
        %v6285 = vadd.f32 %v5979, %v6171
        %v6286 = vadd.f32 %v5980, %v6176
        %v6287 = vadd.f32 %v5981, %v6181
        %v6288 = vadd.f32 %v5982, %v6186
        %v6289 = vadd.f32 %v5983, %v6191
        %v6290 = vadd.f32 %v5984, %v6196
        %v6291 = vadd.f32 %v5985, %v6201
        %v6292 = vadd.f32 %v5986, %v6206
        %v6293 = vadd.f32 %v5987, %v6211
        %v6294 = vadd.f32 %v5988, %v6216
        %v6295 = vadd.f32 %v5989, %v6221
        %v6296 = vadd.f32 %v5990, %v6226
        %v6297 = vadd.f32 %v5991, %v6231
        %v6298 = vadd.f32 %v5992, %v6236
        %v6299 = vadd.f32 %v5993, %v6241
        %v6300 = vadd.f32 %v5994, %v6246
        %v6301 = vadd.f32 %v5995, %v6251
        %v6302 = vadd.f32 %v5996, %v6256
        %v6303 = vadd.f32 %v5997, %v6261
        %v6304 = vadd.f32 %v5998, %v6266
        %v6305 = vadd.f32 %v5999, %v6271
        %v6306 = vld [vmem:[%s5082 + $0x1] sm:$0xff]
        %v6307 = vld [vmem:[%s5082 + $0x9] sm:$0xff]
        %v6308 = vld [vmem:[%s5082 + $0x19] sm:$0xff]
        %v6309 = vld [vmem:[%s5082 + $0x21] sm:$0xff]
        %v6310 = vld [vmem:[%s5082 + $0x31] sm:$0xff]
        %v6311 = vld [vmem:[%s5082 + $0x39] sm:$0xff]
        %v6312 = vld [vmem:[%s5082 + $0x49] sm:$0xff]
        %v6313 = vld [vmem:[%s5082 + $0x51] sm:$0xff]
        %v6314 = vld [vmem:[%s5082 + $0x61] sm:$0xff]
        %v6315 = vld [vmem:[%s5082 + $0x69] sm:$0xff]
        %v6316 = vld [vmem:[%s5082 + $0x79] sm:$0xff]
        %v6317 = vld [vmem:[%s5082 + $0x81] sm:$0xff]
        %v6318 = vld [vmem:[%s5082 + $0x91] sm:$0xff]
        %v6319 = vld [vmem:[%s5082 + $0x99] sm:$0xff]
        %v6320 = vld [vmem:[%s5082 + $0xa9] sm:$0xff]
        %v6321 = vld [vmem:[%s5082 + $0xb1] sm:$0xff]
        %v6322 = vld [vmem:[%s5082 + $0xc1] sm:$0xff]
        %v6323 = vld [vmem:[%s5082 + $0xc9] sm:$0xff]
        %v6324 = vld [vmem:[%s5082 + $0xd9] sm:$0xff]
        %v6325 = vld [vmem:[%s5082 + $0xe1] sm:$0xff]
        %v6326 = vld [vmem:[%s5082 + $0xf1] sm:$0xff]
        %v6327 = vld [vmem:[%s5082 + $0xf9] sm:$0xff]
        %v6328 = vld [vmem:[%s5082 + $0x109] sm:$0xff]
        %v6329 = vld [vmem:[%s5082 + $0x111] sm:$0xff]
        %v6330 = vld [vmem:[%s5082 + $0x121] sm:$0xff]
        %v6331 = vld [vmem:[%s5082 + $0x129] sm:$0xff]
        %v6332 = vld [vmem:[%s5082 + $0x139] sm:$0xff]
        %v6333 = vld [vmem:[%s5082 + $0x141] sm:$0xff]
        %v6334 = vld [vmem:[%s5082 + $0x151] sm:$0xff]
        %v6335 = vld [vmem:[%s5082 + $0x159] sm:$0xff]
        %v6336 = vld [vmem:[%s5082 + $0x169] sm:$0xff]
        %v6337 = vld [vmem:[%s5082 + $0x171] sm:$0xff]
        %s6338 = scalar_lea.vmem [#allocation10], 512
        %v6339 = vld [vmem:[%s6338] sm:$0xff]
        %v6340 = vld [vmem:[%s6338 + $0x8] sm:$0xff]
        %v6341 = vld [vmem:[%s6338 + $0x10] sm:$0xff]
        %v6342 = vld [vmem:[%s6338 + $0x18] sm:$0xff]
        %v6343 = vld [vmem:[%s6338 + $0x20] sm:$0xff]
        %v6344 = vld [vmem:[%s6338 + $0x28] sm:$0xff]
        %v6345 = vld [vmem:[%s6338 + $0x30] sm:$0xff]
        %v6346 = vld [vmem:[%s6338 + $0x38] sm:$0xff]
        %v6347 = vld [vmem:[%s6338 + $0x40] sm:$0xff]
        %v6348 = vld [vmem:[%s6338 + $0x48] sm:$0xff]
        %v6349 = vld [vmem:[%s6338 + $0x50] sm:$0xff]
        %v6350 = vld [vmem:[%s6338 + $0x58] sm:$0xff]
        %v6351 = vld [vmem:[%s6338 + $0x60] sm:$0xff]
        %v6352 = vld [vmem:[%s6338 + $0x68] sm:$0xff]
        %v6353 = vld [vmem:[%s6338 + $0x70] sm:$0xff]
        %v6354 = vld [vmem:[%s6338 + $0x78] sm:$0xff]
        %6355 = vmatprep.subr.mxu0 0.0
        %6356 = vmatpush1.msra.mxu0 %v6339
        %6357 = vmatprep.subr.mxu0 0.0
        %6358 = vmatpush1.msra.mxu0 %v6340
        %6359 = vmatprep.subr.mxu0 0.0
        %6360 = vmatpush1.msra.mxu0 %v6341
        %6361 = vmatprep.subr.mxu0 0.0
        %6362 = vmatpush1.msra.mxu0 %v6342
        %6363 = vmatprep.subr.mxu0 0.0
        %6364 = vmatpush1.msra.mxu0 %v6343
        %6365 = vmatprep.subr.mxu0 0.0
        %6366 = vmatpush1.msra.mxu0 %v6344
        %6367 = vmatprep.subr.mxu0 0.0
        %6368 = vmatpush1.msra.mxu0 %v6345
        %6369 = vmatprep.subr.mxu0 0.0
        %6370 = vmatpush1.msra.mxu0 %v6346
        %6371 = vmatprep.subr.mxu0 0.0
        %6372 = vmatpush1.msra.mxu0 %v6347
        %6373 = vmatprep.subr.mxu0 0.0
        %6374 = vmatpush1.msra.mxu0 %v6348
        %6375 = vmatprep.subr.mxu0 0.0
        %6376 = vmatpush1.msra.mxu0 %v6349
        %6377 = vmatprep.subr.mxu0 0.0
        %6378 = vmatpush1.msra.mxu0 %v6350
        %6379 = vmatprep.subr.mxu0 0.0
        %6380 = vmatpush1.msra.mxu0 %v6351
        %6381 = vmatprep.subr.mxu0 0.0
        %6382 = vmatpush1.msra.mxu0 %v6352
        %6383 = vmatprep.subr.mxu0 0.0
        %6384 = vmatpush1.msra.mxu0 %v6353
        %6385 = vmatprep.subr.mxu0 0.0
        %6386 = vmatpush1.msra.mxu0 %v6354
        %6387 = vmatprep.subr.mxu0 0.0
        %6388 = vmatpush1.msra.mxu0 0.0
        %6389 = vmatprep.subr.mxu0 0.0
        %6390 = vmatpush1.msra.mxu0 0.0
        %6391 = vmatprep.subr.mxu0 0.0
        %6392 = vmatpush1.msra.mxu0 0.0
        %6393 = vmatprep.subr.mxu0 0.0
        %6394 = vmatpush1.msra.mxu0 0.0
        %6395 = vmatprep.subr.mxu0 0.0
        %6396 = vmatpush1.msra.mxu0 0.0
        %6397 = vmatprep.subr.mxu0 0.0
        %6398 = vmatpush1.msra.mxu0 0.0
        %6399 = vmatprep.subr.mxu0 0.0
        %6400 = vmatpush1.msra.mxu0 0.0
        %6401 = vmatprep.subr.mxu0 0.0
        %6402 = vmatpush1.msra.mxu0 0.0
        %6403 = vmatprep.subr.mxu0 0.0
        %6404 = vmatpush1.msra.mxu0 0.0
        %6405 = vmatprep.subr.mxu0 0.0
        %6406 = vmatpush1.msra.mxu0 0.0
        %6407 = vmatprep.subr.mxu0 0.0
        %6408 = vmatpush1.msra.mxu0 0.0
        %6409 = vmatprep.subr.mxu0 0.0
        %6410 = vmatpush1.msra.mxu0 0.0
        %6411 = vmatprep.subr.mxu0 0.0
        %6412 = vmatpush1.msra.mxu0 0.0
        %6413 = vmatprep.subr.mxu0 0.0
        %6414 = vmatpush1.msra.mxu0 0.0
        %6415 = vmatprep.subr.mxu0 0.0
        %6416 = vmatpush1.msra.mxu0 0.0
        %6417 = vmatprep.subr.mxu0 0.0
        %6418 = vmatpush1.msra.mxu0 0.0
        %6419 = vmatprep.mubr.f32.mxu0 0.0
        %6420 = vmatmul.mubr.f32.gmra.mrb[0].mxu0 %v6306
        %v6421 = vpop.f32.mrb[0].mxu0
        %v6422 = vadd.f32 0.0, %v6421
        %v6423 = vpop.f32.mrb[0].mxu0
        %6424 = vmatprep.mubr.f32.mxu0 0.0
        %6425 = vmatmul.mubr.f32.gmra.mrb[0].mxu0 %v6307
        %v6426 = vpop.f32.mrb[0].mxu0
        %v6427 = vadd.f32 0.0, %v6426
        %v6428 = vpop.f32.mrb[0].mxu0
        %6429 = vmatprep.mubr.f32.mxu0 0.0
        %6430 = vmatmul.mubr.f32.gmra.mrb[0].mxu0 %v6308
        %v6431 = vpop.f32.mrb[0].mxu0
        %v6432 = vadd.f32 0.0, %v6431
        %v6433 = vpop.f32.mrb[0].mxu0
        %6434 = vmatprep.mubr.f32.mxu0 0.0
        %6435 = vmatmul.mubr.f32.gmra.mrb[0].mxu0 %v6309
        %v6436 = vpop.f32.mrb[0].mxu0
        %v6437 = vadd.f32 0.0, %v6436
        %v6438 = vpop.f32.mrb[0].mxu0
        %6439 = vmatprep.mubr.f32.mxu0 0.0
        %6440 = vmatmul.mubr.f32.gmra.mrb[0].mxu0 %v6310
        %v6441 = vpop.f32.mrb[0].mxu0
        %v6442 = vadd.f32 0.0, %v6441
        %v6443 = vpop.f32.mrb[0].mxu0
        %6444 = vmatprep.mubr.f32.mxu0 0.0
        %6445 = vmatmul.mubr.f32.gmra.mrb[0].mxu0 %v6311
        %v6446 = vpop.f32.mrb[0].mxu0
        %v6447 = vadd.f32 0.0, %v6446
        %v6448 = vpop.f32.mrb[0].mxu0
        %6449 = vmatprep.mubr.f32.mxu0 0.0
        %6450 = vmatmul.mubr.f32.gmra.mrb[0].mxu0 %v6312
        %v6451 = vpop.f32.mrb[0].mxu0
        %v6452 = vadd.f32 0.0, %v6451
        %v6453 = vpop.f32.mrb[0].mxu0
        %6454 = vmatprep.mubr.f32.mxu0 0.0
        %6455 = vmatmul.mubr.f32.gmra.mrb[0].mxu0 %v6313
        %v6456 = vpop.f32.mrb[0].mxu0
        %v6457 = vadd.f32 0.0, %v6456
        %v6458 = vpop.f32.mrb[0].mxu0
        %6459 = vmatprep.mubr.f32.mxu0 0.0
        %6460 = vmatmul.mubr.f32.gmra.mrb[0].mxu0 %v6314
        %v6461 = vpop.f32.mrb[0].mxu0
        %v6462 = vadd.f32 0.0, %v6461
        %v6463 = vpop.f32.mrb[0].mxu0
        %6464 = vmatprep.mubr.f32.mxu0 0.0
        %6465 = vmatmul.mubr.f32.gmra.mrb[0].mxu0 %v6315
        %v6466 = vpop.f32.mrb[0].mxu0
        %v6467 = vadd.f32 0.0, %v6466
        %v6468 = vpop.f32.mrb[0].mxu0
        %6469 = vmatprep.mubr.f32.mxu0 0.0
        %6470 = vmatmul.mubr.f32.gmra.mrb[0].mxu0 %v6316
        %v6471 = vpop.f32.mrb[0].mxu0
        %v6472 = vadd.f32 0.0, %v6471
        %v6473 = vpop.f32.mrb[0].mxu0
        %6474 = vmatprep.mubr.f32.mxu0 0.0
        %6475 = vmatmul.mubr.f32.gmra.mrb[0].mxu0 %v6317
        %v6476 = vpop.f32.mrb[0].mxu0
        %v6477 = vadd.f32 0.0, %v6476
        %v6478 = vpop.f32.mrb[0].mxu0
        %6479 = vmatprep.mubr.f32.mxu0 0.0
        %6480 = vmatmul.mubr.f32.gmra.mrb[0].mxu0 %v6318
        %v6481 = vpop.f32.mrb[0].mxu0
        %v6482 = vadd.f32 0.0, %v6481
        %v6483 = vpop.f32.mrb[0].mxu0
        %6484 = vmatprep.mubr.f32.mxu0 0.0
        %6485 = vmatmul.mubr.f32.gmra.mrb[0].mxu0 %v6319
        %v6486 = vpop.f32.mrb[0].mxu0
        %v6487 = vadd.f32 0.0, %v6486
        %v6488 = vpop.f32.mrb[0].mxu0
        %6489 = vmatprep.mubr.f32.mxu0 0.0
        %6490 = vmatmul.mubr.f32.gmra.mrb[0].mxu0 %v6320
        %v6491 = vpop.f32.mrb[0].mxu0
        %v6492 = vadd.f32 0.0, %v6491
        %v6493 = vpop.f32.mrb[0].mxu0
        %6494 = vmatprep.mubr.f32.mxu0 0.0
        %6495 = vmatmul.mubr.f32.gmra.mrb[0].mxu0 %v6321
        %v6496 = vpop.f32.mrb[0].mxu0
        %v6497 = vadd.f32 0.0, %v6496
        %v6498 = vpop.f32.mrb[0].mxu0
        %6499 = vmatprep.mubr.f32.mxu0 0.0
        %6500 = vmatmul.mubr.f32.gmra.mrb[0].mxu0 %v6322
        %v6501 = vpop.f32.mrb[0].mxu0
        %v6502 = vadd.f32 0.0, %v6501
        %v6503 = vpop.f32.mrb[0].mxu0
        %6504 = vmatprep.mubr.f32.mxu0 0.0
        %6505 = vmatmul.mubr.f32.gmra.mrb[0].mxu0 %v6323
        %v6506 = vpop.f32.mrb[0].mxu0
        %v6507 = vadd.f32 0.0, %v6506
        %v6508 = vpop.f32.mrb[0].mxu0
        %6509 = vmatprep.mubr.f32.mxu0 0.0
        %6510 = vmatmul.mubr.f32.gmra.mrb[0].mxu0 %v6324
        %v6511 = vpop.f32.mrb[0].mxu0
        %v6512 = vadd.f32 0.0, %v6511
        %v6513 = vpop.f32.mrb[0].mxu0
        %6514 = vmatprep.mubr.f32.mxu0 0.0
        %6515 = vmatmul.mubr.f32.gmra.mrb[0].mxu0 %v6325
        %v6516 = vpop.f32.mrb[0].mxu0
        %v6517 = vadd.f32 0.0, %v6516
        %v6518 = vpop.f32.mrb[0].mxu0
        %6519 = vmatprep.mubr.f32.mxu0 0.0
        %6520 = vmatmul.mubr.f32.gmra.mrb[0].mxu0 %v6326
        %v6521 = vpop.f32.mrb[0].mxu0
        %v6522 = vadd.f32 0.0, %v6521
        %v6523 = vpop.f32.mrb[0].mxu0
        %6524 = vmatprep.mubr.f32.mxu0 0.0
        %6525 = vmatmul.mubr.f32.gmra.mrb[0].mxu0 %v6327
        %v6526 = vpop.f32.mrb[0].mxu0
        %v6527 = vadd.f32 0.0, %v6526
        %v6528 = vpop.f32.mrb[0].mxu0
        %6529 = vmatprep.mubr.f32.mxu0 0.0
        %6530 = vmatmul.mubr.f32.gmra.mrb[0].mxu0 %v6328
        %v6531 = vpop.f32.mrb[0].mxu0
        %v6532 = vadd.f32 0.0, %v6531
        %v6533 = vpop.f32.mrb[0].mxu0
        %6534 = vmatprep.mubr.f32.mxu0 0.0
        %6535 = vmatmul.mubr.f32.gmra.mrb[0].mxu0 %v6329
        %v6536 = vpop.f32.mrb[0].mxu0
        %v6537 = vadd.f32 0.0, %v6536
        %v6538 = vpop.f32.mrb[0].mxu0
        %6539 = vmatprep.mubr.f32.mxu0 0.0
        %6540 = vmatmul.mubr.f32.gmra.mrb[0].mxu0 %v6330
        %v6541 = vpop.f32.mrb[0].mxu0
        %v6542 = vadd.f32 0.0, %v6541
        %v6543 = vpop.f32.mrb[0].mxu0
        %6544 = vmatprep.mubr.f32.mxu0 0.0
        %6545 = vmatmul.mubr.f32.gmra.mrb[0].mxu0 %v6331
        %v6546 = vpop.f32.mrb[0].mxu0
        %v6547 = vadd.f32 0.0, %v6546
        %v6548 = vpop.f32.mrb[0].mxu0
        %6549 = vmatprep.mubr.f32.mxu0 0.0
        %6550 = vmatmul.mubr.f32.gmra.mrb[0].mxu0 %v6332
        %v6551 = vpop.f32.mrb[0].mxu0
        %v6552 = vadd.f32 0.0, %v6551
        %v6553 = vpop.f32.mrb[0].mxu0
        %6554 = vmatprep.mubr.f32.mxu0 0.0
        %6555 = vmatmul.mubr.f32.gmra.mrb[0].mxu0 %v6333
        %v6556 = vpop.f32.mrb[0].mxu0
        %v6557 = vadd.f32 0.0, %v6556
        %v6558 = vpop.f32.mrb[0].mxu0
        %6559 = vmatprep.mubr.f32.mxu0 0.0
        %6560 = vmatmul.mubr.f32.gmra.mrb[0].mxu0 %v6334
        %v6561 = vpop.f32.mrb[0].mxu0
        %v6562 = vadd.f32 0.0, %v6561
        %v6563 = vpop.f32.mrb[0].mxu0
        %6564 = vmatprep.mubr.f32.mxu0 0.0
        %6565 = vmatmul.mubr.f32.gmra.mrb[0].mxu0 %v6335
        %v6566 = vpop.f32.mrb[0].mxu0
        %v6567 = vadd.f32 0.0, %v6566
        %v6568 = vpop.f32.mrb[0].mxu0
        %6569 = vmatprep.mubr.f32.mxu0 0.0
        %6570 = vmatmul.mubr.f32.gmra.mrb[0].mxu0 %v6336
        %v6571 = vpop.f32.mrb[0].mxu0
        %v6572 = vadd.f32 0.0, %v6571
        %v6573 = vpop.f32.mrb[0].mxu0
        %6574 = vmatprep.mubr.f32.mxu0 0.0
        %6575 = vmatmul.mubr.f32.gmra.mrb[0].mxu0 %v6337
        %v6576 = vpop.f32.mrb[0].mxu0
        %v6577 = vadd.f32 0.0, %v6576
        %v6578 = vpop.f32.mrb[0].mxu0
        %6579 = vdwg.mxu0
        %v6580 = vadd.f32 %v6274, %v6422
        %v6581 = vadd.f32 %v6275, %v6427
        %v6582 = vadd.f32 %v6276, %v6432
        %v6583 = vadd.f32 %v6277, %v6437
        %v6584 = vadd.f32 %v6278, %v6442
        %v6585 = vadd.f32 %v6279, %v6447
        %v6586 = vadd.f32 %v6280, %v6452
        %v6587 = vadd.f32 %v6281, %v6457
        %v6588 = vadd.f32 %v6282, %v6462
        %v6589 = vadd.f32 %v6283, %v6467
        %v6590 = vadd.f32 %v6284, %v6472
        %v6591 = vadd.f32 %v6285, %v6477
        %v6592 = vadd.f32 %v6286, %v6482
        %v6593 = vadd.f32 %v6287, %v6487
        %v6594 = vadd.f32 %v6288, %v6492
        %v6595 = vadd.f32 %v6289, %v6497
        %v6596 = vadd.f32 %v6290, %v6502
        %v6597 = vadd.f32 %v6291, %v6507
        %v6598 = vadd.f32 %v6292, %v6512
        %v6599 = vadd.f32 %v6293, %v6517
        %v6600 = vadd.f32 %v6294, %v6522
        %v6601 = vadd.f32 %v6295, %v6527
        %v6602 = vadd.f32 %v6296, %v6532
        %v6603 = vadd.f32 %v6297, %v6537
        %v6604 = vadd.f32 %v6298, %v6542
        %v6605 = vadd.f32 %v6299, %v6547
        %v6606 = vadd.f32 %v6300, %v6552
        %v6607 = vadd.f32 %v6301, %v6557
        %v6608 = vadd.f32 %v6302, %v6562
        %v6609 = vadd.f32 %v6303, %v6567
        %v6610 = vadd.f32 %v6304, %v6572
        %v6611 = vadd.f32 %v6305, %v6577
        %v6612 = vld [vmem:[%s5082 + $0x2] sm:$0xff]
        %v6613 = vld [vmem:[%s5082 + $0xa] sm:$0xff]
        %v6614 = vld [vmem:[%s5082 + $0x1a] sm:$0xff]
        %v6615 = vld [vmem:[%s5082 + $0x22] sm:$0xff]
        %v6616 = vld [vmem:[%s5082 + $0x32] sm:$0xff]
        %v6617 = vld [vmem:[%s5082 + $0x3a] sm:$0xff]
        %v6618 = vld [vmem:[%s5082 + $0x4a] sm:$0xff]
        %v6619 = vld [vmem:[%s5082 + $0x52] sm:$0xff]
        %v6620 = vld [vmem:[%s5082 + $0x62] sm:$0xff]
        %v6621 = vld [vmem:[%s5082 + $0x6a] sm:$0xff]
        %v6622 = vld [vmem:[%s5082 + $0x7a] sm:$0xff]
        %v6623 = vld [vmem:[%s5082 + $0x82] sm:$0xff]
        %v6624 = vld [vmem:[%s5082 + $0x92] sm:$0xff]
        %v6625 = vld [vmem:[%s5082 + $0x9a] sm:$0xff]
        %v6626 = vld [vmem:[%s5082 + $0xaa] sm:$0xff]
        %v6627 = vld [vmem:[%s5082 + $0xb2] sm:$0xff]
        %v6628 = vld [vmem:[%s5082 + $0xc2] sm:$0xff]
        %v6629 = vld [vmem:[%s5082 + $0xca] sm:$0xff]
        %v6630 = vld [vmem:[%s5082 + $0xda] sm:$0xff]
        %v6631 = vld [vmem:[%s5082 + $0xe2] sm:$0xff]
        %v6632 = vld [vmem:[%s5082 + $0xf2] sm:$0xff]
        %v6633 = vld [vmem:[%s5082 + $0xfa] sm:$0xff]
        %v6634 = vld [vmem:[%s5082 + $0x10a] sm:$0xff]
        %v6635 = vld [vmem:[%s5082 + $0x112] sm:$0xff]
        %v6636 = vld [vmem:[%s5082 + $0x122] sm:$0xff]
        %v6637 = vld [vmem:[%s5082 + $0x12a] sm:$0xff]
        %v6638 = vld [vmem:[%s5082 + $0x13a] sm:$0xff]
        %v6639 = vld [vmem:[%s5082 + $0x142] sm:$0xff]
        %v6640 = vld [vmem:[%s5082 + $0x152] sm:$0xff]
        %v6641 = vld [vmem:[%s5082 + $0x15a] sm:$0xff]
        %v6642 = vld [vmem:[%s5082 + $0x16a] sm:$0xff]
        %v6643 = vld [vmem:[%s5082 + $0x172] sm:$0xff]
        %s6644 = scalar_lea.vmem [#allocation10], 640
        %v6645 = vld [vmem:[%s6644] sm:$0xff]
        %v6646 = vld [vmem:[%s6644 + $0x8] sm:$0xff]
        %v6647 = vld [vmem:[%s6644 + $0x10] sm:$0xff]
        %v6648 = vld [vmem:[%s6644 + $0x18] sm:$0xff]
        %v6649 = vld [vmem:[%s6644 + $0x20] sm:$0xff]
        %v6650 = vld [vmem:[%s6644 + $0x28] sm:$0xff]
        %v6651 = vld [vmem:[%s6644 + $0x30] sm:$0xff]
        %v6652 = vld [vmem:[%s6644 + $0x38] sm:$0xff]
        %v6653 = vld [vmem:[%s6644 + $0x40] sm:$0xff]
        %v6654 = vld [vmem:[%s6644 + $0x48] sm:$0xff]
        %v6655 = vld [vmem:[%s6644 + $0x50] sm:$0xff]
        %v6656 = vld [vmem:[%s6644 + $0x58] sm:$0xff]
        %v6657 = vld [vmem:[%s6644 + $0x60] sm:$0xff]
        %v6658 = vld [vmem:[%s6644 + $0x68] sm:$0xff]
        %v6659 = vld [vmem:[%s6644 + $0x70] sm:$0xff]
        %v6660 = vld [vmem:[%s6644 + $0x78] sm:$0xff]
        %6661 = vmatprep.subr.mxu0 0.0
        %6662 = vmatpush1.msra.mxu0 %v6645
        %6663 = vmatprep.subr.mxu0 0.0
        %6664 = vmatpush1.msra.mxu0 %v6646
        %6665 = vmatprep.subr.mxu0 0.0
        %6666 = vmatpush1.msra.mxu0 %v6647
        %6667 = vmatprep.subr.mxu0 0.0
        %6668 = vmatpush1.msra.mxu0 %v6648
        %6669 = vmatprep.subr.mxu0 0.0
        %6670 = vmatpush1.msra.mxu0 %v6649
        %6671 = vmatprep.subr.mxu0 0.0
        %6672 = vmatpush1.msra.mxu0 %v6650
        %6673 = vmatprep.subr.mxu0 0.0
        %6674 = vmatpush1.msra.mxu0 %v6651
        %6675 = vmatprep.subr.mxu0 0.0
        %6676 = vmatpush1.msra.mxu0 %v6652
        %6677 = vmatprep.subr.mxu0 0.0
        %6678 = vmatpush1.msra.mxu0 %v6653
        %6679 = vmatprep.subr.mxu0 0.0
        %6680 = vmatpush1.msra.mxu0 %v6654
        %6681 = vmatprep.subr.mxu0 0.0
        %6682 = vmatpush1.msra.mxu0 %v6655
        %6683 = vmatprep.subr.mxu0 0.0
        %6684 = vmatpush1.msra.mxu0 %v6656
        %6685 = vmatprep.subr.mxu0 0.0
        %6686 = vmatpush1.msra.mxu0 %v6657
        %6687 = vmatprep.subr.mxu0 0.0
        %6688 = vmatpush1.msra.mxu0 %v6658
        %6689 = vmatprep.subr.mxu0 0.0
        %6690 = vmatpush1.msra.mxu0 %v6659
        %6691 = vmatprep.subr.mxu0 0.0
        %6692 = vmatpush1.msra.mxu0 %v6660
        %6693 = vmatprep.subr.mxu0 0.0
        %6694 = vmatpush1.msra.mxu0 0.0
        %6695 = vmatprep.subr.mxu0 0.0
        %6696 = vmatpush1.msra.mxu0 0.0
        %6697 = vmatprep.subr.mxu0 0.0
        %6698 = vmatpush1.msra.mxu0 0.0
        %6699 = vmatprep.subr.mxu0 0.0
        %6700 = vmatpush1.msra.mxu0 0.0
        %6701 = vmatprep.subr.mxu0 0.0
        %6702 = vmatpush1.msra.mxu0 0.0
        %6703 = vmatprep.subr.mxu0 0.0
        %6704 = vmatpush1.msra.mxu0 0.0
        %6705 = vmatprep.subr.mxu0 0.0
        %6706 = vmatpush1.msra.mxu0 0.0
        %6707 = vmatprep.subr.mxu0 0.0
        %6708 = vmatpush1.msra.mxu0 0.0
        %6709 = vmatprep.subr.mxu0 0.0
        %6710 = vmatpush1.msra.mxu0 0.0
        %6711 = vmatprep.subr.mxu0 0.0
        %6712 = vmatpush1.msra.mxu0 0.0
        %6713 = vmatprep.subr.mxu0 0.0
        %6714 = vmatpush1.msra.mxu0 0.0
        %6715 = vmatprep.subr.mxu0 0.0
        %6716 = vmatpush1.msra.mxu0 0.0
        %6717 = vmatprep.subr.mxu0 0.0
        %6718 = vmatpush1.msra.mxu0 0.0
        %6719 = vmatprep.subr.mxu0 0.0
        %6720 = vmatpush1.msra.mxu0 0.0
        %6721 = vmatprep.subr.mxu0 0.0
        %6722 = vmatpush1.msra.mxu0 0.0
        %6723 = vmatprep.subr.mxu0 0.0
        %6724 = vmatpush1.msra.mxu0 0.0
        %6725 = vmatprep.mubr.f32.mxu0 0.0
        %6726 = vmatmul.mubr.f32.gmra.mrb[0].mxu0 %v6612
        %v6727 = vpop.f32.mrb[0].mxu0
        %v6728 = vadd.f32 0.0, %v6727
        %v6729 = vpop.f32.mrb[0].mxu0
        %6730 = vmatprep.mubr.f32.mxu0 0.0
        %6731 = vmatmul.mubr.f32.gmra.mrb[0].mxu0 %v6613
        %v6732 = vpop.f32.mrb[0].mxu0
        %v6733 = vadd.f32 0.0, %v6732
        %v6734 = vpop.f32.mrb[0].mxu0
        %6735 = vmatprep.mubr.f32.mxu0 0.0
        %6736 = vmatmul.mubr.f32.gmra.mrb[0].mxu0 %v6614
        %v6737 = vpop.f32.mrb[0].mxu0
        %v6738 = vadd.f32 0.0, %v6737
        %v6739 = vpop.f32.mrb[0].mxu0
        %6740 = vmatprep.mubr.f32.mxu0 0.0
        %6741 = vmatmul.mubr.f32.gmra.mrb[0].mxu0 %v6615
        %v6742 = vpop.f32.mrb[0].mxu0
        %v6743 = vadd.f32 0.0, %v6742
        %v6744 = vpop.f32.mrb[0].mxu0
        %6745 = vmatprep.mubr.f32.mxu0 0.0
        %6746 = vmatmul.mubr.f32.gmra.mrb[0].mxu0 %v6616
        %v6747 = vpop.f32.mrb[0].mxu0
        %v6748 = vadd.f32 0.0, %v6747
        %v6749 = vpop.f32.mrb[0].mxu0
        %6750 = vmatprep.mubr.f32.mxu0 0.0
        %6751 = vmatmul.mubr.f32.gmra.mrb[0].mxu0 %v6617
        %v6752 = vpop.f32.mrb[0].mxu0
        %v6753 = vadd.f32 0.0, %v6752
        %v6754 = vpop.f32.mrb[0].mxu0
        %6755 = vmatprep.mubr.f32.mxu0 0.0
        %6756 = vmatmul.mubr.f32.gmra.mrb[0].mxu0 %v6618
        %v6757 = vpop.f32.mrb[0].mxu0
        %v6758 = vadd.f32 0.0, %v6757
        %v6759 = vpop.f32.mrb[0].mxu0
        %6760 = vmatprep.mubr.f32.mxu0 0.0
        %6761 = vmatmul.mubr.f32.gmra.mrb[0].mxu0 %v6619
        %v6762 = vpop.f32.mrb[0].mxu0
        %v6763 = vadd.f32 0.0, %v6762
        %v6764 = vpop.f32.mrb[0].mxu0
        %6765 = vmatprep.mubr.f32.mxu0 0.0
        %6766 = vmatmul.mubr.f32.gmra.mrb[0].mxu0 %v6620
        %v6767 = vpop.f32.mrb[0].mxu0
        %v6768 = vadd.f32 0.0, %v6767
        %v6769 = vpop.f32.mrb[0].mxu0
        %6770 = vmatprep.mubr.f32.mxu0 0.0
        %6771 = vmatmul.mubr.f32.gmra.mrb[0].mxu0 %v6621
        %v6772 = vpop.f32.mrb[0].mxu0
        %v6773 = vadd.f32 0.0, %v6772
        %v6774 = vpop.f32.mrb[0].mxu0
        %6775 = vmatprep.mubr.f32.mxu0 0.0
        %6776 = vmatmul.mubr.f32.gmra.mrb[0].mxu0 %v6622
        %v6777 = vpop.f32.mrb[0].mxu0
        %v6778 = vadd.f32 0.0, %v6777
        %v6779 = vpop.f32.mrb[0].mxu0
        %6780 = vmatprep.mubr.f32.mxu0 0.0
        %6781 = vmatmul.mubr.f32.gmra.mrb[0].mxu0 %v6623
        %v6782 = vpop.f32.mrb[0].mxu0
        %v6783 = vadd.f32 0.0, %v6782
        %v6784 = vpop.f32.mrb[0].mxu0
        %6785 = vmatprep.mubr.f32.mxu0 0.0
        %6786 = vmatmul.mubr.f32.gmra.mrb[0].mxu0 %v6624
        %v6787 = vpop.f32.mrb[0].mxu0
        %v6788 = vadd.f32 0.0, %v6787
        %v6789 = vpop.f32.mrb[0].mxu0
        %6790 = vmatprep.mubr.f32.mxu0 0.0
        %6791 = vmatmul.mubr.f32.gmra.mrb[0].mxu0 %v6625
        %v6792 = vpop.f32.mrb[0].mxu0
        %v6793 = vadd.f32 0.0, %v6792
        %v6794 = vpop.f32.mrb[0].mxu0
        %6795 = vmatprep.mubr.f32.mxu0 0.0
        %6796 = vmatmul.mubr.f32.gmra.mrb[0].mxu0 %v6626
        %v6797 = vpop.f32.mrb[0].mxu0
        %v6798 = vadd.f32 0.0, %v6797
        %v6799 = vpop.f32.mrb[0].mxu0
        %6800 = vmatprep.mubr.f32.mxu0 0.0
        %6801 = vmatmul.mubr.f32.gmra.mrb[0].mxu0 %v6627
        %v6802 = vpop.f32.mrb[0].mxu0
        %v6803 = vadd.f32 0.0, %v6802
        %v6804 = vpop.f32.mrb[0].mxu0
        %6805 = vmatprep.mubr.f32.mxu0 0.0
        %6806 = vmatmul.mubr.f32.gmra.mrb[0].mxu0 %v6628
        %v6807 = vpop.f32.mrb[0].mxu0
        %v6808 = vadd.f32 0.0, %v6807
        %v6809 = vpop.f32.mrb[0].mxu0
        %6810 = vmatprep.mubr.f32.mxu0 0.0
        %6811 = vmatmul.mubr.f32.gmra.mrb[0].mxu0 %v6629
        %v6812 = vpop.f32.mrb[0].mxu0
        %v6813 = vadd.f32 0.0, %v6812
        %v6814 = vpop.f32.mrb[0].mxu0
        %6815 = vmatprep.mubr.f32.mxu0 0.0
        %6816 = vmatmul.mubr.f32.gmra.mrb[0].mxu0 %v6630
        %v6817 = vpop.f32.mrb[0].mxu0
        %v6818 = vadd.f32 0.0, %v6817
        %v6819 = vpop.f32.mrb[0].mxu0
        %6820 = vmatprep.mubr.f32.mxu0 0.0
        %6821 = vmatmul.mubr.f32.gmra.mrb[0].mxu0 %v6631
        %v6822 = vpop.f32.mrb[0].mxu0
        %v6823 = vadd.f32 0.0, %v6822
        %v6824 = vpop.f32.mrb[0].mxu0
        %6825 = vmatprep.mubr.f32.mxu0 0.0
        %6826 = vmatmul.mubr.f32.gmra.mrb[0].mxu0 %v6632
        %v6827 = vpop.f32.mrb[0].mxu0
        %v6828 = vadd.f32 0.0, %v6827
        %v6829 = vpop.f32.mrb[0].mxu0
        %6830 = vmatprep.mubr.f32.mxu0 0.0
        %6831 = vmatmul.mubr.f32.gmra.mrb[0].mxu0 %v6633
        %v6832 = vpop.f32.mrb[0].mxu0
        %v6833 = vadd.f32 0.0, %v6832
        %v6834 = vpop.f32.mrb[0].mxu0
        %6835 = vmatprep.mubr.f32.mxu0 0.0
        %6836 = vmatmul.mubr.f32.gmra.mrb[0].mxu0 %v6634
        %v6837 = vpop.f32.mrb[0].mxu0
        %v6838 = vadd.f32 0.0, %v6837
        %v6839 = vpop.f32.mrb[0].mxu0
        %6840 = vmatprep.mubr.f32.mxu0 0.0
        %6841 = vmatmul.mubr.f32.gmra.mrb[0].mxu0 %v6635
        %v6842 = vpop.f32.mrb[0].mxu0
        %v6843 = vadd.f32 0.0, %v6842
        %v6844 = vpop.f32.mrb[0].mxu0
        %6845 = vmatprep.mubr.f32.mxu0 0.0
        %6846 = vmatmul.mubr.f32.gmra.mrb[0].mxu0 %v6636
        %v6847 = vpop.f32.mrb[0].mxu0
        %v6848 = vadd.f32 0.0, %v6847
        %v6849 = vpop.f32.mrb[0].mxu0
        %6850 = vmatprep.mubr.f32.mxu0 0.0
        %6851 = vmatmul.mubr.f32.gmra.mrb[0].mxu0 %v6637
        %v6852 = vpop.f32.mrb[0].mxu0
        %v6853 = vadd.f32 0.0, %v6852
        %v6854 = vpop.f32.mrb[0].mxu0
        %6855 = vmatprep.mubr.f32.mxu0 0.0
        %6856 = vmatmul.mubr.f32.gmra.mrb[0].mxu0 %v6638
        %v6857 = vpop.f32.mrb[0].mxu0
        %v6858 = vadd.f32 0.0, %v6857
        %v6859 = vpop.f32.mrb[0].mxu0
        %6860 = vmatprep.mubr.f32.mxu0 0.0
        %6861 = vmatmul.mubr.f32.gmra.mrb[0].mxu0 %v6639
        %v6862 = vpop.f32.mrb[0].mxu0
        %v6863 = vadd.f32 0.0, %v6862
        %v6864 = vpop.f32.mrb[0].mxu0
        %6865 = vmatprep.mubr.f32.mxu0 0.0
        %6866 = vmatmul.mubr.f32.gmra.mrb[0].mxu0 %v6640
        %v6867 = vpop.f32.mrb[0].mxu0
        %v6868 = vadd.f32 0.0, %v6867
        %v6869 = vpop.f32.mrb[0].mxu0
        %6870 = vmatprep.mubr.f32.mxu0 0.0
        %6871 = vmatmul.mubr.f32.gmra.mrb[0].mxu0 %v6641
        %v6872 = vpop.f32.mrb[0].mxu0
        %v6873 = vadd.f32 0.0, %v6872
        %v6874 = vpop.f32.mrb[0].mxu0
        %6875 = vmatprep.mubr.f32.mxu0 0.0
        %6876 = vmatmul.mubr.f32.gmra.mrb[0].mxu0 %v6642
        %v6877 = vpop.f32.mrb[0].mxu0
        %v6878 = vadd.f32 0.0, %v6877
        %v6879 = vpop.f32.mrb[0].mxu0
        %6880 = vmatprep.mubr.f32.mxu0 0.0
        %6881 = vmatmul.mubr.f32.gmra.mrb[0].mxu0 %v6643
        %v6882 = vpop.f32.mrb[0].mxu0
        %v6883 = vadd.f32 0.0, %v6882
        %v6884 = vpop.f32.mrb[0].mxu0
        %6885 = vdwg.mxu0
        %v6886 = vadd.f32 %v6580, %v6728
        %v6887 = vadd.f32 %v6581, %v6733
        %v6888 = vadd.f32 %v6582, %v6738
        %v6889 = vadd.f32 %v6583, %v6743
        %v6890 = vadd.f32 %v6584, %v6748
        %v6891 = vadd.f32 %v6585, %v6753
        %v6892 = vadd.f32 %v6586, %v6758
        %v6893 = vadd.f32 %v6587, %v6763
        %v6894 = vadd.f32 %v6588, %v6768
        %v6895 = vadd.f32 %v6589, %v6773
        %v6896 = vadd.f32 %v6590, %v6778
        %v6897 = vadd.f32 %v6591, %v6783
        %v6898 = vadd.f32 %v6592, %v6788
        %v6899 = vadd.f32 %v6593, %v6793
        %v6900 = vadd.f32 %v6594, %v6798
        %v6901 = vadd.f32 %v6595, %v6803
        %v6902 = vadd.f32 %v6596, %v6808
        %v6903 = vadd.f32 %v6597, %v6813
        %v6904 = vadd.f32 %v6598, %v6818
        %v6905 = vadd.f32 %v6599, %v6823
        %v6906 = vadd.f32 %v6600, %v6828
        %v6907 = vadd.f32 %v6601, %v6833
        %v6908 = vadd.f32 %v6602, %v6838
        %v6909 = vadd.f32 %v6603, %v6843
        %v6910 = vadd.f32 %v6604, %v6848
        %v6911 = vadd.f32 %v6605, %v6853
        %v6912 = vadd.f32 %v6606, %v6858
        %v6913 = vadd.f32 %v6607, %v6863
        %v6914 = vadd.f32 %v6608, %v6868
        %v6915 = vadd.f32 %v6609, %v6873
        %v6916 = vadd.f32 %v6610, %v6878
        %v6917 = vadd.f32 %v6611, %v6883
        %s6918 = scalar_lea.vmem [#allocation3], 48
        %v6919 = vld [vmem:[%s6918] sm:$0xff]
        %v6920 = vld [vmem:[%s6918 + $0x8] sm:$0xff]
        %v6921 = vld [vmem:[%s6918 + $0x18] sm:$0xff]
        %v6922 = vld [vmem:[%s6918 + $0x20] sm:$0xff]
        %v6923 = vld [vmem:[%s6918 + $0x30] sm:$0xff]
        %v6924 = vld [vmem:[%s6918 + $0x38] sm:$0xff]
        %v6925 = vld [vmem:[%s6918 + $0x48] sm:$0xff]
        %v6926 = vld [vmem:[%s6918 + $0x50] sm:$0xff]
        %v6927 = vld [vmem:[%s6918 + $0x60] sm:$0xff]
        %v6928 = vld [vmem:[%s6918 + $0x68] sm:$0xff]
        %v6929 = vld [vmem:[%s6918 + $0x78] sm:$0xff]
        %v6930 = vld [vmem:[%s6918 + $0x80] sm:$0xff]
        %v6931 = vld [vmem:[%s6918 + $0x90] sm:$0xff]
        %v6932 = vld [vmem:[%s6918 + $0x98] sm:$0xff]
        %v6933 = vld [vmem:[%s6918 + $0xa8] sm:$0xff]
        %v6934 = vld [vmem:[%s6918 + $0xb0] sm:$0xff]
        %v6935 = vld [vmem:[%s6918 + $0xc0] sm:$0xff]
        %v6936 = vld [vmem:[%s6918 + $0xc8] sm:$0xff]
        %v6937 = vld [vmem:[%s6918 + $0xd8] sm:$0xff]
        %v6938 = vld [vmem:[%s6918 + $0xe0] sm:$0xff]
        %v6939 = vld [vmem:[%s6918 + $0xf0] sm:$0xff]
        %v6940 = vld [vmem:[%s6918 + $0xf8] sm:$0xff]
        %v6941 = vld [vmem:[%s6918 + $0x108] sm:$0xff]
        %v6942 = vld [vmem:[%s6918 + $0x110] sm:$0xff]
        %v6943 = vld [vmem:[%s6918 + $0x120] sm:$0xff]
        %v6944 = vld [vmem:[%s6918 + $0x128] sm:$0xff]
        %v6945 = vld [vmem:[%s6918 + $0x138] sm:$0xff]
        %v6946 = vld [vmem:[%s6918 + $0x140] sm:$0xff]
        %v6947 = vld [vmem:[%s6918 + $0x150] sm:$0xff]
        %v6948 = vld [vmem:[%s6918 + $0x158] sm:$0xff]
        %v6949 = vld [vmem:[%s6918 + $0x168] sm:$0xff]
        %v6950 = vld [vmem:[%s6918 + $0x170] sm:$0xff]
        %s6951 = scalar_lea.vmem [#allocation10], 768
        %v6952 = vld [vmem:[%s6951] sm:$0xff]
        %v6953 = vld [vmem:[%s6951 + $0x8] sm:$0xff]
        %v6954 = vld [vmem:[%s6951 + $0x10] sm:$0xff]
        %v6955 = vld [vmem:[%s6951 + $0x18] sm:$0xff]
        %v6956 = vld [vmem:[%s6951 + $0x20] sm:$0xff]
        %v6957 = vld [vmem:[%s6951 + $0x28] sm:$0xff]
        %v6958 = vld [vmem:[%s6951 + $0x30] sm:$0xff]
        %v6959 = vld [vmem:[%s6951 + $0x38] sm:$0xff]
        %v6960 = vld [vmem:[%s6951 + $0x40] sm:$0xff]
        %v6961 = vld [vmem:[%s6951 + $0x48] sm:$0xff]
        %v6962 = vld [vmem:[%s6951 + $0x50] sm:$0xff]
        %v6963 = vld [vmem:[%s6951 + $0x58] sm:$0xff]
        %v6964 = vld [vmem:[%s6951 + $0x60] sm:$0xff]
        %v6965 = vld [vmem:[%s6951 + $0x68] sm:$0xff]
        %v6966 = vld [vmem:[%s6951 + $0x70] sm:$0xff]
        %v6967 = vld [vmem:[%s6951 + $0x78] sm:$0xff]
        %6968 = vmatprep.subr.mxu0 0.0
        %6969 = vmatpush1.msra.mxu0 %v6952
        %6970 = vmatprep.subr.mxu0 0.0
        %6971 = vmatpush1.msra.mxu0 %v6953
        %6972 = vmatprep.subr.mxu0 0.0
        %6973 = vmatpush1.msra.mxu0 %v6954
        %6974 = vmatprep.subr.mxu0 0.0
        %6975 = vmatpush1.msra.mxu0 %v6955
        %6976 = vmatprep.subr.mxu0 0.0
        %6977 = vmatpush1.msra.mxu0 %v6956
        %6978 = vmatprep.subr.mxu0 0.0
        %6979 = vmatpush1.msra.mxu0 %v6957
        %6980 = vmatprep.subr.mxu0 0.0
        %6981 = vmatpush1.msra.mxu0 %v6958
        %6982 = vmatprep.subr.mxu0 0.0
        %6983 = vmatpush1.msra.mxu0 %v6959
        %6984 = vmatprep.subr.mxu0 0.0
        %6985 = vmatpush1.msra.mxu0 %v6960
        %6986 = vmatprep.subr.mxu0 0.0
        %6987 = vmatpush1.msra.mxu0 %v6961
        %6988 = vmatprep.subr.mxu0 0.0
        %6989 = vmatpush1.msra.mxu0 %v6962
        %6990 = vmatprep.subr.mxu0 0.0
        %6991 = vmatpush1.msra.mxu0 %v6963
        %6992 = vmatprep.subr.mxu0 0.0
        %6993 = vmatpush1.msra.mxu0 %v6964
        %6994 = vmatprep.subr.mxu0 0.0
        %6995 = vmatpush1.msra.mxu0 %v6965
        %6996 = vmatprep.subr.mxu0 0.0
        %6997 = vmatpush1.msra.mxu0 %v6966
        %6998 = vmatprep.subr.mxu0 0.0
        %6999 = vmatpush1.msra.mxu0 %v6967
        %7000 = vmatprep.subr.mxu0 0.0
        %7001 = vmatpush1.msra.mxu0 0.0
        %7002 = vmatprep.subr.mxu0 0.0
        %7003 = vmatpush1.msra.mxu0 0.0
        %7004 = vmatprep.subr.mxu0 0.0
        %7005 = vmatpush1.msra.mxu0 0.0
        %7006 = vmatprep.subr.mxu0 0.0
        %7007 = vmatpush1.msra.mxu0 0.0
        %7008 = vmatprep.subr.mxu0 0.0
        %7009 = vmatpush1.msra.mxu0 0.0
        %7010 = vmatprep.subr.mxu0 0.0
        %7011 = vmatpush1.msra.mxu0 0.0
        %7012 = vmatprep.subr.mxu0 0.0
        %7013 = vmatpush1.msra.mxu0 0.0
        %7014 = vmatprep.subr.mxu0 0.0
        %7015 = vmatpush1.msra.mxu0 0.0
        %7016 = vmatprep.subr.mxu0 0.0
        %7017 = vmatpush1.msra.mxu0 0.0
        %7018 = vmatprep.subr.mxu0 0.0
        %7019 = vmatpush1.msra.mxu0 0.0
        %7020 = vmatprep.subr.mxu0 0.0
        %7021 = vmatpush1.msra.mxu0 0.0
        %7022 = vmatprep.subr.mxu0 0.0
        %7023 = vmatpush1.msra.mxu0 0.0
        %7024 = vmatprep.subr.mxu0 0.0
        %7025 = vmatpush1.msra.mxu0 0.0
        %7026 = vmatprep.subr.mxu0 0.0
        %7027 = vmatpush1.msra.mxu0 0.0
        %7028 = vmatprep.subr.mxu0 0.0
        %7029 = vmatpush1.msra.mxu0 0.0
        %7030 = vmatprep.subr.mxu0 0.0
        %7031 = vmatpush1.msra.mxu0 0.0
        %7032 = vmatprep.mubr.f32.mxu0 0.0
        %7033 = vmatmul.mubr.f32.gmra.mrb[0].mxu0 %v6919
        %v7034 = vpop.f32.mrb[0].mxu0
        %v7035 = vadd.f32 0.0, %v7034
        %v7036 = vpop.f32.mrb[0].mxu0
        %7037 = vmatprep.mubr.f32.mxu0 0.0
        %7038 = vmatmul.mubr.f32.gmra.mrb[0].mxu0 %v6920
        %v7039 = vpop.f32.mrb[0].mxu0
        %v7040 = vadd.f32 0.0, %v7039
        %v7041 = vpop.f32.mrb[0].mxu0
        %7042 = vmatprep.mubr.f32.mxu0 0.0
        %7043 = vmatmul.mubr.f32.gmra.mrb[0].mxu0 %v6921
        %v7044 = vpop.f32.mrb[0].mxu0
        %v7045 = vadd.f32 0.0, %v7044
        %v7046 = vpop.f32.mrb[0].mxu0
        %7047 = vmatprep.mubr.f32.mxu0 0.0
        %7048 = vmatmul.mubr.f32.gmra.mrb[0].mxu0 %v6922
        %v7049 = vpop.f32.mrb[0].mxu0
        %v7050 = vadd.f32 0.0, %v7049
        %v7051 = vpop.f32.mrb[0].mxu0
        %7052 = vmatprep.mubr.f32.mxu0 0.0
        %7053 = vmatmul.mubr.f32.gmra.mrb[0].mxu0 %v6923
        %v7054 = vpop.f32.mrb[0].mxu0
        %v7055 = vadd.f32 0.0, %v7054
        %v7056 = vpop.f32.mrb[0].mxu0
        %7057 = vmatprep.mubr.f32.mxu0 0.0
        %7058 = vmatmul.mubr.f32.gmra.mrb[0].mxu0 %v6924
        %v7059 = vpop.f32.mrb[0].mxu0
        %v7060 = vadd.f32 0.0, %v7059
        %v7061 = vpop.f32.mrb[0].mxu0
        %7062 = vmatprep.mubr.f32.mxu0 0.0
        %7063 = vmatmul.mubr.f32.gmra.mrb[0].mxu0 %v6925
        %v7064 = vpop.f32.mrb[0].mxu0
        %v7065 = vadd.f32 0.0, %v7064
        %v7066 = vpop.f32.mrb[0].mxu0
        %7067 = vmatprep.mubr.f32.mxu0 0.0
        %7068 = vmatmul.mubr.f32.gmra.mrb[0].mxu0 %v6926
        %v7069 = vpop.f32.mrb[0].mxu0
        %v7070 = vadd.f32 0.0, %v7069
        %v7071 = vpop.f32.mrb[0].mxu0
        %7072 = vmatprep.mubr.f32.mxu0 0.0
        %7073 = vmatmul.mubr.f32.gmra.mrb[0].mxu0 %v6927
        %v7074 = vpop.f32.mrb[0].mxu0
        %v7075 = vadd.f32 0.0, %v7074
        %v7076 = vpop.f32.mrb[0].mxu0
        %7077 = vmatprep.mubr.f32.mxu0 0.0
        %7078 = vmatmul.mubr.f32.gmra.mrb[0].mxu0 %v6928
        %v7079 = vpop.f32.mrb[0].mxu0
        %v7080 = vadd.f32 0.0, %v7079
        %v7081 = vpop.f32.mrb[0].mxu0
        %7082 = vmatprep.mubr.f32.mxu0 0.0
        %7083 = vmatmul.mubr.f32.gmra.mrb[0].mxu0 %v6929
        %v7084 = vpop.f32.mrb[0].mxu0
        %v7085 = vadd.f32 0.0, %v7084
        %v7086 = vpop.f32.mrb[0].mxu0
        %7087 = vmatprep.mubr.f32.mxu0 0.0
        %7088 = vmatmul.mubr.f32.gmra.mrb[0].mxu0 %v6930
        %v7089 = vpop.f32.mrb[0].mxu0
        %v7090 = vadd.f32 0.0, %v7089
        %v7091 = vpop.f32.mrb[0].mxu0
        %7092 = vmatprep.mubr.f32.mxu0 0.0
        %7093 = vmatmul.mubr.f32.gmra.mrb[0].mxu0 %v6931
        %v7094 = vpop.f32.mrb[0].mxu0
        %v7095 = vadd.f32 0.0, %v7094
        %v7096 = vpop.f32.mrb[0].mxu0
        %7097 = vmatprep.mubr.f32.mxu0 0.0
        %7098 = vmatmul.mubr.f32.gmra.mrb[0].mxu0 %v6932
        %v7099 = vpop.f32.mrb[0].mxu0
        %v7100 = vadd.f32 0.0, %v7099
        %v7101 = vpop.f32.mrb[0].mxu0
        %7102 = vmatprep.mubr.f32.mxu0 0.0
        %7103 = vmatmul.mubr.f32.gmra.mrb[0].mxu0 %v6933
        %v7104 = vpop.f32.mrb[0].mxu0
        %v7105 = vadd.f32 0.0, %v7104
        %v7106 = vpop.f32.mrb[0].mxu0
        %7107 = vmatprep.mubr.f32.mxu0 0.0
        %7108 = vmatmul.mubr.f32.gmra.mrb[0].mxu0 %v6934
        %v7109 = vpop.f32.mrb[0].mxu0
        %v7110 = vadd.f32 0.0, %v7109
        %v7111 = vpop.f32.mrb[0].mxu0
        %7112 = vmatprep.mubr.f32.mxu0 0.0
        %7113 = vmatmul.mubr.f32.gmra.mrb[0].mxu0 %v6935
        %v7114 = vpop.f32.mrb[0].mxu0
        %v7115 = vadd.f32 0.0, %v7114
        %v7116 = vpop.f32.mrb[0].mxu0
        %7117 = vmatprep.mubr.f32.mxu0 0.0
        %7118 = vmatmul.mubr.f32.gmra.mrb[0].mxu0 %v6936
        %v7119 = vpop.f32.mrb[0].mxu0
        %v7120 = vadd.f32 0.0, %v7119
        %v7121 = vpop.f32.mrb[0].mxu0
        %7122 = vmatprep.mubr.f32.mxu0 0.0
        %7123 = vmatmul.mubr.f32.gmra.mrb[0].mxu0 %v6937
        %v7124 = vpop.f32.mrb[0].mxu0
        %v7125 = vadd.f32 0.0, %v7124
        %v7126 = vpop.f32.mrb[0].mxu0
        %7127 = vmatprep.mubr.f32.mxu0 0.0
        %7128 = vmatmul.mubr.f32.gmra.mrb[0].mxu0 %v6938
        %v7129 = vpop.f32.mrb[0].mxu0
        %v7130 = vadd.f32 0.0, %v7129
        %v7131 = vpop.f32.mrb[0].mxu0
        %7132 = vmatprep.mubr.f32.mxu0 0.0
        %7133 = vmatmul.mubr.f32.gmra.mrb[0].mxu0 %v6939
        %v7134 = vpop.f32.mrb[0].mxu0
        %v7135 = vadd.f32 0.0, %v7134
        %v7136 = vpop.f32.mrb[0].mxu0
        %7137 = vmatprep.mubr.f32.mxu0 0.0
        %7138 = vmatmul.mubr.f32.gmra.mrb[0].mxu0 %v6940
        %v7139 = vpop.f32.mrb[0].mxu0
        %v7140 = vadd.f32 0.0, %v7139
        %v7141 = vpop.f32.mrb[0].mxu0
        %7142 = vmatprep.mubr.f32.mxu0 0.0
        %7143 = vmatmul.mubr.f32.gmra.mrb[0].mxu0 %v6941
        %v7144 = vpop.f32.mrb[0].mxu0
        %v7145 = vadd.f32 0.0, %v7144
        %v7146 = vpop.f32.mrb[0].mxu0
        %7147 = vmatprep.mubr.f32.mxu0 0.0
        %7148 = vmatmul.mubr.f32.gmra.mrb[0].mxu0 %v6942
        %v7149 = vpop.f32.mrb[0].mxu0
        %v7150 = vadd.f32 0.0, %v7149
        %v7151 = vpop.f32.mrb[0].mxu0
        %7152 = vmatprep.mubr.f32.mxu0 0.0
        %7153 = vmatmul.mubr.f32.gmra.mrb[0].mxu0 %v6943
        %v7154 = vpop.f32.mrb[0].mxu0
        %v7155 = vadd.f32 0.0, %v7154
        %v7156 = vpop.f32.mrb[0].mxu0
        %7157 = vmatprep.mubr.f32.mxu0 0.0
        %7158 = vmatmul.mubr.f32.gmra.mrb[0].mxu0 %v6944
        %v7159 = vpop.f32.mrb[0].mxu0
        %v7160 = vadd.f32 0.0, %v7159
        %v7161 = vpop.f32.mrb[0].mxu0
        %7162 = vmatprep.mubr.f32.mxu0 0.0
        %7163 = vmatmul.mubr.f32.gmra.mrb[0].mxu0 %v6945
        %v7164 = vpop.f32.mrb[0].mxu0
        %v7165 = vadd.f32 0.0, %v7164
        %v7166 = vpop.f32.mrb[0].mxu0
        %7167 = vmatprep.mubr.f32.mxu0 0.0
        %7168 = vmatmul.mubr.f32.gmra.mrb[0].mxu0 %v6946
        %v7169 = vpop.f32.mrb[0].mxu0
        %v7170 = vadd.f32 0.0, %v7169
        %v7171 = vpop.f32.mrb[0].mxu0
        %7172 = vmatprep.mubr.f32.mxu0 0.0
        %7173 = vmatmul.mubr.f32.gmra.mrb[0].mxu0 %v6947
        %v7174 = vpop.f32.mrb[0].mxu0
        %v7175 = vadd.f32 0.0, %v7174
        %v7176 = vpop.f32.mrb[0].mxu0
        %7177 = vmatprep.mubr.f32.mxu0 0.0
        %7178 = vmatmul.mubr.f32.gmra.mrb[0].mxu0 %v6948
        %v7179 = vpop.f32.mrb[0].mxu0
        %v7180 = vadd.f32 0.0, %v7179
        %v7181 = vpop.f32.mrb[0].mxu0
        %7182 = vmatprep.mubr.f32.mxu0 0.0
        %7183 = vmatmul.mubr.f32.gmra.mrb[0].mxu0 %v6949
        %v7184 = vpop.f32.mrb[0].mxu0
        %v7185 = vadd.f32 0.0, %v7184
        %v7186 = vpop.f32.mrb[0].mxu0
        %7187 = vmatprep.mubr.f32.mxu0 0.0
        %7188 = vmatmul.mubr.f32.gmra.mrb[0].mxu0 %v6950
        %v7189 = vpop.f32.mrb[0].mxu0
        %v7190 = vadd.f32 0.0, %v7189
        %v7191 = vpop.f32.mrb[0].mxu0
        %7192 = vdwg.mxu0
        %v7193 = vadd.f32 %v6886, %v7035
        %v7194 = vadd.f32 %v6887, %v7040
        %v7195 = vadd.f32 %v6888, %v7045
        %v7196 = vadd.f32 %v6889, %v7050
        %v7197 = vadd.f32 %v6890, %v7055
        %v7198 = vadd.f32 %v6891, %v7060
        %v7199 = vadd.f32 %v6892, %v7065
        %v7200 = vadd.f32 %v6893, %v7070
        %v7201 = vadd.f32 %v6894, %v7075
        %v7202 = vadd.f32 %v6895, %v7080
        %v7203 = vadd.f32 %v6896, %v7085
        %v7204 = vadd.f32 %v6897, %v7090
        %v7205 = vadd.f32 %v6898, %v7095
        %v7206 = vadd.f32 %v6899, %v7100
        %v7207 = vadd.f32 %v6900, %v7105
        %v7208 = vadd.f32 %v6901, %v7110
        %v7209 = vadd.f32 %v6902, %v7115
        %v7210 = vadd.f32 %v6903, %v7120
        %v7211 = vadd.f32 %v6904, %v7125
        %v7212 = vadd.f32 %v6905, %v7130
        %v7213 = vadd.f32 %v6906, %v7135
        %v7214 = vadd.f32 %v6907, %v7140
        %v7215 = vadd.f32 %v6908, %v7145
        %v7216 = vadd.f32 %v6909, %v7150
        %v7217 = vadd.f32 %v6910, %v7155
        %v7218 = vadd.f32 %v6911, %v7160
        %v7219 = vadd.f32 %v6912, %v7165
        %v7220 = vadd.f32 %v6913, %v7170
        %v7221 = vadd.f32 %v6914, %v7175
        %v7222 = vadd.f32 %v6915, %v7180
        %v7223 = vadd.f32 %v6916, %v7185
        %v7224 = vadd.f32 %v6917, %v7190
        %v7225 = vld [vmem:[%s6918 + $0x1] sm:$0xff]
        %v7226 = vld [vmem:[%s6918 + $0x9] sm:$0xff]
        %v7227 = vld [vmem:[%s6918 + $0x19] sm:$0xff]
        %v7228 = vld [vmem:[%s6918 + $0x21] sm:$0xff]
        %v7229 = vld [vmem:[%s6918 + $0x31] sm:$0xff]
        %v7230 = vld [vmem:[%s6918 + $0x39] sm:$0xff]
        %v7231 = vld [vmem:[%s6918 + $0x49] sm:$0xff]
        %v7232 = vld [vmem:[%s6918 + $0x51] sm:$0xff]
        %v7233 = vld [vmem:[%s6918 + $0x61] sm:$0xff]
        %v7234 = vld [vmem:[%s6918 + $0x69] sm:$0xff]
        %v7235 = vld [vmem:[%s6918 + $0x79] sm:$0xff]
        %v7236 = vld [vmem:[%s6918 + $0x81] sm:$0xff]
        %v7237 = vld [vmem:[%s6918 + $0x91] sm:$0xff]
        %v7238 = vld [vmem:[%s6918 + $0x99] sm:$0xff]
        %v7239 = vld [vmem:[%s6918 + $0xa9] sm:$0xff]
        %v7240 = vld [vmem:[%s6918 + $0xb1] sm:$0xff]
        %v7241 = vld [vmem:[%s6918 + $0xc1] sm:$0xff]
        %v7242 = vld [vmem:[%s6918 + $0xc9] sm:$0xff]
        %v7243 = vld [vmem:[%s6918 + $0xd9] sm:$0xff]
        %v7244 = vld [vmem:[%s6918 + $0xe1] sm:$0xff]
        %v7245 = vld [vmem:[%s6918 + $0xf1] sm:$0xff]
        %v7246 = vld [vmem:[%s6918 + $0xf9] sm:$0xff]
        %v7247 = vld [vmem:[%s6918 + $0x109] sm:$0xff]
        %v7248 = vld [vmem:[%s6918 + $0x111] sm:$0xff]
        %v7249 = vld [vmem:[%s6918 + $0x121] sm:$0xff]
        %v7250 = vld [vmem:[%s6918 + $0x129] sm:$0xff]
        %v7251 = vld [vmem:[%s6918 + $0x139] sm:$0xff]
        %v7252 = vld [vmem:[%s6918 + $0x141] sm:$0xff]
        %v7253 = vld [vmem:[%s6918 + $0x151] sm:$0xff]
        %v7254 = vld [vmem:[%s6918 + $0x159] sm:$0xff]
        %v7255 = vld [vmem:[%s6918 + $0x169] sm:$0xff]
        %v7256 = vld [vmem:[%s6918 + $0x171] sm:$0xff]
        %s7257 = scalar_lea.vmem [#allocation10], 896
        %v7258 = vld [vmem:[%s7257] sm:$0xff]
        %v7259 = vld [vmem:[%s7257 + $0x8] sm:$0xff]
        %v7260 = vld [vmem:[%s7257 + $0x10] sm:$0xff]
        %v7261 = vld [vmem:[%s7257 + $0x18] sm:$0xff]
        %v7262 = vld [vmem:[%s7257 + $0x20] sm:$0xff]
        %v7263 = vld [vmem:[%s7257 + $0x28] sm:$0xff]
        %v7264 = vld [vmem:[%s7257 + $0x30] sm:$0xff]
        %v7265 = vld [vmem:[%s7257 + $0x38] sm:$0xff]
        %v7266 = vld [vmem:[%s7257 + $0x40] sm:$0xff]
        %v7267 = vld [vmem:[%s7257 + $0x48] sm:$0xff]
        %v7268 = vld [vmem:[%s7257 + $0x50] sm:$0xff]
        %v7269 = vld [vmem:[%s7257 + $0x58] sm:$0xff]
        %v7270 = vld [vmem:[%s7257 + $0x60] sm:$0xff]
        %v7271 = vld [vmem:[%s7257 + $0x68] sm:$0xff]
        %v7272 = vld [vmem:[%s7257 + $0x70] sm:$0xff]
        %v7273 = vld [vmem:[%s7257 + $0x78] sm:$0xff]
        %7274 = vmatprep.subr.mxu0 0.0
        %7275 = vmatpush1.msra.mxu0 %v7258
        %7276 = vmatprep.subr.mxu0 0.0
        %7277 = vmatpush1.msra.mxu0 %v7259
        %7278 = vmatprep.subr.mxu0 0.0
        %7279 = vmatpush1.msra.mxu0 %v7260
        %7280 = vmatprep.subr.mxu0 0.0
        %7281 = vmatpush1.msra.mxu0 %v7261
        %7282 = vmatprep.subr.mxu0 0.0
        %7283 = vmatpush1.msra.mxu0 %v7262
        %7284 = vmatprep.subr.mxu0 0.0
        %7285 = vmatpush1.msra.mxu0 %v7263
        %7286 = vmatprep.subr.mxu0 0.0
        %7287 = vmatpush1.msra.mxu0 %v7264
        %7288 = vmatprep.subr.mxu0 0.0
        %7289 = vmatpush1.msra.mxu0 %v7265
        %7290 = vmatprep.subr.mxu0 0.0
        %7291 = vmatpush1.msra.mxu0 %v7266
        %7292 = vmatprep.subr.mxu0 0.0
        %7293 = vmatpush1.msra.mxu0 %v7267
        %7294 = vmatprep.subr.mxu0 0.0
        %7295 = vmatpush1.msra.mxu0 %v7268
        %7296 = vmatprep.subr.mxu0 0.0
        %7297 = vmatpush1.msra.mxu0 %v7269
        %7298 = vmatprep.subr.mxu0 0.0
        %7299 = vmatpush1.msra.mxu0 %v7270
        %7300 = vmatprep.subr.mxu0 0.0
        %7301 = vmatpush1.msra.mxu0 %v7271
        %7302 = vmatprep.subr.mxu0 0.0
        %7303 = vmatpush1.msra.mxu0 %v7272
        %7304 = vmatprep.subr.mxu0 0.0
        %7305 = vmatpush1.msra.mxu0 %v7273
        %7306 = vmatprep.subr.mxu0 0.0
        %7307 = vmatpush1.msra.mxu0 0.0
        %7308 = vmatprep.subr.mxu0 0.0
        %7309 = vmatpush1.msra.mxu0 0.0
        %7310 = vmatprep.subr.mxu0 0.0
        %7311 = vmatpush1.msra.mxu0 0.0
        %7312 = vmatprep.subr.mxu0 0.0
        %7313 = vmatpush1.msra.mxu0 0.0
        %7314 = vmatprep.subr.mxu0 0.0
        %7315 = vmatpush1.msra.mxu0 0.0
        %7316 = vmatprep.subr.mxu0 0.0
        %7317 = vmatpush1.msra.mxu0 0.0
        %7318 = vmatprep.subr.mxu0 0.0
        %7319 = vmatpush1.msra.mxu0 0.0
        %7320 = vmatprep.subr.mxu0 0.0
        %7321 = vmatpush1.msra.mxu0 0.0
        %7322 = vmatprep.subr.mxu0 0.0
        %7323 = vmatpush1.msra.mxu0 0.0
        %7324 = vmatprep.subr.mxu0 0.0
        %7325 = vmatpush1.msra.mxu0 0.0
        %7326 = vmatprep.subr.mxu0 0.0
        %7327 = vmatpush1.msra.mxu0 0.0
        %7328 = vmatprep.subr.mxu0 0.0
        %7329 = vmatpush1.msra.mxu0 0.0
        %7330 = vmatprep.subr.mxu0 0.0
        %7331 = vmatpush1.msra.mxu0 0.0
        %7332 = vmatprep.subr.mxu0 0.0
        %7333 = vmatpush1.msra.mxu0 0.0
        %7334 = vmatprep.subr.mxu0 0.0
        %7335 = vmatpush1.msra.mxu0 0.0
        %7336 = vmatprep.subr.mxu0 0.0
        %7337 = vmatpush1.msra.mxu0 0.0
        %7338 = vmatprep.mubr.f32.mxu0 0.0
        %7339 = vmatmul.mubr.f32.gmra.mrb[0].mxu0 %v7225
        %v7340 = vpop.f32.mrb[0].mxu0
        %v7341 = vadd.f32 0.0, %v7340
        %v7342 = vpop.f32.mrb[0].mxu0
        %7343 = vmatprep.mubr.f32.mxu0 0.0
        %7344 = vmatmul.mubr.f32.gmra.mrb[0].mxu0 %v7226
        %v7345 = vpop.f32.mrb[0].mxu0
        %v7346 = vadd.f32 0.0, %v7345
        %v7347 = vpop.f32.mrb[0].mxu0
        %7348 = vmatprep.mubr.f32.mxu0 0.0
        %7349 = vmatmul.mubr.f32.gmra.mrb[0].mxu0 %v7227
        %v7350 = vpop.f32.mrb[0].mxu0
        %v7351 = vadd.f32 0.0, %v7350
        %v7352 = vpop.f32.mrb[0].mxu0
        %7353 = vmatprep.mubr.f32.mxu0 0.0
        %7354 = vmatmul.mubr.f32.gmra.mrb[0].mxu0 %v7228
        %v7355 = vpop.f32.mrb[0].mxu0
        %v7356 = vadd.f32 0.0, %v7355
        %v7357 = vpop.f32.mrb[0].mxu0
        %7358 = vmatprep.mubr.f32.mxu0 0.0
        %7359 = vmatmul.mubr.f32.gmra.mrb[0].mxu0 %v7229
        %v7360 = vpop.f32.mrb[0].mxu0
        %v7361 = vadd.f32 0.0, %v7360
        %v7362 = vpop.f32.mrb[0].mxu0
        %7363 = vmatprep.mubr.f32.mxu0 0.0
        %7364 = vmatmul.mubr.f32.gmra.mrb[0].mxu0 %v7230
        %v7365 = vpop.f32.mrb[0].mxu0
        %v7366 = vadd.f32 0.0, %v7365
        %v7367 = vpop.f32.mrb[0].mxu0
        %7368 = vmatprep.mubr.f32.mxu0 0.0
        %7369 = vmatmul.mubr.f32.gmra.mrb[0].mxu0 %v7231
        %v7370 = vpop.f32.mrb[0].mxu0
        %v7371 = vadd.f32 0.0, %v7370
        %v7372 = vpop.f32.mrb[0].mxu0
        %7373 = vmatprep.mubr.f32.mxu0 0.0
        %7374 = vmatmul.mubr.f32.gmra.mrb[0].mxu0 %v7232
        %v7375 = vpop.f32.mrb[0].mxu0
        %v7376 = vadd.f32 0.0, %v7375
        %v7377 = vpop.f32.mrb[0].mxu0
        %7378 = vmatprep.mubr.f32.mxu0 0.0
        %7379 = vmatmul.mubr.f32.gmra.mrb[0].mxu0 %v7233
        %v7380 = vpop.f32.mrb[0].mxu0
        %v7381 = vadd.f32 0.0, %v7380
        %v7382 = vpop.f32.mrb[0].mxu0
        %7383 = vmatprep.mubr.f32.mxu0 0.0
        %7384 = vmatmul.mubr.f32.gmra.mrb[0].mxu0 %v7234
        %v7385 = vpop.f32.mrb[0].mxu0
        %v7386 = vadd.f32 0.0, %v7385
        %v7387 = vpop.f32.mrb[0].mxu0
        %7388 = vmatprep.mubr.f32.mxu0 0.0
        %7389 = vmatmul.mubr.f32.gmra.mrb[0].mxu0 %v7235
        %v7390 = vpop.f32.mrb[0].mxu0
        %v7391 = vadd.f32 0.0, %v7390
        %v7392 = vpop.f32.mrb[0].mxu0
        %7393 = vmatprep.mubr.f32.mxu0 0.0
        %7394 = vmatmul.mubr.f32.gmra.mrb[0].mxu0 %v7236
        %v7395 = vpop.f32.mrb[0].mxu0
        %v7396 = vadd.f32 0.0, %v7395
        %v7397 = vpop.f32.mrb[0].mxu0
        %7398 = vmatprep.mubr.f32.mxu0 0.0
        %7399 = vmatmul.mubr.f32.gmra.mrb[0].mxu0 %v7237
        %v7400 = vpop.f32.mrb[0].mxu0
        %v7401 = vadd.f32 0.0, %v7400
        %v7402 = vpop.f32.mrb[0].mxu0
        %7403 = vmatprep.mubr.f32.mxu0 0.0
        %7404 = vmatmul.mubr.f32.gmra.mrb[0].mxu0 %v7238
        %v7405 = vpop.f32.mrb[0].mxu0
        %v7406 = vadd.f32 0.0, %v7405
        %v7407 = vpop.f32.mrb[0].mxu0
        %7408 = vmatprep.mubr.f32.mxu0 0.0
        %7409 = vmatmul.mubr.f32.gmra.mrb[0].mxu0 %v7239
        %v7410 = vpop.f32.mrb[0].mxu0
        %v7411 = vadd.f32 0.0, %v7410
        %v7412 = vpop.f32.mrb[0].mxu0
        %7413 = vmatprep.mubr.f32.mxu0 0.0
        %7414 = vmatmul.mubr.f32.gmra.mrb[0].mxu0 %v7240
        %v7415 = vpop.f32.mrb[0].mxu0
        %v7416 = vadd.f32 0.0, %v7415
        %v7417 = vpop.f32.mrb[0].mxu0
        %7418 = vmatprep.mubr.f32.mxu0 0.0
        %7419 = vmatmul.mubr.f32.gmra.mrb[0].mxu0 %v7241
        %v7420 = vpop.f32.mrb[0].mxu0
        %v7421 = vadd.f32 0.0, %v7420
        %v7422 = vpop.f32.mrb[0].mxu0
        %7423 = vmatprep.mubr.f32.mxu0 0.0
        %7424 = vmatmul.mubr.f32.gmra.mrb[0].mxu0 %v7242
        %v7425 = vpop.f32.mrb[0].mxu0
        %v7426 = vadd.f32 0.0, %v7425
        %v7427 = vpop.f32.mrb[0].mxu0
        %7428 = vmatprep.mubr.f32.mxu0 0.0
        %7429 = vmatmul.mubr.f32.gmra.mrb[0].mxu0 %v7243
        %v7430 = vpop.f32.mrb[0].mxu0
        %v7431 = vadd.f32 0.0, %v7430
        %v7432 = vpop.f32.mrb[0].mxu0
        %7433 = vmatprep.mubr.f32.mxu0 0.0
        %7434 = vmatmul.mubr.f32.gmra.mrb[0].mxu0 %v7244
        %v7435 = vpop.f32.mrb[0].mxu0
        %v7436 = vadd.f32 0.0, %v7435
        %v7437 = vpop.f32.mrb[0].mxu0
        %7438 = vmatprep.mubr.f32.mxu0 0.0
        %7439 = vmatmul.mubr.f32.gmra.mrb[0].mxu0 %v7245
        %v7440 = vpop.f32.mrb[0].mxu0
        %v7441 = vadd.f32 0.0, %v7440
        %v7442 = vpop.f32.mrb[0].mxu0
        %7443 = vmatprep.mubr.f32.mxu0 0.0
        %7444 = vmatmul.mubr.f32.gmra.mrb[0].mxu0 %v7246
        %v7445 = vpop.f32.mrb[0].mxu0
        %v7446 = vadd.f32 0.0, %v7445
        %v7447 = vpop.f32.mrb[0].mxu0
        %7448 = vmatprep.mubr.f32.mxu0 0.0
        %7449 = vmatmul.mubr.f32.gmra.mrb[0].mxu0 %v7247
        %v7450 = vpop.f32.mrb[0].mxu0
        %v7451 = vadd.f32 0.0, %v7450
        %v7452 = vpop.f32.mrb[0].mxu0
        %7453 = vmatprep.mubr.f32.mxu0 0.0
        %7454 = vmatmul.mubr.f32.gmra.mrb[0].mxu0 %v7248
        %v7455 = vpop.f32.mrb[0].mxu0
        %v7456 = vadd.f32 0.0, %v7455
        %v7457 = vpop.f32.mrb[0].mxu0
        %7458 = vmatprep.mubr.f32.mxu0 0.0
        %7459 = vmatmul.mubr.f32.gmra.mrb[0].mxu0 %v7249
        %v7460 = vpop.f32.mrb[0].mxu0
        %v7461 = vadd.f32 0.0, %v7460
        %v7462 = vpop.f32.mrb[0].mxu0
        %7463 = vmatprep.mubr.f32.mxu0 0.0
        %7464 = vmatmul.mubr.f32.gmra.mrb[0].mxu0 %v7250
        %v7465 = vpop.f32.mrb[0].mxu0
        %v7466 = vadd.f32 0.0, %v7465
        %v7467 = vpop.f32.mrb[0].mxu0
        %7468 = vmatprep.mubr.f32.mxu0 0.0
        %7469 = vmatmul.mubr.f32.gmra.mrb[0].mxu0 %v7251
        %v7470 = vpop.f32.mrb[0].mxu0
        %v7471 = vadd.f32 0.0, %v7470
        %v7472 = vpop.f32.mrb[0].mxu0
        %7473 = vmatprep.mubr.f32.mxu0 0.0
        %7474 = vmatmul.mubr.f32.gmra.mrb[0].mxu0 %v7252
        %v7475 = vpop.f32.mrb[0].mxu0
        %v7476 = vadd.f32 0.0, %v7475
        %v7477 = vpop.f32.mrb[0].mxu0
        %7478 = vmatprep.mubr.f32.mxu0 0.0
        %7479 = vmatmul.mubr.f32.gmra.mrb[0].mxu0 %v7253
        %v7480 = vpop.f32.mrb[0].mxu0
        %v7481 = vadd.f32 0.0, %v7480
        %v7482 = vpop.f32.mrb[0].mxu0
        %7483 = vmatprep.mubr.f32.mxu0 0.0
        %7484 = vmatmul.mubr.f32.gmra.mrb[0].mxu0 %v7254
        %v7485 = vpop.f32.mrb[0].mxu0
        %v7486 = vadd.f32 0.0, %v7485
        %v7487 = vpop.f32.mrb[0].mxu0
        %7488 = vmatprep.mubr.f32.mxu0 0.0
        %7489 = vmatmul.mubr.f32.gmra.mrb[0].mxu0 %v7255
        %v7490 = vpop.f32.mrb[0].mxu0
        %v7491 = vadd.f32 0.0, %v7490
        %v7492 = vpop.f32.mrb[0].mxu0
        %7493 = vmatprep.mubr.f32.mxu0 0.0
        %7494 = vmatmul.mubr.f32.gmra.mrb[0].mxu0 %v7256
        %v7495 = vpop.f32.mrb[0].mxu0
        %v7496 = vadd.f32 0.0, %v7495
        %v7497 = vpop.f32.mrb[0].mxu0
        %7498 = vdwg.mxu0
        %v7499 = vadd.f32 %v7193, %v7341
        %v7500 = vadd.f32 %v7194, %v7346
        %v7501 = vadd.f32 %v7195, %v7351
        %v7502 = vadd.f32 %v7196, %v7356
        %v7503 = vadd.f32 %v7197, %v7361
        %v7504 = vadd.f32 %v7198, %v7366
        %v7505 = vadd.f32 %v7199, %v7371
        %v7506 = vadd.f32 %v7200, %v7376
        %v7507 = vadd.f32 %v7201, %v7381
        %v7508 = vadd.f32 %v7202, %v7386
        %v7509 = vadd.f32 %v7203, %v7391
        %v7510 = vadd.f32 %v7204, %v7396
        %v7511 = vadd.f32 %v7205, %v7401
        %v7512 = vadd.f32 %v7206, %v7406
        %v7513 = vadd.f32 %v7207, %v7411
        %v7514 = vadd.f32 %v7208, %v7416
        %v7515 = vadd.f32 %v7209, %v7421
        %v7516 = vadd.f32 %v7210, %v7426
        %v7517 = vadd.f32 %v7211, %v7431
        %v7518 = vadd.f32 %v7212, %v7436
        %v7519 = vadd.f32 %v7213, %v7441
        %v7520 = vadd.f32 %v7214, %v7446
        %v7521 = vadd.f32 %v7215, %v7451
        %v7522 = vadd.f32 %v7216, %v7456
        %v7523 = vadd.f32 %v7217, %v7461
        %v7524 = vadd.f32 %v7218, %v7466
        %v7525 = vadd.f32 %v7219, %v7471
        %v7526 = vadd.f32 %v7220, %v7476
        %v7527 = vadd.f32 %v7221, %v7481
        %v7528 = vadd.f32 %v7222, %v7486
        %v7529 = vadd.f32 %v7223, %v7491
        %v7530 = vadd.f32 %v7224, %v7496
        %v7531 = vld [vmem:[%s6918 + $0x2] sm:$0xff]
        %v7532 = vld [vmem:[%s6918 + $0xa] sm:$0xff]
        %v7533 = vld [vmem:[%s6918 + $0x1a] sm:$0xff]
        %v7534 = vld [vmem:[%s6918 + $0x22] sm:$0xff]
        %v7535 = vld [vmem:[%s6918 + $0x32] sm:$0xff]
        %v7536 = vld [vmem:[%s6918 + $0x3a] sm:$0xff]
        %v7537 = vld [vmem:[%s6918 + $0x4a] sm:$0xff]
        %v7538 = vld [vmem:[%s6918 + $0x52] sm:$0xff]
        %v7539 = vld [vmem:[%s6918 + $0x62] sm:$0xff]
        %v7540 = vld [vmem:[%s6918 + $0x6a] sm:$0xff]
        %v7541 = vld [vmem:[%s6918 + $0x7a] sm:$0xff]
        %v7542 = vld [vmem:[%s6918 + $0x82] sm:$0xff]
        %v7543 = vld [vmem:[%s6918 + $0x92] sm:$0xff]
        %v7544 = vld [vmem:[%s6918 + $0x9a] sm:$0xff]
        %v7545 = vld [vmem:[%s6918 + $0xaa] sm:$0xff]
        %v7546 = vld [vmem:[%s6918 + $0xb2] sm:$0xff]
        %v7547 = vld [vmem:[%s6918 + $0xc2] sm:$0xff]
        %v7548 = vld [vmem:[%s6918 + $0xca] sm:$0xff]
        %v7549 = vld [vmem:[%s6918 + $0xda] sm:$0xff]
        %v7550 = vld [vmem:[%s6918 + $0xe2] sm:$0xff]
        %v7551 = vld [vmem:[%s6918 + $0xf2] sm:$0xff]
        %v7552 = vld [vmem:[%s6918 + $0xfa] sm:$0xff]
        %v7553 = vld [vmem:[%s6918 + $0x10a] sm:$0xff]
        %v7554 = vld [vmem:[%s6918 + $0x112] sm:$0xff]
        %v7555 = vld [vmem:[%s6918 + $0x122] sm:$0xff]
        %v7556 = vld [vmem:[%s6918 + $0x12a] sm:$0xff]
        %v7557 = vld [vmem:[%s6918 + $0x13a] sm:$0xff]
        %v7558 = vld [vmem:[%s6918 + $0x142] sm:$0xff]
        %v7559 = vld [vmem:[%s6918 + $0x152] sm:$0xff]
        %v7560 = vld [vmem:[%s6918 + $0x15a] sm:$0xff]
        %v7561 = vld [vmem:[%s6918 + $0x16a] sm:$0xff]
        %v7562 = vld [vmem:[%s6918 + $0x172] sm:$0xff]
        %s7563 = scalar_lea.vmem [#allocation10], 1024
        %v7564 = vld [vmem:[%s7563] sm:$0xff]
        %v7565 = vld [vmem:[%s7563 + $0x8] sm:$0xff]
        %v7566 = vld [vmem:[%s7563 + $0x10] sm:$0xff]
        %v7567 = vld [vmem:[%s7563 + $0x18] sm:$0xff]
        %v7568 = vld [vmem:[%s7563 + $0x20] sm:$0xff]
        %v7569 = vld [vmem:[%s7563 + $0x28] sm:$0xff]
        %v7570 = vld [vmem:[%s7563 + $0x30] sm:$0xff]
        %v7571 = vld [vmem:[%s7563 + $0x38] sm:$0xff]
        %v7572 = vld [vmem:[%s7563 + $0x40] sm:$0xff]
        %v7573 = vld [vmem:[%s7563 + $0x48] sm:$0xff]
        %v7574 = vld [vmem:[%s7563 + $0x50] sm:$0xff]
        %v7575 = vld [vmem:[%s7563 + $0x58] sm:$0xff]
        %v7576 = vld [vmem:[%s7563 + $0x60] sm:$0xff]
        %v7577 = vld [vmem:[%s7563 + $0x68] sm:$0xff]
        %v7578 = vld [vmem:[%s7563 + $0x70] sm:$0xff]
        %v7579 = vld [vmem:[%s7563 + $0x78] sm:$0xff]
        %7580 = vmatprep.subr.mxu0 0.0
        %7581 = vmatpush1.msra.mxu0 %v7564
        %7582 = vmatprep.subr.mxu0 0.0
        %7583 = vmatpush1.msra.mxu0 %v7565
        %7584 = vmatprep.subr.mxu0 0.0
        %7585 = vmatpush1.msra.mxu0 %v7566
        %7586 = vmatprep.subr.mxu0 0.0
        %7587 = vmatpush1.msra.mxu0 %v7567
        %7588 = vmatprep.subr.mxu0 0.0
        %7589 = vmatpush1.msra.mxu0 %v7568
        %7590 = vmatprep.subr.mxu0 0.0
        %7591 = vmatpush1.msra.mxu0 %v7569
        %7592 = vmatprep.subr.mxu0 0.0
        %7593 = vmatpush1.msra.mxu0 %v7570
        %7594 = vmatprep.subr.mxu0 0.0
        %7595 = vmatpush1.msra.mxu0 %v7571
        %7596 = vmatprep.subr.mxu0 0.0
        %7597 = vmatpush1.msra.mxu0 %v7572
        %7598 = vmatprep.subr.mxu0 0.0
        %7599 = vmatpush1.msra.mxu0 %v7573
        %7600 = vmatprep.subr.mxu0 0.0
        %7601 = vmatpush1.msra.mxu0 %v7574
        %7602 = vmatprep.subr.mxu0 0.0
        %7603 = vmatpush1.msra.mxu0 %v7575
        %7604 = vmatprep.subr.mxu0 0.0
        %7605 = vmatpush1.msra.mxu0 %v7576
        %7606 = vmatprep.subr.mxu0 0.0
        %7607 = vmatpush1.msra.mxu0 %v7577
        %7608 = vmatprep.subr.mxu0 0.0
        %7609 = vmatpush1.msra.mxu0 %v7578
        %7610 = vmatprep.subr.mxu0 0.0
        %7611 = vmatpush1.msra.mxu0 %v7579
        %7612 = vmatprep.subr.mxu0 0.0
        %7613 = vmatpush1.msra.mxu0 0.0
        %7614 = vmatprep.subr.mxu0 0.0
        %7615 = vmatpush1.msra.mxu0 0.0
        %7616 = vmatprep.subr.mxu0 0.0
        %7617 = vmatpush1.msra.mxu0 0.0
        %7618 = vmatprep.subr.mxu0 0.0
        %7619 = vmatpush1.msra.mxu0 0.0
        %7620 = vmatprep.subr.mxu0 0.0
        %7621 = vmatpush1.msra.mxu0 0.0
        %7622 = vmatprep.subr.mxu0 0.0
        %7623 = vmatpush1.msra.mxu0 0.0
        %7624 = vmatprep.subr.mxu0 0.0
        %7625 = vmatpush1.msra.mxu0 0.0
        %7626 = vmatprep.subr.mxu0 0.0
        %7627 = vmatpush1.msra.mxu0 0.0
        %7628 = vmatprep.subr.mxu0 0.0
        %7629 = vmatpush1.msra.mxu0 0.0
        %7630 = vmatprep.subr.mxu0 0.0
        %7631 = vmatpush1.msra.mxu0 0.0
        %7632 = vmatprep.subr.mxu0 0.0
        %7633 = vmatpush1.msra.mxu0 0.0
        %7634 = vmatprep.subr.mxu0 0.0
        %7635 = vmatpush1.msra.mxu0 0.0
        %7636 = vmatprep.subr.mxu0 0.0
        %7637 = vmatpush1.msra.mxu0 0.0
        %7638 = vmatprep.subr.mxu0 0.0
        %7639 = vmatpush1.msra.mxu0 0.0
        %7640 = vmatprep.subr.mxu0 0.0
        %7641 = vmatpush1.msra.mxu0 0.0
        %7642 = vmatprep.subr.mxu0 0.0
        %7643 = vmatpush1.msra.mxu0 0.0
        %7644 = vmatprep.mubr.f32.mxu0 0.0
        %7645 = vmatmul.mubr.f32.gmra.mrb[0].mxu0 %v7531
        %v7646 = vpop.f32.mrb[0].mxu0
        %v7647 = vadd.f32 0.0, %v7646
        %v7648 = vpop.f32.mrb[0].mxu0
        %7649 = vmatprep.mubr.f32.mxu0 0.0
        %7650 = vmatmul.mubr.f32.gmra.mrb[0].mxu0 %v7532
        %v7651 = vpop.f32.mrb[0].mxu0
        %v7652 = vadd.f32 0.0, %v7651
        %v7653 = vpop.f32.mrb[0].mxu0
        %7654 = vmatprep.mubr.f32.mxu0 0.0
        %7655 = vmatmul.mubr.f32.gmra.mrb[0].mxu0 %v7533
        %v7656 = vpop.f32.mrb[0].mxu0
        %v7657 = vadd.f32 0.0, %v7656
        %v7658 = vpop.f32.mrb[0].mxu0
        %7659 = vmatprep.mubr.f32.mxu0 0.0
        %7660 = vmatmul.mubr.f32.gmra.mrb[0].mxu0 %v7534
        %v7661 = vpop.f32.mrb[0].mxu0
        %v7662 = vadd.f32 0.0, %v7661
        %v7663 = vpop.f32.mrb[0].mxu0
        %7664 = vmatprep.mubr.f32.mxu0 0.0
        %7665 = vmatmul.mubr.f32.gmra.mrb[0].mxu0 %v7535
        %v7666 = vpop.f32.mrb[0].mxu0
        %v7667 = vadd.f32 0.0, %v7666
        %v7668 = vpop.f32.mrb[0].mxu0
        %7669 = vmatprep.mubr.f32.mxu0 0.0
        %7670 = vmatmul.mubr.f32.gmra.mrb[0].mxu0 %v7536
        %v7671 = vpop.f32.mrb[0].mxu0
        %v7672 = vadd.f32 0.0, %v7671
        %v7673 = vpop.f32.mrb[0].mxu0
        %7674 = vmatprep.mubr.f32.mxu0 0.0
        %7675 = vmatmul.mubr.f32.gmra.mrb[0].mxu0 %v7537
        %v7676 = vpop.f32.mrb[0].mxu0
        %v7677 = vadd.f32 0.0, %v7676
        %v7678 = vpop.f32.mrb[0].mxu0
        %7679 = vmatprep.mubr.f32.mxu0 0.0
        %7680 = vmatmul.mubr.f32.gmra.mrb[0].mxu0 %v7538
        %v7681 = vpop.f32.mrb[0].mxu0
        %v7682 = vadd.f32 0.0, %v7681
        %v7683 = vpop.f32.mrb[0].mxu0
        %7684 = vmatprep.mubr.f32.mxu0 0.0
        %7685 = vmatmul.mubr.f32.gmra.mrb[0].mxu0 %v7539
        %v7686 = vpop.f32.mrb[0].mxu0
        %v7687 = vadd.f32 0.0, %v7686
        %v7688 = vpop.f32.mrb[0].mxu0
        %7689 = vmatprep.mubr.f32.mxu0 0.0
        %7690 = vmatmul.mubr.f32.gmra.mrb[0].mxu0 %v7540
        %v7691 = vpop.f32.mrb[0].mxu0
        %v7692 = vadd.f32 0.0, %v7691
        %v7693 = vpop.f32.mrb[0].mxu0
        %7694 = vmatprep.mubr.f32.mxu0 0.0
        %7695 = vmatmul.mubr.f32.gmra.mrb[0].mxu0 %v7541
        %v7696 = vpop.f32.mrb[0].mxu0
        %v7697 = vadd.f32 0.0, %v7696
        %v7698 = vpop.f32.mrb[0].mxu0
        %7699 = vmatprep.mubr.f32.mxu0 0.0
        %7700 = vmatmul.mubr.f32.gmra.mrb[0].mxu0 %v7542
        %v7701 = vpop.f32.mrb[0].mxu0
        %v7702 = vadd.f32 0.0, %v7701
        %v7703 = vpop.f32.mrb[0].mxu0
        %7704 = vmatprep.mubr.f32.mxu0 0.0
        %7705 = vmatmul.mubr.f32.gmra.mrb[0].mxu0 %v7543
        %v7706 = vpop.f32.mrb[0].mxu0
        %v7707 = vadd.f32 0.0, %v7706
        %v7708 = vpop.f32.mrb[0].mxu0
        %7709 = vmatprep.mubr.f32.mxu0 0.0
        %7710 = vmatmul.mubr.f32.gmra.mrb[0].mxu0 %v7544
        %v7711 = vpop.f32.mrb[0].mxu0
        %v7712 = vadd.f32 0.0, %v7711
        %v7713 = vpop.f32.mrb[0].mxu0
        %7714 = vmatprep.mubr.f32.mxu0 0.0
        %7715 = vmatmul.mubr.f32.gmra.mrb[0].mxu0 %v7545
        %v7716 = vpop.f32.mrb[0].mxu0
        %v7717 = vadd.f32 0.0, %v7716
        %v7718 = vpop.f32.mrb[0].mxu0
        %7719 = vmatprep.mubr.f32.mxu0 0.0
        %7720 = vmatmul.mubr.f32.gmra.mrb[0].mxu0 %v7546
        %v7721 = vpop.f32.mrb[0].mxu0
        %v7722 = vadd.f32 0.0, %v7721
        %v7723 = vpop.f32.mrb[0].mxu0
        %7724 = vmatprep.mubr.f32.mxu0 0.0
        %7725 = vmatmul.mubr.f32.gmra.mrb[0].mxu0 %v7547
        %v7726 = vpop.f32.mrb[0].mxu0
        %v7727 = vadd.f32 0.0, %v7726
        %v7728 = vpop.f32.mrb[0].mxu0
        %7729 = vmatprep.mubr.f32.mxu0 0.0
        %7730 = vmatmul.mubr.f32.gmra.mrb[0].mxu0 %v7548
        %v7731 = vpop.f32.mrb[0].mxu0
        %v7732 = vadd.f32 0.0, %v7731
        %v7733 = vpop.f32.mrb[0].mxu0
        %7734 = vmatprep.mubr.f32.mxu0 0.0
        %7735 = vmatmul.mubr.f32.gmra.mrb[0].mxu0 %v7549
        %v7736 = vpop.f32.mrb[0].mxu0
        %v7737 = vadd.f32 0.0, %v7736
        %v7738 = vpop.f32.mrb[0].mxu0
        %7739 = vmatprep.mubr.f32.mxu0 0.0
        %7740 = vmatmul.mubr.f32.gmra.mrb[0].mxu0 %v7550
        %v7741 = vpop.f32.mrb[0].mxu0
        %v7742 = vadd.f32 0.0, %v7741
        %v7743 = vpop.f32.mrb[0].mxu0
        %7744 = vmatprep.mubr.f32.mxu0 0.0
        %7745 = vmatmul.mubr.f32.gmra.mrb[0].mxu0 %v7551
        %v7746 = vpop.f32.mrb[0].mxu0
        %v7747 = vadd.f32 0.0, %v7746
        %v7748 = vpop.f32.mrb[0].mxu0
        %7749 = vmatprep.mubr.f32.mxu0 0.0
        %7750 = vmatmul.mubr.f32.gmra.mrb[0].mxu0 %v7552
        %v7751 = vpop.f32.mrb[0].mxu0
        %v7752 = vadd.f32 0.0, %v7751
        %v7753 = vpop.f32.mrb[0].mxu0
        %7754 = vmatprep.mubr.f32.mxu0 0.0
        %7755 = vmatmul.mubr.f32.gmra.mrb[0].mxu0 %v7553
        %v7756 = vpop.f32.mrb[0].mxu0
        %v7757 = vadd.f32 0.0, %v7756
        %v7758 = vpop.f32.mrb[0].mxu0
        %7759 = vmatprep.mubr.f32.mxu0 0.0
        %7760 = vmatmul.mubr.f32.gmra.mrb[0].mxu0 %v7554
        %v7761 = vpop.f32.mrb[0].mxu0
        %v7762 = vadd.f32 0.0, %v7761
        %v7763 = vpop.f32.mrb[0].mxu0
        %7764 = vmatprep.mubr.f32.mxu0 0.0
        %7765 = vmatmul.mubr.f32.gmra.mrb[0].mxu0 %v7555
        %v7766 = vpop.f32.mrb[0].mxu0
        %v7767 = vadd.f32 0.0, %v7766
        %v7768 = vpop.f32.mrb[0].mxu0
        %7769 = vmatprep.mubr.f32.mxu0 0.0
        %7770 = vmatmul.mubr.f32.gmra.mrb[0].mxu0 %v7556
        %v7771 = vpop.f32.mrb[0].mxu0
        %v7772 = vadd.f32 0.0, %v7771
        %v7773 = vpop.f32.mrb[0].mxu0
        %7774 = vmatprep.mubr.f32.mxu0 0.0
        %7775 = vmatmul.mubr.f32.gmra.mrb[0].mxu0 %v7557
        %v7776 = vpop.f32.mrb[0].mxu0
        %v7777 = vadd.f32 0.0, %v7776
        %v7778 = vpop.f32.mrb[0].mxu0
        %7779 = vmatprep.mubr.f32.mxu0 0.0
        %7780 = vmatmul.mubr.f32.gmra.mrb[0].mxu0 %v7558
        %v7781 = vpop.f32.mrb[0].mxu0
        %v7782 = vadd.f32 0.0, %v7781
        %v7783 = vpop.f32.mrb[0].mxu0
        %7784 = vmatprep.mubr.f32.mxu0 0.0
        %7785 = vmatmul.mubr.f32.gmra.mrb[0].mxu0 %v7559
        %v7786 = vpop.f32.mrb[0].mxu0
        %v7787 = vadd.f32 0.0, %v7786
        %v7788 = vpop.f32.mrb[0].mxu0
        %7789 = vmatprep.mubr.f32.mxu0 0.0
        %7790 = vmatmul.mubr.f32.gmra.mrb[0].mxu0 %v7560
        %v7791 = vpop.f32.mrb[0].mxu0
        %v7792 = vadd.f32 0.0, %v7791
        %v7793 = vpop.f32.mrb[0].mxu0
        %7794 = vmatprep.mubr.f32.mxu0 0.0
        %7795 = vmatmul.mubr.f32.gmra.mrb[0].mxu0 %v7561
        %v7796 = vpop.f32.mrb[0].mxu0
        %v7797 = vadd.f32 0.0, %v7796
        %v7798 = vpop.f32.mrb[0].mxu0
        %7799 = vmatprep.mubr.f32.mxu0 0.0
        %7800 = vmatmul.mubr.f32.gmra.mrb[0].mxu0 %v7562
        %v7801 = vpop.f32.mrb[0].mxu0
        %v7802 = vadd.f32 0.0, %v7801
        %v7803 = vpop.f32.mrb[0].mxu0
        %7804 = vdwg.mxu0
        %v7805 = vadd.f32 %v7499, %v7647
        %v7806 = vadd.f32 %v7500, %v7652
        %v7807 = vadd.f32 %v7501, %v7657
        %v7808 = vadd.f32 %v7502, %v7662
        %v7809 = vadd.f32 %v7503, %v7667
        %v7810 = vadd.f32 %v7504, %v7672
        %v7811 = vadd.f32 %v7505, %v7677
        %v7812 = vadd.f32 %v7506, %v7682
        %v7813 = vadd.f32 %v7507, %v7687
        %v7814 = vadd.f32 %v7508, %v7692
        %v7815 = vadd.f32 %v7509, %v7697
        %v7816 = vadd.f32 %v7510, %v7702
        %v7817 = vadd.f32 %v7511, %v7707
        %v7818 = vadd.f32 %v7512, %v7712
        %v7819 = vadd.f32 %v7513, %v7717
        %v7820 = vadd.f32 %v7514, %v7722
        %v7821 = vadd.f32 %v7515, %v7727
        %v7822 = vadd.f32 %v7516, %v7732
        %v7823 = vadd.f32 %v7517, %v7737
        %v7824 = vadd.f32 %v7518, %v7742
        %v7825 = vadd.f32 %v7519, %v7747
        %v7826 = vadd.f32 %v7520, %v7752
        %v7827 = vadd.f32 %v7521, %v7757
        %v7828 = vadd.f32 %v7522, %v7762
        %v7829 = vadd.f32 %v7523, %v7767
        %v7830 = vadd.f32 %v7524, %v7772
        %v7831 = vadd.f32 %v7525, %v7777
        %v7832 = vadd.f32 %v7526, %v7782
        %v7833 = vadd.f32 %v7527, %v7787
        %v7834 = vadd.f32 %v7528, %v7792
        %v7835 = vadd.f32 %v7529, %v7797
        %v7836 = vadd.f32 %v7530, %v7802
        %v7837 = vlaneseq
        %v7838 = vshrl.u32 %v7837, 7
        %v7839 = vsub.s32 4, %v7838
        %v7840 = vrot.slane %v341, %v7839
        %v7841 = vmul.f32 %v7805, %v7840
        %v7842 = vmul.f32 %v7806, %v7840
        %v7843 = vmul.f32 %v7807, %v7840
        %v7844 = vmul.f32 %v7808, %v7840
        %v7845 = vmul.f32 %v7809, %v7840
        %v7846 = vmul.f32 %v7810, %v7840
        %v7847 = vmul.f32 %v7811, %v7840
        %v7848 = vmul.f32 %v7812, %v7840
        %v7849 = vmul.f32 %v7813, %v7840
        %v7850 = vmul.f32 %v7814, %v7840
        %v7851 = vmul.f32 %v7815, %v7840
        %v7852 = vmul.f32 %v7816, %v7840
        %v7853 = vmul.f32 %v7817, %v7840
        %v7854 = vmul.f32 %v7818, %v7840
        %v7855 = vmul.f32 %v7819, %v7840
        %v7856 = vmul.f32 %v7820, %v7840
        %v7857 = vmul.f32 %v7821, %v7840
        %v7858 = vmul.f32 %v7822, %v7840
        %v7859 = vmul.f32 %v7823, %v7840
        %v7860 = vmul.f32 %v7824, %v7840
        %v7861 = vmul.f32 %v7825, %v7840
        %v7862 = vmul.f32 %v7826, %v7840
        %v7863 = vmul.f32 %v7827, %v7840
        %v7864 = vmul.f32 %v7828, %v7840
        %v7865 = vmul.f32 %v7829, %v7840
        %v7866 = vmul.f32 %v7830, %v7840
        %v7867 = vmul.f32 %v7831, %v7840
        %v7868 = vmul.f32 %v7832, %v7840
        %v7869 = vmul.f32 %v7833, %v7840
        %v7870 = vmul.f32 %v7834, %v7840
        %v7871 = vmul.f32 %v7835, %v7840
        %v7872 = vmul.f32 %v7836, %v7840
        %v7873 = vlaneseq
        %v7874 = vshrl.u32 %v7873, 7
        %v7875 = vsub.s32 5, %v7874
        %v7876 = vrot.slane %v341, %v7875
        %v7877 = vadd.f32 %v7841, %v7876
        %v7878 = vadd.f32 %v7842, %v7876
        %v7879 = vadd.f32 %v7843, %v7876
        %v7880 = vadd.f32 %v7844, %v7876
        %v7881 = vadd.f32 %v7845, %v7876
        %v7882 = vadd.f32 %v7846, %v7876
        %v7883 = vadd.f32 %v7847, %v7876
        %v7884 = vadd.f32 %v7848, %v7876
        %v7885 = vadd.f32 %v7849, %v7876
        %v7886 = vadd.f32 %v7850, %v7876
        %v7887 = vadd.f32 %v7851, %v7876
        %v7888 = vadd.f32 %v7852, %v7876
        %v7889 = vadd.f32 %v7853, %v7876
        %v7890 = vadd.f32 %v7854, %v7876
        %v7891 = vadd.f32 %v7855, %v7876
        %v7892 = vadd.f32 %v7856, %v7876
        %v7893 = vadd.f32 %v7857, %v7876
        %v7894 = vadd.f32 %v7858, %v7876
        %v7895 = vadd.f32 %v7859, %v7876
        %v7896 = vadd.f32 %v7860, %v7876
        %v7897 = vadd.f32 %v7861, %v7876
        %v7898 = vadd.f32 %v7862, %v7876
        %v7899 = vadd.f32 %v7863, %v7876
        %v7900 = vadd.f32 %v7864, %v7876
        %v7901 = vadd.f32 %v7865, %v7876
        %v7902 = vadd.f32 %v7866, %v7876
        %v7903 = vadd.f32 %v7867, %v7876
        %v7904 = vadd.f32 %v7868, %v7876
        %v7905 = vadd.f32 %v7869, %v7876
        %v7906 = vadd.f32 %v7870, %v7876
        %v7907 = vadd.f32 %v7871, %v7876
        %v7908 = vadd.f32 %v7872, %v7876
        %7909 = vst [vmem:[%s340] sm:$0xff] %v7877
        %7910 = vst [vmem:[%s340 + $0x8] sm:$0xff] %v7878
        %7911 = vst [vmem:[%s340 + $0x10] sm:$0xff] %v7879
        %7912 = vst [vmem:[%s340 + $0x18] sm:$0xff] %v7880
        %7913 = vst [vmem:[%s340 + $0x20] sm:$0xff] %v7881
        %7914 = vst [vmem:[%s340 + $0x28] sm:$0xff] %v7882
        %7915 = vst [vmem:[%s340 + $0x30] sm:$0xff] %v7883
        %7916 = vst [vmem:[%s340 + $0x38] sm:$0xff] %v7884
        %7917 = vst [vmem:[%s340 + $0x40] sm:$0xff] %v7885
        %7918 = vst [vmem:[%s340 + $0x48] sm:$0xff] %v7886
        %7919 = vst [vmem:[%s340 + $0x50] sm:$0xff] %v7887
        %7920 = vst [vmem:[%s340 + $0x58] sm:$0xff] %v7888
        %7921 = vst [vmem:[%s340 + $0x60] sm:$0xff] %v7889
        %7922 = vst [vmem:[%s340 + $0x68] sm:$0xff] %v7890
        %7923 = vst [vmem:[%s340 + $0x70] sm:$0xff] %v7891
        %7924 = vst [vmem:[%s340 + $0x78] sm:$0xff] %v7892
        %7925 = vst [vmem:[%s340 + $0x80] sm:$0xff] %v7893
        %7926 = vst [vmem:[%s340 + $0x88] sm:$0xff] %v7894
        %7927 = vst [vmem:[%s340 + $0x90] sm:$0xff] %v7895
        %7928 = vst [vmem:[%s340 + $0x98] sm:$0xff] %v7896
        %7929 = vst [vmem:[%s340 + $0xa0] sm:$0xff] %v7897
        %7930 = vst [vmem:[%s340 + $0xa8] sm:$0xff] %v7898
        %7931 = vst [vmem:[%s340 + $0xb0] sm:$0xff] %v7899
        %7932 = vst [vmem:[%s340 + $0xb8] sm:$0xff] %v7900
        %7933 = vst [vmem:[%s340 + $0xc0] sm:$0xff] %v7901
        %7934 = vst [vmem:[%s340 + $0xc8] sm:$0xff] %v7902
        %7935 = vst [vmem:[%s340 + $0xd0] sm:$0xff] %v7903
        %7936 = vst [vmem:[%s340 + $0xd8] sm:$0xff] %v7904
        %7937 = vst [vmem:[%s340 + $0xe0] sm:$0xff] %v7905
        %7938 = vst [vmem:[%s340 + $0xe8] sm:$0xff] %v7906
        %7939 = vst [vmem:[%s340 + $0xf0] sm:$0xff] %v7907
        %7940 = vst [vmem:[%s340 + $0xf8] sm:$0xff] %v7908
        %s7941 = sand.u32 %s186, 1
        %s7942 = scalar_lea.sflag [#allocation6], %s7941
        %s7943 = sand.u32 %s186, 1
        %s7944 = smul.addr %s7943, 256
        %s7945 = scalar_lea.vmem [#allocation12], %s7944
        // Predicated region
        $region65: #{tpu_custom_call.1} parent=47 // pred_check
          %p7946 = pneg %p196
        $region66: #{tpu_custom_call.1} parent=47 // pred_check_branch
          %7948 = sbr.rel (%p7946) target = $region68
        $region67: #{tpu_custom_call.1} parent=47 // pred_region
          %s7950 = ssub.s32 4096, 4096
          %7951 = vsyncadd %s7942, %s7950
          %s7952 = smul.addr %s26, 32
          %s7953 = smul.addr %s7952, 128
          %s7954 = scalar_lea.hbm %s7, %s7953
          %s7955 = sshll.u32 %s7945, 4
          %s7956 = int_to_ptr.vmem [resolvable:$true] %s7955
          %7961 = dma.vmem_to_hbm [thread:$0]  %s7956, 4096, %s7954, %s7942, 128, 128, 8
        $region68: #{tpu_custom_call.1} parent=47 // pred_fallthru
          _
      $region48: #{tpu_custom_call.1} parent=5 // pred_fallthru
        _
      %p7962 = scmp.le.s32.totalorder 2, %s21
      // Predicated region
      $region69: #{tpu_custom_call.1} parent=5 // pred_check
        %p7963 = pneg %p7962
      $region70: #{tpu_custom_call.1} parent=5 // pred_check_branch
        %7965 = sbr.rel (%p7963) target = $region72
      $region71: #{tpu_custom_call.1} parent=5 // pred_region
        %s7966 = ssub.s32 %s21, 2
        // Predicated region
        $region73: #{tpu_custom_call.1} parent=71 // pred_check
          %p7967 = pneg %p202
        $region74: #{tpu_custom_call.1} parent=71 // pred_check_branch
          %7969 = sbr.rel (%p7967) target = $region76
        $region75: #{tpu_custom_call.1} parent=71 // pred_region
          %s7970 = sand.u32 %s187, 1
          %s7971 = scalar_lea.sflag [#allocation6], %s7970
          %s7972 = sand.u32 %s187, 1
          %s7973 = smul.addr %s7972, 256
          %s7974 = scalar_lea.vmem [#allocation12], %s7973
          %7975 = dma.done %s7971, 4096
        $region76: #{tpu_custom_call.1} parent=71 // pred_fallthru
          _
      $region72: #{tpu_custom_call.1} parent=5 // pred_fallthru
        _
    $region6: #{tpu_custom_call.1} parent=1 // loop_footer
      %s25 = sadd.s32 1, %s21
    $region7: #{tpu_custom_call.1} parent=1 // loop_footer_branch
      %20 = sbr.rel target = $region3
    $region8: #{tpu_custom_call.1} parent=1 // loop_exit
      _
    %7976 = vsyncpa [#allocation5], 1
    %s7977 = scalar_lea.sflag [#allocation5], 1
    %7978 = vsyncpa %s7977, 1
    %7979 = vsyncpa [#allocation8], 1
    %7980 = vsyncpa [#allocation11], 1
    %7981 = vsyncpa [#allocation6], 1
    %s7982 = scalar_lea.sflag [#allocation6], 1
    %7983 = vsyncpa %s7982, 1

</llo_original>
